<compile_context>
chip_gen: v6e
topology: v6e:2x2x1
jax: 0.10.0
libtpu: 0.0.40
codegen_flags: <defaults>
</compile_context>

<pallas_src>
import functools

import jax
import jax.numpy as jnp
from jax.experimental import pallas as pl
from jax.experimental.pallas import tpu as pltpu

VMEM = pltpu.MemorySpace.VMEM


# ----------------------------------------------------------------------------
# Fused kernel: projection + Linear + triangle head + full decoder
# ----------------------------------------------------------------------------
def _fused_kernel(B, base, nlevels, feat_ref, proj_w_ref, proj_sc_ref,
                  proj_sh_ref, lin_w_ref, lin_b_ref, tri_w_ref, tri_b_ref,
                  eye_ref, *refs):
    """Whole post-encoder forward for one batch tile of B samples.

    Decoder activations use an "l-major" row layout: row m = l*B + b holds the
    torch value x[b, :, l].  In that layout the PeriodicUpsample1D circular pad
    is a rotation of whole B-row blocks and the even/odd interleave is a
    concatenation of B-row blocks, so everything stays simple slices/concats
    plus 2-D bf16 matmuls.  All outputs accumulate into one lane-dense
    (B, 128k) f32 slab written with a single store.
    """
    f32 = jnp.float32
    bf16 = jnp.bfloat16
    n_stem = nlevels - 1
    stem_refs = refs[:3 * n_stem]
    leaf_refs = refs[3 * n_stem:3 * n_stem + 2 * nlevels]
    out_ref = refs[3 * n_stem + 2 * nlevels]
    out_w = out_ref.shape[2]

    # ---- projection: Conv2d(Ce,16,1) + folded eval-BN (+conv bias) + ReLU ----
    w_proj = proj_w_ref[...]                        # (16, Ce)  bf16
    p_sc = proj_sc_ref[...]                         # (16, 1)   f32
    p_sh = proj_sh_ref[...]                         # (16, 1)   f32
    zs = []
    for b in range(B):                              # B matmuls: M=16, K=Ce, N=HW
        z = jnp.dot(w_proj, feat_ref[b].astype(bf16),
                    preferred_element_type=f32)     # (16, HW)
        z = jnp.maximum(z * p_sc + p_sh, 0.0)
        zs.append(z.astype(bf16))

    # ---- Linear(16*HW, 3*base) + ReLU, batched with M=B ----------------------
    # lin_w_ref is pre-packed to (16, HW, 3*base) with column index l*base + c,
    # so torch's channel-major Flatten and .view(-1, base, 3) need no in-kernel
    # relayout: the contraction loops the 16 projection channels.
    acc = jnp.zeros((B, 3 * base), f32)
    for c in range(16):
        lhs_c = jnp.concatenate([zs[b][c:c + 1, :] for b in range(B)], axis=0)
        acc = acc + jnp.dot(lhs_c, lin_w_ref[c], preferred_element_type=f32)
    p = jnp.maximum(acc + lin_b_ref[...], 0.0)      # (B, 3*base) f32

    # x0 in l-major rows: row l*B + b  <->  torch x[b, :, l]
    h = jnp.concatenate([p[:, l * base:(l + 1) * base] for l in range(3)],
                        axis=0)                     # (3B, base) f32

    out_acc = jnp.zeros((B, out_w), f32)

    # ---- base triangle: sigmoid(Conv1d(base, 2, 1)); lanes (x0,y0,...,x2,y2) -
    tri = jax.nn.sigmoid(
        jnp.dot(h.astype(bf16), tri_w_ref[...], preferred_element_type=f32)
        + tri_b_ref[...])                           # (3B, 2)
    for l in range(3):
        for d in range(2):
            out_acc = out_acc + (tri[l * B:(l + 1) * B, d:d + 1]
                                 * eye_ref[2 * l + d:2 * l + d + 1, :])

    # ---- decoder: stems (PeriodicUpsample1D + BN + ReLU) + DecodeLeaf heads --
    L = 3
    col = 6
    for i in range(nlevels):
        # DecodeLeaf i: Conv1d(C,1,1) as a VPU lane reduce, then 0.5*scale*tanh
        w_row = leaf_refs[2 * i][...]               # (1, C_i)  f32
        lp = leaf_refs[2 * i + 1]                   # (1, 2) = [bias, 0.5*scale]
        z = jnp.sum(h * w_row, axis=-1, keepdims=True) + lp[0:1, 0:1]  # (L*B,1)
        diff = lp[0:1, 1:2] * jnp.tanh(z)
        for l in range(L):
            out_acc = out_acc + (diff[l * B:(l + 1) * B, :]
                                 * eye_ref[col + l:col + l + 1, :])
        col += L

        if i < n_stem:
            w3 = stem_refs[3 * i]                   # (3, Cin, Cout) bf16
            s_sc = stem_refs[3 * i + 1][...]        # (1, Cout) f32
            s_sh = stem_refs[3 * i + 2][...]        # (1, Cout) f32 (bias folded)
            hb = h.astype(bf16)
            M = L * B
            # circular pad x[(l-1) mod L]: rotate whole B-row blocks by one
            h_prev = jnp.concatenate([hb[M - B:, :], hb[:M - B, :]], axis=0)
            even = jnp.maximum(
                (jnp.dot(h_prev, w3[0], preferred_element_type=f32)
                 + jnp.dot(hb, w3[2], preferred_element_type=f32)) * s_sc + s_sh,
                0.0)
            odd = jnp.maximum(
                jnp.dot(hb, w3[1], preferred_element_type=f32) * s_sc + s_sh,
                0.0)
            # upsample interleave (even, odd, even, odd, ...) over B-row blocks
            parts = []
            for l in range(L):
                parts.append(even[l * B:(l + 1) * B, :])
                parts.append(odd[l * B:(l + 1) * B, :])
            h = jnp.concatenate(parts, axis=0)      # (2*L*B, Cout) f32
            L = 2 * L

    out_ref[0] = out_acc                            # single lane-dense store


# ----------------------------------------------------------------------------
# Plain-XLA polygon construction (tiny [N, <=96, 2] tensors)
# ----------------------------------------------------------------------------
def _add_resolution(V, diff, rot):
    """V: [N, nv, 2], diff: [N, nv] -> [N, 2*nv, 2] (matches PyTorch exactly)."""
    N, nv, _ = V.shape
    V_next = jnp.roll(V, -1, axis=1)
    V_mid = (V + V_next) * 0.5
    d = V_next - V
    V_dir = d / jnp.sqrt(jnp.sum(d * d, axis=2, keepdims=True))
    V_per = jnp.matmul(V_dir, rot)
    V_new = V_mid + V_per * diff[..., None]
    return jnp.stack([V, V_new], axis=2).reshape(N, 2 * nv, 2)


# ----------------------------------------------------------------------------
# Model wrapper
# ----------------------------------------------------------------------------
def _pick_batch_tile(n, cap):
    """Largest divisor of n, <= cap, that still leaves >=2 grid steps."""
    best = 1
    for b in range(1, min(n, cap) + 1):
        if n % b == 0 and (n // b >= 2 or n == 1):
            best = b
    return best


def polygon_net_forward(prep, feat, *, base, nlevels, max_batch_tile=8):
    """feat: [N, C_enc, H, W] (or [N, C_enc, H*W]) encoder feature map.

    bf16 features are preferred (avoids an extra HBM pass); f32 is accepted and
    cast inside the kernel after the DMA.
    """
    if feat.ndim == 4:
        n0, c0, h0, w0 = feat.shape
        feat = feat.reshape(n0, c0, h0 * w0)        # trailing-dim merge: free
    N, Ce, HW = feat.shape

    # batch tile: amortizes per-step overhead, keeps >=2 steps for v7x's 2 TCs,
    # and stays well under the VMEM limit on every generation.
    B = _pick_batch_tile(N, max_batch_tile)
    G = N // B

    Ls = [3 * (2 ** i) for i in range(nlevels)]
    out_w = 128 * ((6 + sum(Ls) + 127) // 128)

    weights = [prep["proj_w"], prep["proj_scale"], prep["proj_shift"],
               prep["lin_w"], prep["lin_b"], prep["tri_w"], prep["tri_b"],
               prep["eye"]]
    for sp in prep["stems"]:
        weights += [sp["w3"], sp["scale"], sp["shift"]]
    for lp in prep["leaves"]:
        weights += [lp["w_row"], lp["p"]]

    # advisory cost estimate so XLA can overlap the kernel with surrounding ops
    flops = (2 * N * 16 * Ce * HW + 2 * N * 16 * HW * 3 * base
             + 2 * N * 3 * base * 2)
    cin = base
    for i in range(nlevels - 1):
        flops += 2 * N * Ls[i] * cin * (cin // 2) * 3
        cin //= 2
    cin = base
    for i in range(nlevels):
        flops += 2 * N * Ls[i] * cin
        cin //= 2
    bytes_accessed = int(feat.size) * feat.dtype.itemsize + N * out_w * 4
    for wgt in weights:
        bytes_accessed += int(wgt.size) * wgt.dtype.itemsize
    cost = pl.CostEstimate(flops=int(flops),
                           transcendentals=int(N * (6 + sum(Ls))),
                           bytes_accessed=int(bytes_accessed))

    slab = pl.pallas_call(
        functools.partial(_fused_kernel, B, base, nlevels),
        out_shape=jax.ShapeDtypeStruct((G, B, out_w), jnp.float32),
        grid=(G,),
        in_specs=([pl.BlockSpec((B, Ce, HW), lambda g: (g, 0, 0))]
                  + [pl.BlockSpec(memory_space=VMEM)] * len(weights)),
        out_specs=pl.BlockSpec((1, B, out_w), lambda g: (g, 0, 0)),
        compiler_params=pltpu.CompilerParams(
            dimension_semantics=("parallel",),
            vmem_limit_bytes=48 * 1024 * 1024),
        cost_estimate=cost,
    )(feat, *weights)

    # unpack the lane-dense slab in plain XLA
    slab = slab.reshape(N, out_w)
    tri = slab[:, 0:6].reshape(N, 3, 2)
    leaves = []
    col = 6
    for L in Ls:
        leaves.append(slab[:, col:col + L])
        col += L

    # polygon construction (tiny tensors) stays in plain XLA
    V = tri
    for diff in leaves:
        V = _add_resolution(V, diff, prep["rot"])
    return V + prep["offsets"]


# ----------------------------------------------------------------------------
# Parameter construction / one-time preparation (folding, packing, casting)
# ----------------------------------------------------------------------------
def init_params(key, *, c_enc, h, w, base, nlevels):
    keys = jax.random.split(key, 10)

    def rnd(k, shape, scale=0.05):
        return scale * jax.random.normal(k, shape, dtype=jnp.float32)

    eps = 1e-5
    npoints = 3 + 3 * (2 ** nlevels - 1)
    params = {}
    # projection conv (1x1): torch weight [16, Ce, 1, 1] squeezed -> [16, Ce]
    params["proj_w"] = rnd(keys[0], (16, c_enc))
    params["proj_b"] = rnd(keys[1], (16,))
    # BN2d(16) default init (gamma=1, beta=0, mean=0, var=1), pre-folded s/t:
    params["proj_bn_s"] = jnp.ones((16,), jnp.float32) / jnp.sqrt(1.0 + eps)
    params["proj_bn_t"] = jnp.zeros((16,), jnp.float32)
    # Linear(16*h*w, 3*base): torch [out, in] stored transposed [in, out]
    params["lin_w"] = rnd(keys[2], (16 * h * w, 3 * base))
    params["lin_b"] = rnd(keys[3], (3 * base,))
    # Conv1d(base, 2, 1): torch weight [2, base, 1] squeezed -> [2, base]
    params["tri_w"] = rnd(keys[4], (2, base))
    params["tri_b"] = rnd(keys[5], (2,))

    stems = []
    ks = jax.random.split(keys[6], max(nlevels - 1, 1))
    for i in range(nlevels - 1):
        cin = base // (2 ** i)
        cout = base // (2 ** (i + 1))
        k1, k2 = jax.random.split(ks[i])
        stems.append(dict(
            w=rnd(k1, (cout, cin, 3)),      # torch Conv1d weight layout
            b=rnd(k2, (cout,)),
            bn_s=jnp.ones((cout,), jnp.float32) / jnp.sqrt(1.0 + eps),
            bn_t=jnp.zeros((cout,), jnp.float32)))
    params["stems"] = stems

    leaves = []
    kl = jax.random.split(keys[7], nlevels)
    for i in range(nlevels):
        cin = base // (2 ** i)
        k1, k2 = jax.random.split(kl[i])
        leaves.append(dict(
            w=rnd(k1, (cin,)),
            b=rnd(k2, (1,)),
            scale=jnp.full((1,), 0.5, jnp.float32)))   # DecodeLeaf.scale init
    params["leaves"] = leaves

    params["offsets"] = 1e-4 * jax.random.uniform(keys[8], (npoints, 2),
                                                  dtype=jnp.float32)
    params["rot"] = jnp.array([[0.0, -1.0], [1.0, 0.0]], jnp.float32)
    return params


def prepare_params(params):
    """One-time host-side prep: fold BN, pack/cast weights, hoist constants."""
    prep = {}
    nlevels = len(params["leaves"])

    # projection: bf16 MXU weight, f32 per-channel scale/shift (bias folded)
    prep["proj_w"] = params["proj_w"].astype(jnp.bfloat16)
    s = params["proj_bn_s"]
    prep["proj_scale"] = s.reshape(-1, 1)
    prep["proj_shift"] = (params["proj_b"] * s + params["proj_bn_t"]).reshape(-1, 1)

    # Linear: pack to (16, HW, 3*base) with column index l*base + c so that the
    # torch channel-major Flatten and .view(-1, base, 3) are free.
    Wl = params["lin_w"]                                  # (16*HW, 3*base)
    K, threebase = Wl.shape
    HW = K // 16
    base = threebase // 3
    prep["lin_w"] = (Wl.reshape(16, HW, base, 3)
                       .transpose(0, 1, 3, 2)
                       .reshape(16, HW, 3 * base)).astype(jnp.bfloat16)
    prep["lin_b"] = params["lin_b"].reshape(base, 3).T.reshape(1, 3 * base)

    prep["tri_w"] = jnp.transpose(params["tri_w"]).astype(jnp.bfloat16)  # (base,2)
    prep["tri_b"] = params["tri_b"].reshape(1, 2)

    stems = []
    for sp in params["stems"]:
        ss = sp["bn_s"]
        stems.append(dict(
            w3=jnp.transpose(sp["w"], (2, 1, 0)).astype(jnp.bfloat16),  # (3,Cin,Cout)
            scale=ss.reshape(1, -1),
            shift=(sp["b"] * ss + sp["bn_t"]).reshape(1, -1)))
    prep["stems"] = stems

    leaves = []
    for lp in params["leaves"]:
        leaves.append(dict(
            w_row=lp["w"].reshape(1, -1),                 # (1, C_i) f32
            p=jnp.stack([lp["b"][0], 0.5 * lp["scale"][0]]).reshape(1, 2)))
    prep["leaves"] = leaves

    # one-hot row table for lane placement of packed outputs (hoisted constant)
    out_w = 128 * ((6 + 3 * (2 ** nlevels - 1) + 127) // 128)
    prep["eye"] = jnp.eye(out_w, dtype=jnp.float32)

    prep["offsets"] = params["offsets"]
    prep["rot"] = params["rot"]
    return prep


if __name__ == "__main__":
    # small stand-in for the real [N, 2048, 7, 7] encoder output
    N, C_ENC, H, W = 4, 64, 7, 7
    BASE, NLEVELS = 32, 5            # npoints = 3 + 3*(2^5 - 1) = 96

    key = jax.random.PRNGKey(0)
    pkey, xkey = jax.random.split(key)
    params = init_params(pkey, c_enc=C_ENC, h=H, w=W, base=BASE, nlevels=NLEVELS)
    prep = prepare_params(params)
    feat = jax.random.normal(xkey, (N, C_ENC, H, W),
                             dtype=jnp.float32).astype(jnp.bfloat16)

    fwd = jax.jit(functools.partial(polygon_net_forward, base=BASE,
                                    nlevels=NLEVELS))
    V = fwd(prep, feat)
    V = jax.block_until_ready(V)
    assert V.shape == (N, 3 + 3 * (2 ** NLEVELS - 1), 2), V.shape
    assert bool(jnp.all(jnp.isfinite(V)))
    print("KERNEL_OK")
</pallas_src>

<mosaic_0001>
module attributes {stable_mosaic.version = 11 : i64} {
  func.func @_fused_kernel(%arg0: i32, %arg1: memref<2x64x49xbf16, #tpu.memory_space<vmem>>, %arg2: memref<16x64xbf16, #tpu.memory_space<vmem>>, %arg3: memref<16x1xf32, #tpu.memory_space<vmem>>, %arg4: memref<16x1xf32, #tpu.memory_space<vmem>>, %arg5: memref<16x49x96xbf16, #tpu.memory_space<vmem>>, %arg6: memref<1x96xf32, #tpu.memory_space<vmem>>, %arg7: memref<32x2xbf16, #tpu.memory_space<vmem>>, %arg8: memref<1x2xf32, #tpu.memory_space<vmem>>, %arg9: memref<128x128xf32, #tpu.memory_space<vmem>>, %arg10: memref<3x32x16xbf16, #tpu.memory_space<vmem>>, %arg11: memref<1x16xf32, #tpu.memory_space<vmem>>, %arg12: memref<1x16xf32, #tpu.memory_space<vmem>>, %arg13: memref<3x16x8xbf16, #tpu.memory_space<vmem>>, %arg14: memref<1x8xf32, #tpu.memory_space<vmem>>, %arg15: memref<1x8xf32, #tpu.memory_space<vmem>>, %arg16: memref<3x8x4xbf16, #tpu.memory_space<vmem>>, %arg17: memref<1x4xf32, #tpu.memory_space<vmem>>, %arg18: memref<1x4xf32, #tpu.memory_space<vmem>>, %arg19: memref<3x4x2xbf16, #tpu.memory_space<vmem>>, %arg20: memref<1x2xf32, #tpu.memory_space<vmem>>, %arg21: memref<1x2xf32, #tpu.memory_space<vmem>>, %arg22: memref<1x32xf32, #tpu.memory_space<vmem>>, %arg23: memref<1x2xf32, #tpu.memory_space<vmem>>, %arg24: memref<1x16xf32, #tpu.memory_space<vmem>>, %arg25: memref<1x2xf32, #tpu.memory_space<vmem>>, %arg26: memref<1x8xf32, #tpu.memory_space<vmem>>, %arg27: memref<1x2xf32, #tpu.memory_space<vmem>>, %arg28: memref<1x4xf32, #tpu.memory_space<vmem>>, %arg29: memref<1x2xf32, #tpu.memory_space<vmem>>, %arg30: memref<1x2xf32, #tpu.memory_space<vmem>>, %arg31: memref<1x2xf32, #tpu.memory_space<vmem>>, %arg32: memref<1x2x128xf32, #tpu.memory_space<vmem>>) attributes {dimension_semantics = [#tpu.dimension_semantics<parallel>], iteration_bounds = array<i64: 2>, scalar_prefetch = 0 : i64, scratch_operands = 0 : i64, tpu.core_type = #tpu.core_type<tc>, window_params = [{transform_indices = @transform_0, window_bounds = array<i64: 2, 64, 49>}, {pipeline_mode = #tpu.pipeline_mode<synchronous>, transform_indices = @transform_1, window_bounds = array<i64: 16, 64>}, {pipeline_mode = #tpu.pipeline_mode<synchronous>, transform_indices = @transform_2, window_bounds = array<i64: 16, 1>}, {pipeline_mode = #tpu.pipeline_mode<synchronous>, transform_indices = @transform_3, window_bounds = array<i64: 16, 1>}, {pipeline_mode = #tpu.pipeline_mode<synchronous>, transform_indices = @transform_4, window_bounds = array<i64: 16, 49, 96>}, {pipeline_mode = #tpu.pipeline_mode<synchronous>, transform_indices = @transform_5, window_bounds = array<i64: 1, 96>}, {pipeline_mode = #tpu.pipeline_mode<synchronous>, transform_indices = @transform_6, window_bounds = array<i64: 32, 2>}, {pipeline_mode = #tpu.pipeline_mode<synchronous>, transform_indices = @transform_7, window_bounds = array<i64: 1, 2>}, {pipeline_mode = #tpu.pipeline_mode<synchronous>, transform_indices = @transform_8, window_bounds = array<i64: 128, 128>}, {pipeline_mode = #tpu.pipeline_mode<synchronous>, transform_indices = @transform_9, window_bounds = array<i64: 3, 32, 16>}, {pipeline_mode = #tpu.pipeline_mode<synchronous>, transform_indices = @transform_10, window_bounds = array<i64: 1, 16>}, {pipeline_mode = #tpu.pipeline_mode<synchronous>, transform_indices = @transform_11, window_bounds = array<i64: 1, 16>}, {pipeline_mode = #tpu.pipeline_mode<synchronous>, transform_indices = @transform_12, window_bounds = array<i64: 3, 16, 8>}, {pipeline_mode = #tpu.pipeline_mode<synchronous>, transform_indices = @transform_13, window_bounds = array<i64: 1, 8>}, {pipeline_mode = #tpu.pipeline_mode<synchronous>, transform_indices = @transform_14, window_bounds = array<i64: 1, 8>}, {pipeline_mode = #tpu.pipeline_mode<synchronous>, transform_indices = @transform_15, window_bounds = array<i64: 3, 8, 4>}, {pipeline_mode = #tpu.pipeline_mode<synchronous>, transform_indices = @transform_16, window_bounds = array<i64: 1, 4>}, {pipeline_mode = #tpu.pipeline_mode<synchronous>, transform_indices = @transform_17, window_bounds = array<i64: 1, 4>}, {pipeline_mode = #tpu.pipeline_mode<synchronous>, transform_indices = @transform_18, window_bounds = array<i64: 3, 4, 2>}, {pipeline_mode = #tpu.pipeline_mode<synchronous>, transform_indices = @transform_19, window_bounds = array<i64: 1, 2>}, {pipeline_mode = #tpu.pipeline_mode<synchronous>, transform_indices = @transform_20, window_bounds = array<i64: 1, 2>}, {pipeline_mode = #tpu.pipeline_mode<synchronous>, transform_indices = @transform_21, window_bounds = array<i64: 1, 32>}, {pipeline_mode = #tpu.pipeline_mode<synchronous>, transform_indices = @transform_22, window_bounds = array<i64: 1, 2>}, {pipeline_mode = #tpu.pipeline_mode<synchronous>, transform_indices = @transform_23, window_bounds = array<i64: 1, 16>}, {pipeline_mode = #tpu.pipeline_mode<synchronous>, transform_indices = @transform_24, window_bounds = array<i64: 1, 2>}, {pipeline_mode = #tpu.pipeline_mode<synchronous>, transform_indices = @transform_25, window_bounds = array<i64: 1, 8>}, {pipeline_mode = #tpu.pipeline_mode<synchronous>, transform_indices = @transform_26, window_bounds = array<i64: 1, 2>}, {pipeline_mode = #tpu.pipeline_mode<synchronous>, transform_indices = @transform_27, window_bounds = array<i64: 1, 4>}, {pipeline_mode = #tpu.pipeline_mode<synchronous>, transform_indices = @transform_28, window_bounds = array<i64: 1, 2>}, {pipeline_mode = #tpu.pipeline_mode<synchronous>, transform_indices = @transform_29, window_bounds = array<i64: 1, 2>}, {pipeline_mode = #tpu.pipeline_mode<synchronous>, transform_indices = @transform_30, window_bounds = array<i64: 1, 2>}, {transform_indices = @transform_31, window_bounds = array<i64: 1, 2, 128>}]} {
    %c0 = arith.constant 0 : index
    %c0_0 = arith.constant 0 : index
    %0 = vector.load %arg2[%c0, %c0_0] : memref<16x64xbf16, #tpu.memory_space<vmem>>, vector<16x64xbf16>
    %c0_1 = arith.constant 0 : index
    %c0_2 = arith.constant 0 : index
    %1 = vector.load %arg3[%c0_1, %c0_2] : memref<16x1xf32, #tpu.memory_space<vmem>>, vector<16x1xf32>
    %c0_3 = arith.constant 0 : index
    %c0_4 = arith.constant 0 : index
    %2 = vector.load %arg4[%c0_3, %c0_4] : memref<16x1xf32, #tpu.memory_space<vmem>>, vector<16x1xf32>
    %c0_5 = arith.constant 0 : index
    %c0_6 = arith.constant 0 : index
    %c0_7 = arith.constant 0 : index
    %3 = vector.load %arg1[%c0_5, %c0_6, %c0_7] : memref<2x64x49xbf16, #tpu.memory_space<vmem>>, vector<1x64x49xbf16>
    %4 = vector.shape_cast %3 : vector<1x64x49xbf16> to vector<64x49xbf16>
    %cst = arith.constant dense<0.000000e+00> : vector<16x49xf32>
    %5 = tpu.matmul %0, %4, %cst {dimension_numbers = #tpu.dot_dimension_numbers<[1], [0], [0], [1], [0, 0, 1, 1], [], []>} : vector<16x64xbf16>, vector<64x49xbf16>, vector<16x49xf32> -> vector<16x49xf32>
    %6 = vector.broadcast %1 : vector<16x1xf32> to vector<16x49xf32>
    %7 = arith.mulf %5, %6 : vector<16x49xf32>
    %8 = vector.broadcast %2 : vector<16x1xf32> to vector<16x49xf32>
    %9 = arith.addf %7, %8 : vector<16x49xf32>
    %cst_8 = arith.constant 0.000000e+00 : f32
    %10 = vector.broadcast %cst_8 : f32 to vector<16x49xf32>
    %11 = arith.maximumf %9, %10 : vector<16x49xf32>
    %12 = arith.truncf %11 : vector<16x49xf32> to vector<16x49xbf16>
    %c1 = arith.constant 1 : index
    %c0_9 = arith.constant 0 : index
    %c0_10 = arith.constant 0 : index
    %13 = vector.load %arg1[%c1, %c0_9, %c0_10] : memref<2x64x49xbf16, #tpu.memory_space<vmem>>, vector<1x64x49xbf16>
    %14 = vector.shape_cast %13 : vector<1x64x49xbf16> to vector<64x49xbf16>
    %cst_11 = arith.constant dense<0.000000e+00> : vector<16x49xf32>
    %15 = tpu.matmul %0, %14, %cst_11 {dimension_numbers = #tpu.dot_dimension_numbers<[1], [0], [0], [1], [0, 0, 1, 1], [], []>} : vector<16x64xbf16>, vector<64x49xbf16>, vector<16x49xf32> -> vector<16x49xf32>
    %16 = vector.broadcast %1 : vector<16x1xf32> to vector<16x49xf32>
    %17 = arith.mulf %15, %16 : vector<16x49xf32>
    %18 = vector.broadcast %2 : vector<16x1xf32> to vector<16x49xf32>
    %19 = arith.addf %17, %18 : vector<16x49xf32>
    %cst_12 = arith.constant 0.000000e+00 : f32
    %20 = vector.broadcast %cst_12 : f32 to vector<16x49xf32>
    %21 = arith.maximumf %19, %20 : vector<16x49xf32>
    %22 = arith.truncf %21 : vector<16x49xf32> to vector<16x49xbf16>
    %cst_13 = arith.constant 0.000000e+00 : f32
    %23 = vector.broadcast %cst_13 : f32 to vector<2x96xf32>
    %24 = vector.extract_strided_slice %12 {offsets = [0, 0], sizes = [1, 49], strides = [1, 1]} : vector<16x49xbf16> to vector<1x49xbf16>
    %25 = vector.extract_strided_slice %22 {offsets = [0, 0], sizes = [1, 49], strides = [1, 1]} : vector<16x49xbf16> to vector<1x49xbf16>
    %26 = tpu.concatenate %24, %25 in 0 : vector<1x49xbf16>, vector<1x49xbf16> -> vector<2x49xbf16>
    %c0_14 = arith.constant 0 : index
    %c0_15 = arith.constant 0 : index
    %c0_16 = arith.constant 0 : index
    %27 = vector.load %arg5[%c0_14, %c0_15, %c0_16] : memref<16x49x96xbf16, #tpu.memory_space<vmem>>, vector<1x49x96xbf16>
    %28 = vector.shape_cast %27 : vector<1x49x96xbf16> to vector<49x96xbf16>
    %cst_17 = arith.constant dense<0.000000e+00> : vector<2x96xf32>
    %29 = tpu.matmul %26, %28, %cst_17 {dimension_numbers = #tpu.dot_dimension_numbers<[1], [0], [0], [1], [0, 0, 1, 1], [], []>} : vector<2x49xbf16>, vector<49x96xbf16>, vector<2x96xf32> -> vector<2x96xf32>
    %30 = arith.addf %23, %29 : vector<2x96xf32>
    %31 = vector.extract_strided_slice %12 {offsets = [1, 0], sizes = [1, 49], strides = [1, 1]} : vector<16x49xbf16> to vector<1x49xbf16>
    %32 = vector.extract_strided_slice %22 {offsets = [1, 0], sizes = [1, 49], strides = [1, 1]} : vector<16x49xbf16> to vector<1x49xbf16>
    %33 = tpu.concatenate %31, %32 in 0 : vector<1x49xbf16>, vector<1x49xbf16> -> vector<2x49xbf16>
    %c1_18 = arith.constant 1 : index
    %c0_19 = arith.constant 0 : index
    %c0_20 = arith.constant 0 : index
    %34 = vector.load %arg5[%c1_18, %c0_19, %c0_20] : memref<16x49x96xbf16, #tpu.memory_space<vmem>>, vector<1x49x96xbf16>
    %35 = vector.shape_cast %34 : vector<1x49x96xbf16> to vector<49x96xbf16>
    %cst_21 = arith.constant dense<0.000000e+00> : vector<2x96xf32>
    %36 = tpu.matmul %33, %35, %cst_21 {dimension_numbers = #tpu.dot_dimension_numbers<[1], [0], [0], [1], [0, 0, 1, 1], [], []>} : vector<2x49xbf16>, vector<49x96xbf16>, vector<2x96xf32> -> vector<2x96xf32>
    %37 = arith.addf %30, %36 : vector<2x96xf32>
    %38 = vector.extract_strided_slice %12 {offsets = [2, 0], sizes = [1, 49], strides = [1, 1]} : vector<16x49xbf16> to vector<1x49xbf16>
    %39 = vector.extract_strided_slice %22 {offsets = [2, 0], sizes = [1, 49], strides = [1, 1]} : vector<16x49xbf16> to vector<1x49xbf16>
    %40 = tpu.concatenate %38, %39 in 0 : vector<1x49xbf16>, vector<1x49xbf16> -> vector<2x49xbf16>
    %c2 = arith.constant 2 : index
    %c0_22 = arith.constant 0 : index
    %c0_23 = arith.constant 0 : index
    %41 = vector.load %arg5[%c2, %c0_22, %c0_23] : memref<16x49x96xbf16, #tpu.memory_space<vmem>>, vector<1x49x96xbf16>
    %42 = vector.shape_cast %41 : vector<1x49x96xbf16> to vector<49x96xbf16>
    %cst_24 = arith.constant dense<0.000000e+00> : vector<2x96xf32>
    %43 = tpu.matmul %40, %42, %cst_24 {dimension_numbers = #tpu.dot_dimension_numbers<[1], [0], [0], [1], [0, 0, 1, 1], [], []>} : vector<2x49xbf16>, vector<49x96xbf16>, vector<2x96xf32> -> vector<2x96xf32>
    %44 = arith.addf %37, %43 : vector<2x96xf32>
    %45 = vector.extract_strided_slice %12 {offsets = [3, 0], sizes = [1, 49], strides = [1, 1]} : vector<16x49xbf16> to vector<1x49xbf16>
    %46 = vector.extract_strided_slice %22 {offsets = [3, 0], sizes = [1, 49], strides = [1, 1]} : vector<16x49xbf16> to vector<1x49xbf16>
    %47 = tpu.concatenate %45, %46 in 0 : vector<1x49xbf16>, vector<1x49xbf16> -> vector<2x49xbf16>
    %c3 = arith.constant 3 : index
    %c0_25 = arith.constant 0 : index
    %c0_26 = arith.constant 0 : index
    %48 = vector.load %arg5[%c3, %c0_25, %c0_26] : memref<16x49x96xbf16, #tpu.memory_space<vmem>>, vector<1x49x96xbf16>
    %49 = vector.shape_cast %48 : vector<1x49x96xbf16> to vector<49x96xbf16>
    %cst_27 = arith.constant dense<0.000000e+00> : vector<2x96xf32>
    %50 = tpu.matmul %47, %49, %cst_27 {dimension_numbers = #tpu.dot_dimension_numbers<[1], [0], [0], [1], [0, 0, 1, 1], [], []>} : vector<2x49xbf16>, vector<49x96xbf16>, vector<2x96xf32> -> vector<2x96xf32>
    %51 = arith.addf %44, %50 : vector<2x96xf32>
    %52 = vector.extract_strided_slice %12 {offsets = [4, 0], sizes = [1, 49], strides = [1, 1]} : vector<16x49xbf16> to vector<1x49xbf16>
    %53 = vector.extract_strided_slice %22 {offsets = [4, 0], sizes = [1, 49], strides = [1, 1]} : vector<16x49xbf16> to vector<1x49xbf16>
    %54 = tpu.concatenate %52, %53 in 0 : vector<1x49xbf16>, vector<1x49xbf16> -> vector<2x49xbf16>
    %c4 = arith.constant 4 : index
    %c0_28 = arith.constant 0 : index
    %c0_29 = arith.constant 0 : index
    %55 = vector.load %arg5[%c4, %c0_28, %c0_29] : memref<16x49x96xbf16, #tpu.memory_space<vmem>>, vector<1x49x96xbf16>
    %56 = vector.shape_cast %55 : vector<1x49x96xbf16> to vector<49x96xbf16>
    %cst_30 = arith.constant dense<0.000000e+00> : vector<2x96xf32>
    %57 = tpu.matmul %54, %56, %cst_30 {dimension_numbers = #tpu.dot_dimension_numbers<[1], [0], [0], [1], [0, 0, 1, 1], [], []>} : vector<2x49xbf16>, vector<49x96xbf16>, vector<2x96xf32> -> vector<2x96xf32>
    %58 = arith.addf %51, %57 : vector<2x96xf32>
    %59 = vector.extract_strided_slice %12 {offsets = [5, 0], sizes = [1, 49], strides = [1, 1]} : vector<16x49xbf16> to vector<1x49xbf16>
    %60 = vector.extract_strided_slice %22 {offsets = [5, 0], sizes = [1, 49], strides = [1, 1]} : vector<16x49xbf16> to vector<1x49xbf16>
    %61 = tpu.concatenate %59, %60 in 0 : vector<1x49xbf16>, vector<1x49xbf16> -> vector<2x49xbf16>
    %c5 = arith.constant 5 : index
    %c0_31 = arith.constant 0 : index
    %c0_32 = arith.constant 0 : index
    %62 = vector.load %arg5[%c5, %c0_31, %c0_32] : memref<16x49x96xbf16, #tpu.memory_space<vmem>>, vector<1x49x96xbf16>
    %63 = vector.shape_cast %62 : vector<1x49x96xbf16> to vector<49x96xbf16>
    %cst_33 = arith.constant dense<0.000000e+00> : vector<2x96xf32>
    %64 = tpu.matmul %61, %63, %cst_33 {dimension_numbers = #tpu.dot_dimension_numbers<[1], [0], [0], [1], [0, 0, 1, 1], [], []>} : vector<2x49xbf16>, vector<49x96xbf16>, vector<2x96xf32> -> vector<2x96xf32>
    %65 = arith.addf %58, %64 : vector<2x96xf32>
    %66 = vector.extract_strided_slice %12 {offsets = [6, 0], sizes = [1, 49], strides = [1, 1]} : vector<16x49xbf16> to vector<1x49xbf16>
    %67 = vector.extract_strided_slice %22 {offsets = [6, 0], sizes = [1, 49], strides = [1, 1]} : vector<16x49xbf16> to vector<1x49xbf16>
    %68 = tpu.concatenate %66, %67 in 0 : vector<1x49xbf16>, vector<1x49xbf16> -> vector<2x49xbf16>
    %c6 = arith.constant 6 : index
    %c0_34 = arith.constant 0 : index
    %c0_35 = arith.constant 0 : index
    %69 = vector.load %arg5[%c6, %c0_34, %c0_35] : memref<16x49x96xbf16, #tpu.memory_space<vmem>>, vector<1x49x96xbf16>
    %70 = vector.shape_cast %69 : vector<1x49x96xbf16> to vector<49x96xbf16>
    %cst_36 = arith.constant dense<0.000000e+00> : vector<2x96xf32>
    %71 = tpu.matmul %68, %70, %cst_36 {dimension_numbers = #tpu.dot_dimension_numbers<[1], [0], [0], [1], [0, 0, 1, 1], [], []>} : vector<2x49xbf16>, vector<49x96xbf16>, vector<2x96xf32> -> vector<2x96xf32>
    %72 = arith.addf %65, %71 : vector<2x96xf32>
    %73 = vector.extract_strided_slice %12 {offsets = [7, 0], sizes = [1, 49], strides = [1, 1]} : vector<16x49xbf16> to vector<1x49xbf16>
    %74 = vector.extract_strided_slice %22 {offsets = [7, 0], sizes = [1, 49], strides = [1, 1]} : vector<16x49xbf16> to vector<1x49xbf16>
    %75 = tpu.concatenate %73, %74 in 0 : vector<1x49xbf16>, vector<1x49xbf16> -> vector<2x49xbf16>
    %c7 = arith.constant 7 : index
    %c0_37 = arith.constant 0 : index
    %c0_38 = arith.constant 0 : index
    %76 = vector.load %arg5[%c7, %c0_37, %c0_38] : memref<16x49x96xbf16, #tpu.memory_space<vmem>>, vector<1x49x96xbf16>
    %77 = vector.shape_cast %76 : vector<1x49x96xbf16> to vector<49x96xbf16>
    %cst_39 = arith.constant dense<0.000000e+00> : vector<2x96xf32>
    %78 = tpu.matmul %75, %77, %cst_39 {dimension_numbers = #tpu.dot_dimension_numbers<[1], [0], [0], [1], [0, 0, 1, 1], [], []>} : vector<2x49xbf16>, vector<49x96xbf16>, vector<2x96xf32> -> vector<2x96xf32>
    %79 = arith.addf %72, %78 : vector<2x96xf32>
    %80 = vector.extract_strided_slice %12 {offsets = [8, 0], sizes = [1, 49], strides = [1, 1]} : vector<16x49xbf16> to vector<1x49xbf16>
    %81 = vector.extract_strided_slice %22 {offsets = [8, 0], sizes = [1, 49], strides = [1, 1]} : vector<16x49xbf16> to vector<1x49xbf16>
    %82 = tpu.concatenate %80, %81 in 0 : vector<1x49xbf16>, vector<1x49xbf16> -> vector<2x49xbf16>
    %c8 = arith.constant 8 : index
    %c0_40 = arith.constant 0 : index
    %c0_41 = arith.constant 0 : index
    %83 = vector.load %arg5[%c8, %c0_40, %c0_41] : memref<16x49x96xbf16, #tpu.memory_space<vmem>>, vector<1x49x96xbf16>
    %84 = vector.shape_cast %83 : vector<1x49x96xbf16> to vector<49x96xbf16>
    %cst_42 = arith.constant dense<0.000000e+00> : vector<2x96xf32>
    %85 = tpu.matmul %82, %84, %cst_42 {dimension_numbers = #tpu.dot_dimension_numbers<[1], [0], [0], [1], [0, 0, 1, 1], [], []>} : vector<2x49xbf16>, vector<49x96xbf16>, vector<2x96xf32> -> vector<2x96xf32>
    %86 = arith.addf %79, %85 : vector<2x96xf32>
    %87 = vector.extract_strided_slice %12 {offsets = [9, 0], sizes = [1, 49], strides = [1, 1]} : vector<16x49xbf16> to vector<1x49xbf16>
    %88 = vector.extract_strided_slice %22 {offsets = [9, 0], sizes = [1, 49], strides = [1, 1]} : vector<16x49xbf16> to vector<1x49xbf16>
    %89 = tpu.concatenate %87, %88 in 0 : vector<1x49xbf16>, vector<1x49xbf16> -> vector<2x49xbf16>
    %c9 = arith.constant 9 : index
    %c0_43 = arith.constant 0 : index
    %c0_44 = arith.constant 0 : index
    %90 = vector.load %arg5[%c9, %c0_43, %c0_44] : memref<16x49x96xbf16, #tpu.memory_space<vmem>>, vector<1x49x96xbf16>
    %91 = vector.shape_cast %90 : vector<1x49x96xbf16> to vector<49x96xbf16>
    %cst_45 = arith.constant dense<0.000000e+00> : vector<2x96xf32>
    %92 = tpu.matmul %89, %91, %cst_45 {dimension_numbers = #tpu.dot_dimension_numbers<[1], [0], [0], [1], [0, 0, 1, 1], [], []>} : vector<2x49xbf16>, vector<49x96xbf16>, vector<2x96xf32> -> vector<2x96xf32>
    %93 = arith.addf %86, %92 : vector<2x96xf32>
    %94 = vector.extract_strided_slice %12 {offsets = [10, 0], sizes = [1, 49], strides = [1, 1]} : vector<16x49xbf16> to vector<1x49xbf16>
    %95 = vector.extract_strided_slice %22 {offsets = [10, 0], sizes = [1, 49], strides = [1, 1]} : vector<16x49xbf16> to vector<1x49xbf16>
    %96 = tpu.concatenate %94, %95 in 0 : vector<1x49xbf16>, vector<1x49xbf16> -> vector<2x49xbf16>
    %c10 = arith.constant 10 : index
    %c0_46 = arith.constant 0 : index
    %c0_47 = arith.constant 0 : index
    %97 = vector.load %arg5[%c10, %c0_46, %c0_47] : memref<16x49x96xbf16, #tpu.memory_space<vmem>>, vector<1x49x96xbf16>
    %98 = vector.shape_cast %97 : vector<1x49x96xbf16> to vector<49x96xbf16>
    %cst_48 = arith.constant dense<0.000000e+00> : vector<2x96xf32>
    %99 = tpu.matmul %96, %98, %cst_48 {dimension_numbers = #tpu.dot_dimension_numbers<[1], [0], [0], [1], [0, 0, 1, 1], [], []>} : vector<2x49xbf16>, vector<49x96xbf16>, vector<2x96xf32> -> vector<2x96xf32>
    %100 = arith.addf %93, %99 : vector<2x96xf32>
    %101 = vector.extract_strided_slice %12 {offsets = [11, 0], sizes = [1, 49], strides = [1, 1]} : vector<16x49xbf16> to vector<1x49xbf16>
    %102 = vector.extract_strided_slice %22 {offsets = [11, 0], sizes = [1, 49], strides = [1, 1]} : vector<16x49xbf16> to vector<1x49xbf16>
    %103 = tpu.concatenate %101, %102 in 0 : vector<1x49xbf16>, vector<1x49xbf16> -> vector<2x49xbf16>
    %c11 = arith.constant 11 : index
    %c0_49 = arith.constant 0 : index
    %c0_50 = arith.constant 0 : index
    %104 = vector.load %arg5[%c11, %c0_49, %c0_50] : memref<16x49x96xbf16, #tpu.memory_space<vmem>>, vector<1x49x96xbf16>
    %105 = vector.shape_cast %104 : vector<1x49x96xbf16> to vector<49x96xbf16>
    %cst_51 = arith.constant dense<0.000000e+00> : vector<2x96xf32>
    %106 = tpu.matmul %103, %105, %cst_51 {dimension_numbers = #tpu.dot_dimension_numbers<[1], [0], [0], [1], [0, 0, 1, 1], [], []>} : vector<2x49xbf16>, vector<49x96xbf16>, vector<2x96xf32> -> vector<2x96xf32>
    %107 = arith.addf %100, %106 : vector<2x96xf32>
    %108 = vector.extract_strided_slice %12 {offsets = [12, 0], sizes = [1, 49], strides = [1, 1]} : vector<16x49xbf16> to vector<1x49xbf16>
    %109 = vector.extract_strided_slice %22 {offsets = [12, 0], sizes = [1, 49], strides = [1, 1]} : vector<16x49xbf16> to vector<1x49xbf16>
    %110 = tpu.concatenate %108, %109 in 0 : vector<1x49xbf16>, vector<1x49xbf16> -> vector<2x49xbf16>
    %c12 = arith.constant 12 : index
    %c0_52 = arith.constant 0 : index
    %c0_53 = arith.constant 0 : index
    %111 = vector.load %arg5[%c12, %c0_52, %c0_53] : memref<16x49x96xbf16, #tpu.memory_space<vmem>>, vector<1x49x96xbf16>
    %112 = vector.shape_cast %111 : vector<1x49x96xbf16> to vector<49x96xbf16>
    %cst_54 = arith.constant dense<0.000000e+00> : vector<2x96xf32>
    %113 = tpu.matmul %110, %112, %cst_54 {dimension_numbers = #tpu.dot_dimension_numbers<[1], [0], [0], [1], [0, 0, 1, 1], [], []>} : vector<2x49xbf16>, vector<49x96xbf16>, vector<2x96xf32> -> vector<2x96xf32>
    %114 = arith.addf %107, %113 : vector<2x96xf32>
    %115 = vector.extract_strided_slice %12 {offsets = [13, 0], sizes = [1, 49], strides = [1, 1]} : vector<16x49xbf16> to vector<1x49xbf16>
    %116 = vector.extract_strided_slice %22 {offsets = [13, 0], sizes = [1, 49], strides = [1, 1]} : vector<16x49xbf16> to vector<1x49xbf16>
    %117 = tpu.concatenate %115, %116 in 0 : vector<1x49xbf16>, vector<1x49xbf16> -> vector<2x49xbf16>
    %c13 = arith.constant 13 : index
    %c0_55 = arith.constant 0 : index
    %c0_56 = arith.constant 0 : index
    %118 = vector.load %arg5[%c13, %c0_55, %c0_56] : memref<16x49x96xbf16, #tpu.memory_space<vmem>>, vector<1x49x96xbf16>
    %119 = vector.shape_cast %118 : vector<1x49x96xbf16> to vector<49x96xbf16>
    %cst_57 = arith.constant dense<0.000000e+00> : vector<2x96xf32>
    %120 = tpu.matmul %117, %119, %cst_57 {dimension_numbers = #tpu.dot_dimension_numbers<[1], [0], [0], [1], [0, 0, 1, 1], [], []>} : vector<2x49xbf16>, vector<49x96xbf16>, vector<2x96xf32> -> vector<2x96xf32>
    %121 = arith.addf %114, %120 : vector<2x96xf32>
    %122 = vector.extract_strided_slice %12 {offsets = [14, 0], sizes = [1, 49], strides = [1, 1]} : vector<16x49xbf16> to vector<1x49xbf16>
    %123 = vector.extract_strided_slice %22 {offsets = [14, 0], sizes = [1, 49], strides = [1, 1]} : vector<16x49xbf16> to vector<1x49xbf16>
    %124 = tpu.concatenate %122, %123 in 0 : vector<1x49xbf16>, vector<1x49xbf16> -> vector<2x49xbf16>
    %c14 = arith.constant 14 : index
    %c0_58 = arith.constant 0 : index
    %c0_59 = arith.constant 0 : index
    %125 = vector.load %arg5[%c14, %c0_58, %c0_59] : memref<16x49x96xbf16, #tpu.memory_space<vmem>>, vector<1x49x96xbf16>
    %126 = vector.shape_cast %125 : vector<1x49x96xbf16> to vector<49x96xbf16>
    %cst_60 = arith.constant dense<0.000000e+00> : vector<2x96xf32>
    %127 = tpu.matmul %124, %126, %cst_60 {dimension_numbers = #tpu.dot_dimension_numbers<[1], [0], [0], [1], [0, 0, 1, 1], [], []>} : vector<2x49xbf16>, vector<49x96xbf16>, vector<2x96xf32> -> vector<2x96xf32>
    %128 = arith.addf %121, %127 : vector<2x96xf32>
    %129 = vector.extract_strided_slice %12 {offsets = [15, 0], sizes = [1, 49], strides = [1, 1]} : vector<16x49xbf16> to vector<1x49xbf16>
    %130 = vector.extract_strided_slice %22 {offsets = [15, 0], sizes = [1, 49], strides = [1, 1]} : vector<16x49xbf16> to vector<1x49xbf16>
    %131 = tpu.concatenate %129, %130 in 0 : vector<1x49xbf16>, vector<1x49xbf16> -> vector<2x49xbf16>
    %c15 = arith.constant 15 : index
    %c0_61 = arith.constant 0 : index
    %c0_62 = arith.constant 0 : index
    %132 = vector.load %arg5[%c15, %c0_61, %c0_62] : memref<16x49x96xbf16, #tpu.memory_space<vmem>>, vector<1x49x96xbf16>
    %133 = vector.shape_cast %132 : vector<1x49x96xbf16> to vector<49x96xbf16>
    %cst_63 = arith.constant dense<0.000000e+00> : vector<2x96xf32>
    %134 = tpu.matmul %131, %133, %cst_63 {dimension_numbers = #tpu.dot_dimension_numbers<[1], [0], [0], [1], [0, 0, 1, 1], [], []>} : vector<2x49xbf16>, vector<49x96xbf16>, vector<2x96xf32> -> vector<2x96xf32>
    %135 = arith.addf %128, %134 : vector<2x96xf32>
    %c0_64 = arith.constant 0 : index
    %c0_65 = arith.constant 0 : index
    %136 = vector.load %arg6[%c0_64, %c0_65] : memref<1x96xf32, #tpu.memory_space<vmem>>, vector<1x96xf32>
    %137 = vector.broadcast %136 : vector<1x96xf32> to vector<2x96xf32>
    %138 = arith.addf %135, %137 : vector<2x96xf32>
    %cst_66 = arith.constant 0.000000e+00 : f32
    %139 = vector.broadcast %cst_66 : f32 to vector<2x96xf32>
    %140 = arith.maximumf %138, %139 : vector<2x96xf32>
    %141 = vector.extract_strided_slice %140 {offsets = [0, 0], sizes = [2, 32], strides = [1, 1]} : vector<2x96xf32> to vector<2x32xf32>
    %142 = vector.extract_strided_slice %140 {offsets = [0, 32], sizes = [2, 32], strides = [1, 1]} : vector<2x96xf32> to vector<2x32xf32>
    %143 = vector.extract_strided_slice %140 {offsets = [0, 64], sizes = [2, 32], strides = [1, 1]} : vector<2x96xf32> to vector<2x32xf32>
    %144 = tpu.concatenate %141, %142, %143 in 0 : vector<2x32xf32>, vector<2x32xf32>, vector<2x32xf32> -> vector<6x32xf32>
    %cst_67 = arith.constant 0.000000e+00 : f32
    %145 = vector.broadcast %cst_67 : f32 to vector<2x128xf32>
    %146 = arith.truncf %144 : vector<6x32xf32> to vector<6x32xbf16>
    %c0_68 = arith.constant 0 : index
    %c0_69 = arith.constant 0 : index
    %147 = vector.load %arg7[%c0_68, %c0_69] : memref<32x2xbf16, #tpu.memory_space<vmem>>, vector<32x2xbf16>
    %cst_70 = arith.constant dense<0.000000e+00> : vector<6x2xf32>
    %148 = tpu.matmul %146, %147, %cst_70 {dimension_numbers = #tpu.dot_dimension_numbers<[1], [0], [0], [1], [0, 0, 1, 1], [], []>} : vector<6x32xbf16>, vector<32x2xbf16>, vector<6x2xf32> -> vector<6x2xf32>
    %c0_71 = arith.constant 0 : index
    %c0_72 = arith.constant 0 : index
    %149 = vector.load %arg8[%c0_71, %c0_72] : memref<1x2xf32, #tpu.memory_space<vmem>>, vector<1x2xf32>
    %150 = vector.broadcast %149 : vector<1x2xf32> to vector<6x2xf32>
    %151 = arith.addf %148, %150 : vector<6x2xf32>
    %152 = arith.negf %151 : vector<6x2xf32>
    %153 = math.exp %152 : vector<6x2xf32>
    %cst_73 = arith.constant 1.000000e+00 : f32
    %154 = vector.broadcast %cst_73 : f32 to vector<6x2xf32>
    %155 = arith.addf %154, %153 : vector<6x2xf32>
    %156 = arith.divf %154, %155 : vector<6x2xf32>
    %157 = vector.extract_strided_slice %156 {offsets = [0, 0], sizes = [2, 1], strides = [1, 1]} : vector<6x2xf32> to vector<2x1xf32>
    %c0_74 = arith.constant 0 : index
    %c0_75 = arith.constant 0 : index
    %158 = vector.load %arg9[%c0_74, %c0_75] : memref<128x128xf32, #tpu.memory_space<vmem>>, vector<1x128xf32>
    %159 = vector.broadcast %157 : vector<2x1xf32> to vector<2x128xf32>
    %160 = vector.broadcast %158 : vector<1x128xf32> to vector<2x128xf32>
    %161 = arith.mulf %159, %160 : vector<2x128xf32>
    %162 = arith.addf %145, %161 : vector<2x128xf32>
    %163 = vector.extract_strided_slice %156 {offsets = [0, 1], sizes = [2, 1], strides = [1, 1]} : vector<6x2xf32> to vector<2x1xf32>
    %c1_76 = arith.constant 1 : index
    %c0_77 = arith.constant 0 : index
    %164 = vector.load %arg9[%c1_76, %c0_77] : memref<128x128xf32, #tpu.memory_space<vmem>>, vector<1x128xf32>
    %165 = vector.broadcast %163 : vector<2x1xf32> to vector<2x128xf32>
    %166 = vector.broadcast %164 : vector<1x128xf32> to vector<2x128xf32>
    %167 = arith.mulf %165, %166 : vector<2x128xf32>
    %168 = arith.addf %162, %167 : vector<2x128xf32>
    %169 = vector.extract_strided_slice %156 {offsets = [2, 0], sizes = [2, 1], strides = [1, 1]} : vector<6x2xf32> to vector<2x1xf32>
    %c2_78 = arith.constant 2 : index
    %c0_79 = arith.constant 0 : index
    %170 = vector.load %arg9[%c2_78, %c0_79] : memref<128x128xf32, #tpu.memory_space<vmem>>, vector<1x128xf32>
    %171 = vector.broadcast %169 : vector<2x1xf32> to vector<2x128xf32>
    %172 = vector.broadcast %170 : vector<1x128xf32> to vector<2x128xf32>
    %173 = arith.mulf %171, %172 : vector<2x128xf32>
    %174 = arith.addf %168, %173 : vector<2x128xf32>
    %175 = vector.extract_strided_slice %156 {offsets = [2, 1], sizes = [2, 1], strides = [1, 1]} : vector<6x2xf32> to vector<2x1xf32>
    %c3_80 = arith.constant 3 : index
    %c0_81 = arith.constant 0 : index
    %176 = vector.load %arg9[%c3_80, %c0_81] : memref<128x128xf32, #tpu.memory_space<vmem>>, vector<1x128xf32>
    %177 = vector.broadcast %175 : vector<2x1xf32> to vector<2x128xf32>
    %178 = vector.broadcast %176 : vector<1x128xf32> to vector<2x128xf32>
    %179 = arith.mulf %177, %178 : vector<2x128xf32>
    %180 = arith.addf %174, %179 : vector<2x128xf32>
    %181 = vector.extract_strided_slice %156 {offsets = [4, 0], sizes = [2, 1], strides = [1, 1]} : vector<6x2xf32> to vector<2x1xf32>
    %c4_82 = arith.constant 4 : index
    %c0_83 = arith.constant 0 : index
    %182 = vector.load %arg9[%c4_82, %c0_83] : memref<128x128xf32, #tpu.memory_space<vmem>>, vector<1x128xf32>
    %183 = vector.broadcast %181 : vector<2x1xf32> to vector<2x128xf32>
    %184 = vector.broadcast %182 : vector<1x128xf32> to vector<2x128xf32>
    %185 = arith.mulf %183, %184 : vector<2x128xf32>
    %186 = arith.addf %180, %185 : vector<2x128xf32>
    %187 = vector.extract_strided_slice %156 {offsets = [4, 1], sizes = [2, 1], strides = [1, 1]} : vector<6x2xf32> to vector<2x1xf32>
    %c5_84 = arith.constant 5 : index
    %c0_85 = arith.constant 0 : index
    %188 = vector.load %arg9[%c5_84, %c0_85] : memref<128x128xf32, #tpu.memory_space<vmem>>, vector<1x128xf32>
    %189 = vector.broadcast %187 : vector<2x1xf32> to vector<2x128xf32>
    %190 = vector.broadcast %188 : vector<1x128xf32> to vector<2x128xf32>
    %191 = arith.mulf %189, %190 : vector<2x128xf32>
    %192 = arith.addf %186, %191 : vector<2x128xf32>
    %c0_86 = arith.constant 0 : index
    %c0_87 = arith.constant 0 : index
    %193 = vector.load %arg22[%c0_86, %c0_87] : memref<1x32xf32, #tpu.memory_space<vmem>>, vector<1x32xf32>
    %194 = vector.broadcast %193 : vector<1x32xf32> to vector<6x32xf32>
    %195 = arith.mulf %144, %194 : vector<6x32xf32>
    %cst_88 = arith.constant dense<0.000000e+00> : vector<6xf32>
    %196 = vector.multi_reduction <add>, %195, %cst_88 [1] : vector<6x32xf32> to vector<6xf32>
    %197 = vector.shape_cast %196 : vector<6xf32> to vector<6x1xf32>
    %c0_89 = arith.constant 0 : index
    %c0_90 = arith.constant 0 : index
    %198 = vector.load %arg23[%c0_89, %c0_90] : memref<1x2xf32, #tpu.memory_space<vmem>>, vector<1x1xf32>
    %199 = vector.broadcast %198 : vector<1x1xf32> to vector<6x1xf32>
    %200 = arith.addf %197, %199 : vector<6x1xf32>
    %c0_91 = arith.constant 0 : index
    %c1_92 = arith.constant 1 : index
    %201 = vector.load %arg23[%c0_91, %c1_92] : memref<1x2xf32, #tpu.memory_space<vmem>>, vector<1x1xf32>
    %202 = math.tanh %200 : vector<6x1xf32>
    %203 = vector.broadcast %201 : vector<1x1xf32> to vector<6x1xf32>
    %204 = arith.mulf %203, %202 : vector<6x1xf32>
    %205 = vector.extract_strided_slice %204 {offsets = [0, 0], sizes = [2, 1], strides = [1, 1]} : vector<6x1xf32> to vector<2x1xf32>
    %c6_93 = arith.constant 6 : index
    %c0_94 = arith.constant 0 : index
    %206 = vector.load %arg9[%c6_93, %c0_94] : memref<128x128xf32, #tpu.memory_space<vmem>>, vector<1x128xf32>
    %207 = vector.broadcast %205 : vector<2x1xf32> to vector<2x128xf32>
    %208 = vector.broadcast %206 : vector<1x128xf32> to vector<2x128xf32>
    %209 = arith.mulf %207, %208 : vector<2x128xf32>
    %210 = arith.addf %192, %209 : vector<2x128xf32>
    %211 = vector.extract_strided_slice %204 {offsets = [2, 0], sizes = [2, 1], strides = [1, 1]} : vector<6x1xf32> to vector<2x1xf32>
    %c7_95 = arith.constant 7 : index
    %c0_96 = arith.constant 0 : index
    %212 = vector.load %arg9[%c7_95, %c0_96] : memref<128x128xf32, #tpu.memory_space<vmem>>, vector<1x128xf32>
    %213 = vector.broadcast %211 : vector<2x1xf32> to vector<2x128xf32>
    %214 = vector.broadcast %212 : vector<1x128xf32> to vector<2x128xf32>
    %215 = arith.mulf %213, %214 : vector<2x128xf32>
    %216 = arith.addf %210, %215 : vector<2x128xf32>
    %217 = vector.extract_strided_slice %204 {offsets = [4, 0], sizes = [2, 1], strides = [1, 1]} : vector<6x1xf32> to vector<2x1xf32>
    %c8_97 = arith.constant 8 : index
    %c0_98 = arith.constant 0 : index
    %218 = vector.load %arg9[%c8_97, %c0_98] : memref<128x128xf32, #tpu.memory_space<vmem>>, vector<1x128xf32>
    %219 = vector.broadcast %217 : vector<2x1xf32> to vector<2x128xf32>
    %220 = vector.broadcast %218 : vector<1x128xf32> to vector<2x128xf32>
    %221 = arith.mulf %219, %220 : vector<2x128xf32>
    %222 = arith.addf %216, %221 : vector<2x128xf32>
    %c0_99 = arith.constant 0 : index
    %c0_100 = arith.constant 0 : index
    %223 = vector.load %arg11[%c0_99, %c0_100] : memref<1x16xf32, #tpu.memory_space<vmem>>, vector<1x16xf32>
    %c0_101 = arith.constant 0 : index
    %c0_102 = arith.constant 0 : index
    %224 = vector.load %arg12[%c0_101, %c0_102] : memref<1x16xf32, #tpu.memory_space<vmem>>, vector<1x16xf32>
    %225 = arith.truncf %144 : vector<6x32xf32> to vector<6x32xbf16>
    %226 = vector.extract_strided_slice %225 {offsets = [4, 0], sizes = [2, 32], strides = [1, 1]} : vector<6x32xbf16> to vector<2x32xbf16>
    %227 = vector.extract_strided_slice %225 {offsets = [0, 0], sizes = [4, 32], strides = [1, 1]} : vector<6x32xbf16> to vector<4x32xbf16>
    %228 = tpu.concatenate %226, %227 in 0 : vector<2x32xbf16>, vector<4x32xbf16> -> vector<6x32xbf16>
    %c0_103 = arith.constant 0 : index
    %c0_104 = arith.constant 0 : index
    %c0_105 = arith.constant 0 : index
    %229 = vector.load %arg10[%c0_103, %c0_104, %c0_105] : memref<3x32x16xbf16, #tpu.memory_space<vmem>>, vector<1x32x16xbf16>
    %230 = vector.shape_cast %229 : vector<1x32x16xbf16> to vector<32x16xbf16>
    %cst_106 = arith.constant dense<0.000000e+00> : vector<6x16xf32>
    %231 = tpu.matmul %228, %230, %cst_106 {dimension_numbers = #tpu.dot_dimension_numbers<[1], [0], [0], [1], [0, 0, 1, 1], [], []>} : vector<6x32xbf16>, vector<32x16xbf16>, vector<6x16xf32> -> vector<6x16xf32>
    %c2_107 = arith.constant 2 : index
    %c0_108 = arith.constant 0 : index
    %c0_109 = arith.constant 0 : index
    %232 = vector.load %arg10[%c2_107, %c0_108, %c0_109] : memref<3x32x16xbf16, #tpu.memory_space<vmem>>, vector<1x32x16xbf16>
    %233 = vector.shape_cast %232 : vector<1x32x16xbf16> to vector<32x16xbf16>
    %cst_110 = arith.constant dense<0.000000e+00> : vector<6x16xf32>
    %234 = tpu.matmul %225, %233, %cst_110 {dimension_numbers = #tpu.dot_dimension_numbers<[1], [0], [0], [1], [0, 0, 1, 1], [], []>} : vector<6x32xbf16>, vector<32x16xbf16>, vector<6x16xf32> -> vector<6x16xf32>
    %235 = arith.addf %231, %234 : vector<6x16xf32>
    %236 = vector.broadcast %223 : vector<1x16xf32> to vector<6x16xf32>
    %237 = arith.mulf %235, %236 : vector<6x16xf32>
    %238 = vector.broadcast %224 : vector<1x16xf32> to vector<6x16xf32>
    %239 = arith.addf %237, %238 : vector<6x16xf32>
    %cst_111 = arith.constant 0.000000e+00 : f32
    %240 = vector.broadcast %cst_111 : f32 to vector<6x16xf32>
    %241 = arith.maximumf %239, %240 : vector<6x16xf32>
    %c1_112 = arith.constant 1 : index
    %c0_113 = arith.constant 0 : index
    %c0_114 = arith.constant 0 : index
    %242 = vector.load %arg10[%c1_112, %c0_113, %c0_114] : memref<3x32x16xbf16, #tpu.memory_space<vmem>>, vector<1x32x16xbf16>
    %243 = vector.shape_cast %242 : vector<1x32x16xbf16> to vector<32x16xbf16>
    %cst_115 = arith.constant dense<0.000000e+00> : vector<6x16xf32>
    %244 = tpu.matmul %225, %243, %cst_115 {dimension_numbers = #tpu.dot_dimension_numbers<[1], [0], [0], [1], [0, 0, 1, 1], [], []>} : vector<6x32xbf16>, vector<32x16xbf16>, vector<6x16xf32> -> vector<6x16xf32>
    %245 = vector.broadcast %223 : vector<1x16xf32> to vector<6x16xf32>
    %246 = arith.mulf %244, %245 : vector<6x16xf32>
    %247 = vector.broadcast %224 : vector<1x16xf32> to vector<6x16xf32>
    %248 = arith.addf %246, %247 : vector<6x16xf32>
    %cst_116 = arith.constant 0.000000e+00 : f32
    %249 = vector.broadcast %cst_116 : f32 to vector<6x16xf32>
    %250 = arith.maximumf %248, %249 : vector<6x16xf32>
    %251 = vector.extract_strided_slice %241 {offsets = [0, 0], sizes = [2, 16], strides = [1, 1]} : vector<6x16xf32> to vector<2x16xf32>
    %252 = vector.extract_strided_slice %250 {offsets = [0, 0], sizes = [2, 16], strides = [1, 1]} : vector<6x16xf32> to vector<2x16xf32>
    %253 = vector.extract_strided_slice %241 {offsets = [2, 0], sizes = [2, 16], strides = [1, 1]} : vector<6x16xf32> to vector<2x16xf32>
    %254 = vector.extract_strided_slice %250 {offsets = [2, 0], sizes = [2, 16], strides = [1, 1]} : vector<6x16xf32> to vector<2x16xf32>
    %255 = vector.extract_strided_slice %241 {offsets = [4, 0], sizes = [2, 16], strides = [1, 1]} : vector<6x16xf32> to vector<2x16xf32>
    %256 = vector.extract_strided_slice %250 {offsets = [4, 0], sizes = [2, 16], strides = [1, 1]} : vector<6x16xf32> to vector<2x16xf32>
    %257 = tpu.concatenate %251, %252, %253, %254, %255, %256 in 0 : vector<2x16xf32>, vector<2x16xf32>, vector<2x16xf32>, vector<2x16xf32>, vector<2x16xf32>, vector<2x16xf32> -> vector<12x16xf32>
    %c0_117 = arith.constant 0 : index
    %c0_118 = arith.constant 0 : index
    %258 = vector.load %arg24[%c0_117, %c0_118] : memref<1x16xf32, #tpu.memory_space<vmem>>, vector<1x16xf32>
    %259 = vector.broadcast %258 : vector<1x16xf32> to vector<12x16xf32>
    %260 = arith.mulf %257, %259 : vector<12x16xf32>
    %cst_119 = arith.constant dense<0.000000e+00> : vector<12xf32>
    %261 = vector.multi_reduction <add>, %260, %cst_119 [1] : vector<12x16xf32> to vector<12xf32>
    %262 = vector.shape_cast %261 : vector<12xf32> to vector<12x1xf32>
    %c0_120 = arith.constant 0 : index
    %c0_121 = arith.constant 0 : index
    %263 = vector.load %arg25[%c0_120, %c0_121] : memref<1x2xf32, #tpu.memory_space<vmem>>, vector<1x1xf32>
    %264 = vector.broadcast %263 : vector<1x1xf32> to vector<12x1xf32>
    %265 = arith.addf %262, %264 : vector<12x1xf32>
    %c0_122 = arith.constant 0 : index
    %c1_123 = arith.constant 1 : index
    %266 = vector.load %arg25[%c0_122, %c1_123] : memref<1x2xf32, #tpu.memory_space<vmem>>, vector<1x1xf32>
    %267 = math.tanh %265 : vector<12x1xf32>
    %268 = vector.broadcast %266 : vector<1x1xf32> to vector<12x1xf32>
    %269 = arith.mulf %268, %267 : vector<12x1xf32>
    %270 = vector.extract_strided_slice %269 {offsets = [0, 0], sizes = [2, 1], strides = [1, 1]} : vector<12x1xf32> to vector<2x1xf32>
    %c9_124 = arith.constant 9 : index
    %c0_125 = arith.constant 0 : index
    %271 = vector.load %arg9[%c9_124, %c0_125] : memref<128x128xf32, #tpu.memory_space<vmem>>, vector<1x128xf32>
    %272 = vector.broadcast %270 : vector<2x1xf32> to vector<2x128xf32>
    %273 = vector.broadcast %271 : vector<1x128xf32> to vector<2x128xf32>
    %274 = arith.mulf %272, %273 : vector<2x128xf32>
    %275 = arith.addf %222, %274 : vector<2x128xf32>
    %276 = vector.extract_strided_slice %269 {offsets = [2, 0], sizes = [2, 1], strides = [1, 1]} : vector<12x1xf32> to vector<2x1xf32>
    %c10_126 = arith.constant 10 : index
    %c0_127 = arith.constant 0 : index
    %277 = vector.load %arg9[%c10_126, %c0_127] : memref<128x128xf32, #tpu.memory_space<vmem>>, vector<1x128xf32>
    %278 = vector.broadcast %276 : vector<2x1xf32> to vector<2x128xf32>
    %279 = vector.broadcast %277 : vector<1x128xf32> to vector<2x128xf32>
    %280 = arith.mulf %278, %279 : vector<2x128xf32>
    %281 = arith.addf %275, %280 : vector<2x128xf32>
    %282 = vector.extract_strided_slice %269 {offsets = [4, 0], sizes = [2, 1], strides = [1, 1]} : vector<12x1xf32> to vector<2x1xf32>
    %c11_128 = arith.constant 11 : index
    %c0_129 = arith.constant 0 : index
    %283 = vector.load %arg9[%c11_128, %c0_129] : memref<128x128xf32, #tpu.memory_space<vmem>>, vector<1x128xf32>
    %284 = vector.broadcast %282 : vector<2x1xf32> to vector<2x128xf32>
    %285 = vector.broadcast %283 : vector<1x128xf32> to vector<2x128xf32>
    %286 = arith.mulf %284, %285 : vector<2x128xf32>
    %287 = arith.addf %281, %286 : vector<2x128xf32>
    %288 = vector.extract_strided_slice %269 {offsets = [6, 0], sizes = [2, 1], strides = [1, 1]} : vector<12x1xf32> to vector<2x1xf32>
    %c12_130 = arith.constant 12 : index
    %c0_131 = arith.constant 0 : index
    %289 = vector.load %arg9[%c12_130, %c0_131] : memref<128x128xf32, #tpu.memory_space<vmem>>, vector<1x128xf32>
    %290 = vector.broadcast %288 : vector<2x1xf32> to vector<2x128xf32>
    %291 = vector.broadcast %289 : vector<1x128xf32> to vector<2x128xf32>
    %292 = arith.mulf %290, %291 : vector<2x128xf32>
    %293 = arith.addf %287, %292 : vector<2x128xf32>
    %294 = vector.extract_strided_slice %269 {offsets = [8, 0], sizes = [2, 1], strides = [1, 1]} : vector<12x1xf32> to vector<2x1xf32>
    %c13_132 = arith.constant 13 : index
    %c0_133 = arith.constant 0 : index
    %295 = vector.load %arg9[%c13_132, %c0_133] : memref<128x128xf32, #tpu.memory_space<vmem>>, vector<1x128xf32>
    %296 = vector.broadcast %294 : vector<2x1xf32> to vector<2x128xf32>
    %297 = vector.broadcast %295 : vector<1x128xf32> to vector<2x128xf32>
    %298 = arith.mulf %296, %297 : vector<2x128xf32>
    %299 = arith.addf %293, %298 : vector<2x128xf32>
    %300 = vector.extract_strided_slice %269 {offsets = [10, 0], sizes = [2, 1], strides = [1, 1]} : vector<12x1xf32> to vector<2x1xf32>
    %c14_134 = arith.constant 14 : index
    %c0_135 = arith.constant 0 : index
    %301 = vector.load %arg9[%c14_134, %c0_135] : memref<128x128xf32, #tpu.memory_space<vmem>>, vector<1x128xf32>
    %302 = vector.broadcast %300 : vector<2x1xf32> to vector<2x128xf32>
    %303 = vector.broadcast %301 : vector<1x128xf32> to vector<2x128xf32>
    %304 = arith.mulf %302, %303 : vector<2x128xf32>
    %305 = arith.addf %299, %304 : vector<2x128xf32>
    %c0_136 = arith.constant 0 : index
    %c0_137 = arith.constant 0 : index
    %306 = vector.load %arg14[%c0_136, %c0_137] : memref<1x8xf32, #tpu.memory_space<vmem>>, vector<1x8xf32>
    %c0_138 = arith.constant 0 : index
    %c0_139 = arith.constant 0 : index
    %307 = vector.load %arg15[%c0_138, %c0_139] : memref<1x8xf32, #tpu.memory_space<vmem>>, vector<1x8xf32>
    %308 = arith.truncf %257 : vector<12x16xf32> to vector<12x16xbf16>
    %309 = vector.extract_strided_slice %308 {offsets = [10, 0], sizes = [2, 16], strides = [1, 1]} : vector<12x16xbf16> to vector<2x16xbf16>
    %310 = vector.extract_strided_slice %308 {offsets = [0, 0], sizes = [10, 16], strides = [1, 1]} : vector<12x16xbf16> to vector<10x16xbf16>
    %311 = tpu.concatenate %309, %310 in 0 : vector<2x16xbf16>, vector<10x16xbf16> -> vector<12x16xbf16>
    %c0_140 = arith.constant 0 : index
    %c0_141 = arith.constant 0 : index
    %c0_142 = arith.constant 0 : index
    %312 = vector.load %arg13[%c0_140, %c0_141, %c0_142] : memref<3x16x8xbf16, #tpu.memory_space<vmem>>, vector<1x16x8xbf16>
    %313 = vector.shape_cast %312 : vector<1x16x8xbf16> to vector<16x8xbf16>
    %cst_143 = arith.constant dense<0.000000e+00> : vector<12x8xf32>
    %314 = tpu.matmul %311, %313, %cst_143 {dimension_numbers = #tpu.dot_dimension_numbers<[1], [0], [0], [1], [0, 0, 1, 1], [], []>} : vector<12x16xbf16>, vector<16x8xbf16>, vector<12x8xf32> -> vector<12x8xf32>
    %c2_144 = arith.constant 2 : index
    %c0_145 = arith.constant 0 : index
    %c0_146 = arith.constant 0 : index
    %315 = vector.load %arg13[%c2_144, %c0_145, %c0_146] : memref<3x16x8xbf16, #tpu.memory_space<vmem>>, vector<1x16x8xbf16>
    %316 = vector.shape_cast %315 : vector<1x16x8xbf16> to vector<16x8xbf16>
    %cst_147 = arith.constant dense<0.000000e+00> : vector<12x8xf32>
    %317 = tpu.matmul %308, %316, %cst_147 {dimension_numbers = #tpu.dot_dimension_numbers<[1], [0], [0], [1], [0, 0, 1, 1], [], []>} : vector<12x16xbf16>, vector<16x8xbf16>, vector<12x8xf32> -> vector<12x8xf32>
    %318 = arith.addf %314, %317 : vector<12x8xf32>
    %319 = vector.broadcast %306 : vector<1x8xf32> to vector<12x8xf32>
    %320 = arith.mulf %318, %319 : vector<12x8xf32>
    %321 = vector.broadcast %307 : vector<1x8xf32> to vector<12x8xf32>
    %322 = arith.addf %320, %321 : vector<12x8xf32>
    %cst_148 = arith.constant 0.000000e+00 : f32
    %323 = vector.broadcast %cst_148 : f32 to vector<12x8xf32>
    %324 = arith.maximumf %322, %323 : vector<12x8xf32>
    %c1_149 = arith.constant 1 : index
    %c0_150 = arith.constant 0 : index
    %c0_151 = arith.constant 0 : index
    %325 = vector.load %arg13[%c1_149, %c0_150, %c0_151] : memref<3x16x8xbf16, #tpu.memory_space<vmem>>, vector<1x16x8xbf16>
    %326 = vector.shape_cast %325 : vector<1x16x8xbf16> to vector<16x8xbf16>
    %cst_152 = arith.constant dense<0.000000e+00> : vector<12x8xf32>
    %327 = tpu.matmul %308, %326, %cst_152 {dimension_numbers = #tpu.dot_dimension_numbers<[1], [0], [0], [1], [0, 0, 1, 1], [], []>} : vector<12x16xbf16>, vector<16x8xbf16>, vector<12x8xf32> -> vector<12x8xf32>
    %328 = vector.broadcast %306 : vector<1x8xf32> to vector<12x8xf32>
    %329 = arith.mulf %327, %328 : vector<12x8xf32>
    %330 = vector.broadcast %307 : vector<1x8xf32> to vector<12x8xf32>
    %331 = arith.addf %329, %330 : vector<12x8xf32>
    %cst_153 = arith.constant 0.000000e+00 : f32
    %332 = vector.broadcast %cst_153 : f32 to vector<12x8xf32>
    %333 = arith.maximumf %331, %332 : vector<12x8xf32>
    %334 = vector.extract_strided_slice %324 {offsets = [0, 0], sizes = [2, 8], strides = [1, 1]} : vector<12x8xf32> to vector<2x8xf32>
    %335 = vector.extract_strided_slice %333 {offsets = [0, 0], sizes = [2, 8], strides = [1, 1]} : vector<12x8xf32> to vector<2x8xf32>
    %336 = vector.extract_strided_slice %324 {offsets = [2, 0], sizes = [2, 8], strides = [1, 1]} : vector<12x8xf32> to vector<2x8xf32>
    %337 = vector.extract_strided_slice %333 {offsets = [2, 0], sizes = [2, 8], strides = [1, 1]} : vector<12x8xf32> to vector<2x8xf32>
    %338 = vector.extract_strided_slice %324 {offsets = [4, 0], sizes = [2, 8], strides = [1, 1]} : vector<12x8xf32> to vector<2x8xf32>
    %339 = vector.extract_strided_slice %333 {offsets = [4, 0], sizes = [2, 8], strides = [1, 1]} : vector<12x8xf32> to vector<2x8xf32>
    %340 = vector.extract_strided_slice %324 {offsets = [6, 0], sizes = [2, 8], strides = [1, 1]} : vector<12x8xf32> to vector<2x8xf32>
    %341 = vector.extract_strided_slice %333 {offsets = [6, 0], sizes = [2, 8], strides = [1, 1]} : vector<12x8xf32> to vector<2x8xf32>
    %342 = vector.extract_strided_slice %324 {offsets = [8, 0], sizes = [2, 8], strides = [1, 1]} : vector<12x8xf32> to vector<2x8xf32>
    %343 = vector.extract_strided_slice %333 {offsets = [8, 0], sizes = [2, 8], strides = [1, 1]} : vector<12x8xf32> to vector<2x8xf32>
    %344 = vector.extract_strided_slice %324 {offsets = [10, 0], sizes = [2, 8], strides = [1, 1]} : vector<12x8xf32> to vector<2x8xf32>
    %345 = vector.extract_strided_slice %333 {offsets = [10, 0], sizes = [2, 8], strides = [1, 1]} : vector<12x8xf32> to vector<2x8xf32>
    %346 = tpu.concatenate %334, %335, %336, %337, %338, %339, %340, %341, %342, %343, %344, %345 in 0 : vector<2x8xf32>, vector<2x8xf32>, vector<2x8xf32>, vector<2x8xf32>, vector<2x8xf32>, vector<2x8xf32>, vector<2x8xf32>, vector<2x8xf32>, vector<2x8xf32>, vector<2x8xf32>, vector<2x8xf32>, vector<2x8xf32> -> vector<24x8xf32>
    %c0_154 = arith.constant 0 : index
    %c0_155 = arith.constant 0 : index
    %347 = vector.load %arg26[%c0_154, %c0_155] : memref<1x8xf32, #tpu.memory_space<vmem>>, vector<1x8xf32>
    %348 = vector.broadcast %347 : vector<1x8xf32> to vector<24x8xf32>
    %349 = arith.mulf %346, %348 : vector<24x8xf32>
    %cst_156 = arith.constant dense<0.000000e+00> : vector<24xf32>
    %350 = vector.multi_reduction <add>, %349, %cst_156 [1] : vector<24x8xf32> to vector<24xf32>
    %351 = vector.shape_cast %350 : vector<24xf32> to vector<24x1xf32>
    %c0_157 = arith.constant 0 : index
    %c0_158 = arith.constant 0 : index
    %352 = vector.load %arg27[%c0_157, %c0_158] : memref<1x2xf32, #tpu.memory_space<vmem>>, vector<1x1xf32>
    %353 = vector.broadcast %352 : vector<1x1xf32> to vector<24x1xf32>
    %354 = arith.addf %351, %353 : vector<24x1xf32>
    %c0_159 = arith.constant 0 : index
    %c1_160 = arith.constant 1 : index
    %355 = vector.load %arg27[%c0_159, %c1_160] : memref<1x2xf32, #tpu.memory_space<vmem>>, vector<1x1xf32>
    %356 = math.tanh %354 : vector<24x1xf32>
    %357 = vector.broadcast %355 : vector<1x1xf32> to vector<24x1xf32>
    %358 = arith.mulf %357, %356 : vector<24x1xf32>
    %359 = vector.extract_strided_slice %358 {offsets = [0, 0], sizes = [2, 1], strides = [1, 1]} : vector<24x1xf32> to vector<2x1xf32>
    %c15_161 = arith.constant 15 : index
    %c0_162 = arith.constant 0 : index
    %360 = vector.load %arg9[%c15_161, %c0_162] : memref<128x128xf32, #tpu.memory_space<vmem>>, vector<1x128xf32>
    %361 = vector.broadcast %359 : vector<2x1xf32> to vector<2x128xf32>
    %362 = vector.broadcast %360 : vector<1x128xf32> to vector<2x128xf32>
    %363 = arith.mulf %361, %362 : vector<2x128xf32>
    %364 = arith.addf %305, %363 : vector<2x128xf32>
    %365 = vector.extract_strided_slice %358 {offsets = [2, 0], sizes = [2, 1], strides = [1, 1]} : vector<24x1xf32> to vector<2x1xf32>
    %c16 = arith.constant 16 : index
    %c0_163 = arith.constant 0 : index
    %366 = vector.load %arg9[%c16, %c0_163] : memref<128x128xf32, #tpu.memory_space<vmem>>, vector<1x128xf32>
    %367 = vector.broadcast %365 : vector<2x1xf32> to vector<2x128xf32>
    %368 = vector.broadcast %366 : vector<1x128xf32> to vector<2x128xf32>
    %369 = arith.mulf %367, %368 : vector<2x128xf32>
    %370 = arith.addf %364, %369 : vector<2x128xf32>
    %371 = vector.extract_strided_slice %358 {offsets = [4, 0], sizes = [2, 1], strides = [1, 1]} : vector<24x1xf32> to vector<2x1xf32>
    %c17 = arith.constant 17 : index
    %c0_164 = arith.constant 0 : index
    %372 = vector.load %arg9[%c17, %c0_164] : memref<128x128xf32, #tpu.memory_space<vmem>>, vector<1x128xf32>
    %373 = vector.broadcast %371 : vector<2x1xf32> to vector<2x128xf32>
    %374 = vector.broadcast %372 : vector<1x128xf32> to vector<2x128xf32>
    %375 = arith.mulf %373, %374 : vector<2x128xf32>
    %376 = arith.addf %370, %375 : vector<2x128xf32>
    %377 = vector.extract_strided_slice %358 {offsets = [6, 0], sizes = [2, 1], strides = [1, 1]} : vector<24x1xf32> to vector<2x1xf32>
    %c18 = arith.constant 18 : index
    %c0_165 = arith.constant 0 : index
    %378 = vector.load %arg9[%c18, %c0_165] : memref<128x128xf32, #tpu.memory_space<vmem>>, vector<1x128xf32>
    %379 = vector.broadcast %377 : vector<2x1xf32> to vector<2x128xf32>
    %380 = vector.broadcast %378 : vector<1x128xf32> to vector<2x128xf32>
    %381 = arith.mulf %379, %380 : vector<2x128xf32>
    %382 = arith.addf %376, %381 : vector<2x128xf32>
    %383 = vector.extract_strided_slice %358 {offsets = [8, 0], sizes = [2, 1], strides = [1, 1]} : vector<24x1xf32> to vector<2x1xf32>
    %c19 = arith.constant 19 : index
    %c0_166 = arith.constant 0 : index
    %384 = vector.load %arg9[%c19, %c0_166] : memref<128x128xf32, #tpu.memory_space<vmem>>, vector<1x128xf32>
    %385 = vector.broadcast %383 : vector<2x1xf32> to vector<2x128xf32>
    %386 = vector.broadcast %384 : vector<1x128xf32> to vector<2x128xf32>
    %387 = arith.mulf %385, %386 : vector<2x128xf32>
    %388 = arith.addf %382, %387 : vector<2x128xf32>
    %389 = vector.extract_strided_slice %358 {offsets = [10, 0], sizes = [2, 1], strides = [1, 1]} : vector<24x1xf32> to vector<2x1xf32>
    %c20 = arith.constant 20 : index
    %c0_167 = arith.constant 0 : index
    %390 = vector.load %arg9[%c20, %c0_167] : memref<128x128xf32, #tpu.memory_space<vmem>>, vector<1x128xf32>
    %391 = vector.broadcast %389 : vector<2x1xf32> to vector<2x128xf32>
    %392 = vector.broadcast %390 : vector<1x128xf32> to vector<2x128xf32>
    %393 = arith.mulf %391, %392 : vector<2x128xf32>
    %394 = arith.addf %388, %393 : vector<2x128xf32>
    %395 = vector.extract_strided_slice %358 {offsets = [12, 0], sizes = [2, 1], strides = [1, 1]} : vector<24x1xf32> to vector<2x1xf32>
    %c21 = arith.constant 21 : index
    %c0_168 = arith.constant 0 : index
    %396 = vector.load %arg9[%c21, %c0_168] : memref<128x128xf32, #tpu.memory_space<vmem>>, vector<1x128xf32>
    %397 = vector.broadcast %395 : vector<2x1xf32> to vector<2x128xf32>
    %398 = vector.broadcast %396 : vector<1x128xf32> to vector<2x128xf32>
    %399 = arith.mulf %397, %398 : vector<2x128xf32>
    %400 = arith.addf %394, %399 : vector<2x128xf32>
    %401 = vector.extract_strided_slice %358 {offsets = [14, 0], sizes = [2, 1], strides = [1, 1]} : vector<24x1xf32> to vector<2x1xf32>
    %c22 = arith.constant 22 : index
    %c0_169 = arith.constant 0 : index
    %402 = vector.load %arg9[%c22, %c0_169] : memref<128x128xf32, #tpu.memory_space<vmem>>, vector<1x128xf32>
    %403 = vector.broadcast %401 : vector<2x1xf32> to vector<2x128xf32>
    %404 = vector.broadcast %402 : vector<1x128xf32> to vector<2x128xf32>
    %405 = arith.mulf %403, %404 : vector<2x128xf32>
    %406 = arith.addf %400, %405 : vector<2x128xf32>
    %407 = vector.extract_strided_slice %358 {offsets = [16, 0], sizes = [2, 1], strides = [1, 1]} : vector<24x1xf32> to vector<2x1xf32>
    %c23 = arith.constant 23 : index
    %c0_170 = arith.constant 0 : index
    %408 = vector.load %arg9[%c23, %c0_170] : memref<128x128xf32, #tpu.memory_space<vmem>>, vector<1x128xf32>
    %409 = vector.broadcast %407 : vector<2x1xf32> to vector<2x128xf32>
    %410 = vector.broadcast %408 : vector<1x128xf32> to vector<2x128xf32>
    %411 = arith.mulf %409, %410 : vector<2x128xf32>
    %412 = arith.addf %406, %411 : vector<2x128xf32>
    %413 = vector.extract_strided_slice %358 {offsets = [18, 0], sizes = [2, 1], strides = [1, 1]} : vector<24x1xf32> to vector<2x1xf32>
    %c24 = arith.constant 24 : index
    %c0_171 = arith.constant 0 : index
    %414 = vector.load %arg9[%c24, %c0_171] : memref<128x128xf32, #tpu.memory_space<vmem>>, vector<1x128xf32>
    %415 = vector.broadcast %413 : vector<2x1xf32> to vector<2x128xf32>
    %416 = vector.broadcast %414 : vector<1x128xf32> to vector<2x128xf32>
    %417 = arith.mulf %415, %416 : vector<2x128xf32>
    %418 = arith.addf %412, %417 : vector<2x128xf32>
    %419 = vector.extract_strided_slice %358 {offsets = [20, 0], sizes = [2, 1], strides = [1, 1]} : vector<24x1xf32> to vector<2x1xf32>
    %c25 = arith.constant 25 : index
    %c0_172 = arith.constant 0 : index
    %420 = vector.load %arg9[%c25, %c0_172] : memref<128x128xf32, #tpu.memory_space<vmem>>, vector<1x128xf32>
    %421 = vector.broadcast %419 : vector<2x1xf32> to vector<2x128xf32>
    %422 = vector.broadcast %420 : vector<1x128xf32> to vector<2x128xf32>
    %423 = arith.mulf %421, %422 : vector<2x128xf32>
    %424 = arith.addf %418, %423 : vector<2x128xf32>
    %425 = vector.extract_strided_slice %358 {offsets = [22, 0], sizes = [2, 1], strides = [1, 1]} : vector<24x1xf32> to vector<2x1xf32>
    %c26 = arith.constant 26 : index
    %c0_173 = arith.constant 0 : index
    %426 = vector.load %arg9[%c26, %c0_173] : memref<128x128xf32, #tpu.memory_space<vmem>>, vector<1x128xf32>
    %427 = vector.broadcast %425 : vector<2x1xf32> to vector<2x128xf32>
    %428 = vector.broadcast %426 : vector<1x128xf32> to vector<2x128xf32>
    %429 = arith.mulf %427, %428 : vector<2x128xf32>
    %430 = arith.addf %424, %429 : vector<2x128xf32>
    %c0_174 = arith.constant 0 : index
    %c0_175 = arith.constant 0 : index
    %431 = vector.load %arg17[%c0_174, %c0_175] : memref<1x4xf32, #tpu.memory_space<vmem>>, vector<1x4xf32>
    %c0_176 = arith.constant 0 : index
    %c0_177 = arith.constant 0 : index
    %432 = vector.load %arg18[%c0_176, %c0_177] : memref<1x4xf32, #tpu.memory_space<vmem>>, vector<1x4xf32>
    %433 = arith.truncf %346 : vector<24x8xf32> to vector<24x8xbf16>
    %434 = vector.extract_strided_slice %433 {offsets = [22, 0], sizes = [2, 8], strides = [1, 1]} : vector<24x8xbf16> to vector<2x8xbf16>
    %435 = vector.extract_strided_slice %433 {offsets = [0, 0], sizes = [22, 8], strides = [1, 1]} : vector<24x8xbf16> to vector<22x8xbf16>
    %436 = tpu.concatenate %434, %435 in 0 : vector<2x8xbf16>, vector<22x8xbf16> -> vector<24x8xbf16>
    %c0_178 = arith.constant 0 : index
    %c0_179 = arith.constant 0 : index
    %c0_180 = arith.constant 0 : index
    %437 = vector.load %arg16[%c0_178, %c0_179, %c0_180] : memref<3x8x4xbf16, #tpu.memory_space<vmem>>, vector<1x8x4xbf16>
    %438 = vector.shape_cast %437 : vector<1x8x4xbf16> to vector<8x4xbf16>
    %cst_181 = arith.constant dense<0.000000e+00> : vector<24x4xf32>
    %439 = tpu.matmul %436, %438, %cst_181 {dimension_numbers = #tpu.dot_dimension_numbers<[1], [0], [0], [1], [0, 0, 1, 1], [], []>} : vector<24x8xbf16>, vector<8x4xbf16>, vector<24x4xf32> -> vector<24x4xf32>
    %c2_182 = arith.constant 2 : index
    %c0_183 = arith.constant 0 : index
    %c0_184 = arith.constant 0 : index
    %440 = vector.load %arg16[%c2_182, %c0_183, %c0_184] : memref<3x8x4xbf16, #tpu.memory_space<vmem>>, vector<1x8x4xbf16>
    %441 = vector.shape_cast %440 : vector<1x8x4xbf16> to vector<8x4xbf16>
    %cst_185 = arith.constant dense<0.000000e+00> : vector<24x4xf32>
    %442 = tpu.matmul %433, %441, %cst_185 {dimension_numbers = #tpu.dot_dimension_numbers<[1], [0], [0], [1], [0, 0, 1, 1], [], []>} : vector<24x8xbf16>, vector<8x4xbf16>, vector<24x4xf32> -> vector<24x4xf32>
    %443 = arith.addf %439, %442 : vector<24x4xf32>
    %444 = vector.broadcast %431 : vector<1x4xf32> to vector<24x4xf32>
    %445 = arith.mulf %443, %444 : vector<24x4xf32>
    %446 = vector.broadcast %432 : vector<1x4xf32> to vector<24x4xf32>
    %447 = arith.addf %445, %446 : vector<24x4xf32>
    %cst_186 = arith.constant 0.000000e+00 : f32
    %448 = vector.broadcast %cst_186 : f32 to vector<24x4xf32>
    %449 = arith.maximumf %447, %448 : vector<24x4xf32>
    %c1_187 = arith.constant 1 : index
    %c0_188 = arith.constant 0 : index
    %c0_189 = arith.constant 0 : index
    %450 = vector.load %arg16[%c1_187, %c0_188, %c0_189] : memref<3x8x4xbf16, #tpu.memory_space<vmem>>, vector<1x8x4xbf16>
    %451 = vector.shape_cast %450 : vector<1x8x4xbf16> to vector<8x4xbf16>
    %cst_190 = arith.constant dense<0.000000e+00> : vector<24x4xf32>
    %452 = tpu.matmul %433, %451, %cst_190 {dimension_numbers = #tpu.dot_dimension_numbers<[1], [0], [0], [1], [0, 0, 1, 1], [], []>} : vector<24x8xbf16>, vector<8x4xbf16>, vector<24x4xf32> -> vector<24x4xf32>
    %453 = vector.broadcast %431 : vector<1x4xf32> to vector<24x4xf32>
    %454 = arith.mulf %452, %453 : vector<24x4xf32>
    %455 = vector.broadcast %432 : vector<1x4xf32> to vector<24x4xf32>
    %456 = arith.addf %454, %455 : vector<24x4xf32>
    %cst_191 = arith.constant 0.000000e+00 : f32
    %457 = vector.broadcast %cst_191 : f32 to vector<24x4xf32>
    %458 = arith.maximumf %456, %457 : vector<24x4xf32>
    %459 = vector.extract_strided_slice %449 {offsets = [0, 0], sizes = [2, 4], strides = [1, 1]} : vector<24x4xf32> to vector<2x4xf32>
    %460 = vector.extract_strided_slice %458 {offsets = [0, 0], sizes = [2, 4], strides = [1, 1]} : vector<24x4xf32> to vector<2x4xf32>
    %461 = vector.extract_strided_slice %449 {offsets = [2, 0], sizes = [2, 4], strides = [1, 1]} : vector<24x4xf32> to vector<2x4xf32>
    %462 = vector.extract_strided_slice %458 {offsets = [2, 0], sizes = [2, 4], strides = [1, 1]} : vector<24x4xf32> to vector<2x4xf32>
    %463 = vector.extract_strided_slice %449 {offsets = [4, 0], sizes = [2, 4], strides = [1, 1]} : vector<24x4xf32> to vector<2x4xf32>
    %464 = vector.extract_strided_slice %458 {offsets = [4, 0], sizes = [2, 4], strides = [1, 1]} : vector<24x4xf32> to vector<2x4xf32>
    %465 = vector.extract_strided_slice %449 {offsets = [6, 0], sizes = [2, 4], strides = [1, 1]} : vector<24x4xf32> to vector<2x4xf32>
    %466 = vector.extract_strided_slice %458 {offsets = [6, 0], sizes = [2, 4], strides = [1, 1]} : vector<24x4xf32> to vector<2x4xf32>
    %467 = vector.extract_strided_slice %449 {offsets = [8, 0], sizes = [2, 4], strides = [1, 1]} : vector<24x4xf32> to vector<2x4xf32>
    %468 = vector.extract_strided_slice %458 {offsets = [8, 0], sizes = [2, 4], strides = [1, 1]} : vector<24x4xf32> to vector<2x4xf32>
    %469 = vector.extract_strided_slice %449 {offsets = [10, 0], sizes = [2, 4], strides = [1, 1]} : vector<24x4xf32> to vector<2x4xf32>
    %470 = vector.extract_strided_slice %458 {offsets = [10, 0], sizes = [2, 4], strides = [1, 1]} : vector<24x4xf32> to vector<2x4xf32>
    %471 = vector.extract_strided_slice %449 {offsets = [12, 0], sizes = [2, 4], strides = [1, 1]} : vector<24x4xf32> to vector<2x4xf32>
    %472 = vector.extract_strided_slice %458 {offsets = [12, 0], sizes = [2, 4], strides = [1, 1]} : vector<24x4xf32> to vector<2x4xf32>
    %473 = vector.extract_strided_slice %449 {offsets = [14, 0], sizes = [2, 4], strides = [1, 1]} : vector<24x4xf32> to vector<2x4xf32>
    %474 = vector.extract_strided_slice %458 {offsets = [14, 0], sizes = [2, 4], strides = [1, 1]} : vector<24x4xf32> to vector<2x4xf32>
    %475 = vector.extract_strided_slice %449 {offsets = [16, 0], sizes = [2, 4], strides = [1, 1]} : vector<24x4xf32> to vector<2x4xf32>
    %476 = vector.extract_strided_slice %458 {offsets = [16, 0], sizes = [2, 4], strides = [1, 1]} : vector<24x4xf32> to vector<2x4xf32>
    %477 = vector.extract_strided_slice %449 {offsets = [18, 0], sizes = [2, 4], strides = [1, 1]} : vector<24x4xf32> to vector<2x4xf32>
    %478 = vector.extract_strided_slice %458 {offsets = [18, 0], sizes = [2, 4], strides = [1, 1]} : vector<24x4xf32> to vector<2x4xf32>
    %479 = vector.extract_strided_slice %449 {offsets = [20, 0], sizes = [2, 4], strides = [1, 1]} : vector<24x4xf32> to vector<2x4xf32>
    %480 = vector.extract_strided_slice %458 {offsets = [20, 0], sizes = [2, 4], strides = [1, 1]} : vector<24x4xf32> to vector<2x4xf32>
    %481 = vector.extract_strided_slice %449 {offsets = [22, 0], sizes = [2, 4], strides = [1, 1]} : vector<24x4xf32> to vector<2x4xf32>
    %482 = vector.extract_strided_slice %458 {offsets = [22, 0], sizes = [2, 4], strides = [1, 1]} : vector<24x4xf32> to vector<2x4xf32>
    %483 = tpu.concatenate %459, %460, %461, %462, %463, %464, %465, %466, %467, %468, %469, %470, %471, %472, %473, %474 in 0 : vector<2x4xf32>, vector<2x4xf32>, vector<2x4xf32>, vector<2x4xf32>, vector<2x4xf32>, vector<2x4xf32>, vector<2x4xf32>, vector<2x4xf32>, vector<2x4xf32>, vector<2x4xf32>, vector<2x4xf32>, vector<2x4xf32>, vector<2x4xf32>, vector<2x4xf32>, vector<2x4xf32>, vector<2x4xf32> -> vector<32x4xf32>
    %484 = tpu.concatenate %475, %476, %477, %478, %479, %480, %481, %482 in 0 : vector<2x4xf32>, vector<2x4xf32>, vector<2x4xf32>, vector<2x4xf32>, vector<2x4xf32>, vector<2x4xf32>, vector<2x4xf32>, vector<2x4xf32> -> vector<16x4xf32>
    %485 = tpu.concatenate %483, %484 in 0 : vector<32x4xf32>, vector<16x4xf32> -> vector<48x4xf32>
    %c0_192 = arith.constant 0 : index
    %c0_193 = arith.constant 0 : index
    %486 = vector.load %arg28[%c0_192, %c0_193] : memref<1x4xf32, #tpu.memory_space<vmem>>, vector<1x4xf32>
    %487 = vector.broadcast %486 : vector<1x4xf32> to vector<48x4xf32>
    %488 = arith.mulf %485, %487 : vector<48x4xf32>
    %cst_194 = arith.constant dense<0.000000e+00> : vector<48xf32>
    %489 = vector.multi_reduction <add>, %488, %cst_194 [1] : vector<48x4xf32> to vector<48xf32>
    %490 = vector.shape_cast %489 : vector<48xf32> to vector<48x1xf32>
    %c0_195 = arith.constant 0 : index
    %c0_196 = arith.constant 0 : index
    %491 = vector.load %arg29[%c0_195, %c0_196] : memref<1x2xf32, #tpu.memory_space<vmem>>, vector<1x1xf32>
    %492 = vector.broadcast %491 : vector<1x1xf32> to vector<48x1xf32>
    %493 = arith.addf %490, %492 : vector<48x1xf32>
    %c0_197 = arith.constant 0 : index
    %c1_198 = arith.constant 1 : index
    %494 = vector.load %arg29[%c0_197, %c1_198] : memref<1x2xf32, #tpu.memory_space<vmem>>, vector<1x1xf32>
    %495 = math.tanh %493 : vector<48x1xf32>
    %496 = vector.broadcast %494 : vector<1x1xf32> to vector<48x1xf32>
    %497 = arith.mulf %496, %495 : vector<48x1xf32>
    %498 = vector.extract_strided_slice %497 {offsets = [0, 0], sizes = [2, 1], strides = [1, 1]} : vector<48x1xf32> to vector<2x1xf32>
    %c27 = arith.constant 27 : index
    %c0_199 = arith.constant 0 : index
    %499 = vector.load %arg9[%c27, %c0_199] : memref<128x128xf32, #tpu.memory_space<vmem>>, vector<1x128xf32>
    %500 = vector.broadcast %498 : vector<2x1xf32> to vector<2x128xf32>
    %501 = vector.broadcast %499 : vector<1x128xf32> to vector<2x128xf32>
    %502 = arith.mulf %500, %501 : vector<2x128xf32>
    %503 = arith.addf %430, %502 : vector<2x128xf32>
    %504 = vector.extract_strided_slice %497 {offsets = [2, 0], sizes = [2, 1], strides = [1, 1]} : vector<48x1xf32> to vector<2x1xf32>
    %c28 = arith.constant 28 : index
    %c0_200 = arith.constant 0 : index
    %505 = vector.load %arg9[%c28, %c0_200] : memref<128x128xf32, #tpu.memory_space<vmem>>, vector<1x128xf32>
    %506 = vector.broadcast %504 : vector<2x1xf32> to vector<2x128xf32>
    %507 = vector.broadcast %505 : vector<1x128xf32> to vector<2x128xf32>
    %508 = arith.mulf %506, %507 : vector<2x128xf32>
    %509 = arith.addf %503, %508 : vector<2x128xf32>
    %510 = vector.extract_strided_slice %497 {offsets = [4, 0], sizes = [2, 1], strides = [1, 1]} : vector<48x1xf32> to vector<2x1xf32>
    %c29 = arith.constant 29 : index
    %c0_201 = arith.constant 0 : index
    %511 = vector.load %arg9[%c29, %c0_201] : memref<128x128xf32, #tpu.memory_space<vmem>>, vector<1x128xf32>
    %512 = vector.broadcast %510 : vector<2x1xf32> to vector<2x128xf32>
    %513 = vector.broadcast %511 : vector<1x128xf32> to vector<2x128xf32>
    %514 = arith.mulf %512, %513 : vector<2x128xf32>
    %515 = arith.addf %509, %514 : vector<2x128xf32>
    %516 = vector.extract_strided_slice %497 {offsets = [6, 0], sizes = [2, 1], strides = [1, 1]} : vector<48x1xf32> to vector<2x1xf32>
    %c30 = arith.constant 30 : index
    %c0_202 = arith.constant 0 : index
    %517 = vector.load %arg9[%c30, %c0_202] : memref<128x128xf32, #tpu.memory_space<vmem>>, vector<1x128xf32>
    %518 = vector.broadcast %516 : vector<2x1xf32> to vector<2x128xf32>
    %519 = vector.broadcast %517 : vector<1x128xf32> to vector<2x128xf32>
    %520 = arith.mulf %518, %519 : vector<2x128xf32>
    %521 = arith.addf %515, %520 : vector<2x128xf32>
    %522 = vector.extract_strided_slice %497 {offsets = [8, 0], sizes = [2, 1], strides = [1, 1]} : vector<48x1xf32> to vector<2x1xf32>
    %c31 = arith.constant 31 : index
    %c0_203 = arith.constant 0 : index
    %523 = vector.load %arg9[%c31, %c0_203] : memref<128x128xf32, #tpu.memory_space<vmem>>, vector<1x128xf32>
    %524 = vector.broadcast %522 : vector<2x1xf32> to vector<2x128xf32>
    %525 = vector.broadcast %523 : vector<1x128xf32> to vector<2x128xf32>
    %526 = arith.mulf %524, %525 : vector<2x128xf32>
    %527 = arith.addf %521, %526 : vector<2x128xf32>
    %528 = vector.extract_strided_slice %497 {offsets = [10, 0], sizes = [2, 1], strides = [1, 1]} : vector<48x1xf32> to vector<2x1xf32>
    %c32 = arith.constant 32 : index
    %c0_204 = arith.constant 0 : index
    %529 = vector.load %arg9[%c32, %c0_204] : memref<128x128xf32, #tpu.memory_space<vmem>>, vector<1x128xf32>
    %530 = vector.broadcast %528 : vector<2x1xf32> to vector<2x128xf32>
    %531 = vector.broadcast %529 : vector<1x128xf32> to vector<2x128xf32>
    %532 = arith.mulf %530, %531 : vector<2x128xf32>
    %533 = arith.addf %527, %532 : vector<2x128xf32>
    %534 = vector.extract_strided_slice %497 {offsets = [12, 0], sizes = [2, 1], strides = [1, 1]} : vector<48x1xf32> to vector<2x1xf32>
    %c33 = arith.constant 33 : index
    %c0_205 = arith.constant 0 : index
    %535 = vector.load %arg9[%c33, %c0_205] : memref<128x128xf32, #tpu.memory_space<vmem>>, vector<1x128xf32>
    %536 = vector.broadcast %534 : vector<2x1xf32> to vector<2x128xf32>
    %537 = vector.broadcast %535 : vector<1x128xf32> to vector<2x128xf32>
    %538 = arith.mulf %536, %537 : vector<2x128xf32>
    %539 = arith.addf %533, %538 : vector<2x128xf32>
    %540 = vector.extract_strided_slice %497 {offsets = [14, 0], sizes = [2, 1], strides = [1, 1]} : vector<48x1xf32> to vector<2x1xf32>
    %c34 = arith.constant 34 : index
    %c0_206 = arith.constant 0 : index
    %541 = vector.load %arg9[%c34, %c0_206] : memref<128x128xf32, #tpu.memory_space<vmem>>, vector<1x128xf32>
    %542 = vector.broadcast %540 : vector<2x1xf32> to vector<2x128xf32>
    %543 = vector.broadcast %541 : vector<1x128xf32> to vector<2x128xf32>
    %544 = arith.mulf %542, %543 : vector<2x128xf32>
    %545 = arith.addf %539, %544 : vector<2x128xf32>
    %546 = vector.extract_strided_slice %497 {offsets = [16, 0], sizes = [2, 1], strides = [1, 1]} : vector<48x1xf32> to vector<2x1xf32>
    %c35 = arith.constant 35 : index
    %c0_207 = arith.constant 0 : index
    %547 = vector.load %arg9[%c35, %c0_207] : memref<128x128xf32, #tpu.memory_space<vmem>>, vector<1x128xf32>
    %548 = vector.broadcast %546 : vector<2x1xf32> to vector<2x128xf32>
    %549 = vector.broadcast %547 : vector<1x128xf32> to vector<2x128xf32>
    %550 = arith.mulf %548, %549 : vector<2x128xf32>
    %551 = arith.addf %545, %550 : vector<2x128xf32>
    %552 = vector.extract_strided_slice %497 {offsets = [18, 0], sizes = [2, 1], strides = [1, 1]} : vector<48x1xf32> to vector<2x1xf32>
    %c36 = arith.constant 36 : index
    %c0_208 = arith.constant 0 : index
    %553 = vector.load %arg9[%c36, %c0_208] : memref<128x128xf32, #tpu.memory_space<vmem>>, vector<1x128xf32>
    %554 = vector.broadcast %552 : vector<2x1xf32> to vector<2x128xf32>
    %555 = vector.broadcast %553 : vector<1x128xf32> to vector<2x128xf32>
    %556 = arith.mulf %554, %555 : vector<2x128xf32>
    %557 = arith.addf %551, %556 : vector<2x128xf32>
    %558 = vector.extract_strided_slice %497 {offsets = [20, 0], sizes = [2, 1], strides = [1, 1]} : vector<48x1xf32> to vector<2x1xf32>
    %c37 = arith.constant 37 : index
    %c0_209 = arith.constant 0 : index
    %559 = vector.load %arg9[%c37, %c0_209] : memref<128x128xf32, #tpu.memory_space<vmem>>, vector<1x128xf32>
    %560 = vector.broadcast %558 : vector<2x1xf32> to vector<2x128xf32>
    %561 = vector.broadcast %559 : vector<1x128xf32> to vector<2x128xf32>
    %562 = arith.mulf %560, %561 : vector<2x128xf32>
    %563 = arith.addf %557, %562 : vector<2x128xf32>
    %564 = vector.extract_strided_slice %497 {offsets = [22, 0], sizes = [2, 1], strides = [1, 1]} : vector<48x1xf32> to vector<2x1xf32>
    %c38 = arith.constant 38 : index
    %c0_210 = arith.constant 0 : index
    %565 = vector.load %arg9[%c38, %c0_210] : memref<128x128xf32, #tpu.memory_space<vmem>>, vector<1x128xf32>
    %566 = vector.broadcast %564 : vector<2x1xf32> to vector<2x128xf32>
    %567 = vector.broadcast %565 : vector<1x128xf32> to vector<2x128xf32>
    %568 = arith.mulf %566, %567 : vector<2x128xf32>
    %569 = arith.addf %563, %568 : vector<2x128xf32>
    %570 = vector.extract_strided_slice %497 {offsets = [24, 0], sizes = [2, 1], strides = [1, 1]} : vector<48x1xf32> to vector<2x1xf32>
    %c39 = arith.constant 39 : index
    %c0_211 = arith.constant 0 : index
    %571 = vector.load %arg9[%c39, %c0_211] : memref<128x128xf32, #tpu.memory_space<vmem>>, vector<1x128xf32>
    %572 = vector.broadcast %570 : vector<2x1xf32> to vector<2x128xf32>
    %573 = vector.broadcast %571 : vector<1x128xf32> to vector<2x128xf32>
    %574 = arith.mulf %572, %573 : vector<2x128xf32>
    %575 = arith.addf %569, %574 : vector<2x128xf32>
    %576 = vector.extract_strided_slice %497 {offsets = [26, 0], sizes = [2, 1], strides = [1, 1]} : vector<48x1xf32> to vector<2x1xf32>
    %c40 = arith.constant 40 : index
    %c0_212 = arith.constant 0 : index
    %577 = vector.load %arg9[%c40, %c0_212] : memref<128x128xf32, #tpu.memory_space<vmem>>, vector<1x128xf32>
    %578 = vector.broadcast %576 : vector<2x1xf32> to vector<2x128xf32>
    %579 = vector.broadcast %577 : vector<1x128xf32> to vector<2x128xf32>
    %580 = arith.mulf %578, %579 : vector<2x128xf32>
    %581 = arith.addf %575, %580 : vector<2x128xf32>
    %582 = vector.extract_strided_slice %497 {offsets = [28, 0], sizes = [2, 1], strides = [1, 1]} : vector<48x1xf32> to vector<2x1xf32>
    %c41 = arith.constant 41 : index
    %c0_213 = arith.constant 0 : index
    %583 = vector.load %arg9[%c41, %c0_213] : memref<128x128xf32, #tpu.memory_space<vmem>>, vector<1x128xf32>
    %584 = vector.broadcast %582 : vector<2x1xf32> to vector<2x128xf32>
    %585 = vector.broadcast %583 : vector<1x128xf32> to vector<2x128xf32>
    %586 = arith.mulf %584, %585 : vector<2x128xf32>
    %587 = arith.addf %581, %586 : vector<2x128xf32>
    %588 = vector.extract_strided_slice %497 {offsets = [30, 0], sizes = [2, 1], strides = [1, 1]} : vector<48x1xf32> to vector<2x1xf32>
    %c42 = arith.constant 42 : index
    %c0_214 = arith.constant 0 : index
    %589 = vector.load %arg9[%c42, %c0_214] : memref<128x128xf32, #tpu.memory_space<vmem>>, vector<1x128xf32>
    %590 = vector.broadcast %588 : vector<2x1xf32> to vector<2x128xf32>
    %591 = vector.broadcast %589 : vector<1x128xf32> to vector<2x128xf32>
    %592 = arith.mulf %590, %591 : vector<2x128xf32>
    %593 = arith.addf %587, %592 : vector<2x128xf32>
    %594 = vector.extract_strided_slice %497 {offsets = [32, 0], sizes = [2, 1], strides = [1, 1]} : vector<48x1xf32> to vector<2x1xf32>
    %c43 = arith.constant 43 : index
    %c0_215 = arith.constant 0 : index
    %595 = vector.load %arg9[%c43, %c0_215] : memref<128x128xf32, #tpu.memory_space<vmem>>, vector<1x128xf32>
    %596 = vector.broadcast %594 : vector<2x1xf32> to vector<2x128xf32>
    %597 = vector.broadcast %595 : vector<1x128xf32> to vector<2x128xf32>
    %598 = arith.mulf %596, %597 : vector<2x128xf32>
    %599 = arith.addf %593, %598 : vector<2x128xf32>
    %600 = vector.extract_strided_slice %497 {offsets = [34, 0], sizes = [2, 1], strides = [1, 1]} : vector<48x1xf32> to vector<2x1xf32>
    %c44 = arith.constant 44 : index
    %c0_216 = arith.constant 0 : index
    %601 = vector.load %arg9[%c44, %c0_216] : memref<128x128xf32, #tpu.memory_space<vmem>>, vector<1x128xf32>
    %602 = vector.broadcast %600 : vector<2x1xf32> to vector<2x128xf32>
    %603 = vector.broadcast %601 : vector<1x128xf32> to vector<2x128xf32>
    %604 = arith.mulf %602, %603 : vector<2x128xf32>
    %605 = arith.addf %599, %604 : vector<2x128xf32>
    %606 = vector.extract_strided_slice %497 {offsets = [36, 0], sizes = [2, 1], strides = [1, 1]} : vector<48x1xf32> to vector<2x1xf32>
    %c45 = arith.constant 45 : index
    %c0_217 = arith.constant 0 : index
    %607 = vector.load %arg9[%c45, %c0_217] : memref<128x128xf32, #tpu.memory_space<vmem>>, vector<1x128xf32>
    %608 = vector.broadcast %606 : vector<2x1xf32> to vector<2x128xf32>
    %609 = vector.broadcast %607 : vector<1x128xf32> to vector<2x128xf32>
    %610 = arith.mulf %608, %609 : vector<2x128xf32>
    %611 = arith.addf %605, %610 : vector<2x128xf32>
    %612 = vector.extract_strided_slice %497 {offsets = [38, 0], sizes = [2, 1], strides = [1, 1]} : vector<48x1xf32> to vector<2x1xf32>
    %c46 = arith.constant 46 : index
    %c0_218 = arith.constant 0 : index
    %613 = vector.load %arg9[%c46, %c0_218] : memref<128x128xf32, #tpu.memory_space<vmem>>, vector<1x128xf32>
    %614 = vector.broadcast %612 : vector<2x1xf32> to vector<2x128xf32>
    %615 = vector.broadcast %613 : vector<1x128xf32> to vector<2x128xf32>
    %616 = arith.mulf %614, %615 : vector<2x128xf32>
    %617 = arith.addf %611, %616 : vector<2x128xf32>
    %618 = vector.extract_strided_slice %497 {offsets = [40, 0], sizes = [2, 1], strides = [1, 1]} : vector<48x1xf32> to vector<2x1xf32>
    %c47 = arith.constant 47 : index
    %c0_219 = arith.constant 0 : index
    %619 = vector.load %arg9[%c47, %c0_219] : memref<128x128xf32, #tpu.memory_space<vmem>>, vector<1x128xf32>
    %620 = vector.broadcast %618 : vector<2x1xf32> to vector<2x128xf32>
    %621 = vector.broadcast %619 : vector<1x128xf32> to vector<2x128xf32>
    %622 = arith.mulf %620, %621 : vector<2x128xf32>
    %623 = arith.addf %617, %622 : vector<2x128xf32>
    %624 = vector.extract_strided_slice %497 {offsets = [42, 0], sizes = [2, 1], strides = [1, 1]} : vector<48x1xf32> to vector<2x1xf32>
    %c48 = arith.constant 48 : index
    %c0_220 = arith.constant 0 : index
    %625 = vector.load %arg9[%c48, %c0_220] : memref<128x128xf32, #tpu.memory_space<vmem>>, vector<1x128xf32>
    %626 = vector.broadcast %624 : vector<2x1xf32> to vector<2x128xf32>
    %627 = vector.broadcast %625 : vector<1x128xf32> to vector<2x128xf32>
    %628 = arith.mulf %626, %627 : vector<2x128xf32>
    %629 = arith.addf %623, %628 : vector<2x128xf32>
    %630 = vector.extract_strided_slice %497 {offsets = [44, 0], sizes = [2, 1], strides = [1, 1]} : vector<48x1xf32> to vector<2x1xf32>
    %c49 = arith.constant 49 : index
    %c0_221 = arith.constant 0 : index
    %631 = vector.load %arg9[%c49, %c0_221] : memref<128x128xf32, #tpu.memory_space<vmem>>, vector<1x128xf32>
    %632 = vector.broadcast %630 : vector<2x1xf32> to vector<2x128xf32>
    %633 = vector.broadcast %631 : vector<1x128xf32> to vector<2x128xf32>
    %634 = arith.mulf %632, %633 : vector<2x128xf32>
    %635 = arith.addf %629, %634 : vector<2x128xf32>
    %636 = vector.extract_strided_slice %497 {offsets = [46, 0], sizes = [2, 1], strides = [1, 1]} : vector<48x1xf32> to vector<2x1xf32>
    %c50 = arith.constant 50 : index
    %c0_222 = arith.constant 0 : index
    %637 = vector.load %arg9[%c50, %c0_222] : memref<128x128xf32, #tpu.memory_space<vmem>>, vector<1x128xf32>
    %638 = vector.broadcast %636 : vector<2x1xf32> to vector<2x128xf32>
    %639 = vector.broadcast %637 : vector<1x128xf32> to vector<2x128xf32>
    %640 = arith.mulf %638, %639 : vector<2x128xf32>
    %641 = arith.addf %635, %640 : vector<2x128xf32>
    %c0_223 = arith.constant 0 : index
    %c0_224 = arith.constant 0 : index
    %642 = vector.load %arg20[%c0_223, %c0_224] : memref<1x2xf32, #tpu.memory_space<vmem>>, vector<1x2xf32>
    %c0_225 = arith.constant 0 : index
    %c0_226 = arith.constant 0 : index
    %643 = vector.load %arg21[%c0_225, %c0_226] : memref<1x2xf32, #tpu.memory_space<vmem>>, vector<1x2xf32>
    %644 = arith.truncf %485 : vector<48x4xf32> to vector<48x4xbf16>
    %645 = vector.extract_strided_slice %644 {offsets = [46, 0], sizes = [2, 4], strides = [1, 1]} : vector<48x4xbf16> to vector<2x4xbf16>
    %646 = vector.extract_strided_slice %644 {offsets = [0, 0], sizes = [46, 4], strides = [1, 1]} : vector<48x4xbf16> to vector<46x4xbf16>
    %647 = tpu.concatenate %645, %646 in 0 : vector<2x4xbf16>, vector<46x4xbf16> -> vector<48x4xbf16>
    %c0_227 = arith.constant 0 : index
    %c0_228 = arith.constant 0 : index
    %c0_229 = arith.constant 0 : index
    %648 = vector.load %arg19[%c0_227, %c0_228, %c0_229] : memref<3x4x2xbf16, #tpu.memory_space<vmem>>, vector<1x4x2xbf16>
    %649 = vector.shape_cast %648 : vector<1x4x2xbf16> to vector<4x2xbf16>
    %cst_230 = arith.constant dense<0.000000e+00> : vector<48x2xf32>
    %650 = tpu.matmul %647, %649, %cst_230 {dimension_numbers = #tpu.dot_dimension_numbers<[1], [0], [0], [1], [0, 0, 1, 1], [], []>} : vector<48x4xbf16>, vector<4x2xbf16>, vector<48x2xf32> -> vector<48x2xf32>
    %c2_231 = arith.constant 2 : index
    %c0_232 = arith.constant 0 : index
    %c0_233 = arith.constant 0 : index
    %651 = vector.load %arg19[%c2_231, %c0_232, %c0_233] : memref<3x4x2xbf16, #tpu.memory_space<vmem>>, vector<1x4x2xbf16>
    %652 = vector.shape_cast %651 : vector<1x4x2xbf16> to vector<4x2xbf16>
    %cst_234 = arith.constant dense<0.000000e+00> : vector<48x2xf32>
    %653 = tpu.matmul %644, %652, %cst_234 {dimension_numbers = #tpu.dot_dimension_numbers<[1], [0], [0], [1], [0, 0, 1, 1], [], []>} : vector<48x4xbf16>, vector<4x2xbf16>, vector<48x2xf32> -> vector<48x2xf32>
    %654 = arith.addf %650, %653 : vector<48x2xf32>
    %655 = vector.broadcast %642 : vector<1x2xf32> to vector<48x2xf32>
    %656 = arith.mulf %654, %655 : vector<48x2xf32>
    %657 = vector.broadcast %643 : vector<1x2xf32> to vector<48x2xf32>
    %658 = arith.addf %656, %657 : vector<48x2xf32>
    %cst_235 = arith.constant 0.000000e+00 : f32
    %659 = vector.broadcast %cst_235 : f32 to vector<48x2xf32>
    %660 = arith.maximumf %658, %659 : vector<48x2xf32>
    %c1_236 = arith.constant 1 : index
    %c0_237 = arith.constant 0 : index
    %c0_238 = arith.constant 0 : index
    %661 = vector.load %arg19[%c1_236, %c0_237, %c0_238] : memref<3x4x2xbf16, #tpu.memory_space<vmem>>, vector<1x4x2xbf16>
    %662 = vector.shape_cast %661 : vector<1x4x2xbf16> to vector<4x2xbf16>
    %cst_239 = arith.constant dense<0.000000e+00> : vector<48x2xf32>
    %663 = tpu.matmul %644, %662, %cst_239 {dimension_numbers = #tpu.dot_dimension_numbers<[1], [0], [0], [1], [0, 0, 1, 1], [], []>} : vector<48x4xbf16>, vector<4x2xbf16>, vector<48x2xf32> -> vector<48x2xf32>
    %664 = vector.broadcast %642 : vector<1x2xf32> to vector<48x2xf32>
    %665 = arith.mulf %663, %664 : vector<48x2xf32>
    %666 = vector.broadcast %643 : vector<1x2xf32> to vector<48x2xf32>
    %667 = arith.addf %665, %666 : vector<48x2xf32>
    %cst_240 = arith.constant 0.000000e+00 : f32
    %668 = vector.broadcast %cst_240 : f32 to vector<48x2xf32>
    %669 = arith.maximumf %667, %668 : vector<48x2xf32>
    %670 = vector.extract_strided_slice %660 {offsets = [0, 0], sizes = [2, 2], strides = [1, 1]} : vector<48x2xf32> to vector<2x2xf32>
    %671 = vector.extract_strided_slice %669 {offsets = [0, 0], sizes = [2, 2], strides = [1, 1]} : vector<48x2xf32> to vector<2x2xf32>
    %672 = vector.extract_strided_slice %660 {offsets = [2, 0], sizes = [2, 2], strides = [1, 1]} : vector<48x2xf32> to vector<2x2xf32>
    %673 = vector.extract_strided_slice %669 {offsets = [2, 0], sizes = [2, 2], strides = [1, 1]} : vector<48x2xf32> to vector<2x2xf32>
    %674 = vector.extract_strided_slice %660 {offsets = [4, 0], sizes = [2, 2], strides = [1, 1]} : vector<48x2xf32> to vector<2x2xf32>
    %675 = vector.extract_strided_slice %669 {offsets = [4, 0], sizes = [2, 2], strides = [1, 1]} : vector<48x2xf32> to vector<2x2xf32>
    %676 = vector.extract_strided_slice %660 {offsets = [6, 0], sizes = [2, 2], strides = [1, 1]} : vector<48x2xf32> to vector<2x2xf32>
    %677 = vector.extract_strided_slice %669 {offsets = [6, 0], sizes = [2, 2], strides = [1, 1]} : vector<48x2xf32> to vector<2x2xf32>
    %678 = vector.extract_strided_slice %660 {offsets = [8, 0], sizes = [2, 2], strides = [1, 1]} : vector<48x2xf32> to vector<2x2xf32>
    %679 = vector.extract_strided_slice %669 {offsets = [8, 0], sizes = [2, 2], strides = [1, 1]} : vector<48x2xf32> to vector<2x2xf32>
    %680 = vector.extract_strided_slice %660 {offsets = [10, 0], sizes = [2, 2], strides = [1, 1]} : vector<48x2xf32> to vector<2x2xf32>
    %681 = vector.extract_strided_slice %669 {offsets = [10, 0], sizes = [2, 2], strides = [1, 1]} : vector<48x2xf32> to vector<2x2xf32>
    %682 = vector.extract_strided_slice %660 {offsets = [12, 0], sizes = [2, 2], strides = [1, 1]} : vector<48x2xf32> to vector<2x2xf32>
    %683 = vector.extract_strided_slice %669 {offsets = [12, 0], sizes = [2, 2], strides = [1, 1]} : vector<48x2xf32> to vector<2x2xf32>
    %684 = vector.extract_strided_slice %660 {offsets = [14, 0], sizes = [2, 2], strides = [1, 1]} : vector<48x2xf32> to vector<2x2xf32>
    %685 = vector.extract_strided_slice %669 {offsets = [14, 0], sizes = [2, 2], strides = [1, 1]} : vector<48x2xf32> to vector<2x2xf32>
    %686 = vector.extract_strided_slice %660 {offsets = [16, 0], sizes = [2, 2], strides = [1, 1]} : vector<48x2xf32> to vector<2x2xf32>
    %687 = vector.extract_strided_slice %669 {offsets = [16, 0], sizes = [2, 2], strides = [1, 1]} : vector<48x2xf32> to vector<2x2xf32>
    %688 = vector.extract_strided_slice %660 {offsets = [18, 0], sizes = [2, 2], strides = [1, 1]} : vector<48x2xf32> to vector<2x2xf32>
    %689 = vector.extract_strided_slice %669 {offsets = [18, 0], sizes = [2, 2], strides = [1, 1]} : vector<48x2xf32> to vector<2x2xf32>
    %690 = vector.extract_strided_slice %660 {offsets = [20, 0], sizes = [2, 2], strides = [1, 1]} : vector<48x2xf32> to vector<2x2xf32>
    %691 = vector.extract_strided_slice %669 {offsets = [20, 0], sizes = [2, 2], strides = [1, 1]} : vector<48x2xf32> to vector<2x2xf32>
    %692 = vector.extract_strided_slice %660 {offsets = [22, 0], sizes = [2, 2], strides = [1, 1]} : vector<48x2xf32> to vector<2x2xf32>
    %693 = vector.extract_strided_slice %669 {offsets = [22, 0], sizes = [2, 2], strides = [1, 1]} : vector<48x2xf32> to vector<2x2xf32>
    %694 = vector.extract_strided_slice %660 {offsets = [24, 0], sizes = [2, 2], strides = [1, 1]} : vector<48x2xf32> to vector<2x2xf32>
    %695 = vector.extract_strided_slice %669 {offsets = [24, 0], sizes = [2, 2], strides = [1, 1]} : vector<48x2xf32> to vector<2x2xf32>
    %696 = vector.extract_strided_slice %660 {offsets = [26, 0], sizes = [2, 2], strides = [1, 1]} : vector<48x2xf32> to vector<2x2xf32>
    %697 = vector.extract_strided_slice %669 {offsets = [26, 0], sizes = [2, 2], strides = [1, 1]} : vector<48x2xf32> to vector<2x2xf32>
    %698 = vector.extract_strided_slice %660 {offsets = [28, 0], sizes = [2, 2], strides = [1, 1]} : vector<48x2xf32> to vector<2x2xf32>
    %699 = vector.extract_strided_slice %669 {offsets = [28, 0], sizes = [2, 2], strides = [1, 1]} : vector<48x2xf32> to vector<2x2xf32>
    %700 = vector.extract_strided_slice %660 {offsets = [30, 0], sizes = [2, 2], strides = [1, 1]} : vector<48x2xf32> to vector<2x2xf32>
    %701 = vector.extract_strided_slice %669 {offsets = [30, 0], sizes = [2, 2], strides = [1, 1]} : vector<48x2xf32> to vector<2x2xf32>
    %702 = vector.extract_strided_slice %660 {offsets = [32, 0], sizes = [2, 2], strides = [1, 1]} : vector<48x2xf32> to vector<2x2xf32>
    %703 = vector.extract_strided_slice %669 {offsets = [32, 0], sizes = [2, 2], strides = [1, 1]} : vector<48x2xf32> to vector<2x2xf32>
    %704 = vector.extract_strided_slice %660 {offsets = [34, 0], sizes = [2, 2], strides = [1, 1]} : vector<48x2xf32> to vector<2x2xf32>
    %705 = vector.extract_strided_slice %669 {offsets = [34, 0], sizes = [2, 2], strides = [1, 1]} : vector<48x2xf32> to vector<2x2xf32>
    %706 = vector.extract_strided_slice %660 {offsets = [36, 0], sizes = [2, 2], strides = [1, 1]} : vector<48x2xf32> to vector<2x2xf32>
    %707 = vector.extract_strided_slice %669 {offsets = [36, 0], sizes = [2, 2], strides = [1, 1]} : vector<48x2xf32> to vector<2x2xf32>
    %708 = vector.extract_strided_slice %660 {offsets = [38, 0], sizes = [2, 2], strides = [1, 1]} : vector<48x2xf32> to vector<2x2xf32>
    %709 = vector.extract_strided_slice %669 {offsets = [38, 0], sizes = [2, 2], strides = [1, 1]} : vector<48x2xf32> to vector<2x2xf32>
    %710 = vector.extract_strided_slice %660 {offsets = [40, 0], sizes = [2, 2], strides = [1, 1]} : vector<48x2xf32> to vector<2x2xf32>
    %711 = vector.extract_strided_slice %669 {offsets = [40, 0], sizes = [2, 2], strides = [1, 1]} : vector<48x2xf32> to vector<2x2xf32>
    %712 = vector.extract_strided_slice %660 {offsets = [42, 0], sizes = [2, 2], strides = [1, 1]} : vector<48x2xf32> to vector<2x2xf32>
    %713 = vector.extract_strided_slice %669 {offsets = [42, 0], sizes = [2, 2], strides = [1, 1]} : vector<48x2xf32> to vector<2x2xf32>
    %714 = vector.extract_strided_slice %660 {offsets = [44, 0], sizes = [2, 2], strides = [1, 1]} : vector<48x2xf32> to vector<2x2xf32>
    %715 = vector.extract_strided_slice %669 {offsets = [44, 0], sizes = [2, 2], strides = [1, 1]} : vector<48x2xf32> to vector<2x2xf32>
    %716 = vector.extract_strided_slice %660 {offsets = [46, 0], sizes = [2, 2], strides = [1, 1]} : vector<48x2xf32> to vector<2x2xf32>
    %717 = vector.extract_strided_slice %669 {offsets = [46, 0], sizes = [2, 2], strides = [1, 1]} : vector<48x2xf32> to vector<2x2xf32>
    %718 = tpu.concatenate %670, %671, %672, %673, %674, %675, %676, %677, %678, %679, %680, %681, %682, %683, %684, %685 in 0 : vector<2x2xf32>, vector<2x2xf32>, vector<2x2xf32>, vector<2x2xf32>, vector<2x2xf32>, vector<2x2xf32>, vector<2x2xf32>, vector<2x2xf32>, vector<2x2xf32>, vector<2x2xf32>, vector<2x2xf32>, vector<2x2xf32>, vector<2x2xf32>, vector<2x2xf32>, vector<2x2xf32>, vector<2x2xf32> -> vector<32x2xf32>
    %719 = tpu.concatenate %686, %687, %688, %689, %690, %691, %692, %693, %694, %695, %696, %697, %698, %699, %700, %701 in 0 : vector<2x2xf32>, vector<2x2xf32>, vector<2x2xf32>, vector<2x2xf32>, vector<2x2xf32>, vector<2x2xf32>, vector<2x2xf32>, vector<2x2xf32>, vector<2x2xf32>, vector<2x2xf32>, vector<2x2xf32>, vector<2x2xf32>, vector<2x2xf32>, vector<2x2xf32>, vector<2x2xf32>, vector<2x2xf32> -> vector<32x2xf32>
    %720 = tpu.concatenate %702, %703, %704, %705, %706, %707, %708, %709, %710, %711, %712, %713, %714, %715, %716, %717 in 0 : vector<2x2xf32>, vector<2x2xf32>, vector<2x2xf32>, vector<2x2xf32>, vector<2x2xf32>, vector<2x2xf32>, vector<2x2xf32>, vector<2x2xf32>, vector<2x2xf32>, vector<2x2xf32>, vector<2x2xf32>, vector<2x2xf32>, vector<2x2xf32>, vector<2x2xf32>, vector<2x2xf32>, vector<2x2xf32> -> vector<32x2xf32>
    %721 = tpu.concatenate %718, %719, %720 in 0 : vector<32x2xf32>, vector<32x2xf32>, vector<32x2xf32> -> vector<96x2xf32>
    %c0_241 = arith.constant 0 : index
    %c0_242 = arith.constant 0 : index
    %722 = vector.load %arg30[%c0_241, %c0_242] : memref<1x2xf32, #tpu.memory_space<vmem>>, vector<1x2xf32>
    %723 = vector.broadcast %722 : vector<1x2xf32> to vector<96x2xf32>
    %724 = arith.mulf %721, %723 : vector<96x2xf32>
    %cst_243 = arith.constant dense<0.000000e+00> : vector<96xf32>
    %725 = vector.multi_reduction <add>, %724, %cst_243 [1] : vector<96x2xf32> to vector<96xf32>
    %726 = vector.shape_cast %725 : vector<96xf32> to vector<96x1xf32>
    %c0_244 = arith.constant 0 : index
    %c0_245 = arith.constant 0 : index
    %727 = vector.load %arg31[%c0_244, %c0_245] : memref<1x2xf32, #tpu.memory_space<vmem>>, vector<1x1xf32>
    %728 = vector.broadcast %727 : vector<1x1xf32> to vector<96x1xf32>
    %729 = arith.addf %726, %728 : vector<96x1xf32>
    %c0_246 = arith.constant 0 : index
    %c1_247 = arith.constant 1 : index
    %730 = vector.load %arg31[%c0_246, %c1_247] : memref<1x2xf32, #tpu.memory_space<vmem>>, vector<1x1xf32>
    %731 = math.tanh %729 : vector<96x1xf32>
    %732 = vector.broadcast %730 : vector<1x1xf32> to vector<96x1xf32>
    %733 = arith.mulf %732, %731 : vector<96x1xf32>
    %734 = vector.extract_strided_slice %733 {offsets = [0, 0], sizes = [2, 1], strides = [1, 1]} : vector<96x1xf32> to vector<2x1xf32>
    %c51 = arith.constant 51 : index
    %c0_248 = arith.constant 0 : index
    %735 = vector.load %arg9[%c51, %c0_248] : memref<128x128xf32, #tpu.memory_space<vmem>>, vector<1x128xf32>
    %736 = vector.broadcast %734 : vector<2x1xf32> to vector<2x128xf32>
    %737 = vector.broadcast %735 : vector<1x128xf32> to vector<2x128xf32>
    %738 = arith.mulf %736, %737 : vector<2x128xf32>
    %739 = arith.addf %641, %738 : vector<2x128xf32>
    %740 = vector.extract_strided_slice %733 {offsets = [2, 0], sizes = [2, 1], strides = [1, 1]} : vector<96x1xf32> to vector<2x1xf32>
    %c52 = arith.constant 52 : index
    %c0_249 = arith.constant 0 : index
    %741 = vector.load %arg9[%c52, %c0_249] : memref<128x128xf32, #tpu.memory_space<vmem>>, vector<1x128xf32>
    %742 = vector.broadcast %740 : vector<2x1xf32> to vector<2x128xf32>
    %743 = vector.broadcast %741 : vector<1x128xf32> to vector<2x128xf32>
    %744 = arith.mulf %742, %743 : vector<2x128xf32>
    %745 = arith.addf %739, %744 : vector<2x128xf32>
    %746 = vector.extract_strided_slice %733 {offsets = [4, 0], sizes = [2, 1], strides = [1, 1]} : vector<96x1xf32> to vector<2x1xf32>
    %c53 = arith.constant 53 : index
    %c0_250 = arith.constant 0 : index
    %747 = vector.load %arg9[%c53, %c0_250] : memref<128x128xf32, #tpu.memory_space<vmem>>, vector<1x128xf32>
    %748 = vector.broadcast %746 : vector<2x1xf32> to vector<2x128xf32>
    %749 = vector.broadcast %747 : vector<1x128xf32> to vector<2x128xf32>
    %750 = arith.mulf %748, %749 : vector<2x128xf32>
    %751 = arith.addf %745, %750 : vector<2x128xf32>
    %752 = vector.extract_strided_slice %733 {offsets = [6, 0], sizes = [2, 1], strides = [1, 1]} : vector<96x1xf32> to vector<2x1xf32>
    %c54 = arith.constant 54 : index
    %c0_251 = arith.constant 0 : index
    %753 = vector.load %arg9[%c54, %c0_251] : memref<128x128xf32, #tpu.memory_space<vmem>>, vector<1x128xf32>
    %754 = vector.broadcast %752 : vector<2x1xf32> to vector<2x128xf32>
    %755 = vector.broadcast %753 : vector<1x128xf32> to vector<2x128xf32>
    %756 = arith.mulf %754, %755 : vector<2x128xf32>
    %757 = arith.addf %751, %756 : vector<2x128xf32>
    %758 = vector.extract_strided_slice %733 {offsets = [8, 0], sizes = [2, 1], strides = [1, 1]} : vector<96x1xf32> to vector<2x1xf32>
    %c55 = arith.constant 55 : index
    %c0_252 = arith.constant 0 : index
    %759 = vector.load %arg9[%c55, %c0_252] : memref<128x128xf32, #tpu.memory_space<vmem>>, vector<1x128xf32>
    %760 = vector.broadcast %758 : vector<2x1xf32> to vector<2x128xf32>
    %761 = vector.broadcast %759 : vector<1x128xf32> to vector<2x128xf32>
    %762 = arith.mulf %760, %761 : vector<2x128xf32>
    %763 = arith.addf %757, %762 : vector<2x128xf32>
    %764 = vector.extract_strided_slice %733 {offsets = [10, 0], sizes = [2, 1], strides = [1, 1]} : vector<96x1xf32> to vector<2x1xf32>
    %c56 = arith.constant 56 : index
    %c0_253 = arith.constant 0 : index
    %765 = vector.load %arg9[%c56, %c0_253] : memref<128x128xf32, #tpu.memory_space<vmem>>, vector<1x128xf32>
    %766 = vector.broadcast %764 : vector<2x1xf32> to vector<2x128xf32>
    %767 = vector.broadcast %765 : vector<1x128xf32> to vector<2x128xf32>
    %768 = arith.mulf %766, %767 : vector<2x128xf32>
    %769 = arith.addf %763, %768 : vector<2x128xf32>
    %770 = vector.extract_strided_slice %733 {offsets = [12, 0], sizes = [2, 1], strides = [1, 1]} : vector<96x1xf32> to vector<2x1xf32>
    %c57 = arith.constant 57 : index
    %c0_254 = arith.constant 0 : index
    %771 = vector.load %arg9[%c57, %c0_254] : memref<128x128xf32, #tpu.memory_space<vmem>>, vector<1x128xf32>
    %772 = vector.broadcast %770 : vector<2x1xf32> to vector<2x128xf32>
    %773 = vector.broadcast %771 : vector<1x128xf32> to vector<2x128xf32>
    %774 = arith.mulf %772, %773 : vector<2x128xf32>
    %775 = arith.addf %769, %774 : vector<2x128xf32>
    %776 = vector.extract_strided_slice %733 {offsets = [14, 0], sizes = [2, 1], strides = [1, 1]} : vector<96x1xf32> to vector<2x1xf32>
    %c58 = arith.constant 58 : index
    %c0_255 = arith.constant 0 : index
    %777 = vector.load %arg9[%c58, %c0_255] : memref<128x128xf32, #tpu.memory_space<vmem>>, vector<1x128xf32>
    %778 = vector.broadcast %776 : vector<2x1xf32> to vector<2x128xf32>
    %779 = vector.broadcast %777 : vector<1x128xf32> to vector<2x128xf32>
    %780 = arith.mulf %778, %779 : vector<2x128xf32>
    %781 = arith.addf %775, %780 : vector<2x128xf32>
    %782 = vector.extract_strided_slice %733 {offsets = [16, 0], sizes = [2, 1], strides = [1, 1]} : vector<96x1xf32> to vector<2x1xf32>
    %c59 = arith.constant 59 : index
    %c0_256 = arith.constant 0 : index
    %783 = vector.load %arg9[%c59, %c0_256] : memref<128x128xf32, #tpu.memory_space<vmem>>, vector<1x128xf32>
    %784 = vector.broadcast %782 : vector<2x1xf32> to vector<2x128xf32>
    %785 = vector.broadcast %783 : vector<1x128xf32> to vector<2x128xf32>
    %786 = arith.mulf %784, %785 : vector<2x128xf32>
    %787 = arith.addf %781, %786 : vector<2x128xf32>
    %788 = vector.extract_strided_slice %733 {offsets = [18, 0], sizes = [2, 1], strides = [1, 1]} : vector<96x1xf32> to vector<2x1xf32>
    %c60 = arith.constant 60 : index
    %c0_257 = arith.constant 0 : index
    %789 = vector.load %arg9[%c60, %c0_257] : memref<128x128xf32, #tpu.memory_space<vmem>>, vector<1x128xf32>
    %790 = vector.broadcast %788 : vector<2x1xf32> to vector<2x128xf32>
    %791 = vector.broadcast %789 : vector<1x128xf32> to vector<2x128xf32>
    %792 = arith.mulf %790, %791 : vector<2x128xf32>
    %793 = arith.addf %787, %792 : vector<2x128xf32>
    %794 = vector.extract_strided_slice %733 {offsets = [20, 0], sizes = [2, 1], strides = [1, 1]} : vector<96x1xf32> to vector<2x1xf32>
    %c61 = arith.constant 61 : index
    %c0_258 = arith.constant 0 : index
    %795 = vector.load %arg9[%c61, %c0_258] : memref<128x128xf32, #tpu.memory_space<vmem>>, vector<1x128xf32>
    %796 = vector.broadcast %794 : vector<2x1xf32> to vector<2x128xf32>
    %797 = vector.broadcast %795 : vector<1x128xf32> to vector<2x128xf32>
    %798 = arith.mulf %796, %797 : vector<2x128xf32>
    %799 = arith.addf %793, %798 : vector<2x128xf32>
    %800 = vector.extract_strided_slice %733 {offsets = [22, 0], sizes = [2, 1], strides = [1, 1]} : vector<96x1xf32> to vector<2x1xf32>
    %c62 = arith.constant 62 : index
    %c0_259 = arith.constant 0 : index
    %801 = vector.load %arg9[%c62, %c0_259] : memref<128x128xf32, #tpu.memory_space<vmem>>, vector<1x128xf32>
    %802 = vector.broadcast %800 : vector<2x1xf32> to vector<2x128xf32>
    %803 = vector.broadcast %801 : vector<1x128xf32> to vector<2x128xf32>
    %804 = arith.mulf %802, %803 : vector<2x128xf32>
    %805 = arith.addf %799, %804 : vector<2x128xf32>
    %806 = vector.extract_strided_slice %733 {offsets = [24, 0], sizes = [2, 1], strides = [1, 1]} : vector<96x1xf32> to vector<2x1xf32>
    %c63 = arith.constant 63 : index
    %c0_260 = arith.constant 0 : index
    %807 = vector.load %arg9[%c63, %c0_260] : memref<128x128xf32, #tpu.memory_space<vmem>>, vector<1x128xf32>
    %808 = vector.broadcast %806 : vector<2x1xf32> to vector<2x128xf32>
    %809 = vector.broadcast %807 : vector<1x128xf32> to vector<2x128xf32>
    %810 = arith.mulf %808, %809 : vector<2x128xf32>
    %811 = arith.addf %805, %810 : vector<2x128xf32>
    %812 = vector.extract_strided_slice %733 {offsets = [26, 0], sizes = [2, 1], strides = [1, 1]} : vector<96x1xf32> to vector<2x1xf32>
    %c64 = arith.constant 64 : index
    %c0_261 = arith.constant 0 : index
    %813 = vector.load %arg9[%c64, %c0_261] : memref<128x128xf32, #tpu.memory_space<vmem>>, vector<1x128xf32>
    %814 = vector.broadcast %812 : vector<2x1xf32> to vector<2x128xf32>
    %815 = vector.broadcast %813 : vector<1x128xf32> to vector<2x128xf32>
    %816 = arith.mulf %814, %815 : vector<2x128xf32>
    %817 = arith.addf %811, %816 : vector<2x128xf32>
    %818 = vector.extract_strided_slice %733 {offsets = [28, 0], sizes = [2, 1], strides = [1, 1]} : vector<96x1xf32> to vector<2x1xf32>
    %c65 = arith.constant 65 : index
    %c0_262 = arith.constant 0 : index
    %819 = vector.load %arg9[%c65, %c0_262] : memref<128x128xf32, #tpu.memory_space<vmem>>, vector<1x128xf32>
    %820 = vector.broadcast %818 : vector<2x1xf32> to vector<2x128xf32>
    %821 = vector.broadcast %819 : vector<1x128xf32> to vector<2x128xf32>
    %822 = arith.mulf %820, %821 : vector<2x128xf32>
    %823 = arith.addf %817, %822 : vector<2x128xf32>
    %824 = vector.extract_strided_slice %733 {offsets = [30, 0], sizes = [2, 1], strides = [1, 1]} : vector<96x1xf32> to vector<2x1xf32>
    %c66 = arith.constant 66 : index
    %c0_263 = arith.constant 0 : index
    %825 = vector.load %arg9[%c66, %c0_263] : memref<128x128xf32, #tpu.memory_space<vmem>>, vector<1x128xf32>
    %826 = vector.broadcast %824 : vector<2x1xf32> to vector<2x128xf32>
    %827 = vector.broadcast %825 : vector<1x128xf32> to vector<2x128xf32>
    %828 = arith.mulf %826, %827 : vector<2x128xf32>
    %829 = arith.addf %823, %828 : vector<2x128xf32>
    %830 = vector.extract_strided_slice %733 {offsets = [32, 0], sizes = [2, 1], strides = [1, 1]} : vector<96x1xf32> to vector<2x1xf32>
    %c67 = arith.constant 67 : index
    %c0_264 = arith.constant 0 : index
    %831 = vector.load %arg9[%c67, %c0_264] : memref<128x128xf32, #tpu.memory_space<vmem>>, vector<1x128xf32>
    %832 = vector.broadcast %830 : vector<2x1xf32> to vector<2x128xf32>
    %833 = vector.broadcast %831 : vector<1x128xf32> to vector<2x128xf32>
    %834 = arith.mulf %832, %833 : vector<2x128xf32>
    %835 = arith.addf %829, %834 : vector<2x128xf32>
    %836 = vector.extract_strided_slice %733 {offsets = [34, 0], sizes = [2, 1], strides = [1, 1]} : vector<96x1xf32> to vector<2x1xf32>
    %c68 = arith.constant 68 : index
    %c0_265 = arith.constant 0 : index
    %837 = vector.load %arg9[%c68, %c0_265] : memref<128x128xf32, #tpu.memory_space<vmem>>, vector<1x128xf32>
    %838 = vector.broadcast %836 : vector<2x1xf32> to vector<2x128xf32>
    %839 = vector.broadcast %837 : vector<1x128xf32> to vector<2x128xf32>
    %840 = arith.mulf %838, %839 : vector<2x128xf32>
    %841 = arith.addf %835, %840 : vector<2x128xf32>
    %842 = vector.extract_strided_slice %733 {offsets = [36, 0], sizes = [2, 1], strides = [1, 1]} : vector<96x1xf32> to vector<2x1xf32>
    %c69 = arith.constant 69 : index
    %c0_266 = arith.constant 0 : index
    %843 = vector.load %arg9[%c69, %c0_266] : memref<128x128xf32, #tpu.memory_space<vmem>>, vector<1x128xf32>
    %844 = vector.broadcast %842 : vector<2x1xf32> to vector<2x128xf32>
    %845 = vector.broadcast %843 : vector<1x128xf32> to vector<2x128xf32>
    %846 = arith.mulf %844, %845 : vector<2x128xf32>
    %847 = arith.addf %841, %846 : vector<2x128xf32>
    %848 = vector.extract_strided_slice %733 {offsets = [38, 0], sizes = [2, 1], strides = [1, 1]} : vector<96x1xf32> to vector<2x1xf32>
    %c70 = arith.constant 70 : index
    %c0_267 = arith.constant 0 : index
    %849 = vector.load %arg9[%c70, %c0_267] : memref<128x128xf32, #tpu.memory_space<vmem>>, vector<1x128xf32>
    %850 = vector.broadcast %848 : vector<2x1xf32> to vector<2x128xf32>
    %851 = vector.broadcast %849 : vector<1x128xf32> to vector<2x128xf32>
    %852 = arith.mulf %850, %851 : vector<2x128xf32>
    %853 = arith.addf %847, %852 : vector<2x128xf32>
    %854 = vector.extract_strided_slice %733 {offsets = [40, 0], sizes = [2, 1], strides = [1, 1]} : vector<96x1xf32> to vector<2x1xf32>
    %c71 = arith.constant 71 : index
    %c0_268 = arith.constant 0 : index
    %855 = vector.load %arg9[%c71, %c0_268] : memref<128x128xf32, #tpu.memory_space<vmem>>, vector<1x128xf32>
    %856 = vector.broadcast %854 : vector<2x1xf32> to vector<2x128xf32>
    %857 = vector.broadcast %855 : vector<1x128xf32> to vector<2x128xf32>
    %858 = arith.mulf %856, %857 : vector<2x128xf32>
    %859 = arith.addf %853, %858 : vector<2x128xf32>
    %860 = vector.extract_strided_slice %733 {offsets = [42, 0], sizes = [2, 1], strides = [1, 1]} : vector<96x1xf32> to vector<2x1xf32>
    %c72 = arith.constant 72 : index
    %c0_269 = arith.constant 0 : index
    %861 = vector.load %arg9[%c72, %c0_269] : memref<128x128xf32, #tpu.memory_space<vmem>>, vector<1x128xf32>
    %862 = vector.broadcast %860 : vector<2x1xf32> to vector<2x128xf32>
    %863 = vector.broadcast %861 : vector<1x128xf32> to vector<2x128xf32>
    %864 = arith.mulf %862, %863 : vector<2x128xf32>
    %865 = arith.addf %859, %864 : vector<2x128xf32>
    %866 = vector.extract_strided_slice %733 {offsets = [44, 0], sizes = [2, 1], strides = [1, 1]} : vector<96x1xf32> to vector<2x1xf32>
    %c73 = arith.constant 73 : index
    %c0_270 = arith.constant 0 : index
    %867 = vector.load %arg9[%c73, %c0_270] : memref<128x128xf32, #tpu.memory_space<vmem>>, vector<1x128xf32>
    %868 = vector.broadcast %866 : vector<2x1xf32> to vector<2x128xf32>
    %869 = vector.broadcast %867 : vector<1x128xf32> to vector<2x128xf32>
    %870 = arith.mulf %868, %869 : vector<2x128xf32>
    %871 = arith.addf %865, %870 : vector<2x128xf32>
    %872 = vector.extract_strided_slice %733 {offsets = [46, 0], sizes = [2, 1], strides = [1, 1]} : vector<96x1xf32> to vector<2x1xf32>
    %c74 = arith.constant 74 : index
    %c0_271 = arith.constant 0 : index
    %873 = vector.load %arg9[%c74, %c0_271] : memref<128x128xf32, #tpu.memory_space<vmem>>, vector<1x128xf32>
    %874 = vector.broadcast %872 : vector<2x1xf32> to vector<2x128xf32>
    %875 = vector.broadcast %873 : vector<1x128xf32> to vector<2x128xf32>
    %876 = arith.mulf %874, %875 : vector<2x128xf32>
    %877 = arith.addf %871, %876 : vector<2x128xf32>
    %878 = vector.extract_strided_slice %733 {offsets = [48, 0], sizes = [2, 1], strides = [1, 1]} : vector<96x1xf32> to vector<2x1xf32>
    %c75 = arith.constant 75 : index
    %c0_272 = arith.constant 0 : index
    %879 = vector.load %arg9[%c75, %c0_272] : memref<128x128xf32, #tpu.memory_space<vmem>>, vector<1x128xf32>
    %880 = vector.broadcast %878 : vector<2x1xf32> to vector<2x128xf32>
    %881 = vector.broadcast %879 : vector<1x128xf32> to vector<2x128xf32>
    %882 = arith.mulf %880, %881 : vector<2x128xf32>
    %883 = arith.addf %877, %882 : vector<2x128xf32>
    %884 = vector.extract_strided_slice %733 {offsets = [50, 0], sizes = [2, 1], strides = [1, 1]} : vector<96x1xf32> to vector<2x1xf32>
    %c76 = arith.constant 76 : index
    %c0_273 = arith.constant 0 : index
    %885 = vector.load %arg9[%c76, %c0_273] : memref<128x128xf32, #tpu.memory_space<vmem>>, vector<1x128xf32>
    %886 = vector.broadcast %884 : vector<2x1xf32> to vector<2x128xf32>
    %887 = vector.broadcast %885 : vector<1x128xf32> to vector<2x128xf32>
    %888 = arith.mulf %886, %887 : vector<2x128xf32>
    %889 = arith.addf %883, %888 : vector<2x128xf32>
    %890 = vector.extract_strided_slice %733 {offsets = [52, 0], sizes = [2, 1], strides = [1, 1]} : vector<96x1xf32> to vector<2x1xf32>
    %c77 = arith.constant 77 : index
    %c0_274 = arith.constant 0 : index
    %891 = vector.load %arg9[%c77, %c0_274] : memref<128x128xf32, #tpu.memory_space<vmem>>, vector<1x128xf32>
    %892 = vector.broadcast %890 : vector<2x1xf32> to vector<2x128xf32>
    %893 = vector.broadcast %891 : vector<1x128xf32> to vector<2x128xf32>
    %894 = arith.mulf %892, %893 : vector<2x128xf32>
    %895 = arith.addf %889, %894 : vector<2x128xf32>
    %896 = vector.extract_strided_slice %733 {offsets = [54, 0], sizes = [2, 1], strides = [1, 1]} : vector<96x1xf32> to vector<2x1xf32>
    %c78 = arith.constant 78 : index
    %c0_275 = arith.constant 0 : index
    %897 = vector.load %arg9[%c78, %c0_275] : memref<128x128xf32, #tpu.memory_space<vmem>>, vector<1x128xf32>
    %898 = vector.broadcast %896 : vector<2x1xf32> to vector<2x128xf32>
    %899 = vector.broadcast %897 : vector<1x128xf32> to vector<2x128xf32>
    %900 = arith.mulf %898, %899 : vector<2x128xf32>
    %901 = arith.addf %895, %900 : vector<2x128xf32>
    %902 = vector.extract_strided_slice %733 {offsets = [56, 0], sizes = [2, 1], strides = [1, 1]} : vector<96x1xf32> to vector<2x1xf32>
    %c79 = arith.constant 79 : index
    %c0_276 = arith.constant 0 : index
    %903 = vector.load %arg9[%c79, %c0_276] : memref<128x128xf32, #tpu.memory_space<vmem>>, vector<1x128xf32>
    %904 = vector.broadcast %902 : vector<2x1xf32> to vector<2x128xf32>
    %905 = vector.broadcast %903 : vector<1x128xf32> to vector<2x128xf32>
    %906 = arith.mulf %904, %905 : vector<2x128xf32>
    %907 = arith.addf %901, %906 : vector<2x128xf32>
    %908 = vector.extract_strided_slice %733 {offsets = [58, 0], sizes = [2, 1], strides = [1, 1]} : vector<96x1xf32> to vector<2x1xf32>
    %c80 = arith.constant 80 : index
    %c0_277 = arith.constant 0 : index
    %909 = vector.load %arg9[%c80, %c0_277] : memref<128x128xf32, #tpu.memory_space<vmem>>, vector<1x128xf32>
    %910 = vector.broadcast %908 : vector<2x1xf32> to vector<2x128xf32>
    %911 = vector.broadcast %909 : vector<1x128xf32> to vector<2x128xf32>
    %912 = arith.mulf %910, %911 : vector<2x128xf32>
    %913 = arith.addf %907, %912 : vector<2x128xf32>
    %914 = vector.extract_strided_slice %733 {offsets = [60, 0], sizes = [2, 1], strides = [1, 1]} : vector<96x1xf32> to vector<2x1xf32>
    %c81 = arith.constant 81 : index
    %c0_278 = arith.constant 0 : index
    %915 = vector.load %arg9[%c81, %c0_278] : memref<128x128xf32, #tpu.memory_space<vmem>>, vector<1x128xf32>
    %916 = vector.broadcast %914 : vector<2x1xf32> to vector<2x128xf32>
    %917 = vector.broadcast %915 : vector<1x128xf32> to vector<2x128xf32>
    %918 = arith.mulf %916, %917 : vector<2x128xf32>
    %919 = arith.addf %913, %918 : vector<2x128xf32>
    %920 = vector.extract_strided_slice %733 {offsets = [62, 0], sizes = [2, 1], strides = [1, 1]} : vector<96x1xf32> to vector<2x1xf32>
    %c82 = arith.constant 82 : index
    %c0_279 = arith.constant 0 : index
    %921 = vector.load %arg9[%c82, %c0_279] : memref<128x128xf32, #tpu.memory_space<vmem>>, vector<1x128xf32>
    %922 = vector.broadcast %920 : vector<2x1xf32> to vector<2x128xf32>
    %923 = vector.broadcast %921 : vector<1x128xf32> to vector<2x128xf32>
    %924 = arith.mulf %922, %923 : vector<2x128xf32>
    %925 = arith.addf %919, %924 : vector<2x128xf32>
    %926 = vector.extract_strided_slice %733 {offsets = [64, 0], sizes = [2, 1], strides = [1, 1]} : vector<96x1xf32> to vector<2x1xf32>
    %c83 = arith.constant 83 : index
    %c0_280 = arith.constant 0 : index
    %927 = vector.load %arg9[%c83, %c0_280] : memref<128x128xf32, #tpu.memory_space<vmem>>, vector<1x128xf32>
    %928 = vector.broadcast %926 : vector<2x1xf32> to vector<2x128xf32>
    %929 = vector.broadcast %927 : vector<1x128xf32> to vector<2x128xf32>
    %930 = arith.mulf %928, %929 : vector<2x128xf32>
    %931 = arith.addf %925, %930 : vector<2x128xf32>
    %932 = vector.extract_strided_slice %733 {offsets = [66, 0], sizes = [2, 1], strides = [1, 1]} : vector<96x1xf32> to vector<2x1xf32>
    %c84 = arith.constant 84 : index
    %c0_281 = arith.constant 0 : index
    %933 = vector.load %arg9[%c84, %c0_281] : memref<128x128xf32, #tpu.memory_space<vmem>>, vector<1x128xf32>
    %934 = vector.broadcast %932 : vector<2x1xf32> to vector<2x128xf32>
    %935 = vector.broadcast %933 : vector<1x128xf32> to vector<2x128xf32>
    %936 = arith.mulf %934, %935 : vector<2x128xf32>
    %937 = arith.addf %931, %936 : vector<2x128xf32>
    %938 = vector.extract_strided_slice %733 {offsets = [68, 0], sizes = [2, 1], strides = [1, 1]} : vector<96x1xf32> to vector<2x1xf32>
    %c85 = arith.constant 85 : index
    %c0_282 = arith.constant 0 : index
    %939 = vector.load %arg9[%c85, %c0_282] : memref<128x128xf32, #tpu.memory_space<vmem>>, vector<1x128xf32>
    %940 = vector.broadcast %938 : vector<2x1xf32> to vector<2x128xf32>
    %941 = vector.broadcast %939 : vector<1x128xf32> to vector<2x128xf32>
    %942 = arith.mulf %940, %941 : vector<2x128xf32>
    %943 = arith.addf %937, %942 : vector<2x128xf32>
    %944 = vector.extract_strided_slice %733 {offsets = [70, 0], sizes = [2, 1], strides = [1, 1]} : vector<96x1xf32> to vector<2x1xf32>
    %c86 = arith.constant 86 : index
    %c0_283 = arith.constant 0 : index
    %945 = vector.load %arg9[%c86, %c0_283] : memref<128x128xf32, #tpu.memory_space<vmem>>, vector<1x128xf32>
    %946 = vector.broadcast %944 : vector<2x1xf32> to vector<2x128xf32>
    %947 = vector.broadcast %945 : vector<1x128xf32> to vector<2x128xf32>
    %948 = arith.mulf %946, %947 : vector<2x128xf32>
    %949 = arith.addf %943, %948 : vector<2x128xf32>
    %950 = vector.extract_strided_slice %733 {offsets = [72, 0], sizes = [2, 1], strides = [1, 1]} : vector<96x1xf32> to vector<2x1xf32>
    %c87 = arith.constant 87 : index
    %c0_284 = arith.constant 0 : index
    %951 = vector.load %arg9[%c87, %c0_284] : memref<128x128xf32, #tpu.memory_space<vmem>>, vector<1x128xf32>
    %952 = vector.broadcast %950 : vector<2x1xf32> to vector<2x128xf32>
    %953 = vector.broadcast %951 : vector<1x128xf32> to vector<2x128xf32>
    %954 = arith.mulf %952, %953 : vector<2x128xf32>
    %955 = arith.addf %949, %954 : vector<2x128xf32>
    %956 = vector.extract_strided_slice %733 {offsets = [74, 0], sizes = [2, 1], strides = [1, 1]} : vector<96x1xf32> to vector<2x1xf32>
    %c88 = arith.constant 88 : index
    %c0_285 = arith.constant 0 : index
    %957 = vector.load %arg9[%c88, %c0_285] : memref<128x128xf32, #tpu.memory_space<vmem>>, vector<1x128xf32>
    %958 = vector.broadcast %956 : vector<2x1xf32> to vector<2x128xf32>
    %959 = vector.broadcast %957 : vector<1x128xf32> to vector<2x128xf32>
    %960 = arith.mulf %958, %959 : vector<2x128xf32>
    %961 = arith.addf %955, %960 : vector<2x128xf32>
    %962 = vector.extract_strided_slice %733 {offsets = [76, 0], sizes = [2, 1], strides = [1, 1]} : vector<96x1xf32> to vector<2x1xf32>
    %c89 = arith.constant 89 : index
    %c0_286 = arith.constant 0 : index
    %963 = vector.load %arg9[%c89, %c0_286] : memref<128x128xf32, #tpu.memory_space<vmem>>, vector<1x128xf32>
    %964 = vector.broadcast %962 : vector<2x1xf32> to vector<2x128xf32>
    %965 = vector.broadcast %963 : vector<1x128xf32> to vector<2x128xf32>
    %966 = arith.mulf %964, %965 : vector<2x128xf32>
    %967 = arith.addf %961, %966 : vector<2x128xf32>
    %968 = vector.extract_strided_slice %733 {offsets = [78, 0], sizes = [2, 1], strides = [1, 1]} : vector<96x1xf32> to vector<2x1xf32>
    %c90 = arith.constant 90 : index
    %c0_287 = arith.constant 0 : index
    %969 = vector.load %arg9[%c90, %c0_287] : memref<128x128xf32, #tpu.memory_space<vmem>>, vector<1x128xf32>
    %970 = vector.broadcast %968 : vector<2x1xf32> to vector<2x128xf32>
    %971 = vector.broadcast %969 : vector<1x128xf32> to vector<2x128xf32>
    %972 = arith.mulf %970, %971 : vector<2x128xf32>
    %973 = arith.addf %967, %972 : vector<2x128xf32>
    %974 = vector.extract_strided_slice %733 {offsets = [80, 0], sizes = [2, 1], strides = [1, 1]} : vector<96x1xf32> to vector<2x1xf32>
    %c91 = arith.constant 91 : index
    %c0_288 = arith.constant 0 : index
    %975 = vector.load %arg9[%c91, %c0_288] : memref<128x128xf32, #tpu.memory_space<vmem>>, vector<1x128xf32>
    %976 = vector.broadcast %974 : vector<2x1xf32> to vector<2x128xf32>
    %977 = vector.broadcast %975 : vector<1x128xf32> to vector<2x128xf32>
    %978 = arith.mulf %976, %977 : vector<2x128xf32>
    %979 = arith.addf %973, %978 : vector<2x128xf32>
    %980 = vector.extract_strided_slice %733 {offsets = [82, 0], sizes = [2, 1], strides = [1, 1]} : vector<96x1xf32> to vector<2x1xf32>
    %c92 = arith.constant 92 : index
    %c0_289 = arith.constant 0 : index
    %981 = vector.load %arg9[%c92, %c0_289] : memref<128x128xf32, #tpu.memory_space<vmem>>, vector<1x128xf32>
    %982 = vector.broadcast %980 : vector<2x1xf32> to vector<2x128xf32>
    %983 = vector.broadcast %981 : vector<1x128xf32> to vector<2x128xf32>
    %984 = arith.mulf %982, %983 : vector<2x128xf32>
    %985 = arith.addf %979, %984 : vector<2x128xf32>
    %986 = vector.extract_strided_slice %733 {offsets = [84, 0], sizes = [2, 1], strides = [1, 1]} : vector<96x1xf32> to vector<2x1xf32>
    %c93 = arith.constant 93 : index
    %c0_290 = arith.constant 0 : index
    %987 = vector.load %arg9[%c93, %c0_290] : memref<128x128xf32, #tpu.memory_space<vmem>>, vector<1x128xf32>
    %988 = vector.broadcast %986 : vector<2x1xf32> to vector<2x128xf32>
    %989 = vector.broadcast %987 : vector<1x128xf32> to vector<2x128xf32>
    %990 = arith.mulf %988, %989 : vector<2x128xf32>
    %991 = arith.addf %985, %990 : vector<2x128xf32>
    %992 = vector.extract_strided_slice %733 {offsets = [86, 0], sizes = [2, 1], strides = [1, 1]} : vector<96x1xf32> to vector<2x1xf32>
    %c94 = arith.constant 94 : index
    %c0_291 = arith.constant 0 : index
    %993 = vector.load %arg9[%c94, %c0_291] : memref<128x128xf32, #tpu.memory_space<vmem>>, vector<1x128xf32>
    %994 = vector.broadcast %992 : vector<2x1xf32> to vector<2x128xf32>
    %995 = vector.broadcast %993 : vector<1x128xf32> to vector<2x128xf32>
    %996 = arith.mulf %994, %995 : vector<2x128xf32>
    %997 = arith.addf %991, %996 : vector<2x128xf32>
    %998 = vector.extract_strided_slice %733 {offsets = [88, 0], sizes = [2, 1], strides = [1, 1]} : vector<96x1xf32> to vector<2x1xf32>
    %c95 = arith.constant 95 : index
    %c0_292 = arith.constant 0 : index
    %999 = vector.load %arg9[%c95, %c0_292] : memref<128x128xf32, #tpu.memory_space<vmem>>, vector<1x128xf32>
    %1000 = vector.broadcast %998 : vector<2x1xf32> to vector<2x128xf32>
    %1001 = vector.broadcast %999 : vector<1x128xf32> to vector<2x128xf32>
    %1002 = arith.mulf %1000, %1001 : vector<2x128xf32>
    %1003 = arith.addf %997, %1002 : vector<2x128xf32>
    %1004 = vector.extract_strided_slice %733 {offsets = [90, 0], sizes = [2, 1], strides = [1, 1]} : vector<96x1xf32> to vector<2x1xf32>
    %c96 = arith.constant 96 : index
    %c0_293 = arith.constant 0 : index
    %1005 = vector.load %arg9[%c96, %c0_293] : memref<128x128xf32, #tpu.memory_space<vmem>>, vector<1x128xf32>
    %1006 = vector.broadcast %1004 : vector<2x1xf32> to vector<2x128xf32>
    %1007 = vector.broadcast %1005 : vector<1x128xf32> to vector<2x128xf32>
    %1008 = arith.mulf %1006, %1007 : vector<2x128xf32>
    %1009 = arith.addf %1003, %1008 : vector<2x128xf32>
    %1010 = vector.extract_strided_slice %733 {offsets = [92, 0], sizes = [2, 1], strides = [1, 1]} : vector<96x1xf32> to vector<2x1xf32>
    %c97 = arith.constant 97 : index
    %c0_294 = arith.constant 0 : index
    %1011 = vector.load %arg9[%c97, %c0_294] : memref<128x128xf32, #tpu.memory_space<vmem>>, vector<1x128xf32>
    %1012 = vector.broadcast %1010 : vector<2x1xf32> to vector<2x128xf32>
    %1013 = vector.broadcast %1011 : vector<1x128xf32> to vector<2x128xf32>
    %1014 = arith.mulf %1012, %1013 : vector<2x128xf32>
    %1015 = arith.addf %1009, %1014 : vector<2x128xf32>
    %1016 = vector.extract_strided_slice %733 {offsets = [94, 0], sizes = [2, 1], strides = [1, 1]} : vector<96x1xf32> to vector<2x1xf32>
    %c98 = arith.constant 98 : index
    %c0_295 = arith.constant 0 : index
    %1017 = vector.load %arg9[%c98, %c0_295] : memref<128x128xf32, #tpu.memory_space<vmem>>, vector<1x128xf32>
    %1018 = vector.broadcast %1016 : vector<2x1xf32> to vector<2x128xf32>
    %1019 = vector.broadcast %1017 : vector<1x128xf32> to vector<2x128xf32>
    %1020 = arith.mulf %1018, %1019 : vector<2x128xf32>
    %1021 = arith.addf %1015, %1020 : vector<2x128xf32>
    %c0_296 = arith.constant 0 : index
    %c0_297 = arith.constant 0 : index
    %c0_298 = arith.constant 0 : index
    %1022 = vector.load %arg32[%c0_296, %c0_297, %c0_298] : memref<1x2x128xf32, #tpu.memory_space<vmem>>, vector<1x2x128xf32>
    %1023 = vector.shape_cast %1022 : vector<1x2x128xf32> to vector<2x128xf32>
    %1024 = vector.shape_cast %1021 : vector<2x128xf32> to vector<1x2x128xf32>
    tpu.vector_store %arg32[%c0_296, %c0_297, %c0_298], %1024 {strides = array<i32>} : memref<1x2x128xf32, #tpu.memory_space<vmem>>, vector<1x2x128xf32>,
    return
  }
  func.func @transform_0(%arg0: i32) -> (i32, i32, i32) {
    %c0_i32 = arith.constant 0 : i32
    %c0_i32_0 = arith.constant 0 : i32
    %c0_i32_1 = arith.constant 0 : i32
    return %arg0, %c0_i32, %c0_i32_0 : i32, i32, i32
  }
  func.func @transform_1(%arg0: i32) -> (i32, i32) {
    %c0_i32 = arith.constant 0 : i32
    %c0_i32_0 = arith.constant 0 : i32
    %c0_i32_1 = arith.constant 0 : i32
    return %c0_i32, %c0_i32_0 : i32, i32
  }
  func.func @transform_2(%arg0: i32) -> (i32, i32) {
    %c0_i32 = arith.constant 0 : i32
    %c0_i32_0 = arith.constant 0 : i32
    %c0_i32_1 = arith.constant 0 : i32
    return %c0_i32, %c0_i32_0 : i32, i32
  }
  func.func @transform_3(%arg0: i32) -> (i32, i32) {
    %c0_i32 = arith.constant 0 : i32
    %c0_i32_0 = arith.constant 0 : i32
    %c0_i32_1 = arith.constant 0 : i32
    return %c0_i32, %c0_i32_0 : i32, i32
  }
  func.func @transform_4(%arg0: i32) -> (i32, i32, i32) {
    %c0_i32 = arith.constant 0 : i32
    %c0_i32_0 = arith.constant 0 : i32
    %c0_i32_1 = arith.constant 0 : i32
    %c0_i32_2 = arith.constant 0 : i32
    return %c0_i32, %c0_i32_0, %c0_i32_1 : i32, i32, i32
  }
  func.func @transform_5(%arg0: i32) -> (i32, i32) {
    %c0_i32 = arith.constant 0 : i32
    %c0_i32_0 = arith.constant 0 : i32
    %c0_i32_1 = arith.constant 0 : i32
    return %c0_i32, %c0_i32_0 : i32, i32
  }
  func.func @transform_6(%arg0: i32) -> (i32, i32) {
    %c0_i32 = arith.constant 0 : i32
    %c0_i32_0 = arith.constant 0 : i32
    %c0_i32_1 = arith.constant 0 : i32
    return %c0_i32, %c0_i32_0 : i32, i32
  }
  func.func @transform_7(%arg0: i32) -> (i32, i32) {
    %c0_i32 = arith.constant 0 : i32
    %c0_i32_0 = arith.constant 0 : i32
    %c0_i32_1 = arith.constant 0 : i32
    return %c0_i32, %c0_i32_0 : i32, i32
  }
  func.func @transform_8(%arg0: i32) -> (i32, i32) {
    %c0_i32 = arith.constant 0 : i32
    %c0_i32_0 = arith.constant 0 : i32
    %c0_i32_1 = arith.constant 0 : i32
    return %c0_i32, %c0_i32_0 : i32, i32
  }
  func.func @transform_9(%arg0: i32) -> (i32, i32, i32) {
    %c0_i32 = arith.constant 0 : i32
    %c0_i32_0 = arith.constant 0 : i32
    %c0_i32_1 = arith.constant 0 : i32
    %c0_i32_2 = arith.constant 0 : i32
    return %c0_i32, %c0_i32_0, %c0_i32_1 : i32, i32, i32
  }
  func.func @transform_10(%arg0: i32) -> (i32, i32) {
    %c0_i32 = arith.constant 0 : i32
    %c0_i32_0 = arith.constant 0 : i32
    %c0_i32_1 = arith.constant 0 : i32
    return %c0_i32, %c0_i32_0 : i32, i32
  }
  func.func @transform_11(%arg0: i32) -> (i32, i32) {
    %c0_i32 = arith.constant 0 : i32
    %c0_i32_0 = arith.constant 0 : i32
    %c0_i32_1 = arith.constant 0 : i32
    return %c0_i32, %c0_i32_0 : i32, i32
  }
  func.func @transform_12(%arg0: i32) -> (i32, i32, i32) {
    %c0_i32 = arith.constant 0 : i32
    %c0_i32_0 = arith.constant 0 : i32
    %c0_i32_1 = arith.constant 0 : i32
    %c0_i32_2 = arith.constant 0 : i32
    return %c0_i32, %c0_i32_0, %c0_i32_1 : i32, i32, i32
  }
  func.func @transform_13(%arg0: i32) -> (i32, i32) {
    %c0_i32 = arith.constant 0 : i32
    %c0_i32_0 = arith.constant 0 : i32
    %c0_i32_1 = arith.constant 0 : i32
    return %c0_i32, %c0_i32_0 : i32, i32
  }
  func.func @transform_14(%arg0: i32) -> (i32, i32) {
    %c0_i32 = arith.constant 0 : i32
    %c0_i32_0 = arith.constant 0 : i32
    %c0_i32_1 = arith.constant 0 : i32
    return %c0_i32, %c0_i32_0 : i32, i32
  }
  func.func @transform_15(%arg0: i32) -> (i32, i32, i32) {
    %c0_i32 = arith.constant 0 : i32
    %c0_i32_0 = arith.constant 0 : i32
    %c0_i32_1 = arith.constant 0 : i32
    %c0_i32_2 = arith.constant 0 : i32
    return %c0_i32, %c0_i32_0, %c0_i32_1 : i32, i32, i32
  }
  func.func @transform_16(%arg0: i32) -> (i32, i32) {
    %c0_i32 = arith.constant 0 : i32
    %c0_i32_0 = arith.constant 0 : i32
    %c0_i32_1 = arith.constant 0 : i32
    return %c0_i32, %c0_i32_0 : i32, i32
  }
  func.func @transform_17(%arg0: i32) -> (i32, i32) {
    %c0_i32 = arith.constant 0 : i32
    %c0_i32_0 = arith.constant 0 : i32
    %c0_i32_1 = arith.constant 0 : i32
    return %c0_i32, %c0_i32_0 : i32, i32
  }
  func.func @transform_18(%arg0: i32) -> (i32, i32, i32) {
    %c0_i32 = arith.constant 0 : i32
    %c0_i32_0 = arith.constant 0 : i32
    %c0_i32_1 = arith.constant 0 : i32
    %c0_i32_2 = arith.constant 0 : i32
    return %c0_i32, %c0_i32_0, %c0_i32_1 : i32, i32, i32
  }
  func.func @transform_19(%arg0: i32) -> (i32, i32) {
    %c0_i32 = arith.constant 0 : i32
    %c0_i32_0 = arith.constant 0 : i32
    %c0_i32_1 = arith.constant 0 : i32
    return %c0_i32, %c0_i32_0 : i32, i32
  }
  func.func @transform_20(%arg0: i32) -> (i32, i32) {
    %c0_i32 = arith.constant 0 : i32
    %c0_i32_0 = arith.constant 0 : i32
    %c0_i32_1 = arith.constant 0 : i32
    return %c0_i32, %c0_i32_0 : i32, i32
  }
  func.func @transform_21(%arg0: i32) -> (i32, i32) {
    %c0_i32 = arith.constant 0 : i32
    %c0_i32_0 = arith.constant 0 : i32
    %c0_i32_1 = arith.constant 0 : i32
    return %c0_i32, %c0_i32_0 : i32, i32
  }
  func.func @transform_22(%arg0: i32) -> (i32, i32) {
    %c0_i32 = arith.constant 0 : i32
    %c0_i32_0 = arith.constant 0 : i32
    %c0_i32_1 = arith.constant 0 : i32
    return %c0_i32, %c0_i32_0 : i32, i32
  }
  func.func @transform_23(%arg0: i32) -> (i32, i32) {
    %c0_i32 = arith.constant 0 : i32
    %c0_i32_0 = arith.constant 0 : i32
    %c0_i32_1 = arith.constant 0 : i32
    return %c0_i32, %c0_i32_0 : i32, i32
  }
  func.func @transform_24(%arg0: i32) -> (i32, i32) {
    %c0_i32 = arith.constant 0 : i32
    %c0_i32_0 = arith.constant 0 : i32
    %c0_i32_1 = arith.constant 0 : i32
    return %c0_i32, %c0_i32_0 : i32, i32
  }
  func.func @transform_25(%arg0: i32) -> (i32, i32) {
    %c0_i32 = arith.constant 0 : i32
    %c0_i32_0 = arith.constant 0 : i32
    %c0_i32_1 = arith.constant 0 : i32
    return %c0_i32, %c0_i32_0 : i32, i32
  }
  func.func @transform_26(%arg0: i32) -> (i32, i32) {
    %c0_i32 = arith.constant 0 : i32
    %c0_i32_0 = arith.constant 0 : i32
    %c0_i32_1 = arith.constant 0 : i32
    return %c0_i32, %c0_i32_0 : i32, i32
  }
  func.func @transform_27(%arg0: i32) -> (i32, i32) {
    %c0_i32 = arith.constant 0 : i32
    %c0_i32_0 = arith.constant 0 : i32
    %c0_i32_1 = arith.constant 0 : i32
    return %c0_i32, %c0_i32_0 : i32, i32
  }
  func.func @transform_28(%arg0: i32) -> (i32, i32) {
    %c0_i32 = arith.constant 0 : i32
    %c0_i32_0 = arith.constant 0 : i32
    %c0_i32_1 = arith.constant 0 : i32
    return %c0_i32, %c0_i32_0 : i32, i32
  }
  func.func @transform_29(%arg0: i32) -> (i32, i32) {
    %c0_i32 = arith.constant 0 : i32
    %c0_i32_0 = arith.constant 0 : i32
    %c0_i32_1 = arith.constant 0 : i32
    return %c0_i32, %c0_i32_0 : i32, i32
  }
  func.func @transform_30(%arg0: i32) -> (i32, i32) {
    %c0_i32 = arith.constant 0 : i32
    %c0_i32_0 = arith.constant 0 : i32
    %c0_i32_1 = arith.constant 0 : i32
    return %c0_i32, %c0_i32_0 : i32, i32
  }
  func.func @transform_31(%arg0: i32) -> (i32, i32, i32) {
    %c0_i32 = arith.constant 0 : i32
    %c0_i32_0 = arith.constant 0 : i32
    %c0_i32_1 = arith.constant 0 : i32
    return %arg0, %c0_i32, %c0_i32_0 : i32, i32, i32
  }
}

</mosaic_0001>

<llo_original>
// kernel: polygon_net_forward.1
$region0: #{polygon_net_forward.1}
  #allocation0 [shape = 'u32[]', space=smem, size = 0x4, offset = 0x4, fixed_abs, tag = 'smem constant byte address 0x4 - core index']
  #allocation1 [shape = 'u32[144,128]{1,0:T(1,128)}', space=vmem, size = 0x12000, scoped, tag = 'internal scratch']
  %s0 = inlined_call_operand.smem [shape: u32[32], index: -1, kind: input, shape index: {}]
  %s1 = sld [smem:[%s0]]
  %s2 = scalar_lea.smem %s0, 1
  %s3 = sld [smem:[%s2]]
  %s4 = scalar_lea.smem %s0, 2
  %s5 = sld [smem:[%s4]]
  %s6 = scalar_lea.smem %s0, 3
  %s7 = sld [smem:[%s6]]
  %s8 = scalar_lea.smem %s0, 4
  %s9 = sld [smem:[%s8]]
  %s10 = scalar_lea.smem %s0, 5
  %s11 = sld [smem:[%s10]]
  %s12 = scalar_lea.smem %s0, 6
  %s13 = sld [smem:[%s12]]
  %s14 = scalar_lea.smem %s0, 7
  %s15 = sld [smem:[%s14]]
  %s16 = scalar_lea.smem %s0, 8
  %s17 = sld [smem:[%s16]]
  %s18 = scalar_lea.smem %s0, 9
  %s19 = sld [smem:[%s18]]
  %s20 = scalar_lea.smem %s0, 10
  %s21 = sld [smem:[%s20]]
  %s22 = scalar_lea.smem %s0, 11
  %s23 = sld [smem:[%s22]]
  %s24 = scalar_lea.smem %s0, 12
  %s25 = sld [smem:[%s24]]
  %s26 = scalar_lea.smem %s0, 13
  %s27 = sld [smem:[%s26]]
  %s28 = scalar_lea.smem %s0, 14
  %s29 = sld [smem:[%s28]]
  %s30 = scalar_lea.smem %s0, 15
  %s31 = sld [smem:[%s30]]
  %s32 = scalar_lea.smem %s0, 16
  %s33 = sld [smem:[%s32]]
  %s34 = scalar_lea.smem %s0, 17
  %s35 = sld [smem:[%s34]]
  %s36 = scalar_lea.smem %s0, 18
  %s37 = sld [smem:[%s36]]
  %s38 = scalar_lea.smem %s0, 19
  %s39 = sld [smem:[%s38]]
  %s40 = scalar_lea.smem %s0, 20
  %s41 = sld [smem:[%s40]]
  %s42 = scalar_lea.smem %s0, 21
  %s43 = sld [smem:[%s42]]
  %s44 = scalar_lea.smem %s0, 22
  %s45 = sld [smem:[%s44]]
  %s46 = scalar_lea.smem %s0, 23
  %s47 = sld [smem:[%s46]]
  %s48 = scalar_lea.smem %s0, 24
  %s49 = sld [smem:[%s48]]
  %s50 = scalar_lea.smem %s0, 25
  %s51 = sld [smem:[%s50]]
  %s52 = scalar_lea.smem %s0, 26
  %s53 = sld [smem:[%s52]]
  %s54 = scalar_lea.smem %s0, 27
  %s55 = sld [smem:[%s54]]
  %s56 = scalar_lea.smem %s0, 28
  %s57 = sld [smem:[%s56]]
  %s58 = scalar_lea.smem %s0, 29
  %s59 = sld [smem:[%s58]]
  %s60 = scalar_lea.smem %s0, 30
  %s61 = sld [smem:[%s60]]
  %s62 = scalar_lea.smem %s0, 31
  %s63 = sld [smem:[%s62]]
  %s64 = sld [smem:[#allocation0]]
  $region157: #{polygon_net_forward.1} parent=0
    _
  %s66 = ssub.s32 1, %s64
  %s67 = scalar_select 0, %s66, %s64
  loop: start=0, step=1, limit=4
  $region2: #{polygon_net_forward.1} parent=0 // loop_pre_header
    _
  $region3: #{polygon_net_forward.1} parent=0 // loop_header
    %s69 = sphi 0, %s73
    %p70 = scmp.ge.s32.totalorder %s69, 4
    %s79 = sphi 0, %s81
    %s82 = sphi 0, %s79
    %s83 = sphi 0, %s82
    %s99 = sphi 0, %s83
    %s103 = sphi 0, %s103
    %s105 = sphi 0, %s103
    %s106 = sphi 0, %s105
    %s120 = sphi 0, %s106
    %s124 = sphi 0, %s124
    %s126 = sphi 0, %s124
    %s127 = sphi 0, %s126
    %s141 = sphi 0, %s127
    %s145 = sphi 0, %s145
    %s147 = sphi 0, %s145
    %s148 = sphi 0, %s147
    %s162 = sphi 0, %s148
    %s166 = sphi 0, %s166
    %s168 = sphi 0, %s166
    %s169 = sphi 0, %s168
    %s183 = sphi 0, %s169
    %s187 = sphi 0, %s187
    %s189 = sphi 0, %s187
    %s190 = sphi 0, %s189
    %s204 = sphi 0, %s190
    %s208 = sphi 0, %s208
    %s210 = sphi 0, %s208
    %s211 = sphi 0, %s210
    %s225 = sphi 0, %s211
    %s229 = sphi 0, %s229
    %s231 = sphi 0, %s229
    %s232 = sphi 0, %s231
    %s246 = sphi 0, %s232
    %s250 = sphi 0, %s250
    %s252 = sphi 0, %s250
    %s253 = sphi 0, %s252
    %s267 = sphi 0, %s253
    %s271 = sphi 0, %s271
    %s273 = sphi 0, %s271
    %s274 = sphi 0, %s273
    %s288 = sphi 0, %s274
    %s292 = sphi 0, %s292
    %s294 = sphi 0, %s292
    %s295 = sphi 0, %s294
    %s309 = sphi 0, %s295
    %s313 = sphi 0, %s313
    %s315 = sphi 0, %s313
    %s316 = sphi 0, %s315
    %s330 = sphi 0, %s316
    %s334 = sphi 0, %s334
    %s336 = sphi 0, %s334
    %s337 = sphi 0, %s336
    %s351 = sphi 0, %s337
    %s355 = sphi 0, %s355
    %s357 = sphi 0, %s355
    %s358 = sphi 0, %s357
    %s372 = sphi 0, %s358
    %s376 = sphi 0, %s376
    %s378 = sphi 0, %s376
    %s379 = sphi 0, %s378
    %s393 = sphi 0, %s379
    %s397 = sphi 0, %s397
    %s399 = sphi 0, %s397
    %s400 = sphi 0, %s399
    %s414 = sphi 0, %s400
    %s418 = sphi 0, %s418
    %s420 = sphi 0, %s418
    %s421 = sphi 0, %s420
    %s435 = sphi 0, %s421
    %s439 = sphi 0, %s439
    %s441 = sphi 0, %s439
    %s442 = sphi 0, %s441
    %s456 = sphi 0, %s442
    %s460 = sphi 0, %s460
    %s462 = sphi 0, %s460
    %s463 = sphi 0, %s462
    %s477 = sphi 0, %s463
    %s481 = sphi 0, %s481
    %s483 = sphi 0, %s481
    %s484 = sphi 0, %s483
    %s498 = sphi 0, %s484
    %s502 = sphi 0, %s502
    %s504 = sphi 0, %s502
    %s505 = sphi 0, %s504
    %s519 = sphi 0, %s505
    %s523 = sphi 0, %s523
    %s525 = sphi 0, %s523
    %s526 = sphi 0, %s525
    %s540 = sphi 0, %s526
    %s544 = sphi 0, %s544
    %s546 = sphi 0, %s544
    %s547 = sphi 0, %s546
    %s561 = sphi 0, %s547
    %s565 = sphi 0, %s565
    %s567 = sphi 0, %s565
    %s568 = sphi 0, %s567
    %s582 = sphi 0, %s568
    %s586 = sphi 0, %s586
    %s588 = sphi 0, %s586
    %s589 = sphi 0, %s588
    %s603 = sphi 0, %s589
    %s607 = sphi 0, %s607
    %s609 = sphi 0, %s607
    %s610 = sphi 0, %s609
    %s624 = sphi 0, %s610
    %s628 = sphi 0, %s628
    %s630 = sphi 0, %s628
    %s631 = sphi 0, %s630
    %s645 = sphi 0, %s631
    %s649 = sphi 0, %s649
    %s651 = sphi 0, %s649
    %s652 = sphi 0, %s651
    %s666 = sphi 0, %s652
    %s670 = sphi 0, %s670
    %s672 = sphi 0, %s670
    %s673 = sphi 0, %s672
    %s687 = sphi 0, %s673
    %s691 = sphi 0, %s691
    %s693 = sphi 0, %s691
    %s694 = sphi 0, %s693
    %s708 = sphi 0, %s694
    %s712 = sphi 0, %s712
    %s714 = sphi 0, %s712
    %s715 = sphi 0, %s714
    %s729 = sphi 0, %s715
    %s735 = sphi 0, %s737
    %s738 = sphi 0, %s735
    %s739 = sphi 0, %s738
    %s755 = sphi 0, %s739
  $region4: #{polygon_net_forward.1} parent=0 // loop_header_branch
    %72 = sbr.rel (%p70) target = $region8
  $region5: #{polygon_net_forward.1} parent=0 // loop_body
    %s74 = ssub.s32 %s69, 1
    %s75 = ssub.s32 %s69, 2
    %s76 = sadd.s32 %s69, 1
    %s77 = ssub.s32 %s69, %s76
    %p78 = scmp.eq.s32.totalorder %s77, 0
    %s80 = sadd.s32 %s79, 1
    %s81 = scalar_select %p78, %s79, %s80
    %p84 = pneg %p78
    %p85 = scmp.eq.s32.totalorder %s69, 1
    %p86 = por %p84, %p85
    %p87 = scmp.ne.s32.totalorder %s79, %s82
    %p88 = scmp.eq.s32.totalorder %s69, 0
    %p89 = por %p87, %p88
    %p90 = scmp.ne.s32.totalorder %s79, %s82
    %p91 = scmp.eq.s32.totalorder %s74, 1
    %p92 = por %p90, %p91
    %p93 = scmp.ne.s32.totalorder %s82, %s83
    %p94 = scmp.eq.s32.totalorder %s74, 0
    %p95 = por %p93, %p94
    %p96 = scmp.ne.s32.totalorder %s82, %s83
    %p97 = scmp.eq.s32.totalorder %s75, 1
    %p98 = por %p96, %p97
    %p100 = scmp.ne.s32.totalorder %s83, %s99
    %p101 = scmp.eq.s32.totalorder %s75, 0
    %p102 = por %p100, %p101
    %s104 = sadd.s32 %s103, 1
    %p107 = scmp.eq.s32.totalorder %s69, 1
    %p108 = scmp.ne.s32.totalorder %s103, %s105
    %p109 = scmp.eq.s32.totalorder %s69, 0
    %p110 = por %p108, %p109
    %p111 = scmp.ne.s32.totalorder %s103, %s105
    %p112 = scmp.eq.s32.totalorder %s74, 1
    %p113 = por %p111, %p112
    %p114 = scmp.ne.s32.totalorder %s105, %s106
    %p115 = scmp.eq.s32.totalorder %s74, 0
    %p116 = por %p114, %p115
    %p117 = scmp.ne.s32.totalorder %s105, %s106
    %p118 = scmp.eq.s32.totalorder %s75, 1
    %p119 = por %p117, %p118
    %p121 = scmp.ne.s32.totalorder %s106, %s120
    %p122 = scmp.eq.s32.totalorder %s75, 0
    %p123 = por %p121, %p122
    %s125 = sadd.s32 %s124, 1
    %p128 = scmp.eq.s32.totalorder %s69, 1
    %p129 = scmp.ne.s32.totalorder %s124, %s126
    %p130 = scmp.eq.s32.totalorder %s69, 0
    %p131 = por %p129, %p130
    %p132 = scmp.ne.s32.totalorder %s124, %s126
    %p133 = scmp.eq.s32.totalorder %s74, 1
    %p134 = por %p132, %p133
    %p135 = scmp.ne.s32.totalorder %s126, %s127
    %p136 = scmp.eq.s32.totalorder %s74, 0
    %p137 = por %p135, %p136
    %p138 = scmp.ne.s32.totalorder %s126, %s127
    %p139 = scmp.eq.s32.totalorder %s75, 1
    %p140 = por %p138, %p139
    %p142 = scmp.ne.s32.totalorder %s127, %s141
    %p143 = scmp.eq.s32.totalorder %s75, 0
    %p144 = por %p142, %p143
    %s146 = sadd.s32 %s145, 1
    %p149 = scmp.eq.s32.totalorder %s69, 1
    %p150 = scmp.ne.s32.totalorder %s145, %s147
    %p151 = scmp.eq.s32.totalorder %s69, 0
    %p152 = por %p150, %p151
    %p153 = scmp.ne.s32.totalorder %s145, %s147
    %p154 = scmp.eq.s32.totalorder %s74, 1
    %p155 = por %p153, %p154
    %p156 = scmp.ne.s32.totalorder %s147, %s148
    %p157 = scmp.eq.s32.totalorder %s74, 0
    %p158 = por %p156, %p157
    %p159 = scmp.ne.s32.totalorder %s147, %s148
    %p160 = scmp.eq.s32.totalorder %s75, 1
    %p161 = por %p159, %p160
    %p163 = scmp.ne.s32.totalorder %s148, %s162
    %p164 = scmp.eq.s32.totalorder %s75, 0
    %p165 = por %p163, %p164
    %s167 = sadd.s32 %s166, 1
    %p170 = scmp.eq.s32.totalorder %s69, 1
    %p171 = scmp.ne.s32.totalorder %s166, %s168
    %p172 = scmp.eq.s32.totalorder %s69, 0
    %p173 = por %p171, %p172
    %p174 = scmp.ne.s32.totalorder %s166, %s168
    %p175 = scmp.eq.s32.totalorder %s74, 1
    %p176 = por %p174, %p175
    %p177 = scmp.ne.s32.totalorder %s168, %s169
    %p178 = scmp.eq.s32.totalorder %s74, 0
    %p179 = por %p177, %p178
    %p180 = scmp.ne.s32.totalorder %s168, %s169
    %p181 = scmp.eq.s32.totalorder %s75, 1
    %p182 = por %p180, %p181
    %p184 = scmp.ne.s32.totalorder %s169, %s183
    %p185 = scmp.eq.s32.totalorder %s75, 0
    %p186 = por %p184, %p185
    %s188 = sadd.s32 %s187, 1
    %p191 = scmp.eq.s32.totalorder %s69, 1
    %p192 = scmp.ne.s32.totalorder %s187, %s189
    %p193 = scmp.eq.s32.totalorder %s69, 0
    %p194 = por %p192, %p193
    %p195 = scmp.ne.s32.totalorder %s187, %s189
    %p196 = scmp.eq.s32.totalorder %s74, 1
    %p197 = por %p195, %p196
    %p198 = scmp.ne.s32.totalorder %s189, %s190
    %p199 = scmp.eq.s32.totalorder %s74, 0
    %p200 = por %p198, %p199
    %p201 = scmp.ne.s32.totalorder %s189, %s190
    %p202 = scmp.eq.s32.totalorder %s75, 1
    %p203 = por %p201, %p202
    %p205 = scmp.ne.s32.totalorder %s190, %s204
    %p206 = scmp.eq.s32.totalorder %s75, 0
    %p207 = por %p205, %p206
    %s209 = sadd.s32 %s208, 1
    %p212 = scmp.eq.s32.totalorder %s69, 1
    %p213 = scmp.ne.s32.totalorder %s208, %s210
    %p214 = scmp.eq.s32.totalorder %s69, 0
    %p215 = por %p213, %p214
    %p216 = scmp.ne.s32.totalorder %s208, %s210
    %p217 = scmp.eq.s32.totalorder %s74, 1
    %p218 = por %p216, %p217
    %p219 = scmp.ne.s32.totalorder %s210, %s211
    %p220 = scmp.eq.s32.totalorder %s74, 0
    %p221 = por %p219, %p220
    %p222 = scmp.ne.s32.totalorder %s210, %s211
    %p223 = scmp.eq.s32.totalorder %s75, 1
    %p224 = por %p222, %p223
    %p226 = scmp.ne.s32.totalorder %s211, %s225
    %p227 = scmp.eq.s32.totalorder %s75, 0
    %p228 = por %p226, %p227
    %s230 = sadd.s32 %s229, 1
    %p233 = scmp.eq.s32.totalorder %s69, 1
    %p234 = scmp.ne.s32.totalorder %s229, %s231
    %p235 = scmp.eq.s32.totalorder %s69, 0
    %p236 = por %p234, %p235
    %p237 = scmp.ne.s32.totalorder %s229, %s231
    %p238 = scmp.eq.s32.totalorder %s74, 1
    %p239 = por %p237, %p238
    %p240 = scmp.ne.s32.totalorder %s231, %s232
    %p241 = scmp.eq.s32.totalorder %s74, 0
    %p242 = por %p240, %p241
    %p243 = scmp.ne.s32.totalorder %s231, %s232
    %p244 = scmp.eq.s32.totalorder %s75, 1
    %p245 = por %p243, %p244
    %p247 = scmp.ne.s32.totalorder %s232, %s246
    %p248 = scmp.eq.s32.totalorder %s75, 0
    %p249 = por %p247, %p248
    %s251 = sadd.s32 %s250, 1
    %p254 = scmp.eq.s32.totalorder %s69, 1
    %p255 = scmp.ne.s32.totalorder %s250, %s252
    %p256 = scmp.eq.s32.totalorder %s69, 0
    %p257 = por %p255, %p256
    %p258 = scmp.ne.s32.totalorder %s250, %s252
    %p259 = scmp.eq.s32.totalorder %s74, 1
    %p260 = por %p258, %p259
    %p261 = scmp.ne.s32.totalorder %s252, %s253
    %p262 = scmp.eq.s32.totalorder %s74, 0
    %p263 = por %p261, %p262
    %p264 = scmp.ne.s32.totalorder %s252, %s253
    %p265 = scmp.eq.s32.totalorder %s75, 1
    %p266 = por %p264, %p265
    %p268 = scmp.ne.s32.totalorder %s253, %s267
    %p269 = scmp.eq.s32.totalorder %s75, 0
    %p270 = por %p268, %p269
    %s272 = sadd.s32 %s271, 1
    %p275 = scmp.eq.s32.totalorder %s69, 1
    %p276 = scmp.ne.s32.totalorder %s271, %s273
    %p277 = scmp.eq.s32.totalorder %s69, 0
    %p278 = por %p276, %p277
    %p279 = scmp.ne.s32.totalorder %s271, %s273
    %p280 = scmp.eq.s32.totalorder %s74, 1
    %p281 = por %p279, %p280
    %p282 = scmp.ne.s32.totalorder %s273, %s274
    %p283 = scmp.eq.s32.totalorder %s74, 0
    %p284 = por %p282, %p283
    %p285 = scmp.ne.s32.totalorder %s273, %s274
    %p286 = scmp.eq.s32.totalorder %s75, 1
    %p287 = por %p285, %p286
    %p289 = scmp.ne.s32.totalorder %s274, %s288
    %p290 = scmp.eq.s32.totalorder %s75, 0
    %p291 = por %p289, %p290
    %s293 = sadd.s32 %s292, 1
    %p296 = scmp.eq.s32.totalorder %s69, 1
    %p297 = scmp.ne.s32.totalorder %s292, %s294
    %p298 = scmp.eq.s32.totalorder %s69, 0
    %p299 = por %p297, %p298
    %p300 = scmp.ne.s32.totalorder %s292, %s294
    %p301 = scmp.eq.s32.totalorder %s74, 1
    %p302 = por %p300, %p301
    %p303 = scmp.ne.s32.totalorder %s294, %s295
    %p304 = scmp.eq.s32.totalorder %s74, 0
    %p305 = por %p303, %p304
    %p306 = scmp.ne.s32.totalorder %s294, %s295
    %p307 = scmp.eq.s32.totalorder %s75, 1
    %p308 = por %p306, %p307
    %p310 = scmp.ne.s32.totalorder %s295, %s309
    %p311 = scmp.eq.s32.totalorder %s75, 0
    %p312 = por %p310, %p311
    %s314 = sadd.s32 %s313, 1
    %p317 = scmp.eq.s32.totalorder %s69, 1
    %p318 = scmp.ne.s32.totalorder %s313, %s315
    %p319 = scmp.eq.s32.totalorder %s69, 0
    %p320 = por %p318, %p319
    %p321 = scmp.ne.s32.totalorder %s313, %s315
    %p322 = scmp.eq.s32.totalorder %s74, 1
    %p323 = por %p321, %p322
    %p324 = scmp.ne.s32.totalorder %s315, %s316
    %p325 = scmp.eq.s32.totalorder %s74, 0
    %p326 = por %p324, %p325
    %p327 = scmp.ne.s32.totalorder %s315, %s316
    %p328 = scmp.eq.s32.totalorder %s75, 1
    %p329 = por %p327, %p328
    %p331 = scmp.ne.s32.totalorder %s316, %s330
    %p332 = scmp.eq.s32.totalorder %s75, 0
    %p333 = por %p331, %p332
    %s335 = sadd.s32 %s334, 1
    %p338 = scmp.eq.s32.totalorder %s69, 1
    %p339 = scmp.ne.s32.totalorder %s334, %s336
    %p340 = scmp.eq.s32.totalorder %s69, 0
    %p341 = por %p339, %p340
    %p342 = scmp.ne.s32.totalorder %s334, %s336
    %p343 = scmp.eq.s32.totalorder %s74, 1
    %p344 = por %p342, %p343
    %p345 = scmp.ne.s32.totalorder %s336, %s337
    %p346 = scmp.eq.s32.totalorder %s74, 0
    %p347 = por %p345, %p346
    %p348 = scmp.ne.s32.totalorder %s336, %s337
    %p349 = scmp.eq.s32.totalorder %s75, 1
    %p350 = por %p348, %p349
    %p352 = scmp.ne.s32.totalorder %s337, %s351
    %p353 = scmp.eq.s32.totalorder %s75, 0
    %p354 = por %p352, %p353
    %s356 = sadd.s32 %s355, 1
    %p359 = scmp.eq.s32.totalorder %s69, 1
    %p360 = scmp.ne.s32.totalorder %s355, %s357
    %p361 = scmp.eq.s32.totalorder %s69, 0
    %p362 = por %p360, %p361
    %p363 = scmp.ne.s32.totalorder %s355, %s357
    %p364 = scmp.eq.s32.totalorder %s74, 1
    %p365 = por %p363, %p364
    %p366 = scmp.ne.s32.totalorder %s357, %s358
    %p367 = scmp.eq.s32.totalorder %s74, 0
    %p368 = por %p366, %p367
    %p369 = scmp.ne.s32.totalorder %s357, %s358
    %p370 = scmp.eq.s32.totalorder %s75, 1
    %p371 = por %p369, %p370
    %p373 = scmp.ne.s32.totalorder %s358, %s372
    %p374 = scmp.eq.s32.totalorder %s75, 0
    %p375 = por %p373, %p374
    %s377 = sadd.s32 %s376, 1
    %p380 = scmp.eq.s32.totalorder %s69, 1
    %p381 = scmp.ne.s32.totalorder %s376, %s378
    %p382 = scmp.eq.s32.totalorder %s69, 0
    %p383 = por %p381, %p382
    %p384 = scmp.ne.s32.totalorder %s376, %s378
    %p385 = scmp.eq.s32.totalorder %s74, 1
    %p386 = por %p384, %p385
    %p387 = scmp.ne.s32.totalorder %s378, %s379
    %p388 = scmp.eq.s32.totalorder %s74, 0
    %p389 = por %p387, %p388
    %p390 = scmp.ne.s32.totalorder %s378, %s379
    %p391 = scmp.eq.s32.totalorder %s75, 1
    %p392 = por %p390, %p391
    %p394 = scmp.ne.s32.totalorder %s379, %s393
    %p395 = scmp.eq.s32.totalorder %s75, 0
    %p396 = por %p394, %p395
    %s398 = sadd.s32 %s397, 1
    %p401 = scmp.eq.s32.totalorder %s69, 1
    %p402 = scmp.ne.s32.totalorder %s397, %s399
    %p403 = scmp.eq.s32.totalorder %s69, 0
    %p404 = por %p402, %p403
    %p405 = scmp.ne.s32.totalorder %s397, %s399
    %p406 = scmp.eq.s32.totalorder %s74, 1
    %p407 = por %p405, %p406
    %p408 = scmp.ne.s32.totalorder %s399, %s400
    %p409 = scmp.eq.s32.totalorder %s74, 0
    %p410 = por %p408, %p409
    %p411 = scmp.ne.s32.totalorder %s399, %s400
    %p412 = scmp.eq.s32.totalorder %s75, 1
    %p413 = por %p411, %p412
    %p415 = scmp.ne.s32.totalorder %s400, %s414
    %p416 = scmp.eq.s32.totalorder %s75, 0
    %p417 = por %p415, %p416
    %s419 = sadd.s32 %s418, 1
    %p422 = scmp.eq.s32.totalorder %s69, 1
    %p423 = scmp.ne.s32.totalorder %s418, %s420
    %p424 = scmp.eq.s32.totalorder %s69, 0
    %p425 = por %p423, %p424
    %p426 = scmp.ne.s32.totalorder %s418, %s420
    %p427 = scmp.eq.s32.totalorder %s74, 1
    %p428 = por %p426, %p427
    %p429 = scmp.ne.s32.totalorder %s420, %s421
    %p430 = scmp.eq.s32.totalorder %s74, 0
    %p431 = por %p429, %p430
    %p432 = scmp.ne.s32.totalorder %s420, %s421
    %p433 = scmp.eq.s32.totalorder %s75, 1
    %p434 = por %p432, %p433
    %p436 = scmp.ne.s32.totalorder %s421, %s435
    %p437 = scmp.eq.s32.totalorder %s75, 0
    %p438 = por %p436, %p437
    %s440 = sadd.s32 %s439, 1
    %p443 = scmp.eq.s32.totalorder %s69, 1
    %p444 = scmp.ne.s32.totalorder %s439, %s441
    %p445 = scmp.eq.s32.totalorder %s69, 0
    %p446 = por %p444, %p445
    %p447 = scmp.ne.s32.totalorder %s439, %s441
    %p448 = scmp.eq.s32.totalorder %s74, 1
    %p449 = por %p447, %p448
    %p450 = scmp.ne.s32.totalorder %s441, %s442
    %p451 = scmp.eq.s32.totalorder %s74, 0
    %p452 = por %p450, %p451
    %p453 = scmp.ne.s32.totalorder %s441, %s442
    %p454 = scmp.eq.s32.totalorder %s75, 1
    %p455 = por %p453, %p454
    %p457 = scmp.ne.s32.totalorder %s442, %s456
    %p458 = scmp.eq.s32.totalorder %s75, 0
    %p459 = por %p457, %p458
    %s461 = sadd.s32 %s460, 1
    %p464 = scmp.eq.s32.totalorder %s69, 1
    %p465 = scmp.ne.s32.totalorder %s460, %s462
    %p466 = scmp.eq.s32.totalorder %s69, 0
    %p467 = por %p465, %p466
    %p468 = scmp.ne.s32.totalorder %s460, %s462
    %p469 = scmp.eq.s32.totalorder %s74, 1
    %p470 = por %p468, %p469
    %p471 = scmp.ne.s32.totalorder %s462, %s463
    %p472 = scmp.eq.s32.totalorder %s74, 0
    %p473 = por %p471, %p472
    %p474 = scmp.ne.s32.totalorder %s462, %s463
    %p475 = scmp.eq.s32.totalorder %s75, 1
    %p476 = por %p474, %p475
    %p478 = scmp.ne.s32.totalorder %s463, %s477
    %p479 = scmp.eq.s32.totalorder %s75, 0
    %p480 = por %p478, %p479
    %s482 = sadd.s32 %s481, 1
    %p485 = scmp.eq.s32.totalorder %s69, 1
    %p486 = scmp.ne.s32.totalorder %s481, %s483
    %p487 = scmp.eq.s32.totalorder %s69, 0
    %p488 = por %p486, %p487
    %p489 = scmp.ne.s32.totalorder %s481, %s483
    %p490 = scmp.eq.s32.totalorder %s74, 1
    %p491 = por %p489, %p490
    %p492 = scmp.ne.s32.totalorder %s483, %s484
    %p493 = scmp.eq.s32.totalorder %s74, 0
    %p494 = por %p492, %p493
    %p495 = scmp.ne.s32.totalorder %s483, %s484
    %p496 = scmp.eq.s32.totalorder %s75, 1
    %p497 = por %p495, %p496
    %p499 = scmp.ne.s32.totalorder %s484, %s498
    %p500 = scmp.eq.s32.totalorder %s75, 0
    %p501 = por %p499, %p500
    %s503 = sadd.s32 %s502, 1
    %p506 = scmp.eq.s32.totalorder %s69, 1
    %p507 = scmp.ne.s32.totalorder %s502, %s504
    %p508 = scmp.eq.s32.totalorder %s69, 0
    %p509 = por %p507, %p508
    %p510 = scmp.ne.s32.totalorder %s502, %s504
    %p511 = scmp.eq.s32.totalorder %s74, 1
    %p512 = por %p510, %p511
    %p513 = scmp.ne.s32.totalorder %s504, %s505
    %p514 = scmp.eq.s32.totalorder %s74, 0
    %p515 = por %p513, %p514
    %p516 = scmp.ne.s32.totalorder %s504, %s505
    %p517 = scmp.eq.s32.totalorder %s75, 1
    %p518 = por %p516, %p517
    %p520 = scmp.ne.s32.totalorder %s505, %s519
    %p521 = scmp.eq.s32.totalorder %s75, 0
    %p522 = por %p520, %p521
    %s524 = sadd.s32 %s523, 1
    %p527 = scmp.eq.s32.totalorder %s69, 1
    %p528 = scmp.ne.s32.totalorder %s523, %s525
    %p529 = scmp.eq.s32.totalorder %s69, 0
    %p530 = por %p528, %p529
    %p531 = scmp.ne.s32.totalorder %s523, %s525
    %p532 = scmp.eq.s32.totalorder %s74, 1
    %p533 = por %p531, %p532
    %p534 = scmp.ne.s32.totalorder %s525, %s526
    %p535 = scmp.eq.s32.totalorder %s74, 0
    %p536 = por %p534, %p535
    %p537 = scmp.ne.s32.totalorder %s525, %s526
    %p538 = scmp.eq.s32.totalorder %s75, 1
    %p539 = por %p537, %p538
    %p541 = scmp.ne.s32.totalorder %s526, %s540
    %p542 = scmp.eq.s32.totalorder %s75, 0
    %p543 = por %p541, %p542
    %s545 = sadd.s32 %s544, 1
    %p548 = scmp.eq.s32.totalorder %s69, 1
    %p549 = scmp.ne.s32.totalorder %s544, %s546
    %p550 = scmp.eq.s32.totalorder %s69, 0
    %p551 = por %p549, %p550
    %p552 = scmp.ne.s32.totalorder %s544, %s546
    %p553 = scmp.eq.s32.totalorder %s74, 1
    %p554 = por %p552, %p553
    %p555 = scmp.ne.s32.totalorder %s546, %s547
    %p556 = scmp.eq.s32.totalorder %s74, 0
    %p557 = por %p555, %p556
    %p558 = scmp.ne.s32.totalorder %s546, %s547
    %p559 = scmp.eq.s32.totalorder %s75, 1
    %p560 = por %p558, %p559
    %p562 = scmp.ne.s32.totalorder %s547, %s561
    %p563 = scmp.eq.s32.totalorder %s75, 0
    %p564 = por %p562, %p563
    %s566 = sadd.s32 %s565, 1
    %p569 = scmp.eq.s32.totalorder %s69, 1
    %p570 = scmp.ne.s32.totalorder %s565, %s567
    %p571 = scmp.eq.s32.totalorder %s69, 0
    %p572 = por %p570, %p571
    %p573 = scmp.ne.s32.totalorder %s565, %s567
    %p574 = scmp.eq.s32.totalorder %s74, 1
    %p575 = por %p573, %p574
    %p576 = scmp.ne.s32.totalorder %s567, %s568
    %p577 = scmp.eq.s32.totalorder %s74, 0
    %p578 = por %p576, %p577
    %p579 = scmp.ne.s32.totalorder %s567, %s568
    %p580 = scmp.eq.s32.totalorder %s75, 1
    %p581 = por %p579, %p580
    %p583 = scmp.ne.s32.totalorder %s568, %s582
    %p584 = scmp.eq.s32.totalorder %s75, 0
    %p585 = por %p583, %p584
    %s587 = sadd.s32 %s586, 1
    %p590 = scmp.eq.s32.totalorder %s69, 1
    %p591 = scmp.ne.s32.totalorder %s586, %s588
    %p592 = scmp.eq.s32.totalorder %s69, 0
    %p593 = por %p591, %p592
    %p594 = scmp.ne.s32.totalorder %s586, %s588
    %p595 = scmp.eq.s32.totalorder %s74, 1
    %p596 = por %p594, %p595
    %p597 = scmp.ne.s32.totalorder %s588, %s589
    %p598 = scmp.eq.s32.totalorder %s74, 0
    %p599 = por %p597, %p598
    %p600 = scmp.ne.s32.totalorder %s588, %s589
    %p601 = scmp.eq.s32.totalorder %s75, 1
    %p602 = por %p600, %p601
    %p604 = scmp.ne.s32.totalorder %s589, %s603
    %p605 = scmp.eq.s32.totalorder %s75, 0
    %p606 = por %p604, %p605
    %s608 = sadd.s32 %s607, 1
    %p611 = scmp.eq.s32.totalorder %s69, 1
    %p612 = scmp.ne.s32.totalorder %s607, %s609
    %p613 = scmp.eq.s32.totalorder %s69, 0
    %p614 = por %p612, %p613
    %p615 = scmp.ne.s32.totalorder %s607, %s609
    %p616 = scmp.eq.s32.totalorder %s74, 1
    %p617 = por %p615, %p616
    %p618 = scmp.ne.s32.totalorder %s609, %s610
    %p619 = scmp.eq.s32.totalorder %s74, 0
    %p620 = por %p618, %p619
    %p621 = scmp.ne.s32.totalorder %s609, %s610
    %p622 = scmp.eq.s32.totalorder %s75, 1
    %p623 = por %p621, %p622
    %p625 = scmp.ne.s32.totalorder %s610, %s624
    %p626 = scmp.eq.s32.totalorder %s75, 0
    %p627 = por %p625, %p626
    %s629 = sadd.s32 %s628, 1
    %p632 = scmp.eq.s32.totalorder %s69, 1
    %p633 = scmp.ne.s32.totalorder %s628, %s630
    %p634 = scmp.eq.s32.totalorder %s69, 0
    %p635 = por %p633, %p634
    %p636 = scmp.ne.s32.totalorder %s628, %s630
    %p637 = scmp.eq.s32.totalorder %s74, 1
    %p638 = por %p636, %p637
    %p639 = scmp.ne.s32.totalorder %s630, %s631
    %p640 = scmp.eq.s32.totalorder %s74, 0
    %p641 = por %p639, %p640
    %p642 = scmp.ne.s32.totalorder %s630, %s631
    %p643 = scmp.eq.s32.totalorder %s75, 1
    %p644 = por %p642, %p643
    %p646 = scmp.ne.s32.totalorder %s631, %s645
    %p647 = scmp.eq.s32.totalorder %s75, 0
    %p648 = por %p646, %p647
    %s650 = sadd.s32 %s649, 1
    %p653 = scmp.eq.s32.totalorder %s69, 1
    %p654 = scmp.ne.s32.totalorder %s649, %s651
    %p655 = scmp.eq.s32.totalorder %s69, 0
    %p656 = por %p654, %p655
    %p657 = scmp.ne.s32.totalorder %s649, %s651
    %p658 = scmp.eq.s32.totalorder %s74, 1
    %p659 = por %p657, %p658
    %p660 = scmp.ne.s32.totalorder %s651, %s652
    %p661 = scmp.eq.s32.totalorder %s74, 0
    %p662 = por %p660, %p661
    %p663 = scmp.ne.s32.totalorder %s651, %s652
    %p664 = scmp.eq.s32.totalorder %s75, 1
    %p665 = por %p663, %p664
    %p667 = scmp.ne.s32.totalorder %s652, %s666
    %p668 = scmp.eq.s32.totalorder %s75, 0
    %p669 = por %p667, %p668
    %s671 = sadd.s32 %s670, 1
    %p674 = scmp.eq.s32.totalorder %s69, 1
    %p675 = scmp.ne.s32.totalorder %s670, %s672
    %p676 = scmp.eq.s32.totalorder %s69, 0
    %p677 = por %p675, %p676
    %p678 = scmp.ne.s32.totalorder %s670, %s672
    %p679 = scmp.eq.s32.totalorder %s74, 1
    %p680 = por %p678, %p679
    %p681 = scmp.ne.s32.totalorder %s672, %s673
    %p682 = scmp.eq.s32.totalorder %s74, 0
    %p683 = por %p681, %p682
    %p684 = scmp.ne.s32.totalorder %s672, %s673
    %p685 = scmp.eq.s32.totalorder %s75, 1
    %p686 = por %p684, %p685
    %p688 = scmp.ne.s32.totalorder %s673, %s687
    %p689 = scmp.eq.s32.totalorder %s75, 0
    %p690 = por %p688, %p689
    %s692 = sadd.s32 %s691, 1
    %p695 = scmp.eq.s32.totalorder %s69, 1
    %p696 = scmp.ne.s32.totalorder %s691, %s693
    %p697 = scmp.eq.s32.totalorder %s69, 0
    %p698 = por %p696, %p697
    %p699 = scmp.ne.s32.totalorder %s691, %s693
    %p700 = scmp.eq.s32.totalorder %s74, 1
    %p701 = por %p699, %p700
    %p702 = scmp.ne.s32.totalorder %s693, %s694
    %p703 = scmp.eq.s32.totalorder %s74, 0
    %p704 = por %p702, %p703
    %p705 = scmp.ne.s32.totalorder %s693, %s694
    %p706 = scmp.eq.s32.totalorder %s75, 1
    %p707 = por %p705, %p706
    %p709 = scmp.ne.s32.totalorder %s694, %s708
    %p710 = scmp.eq.s32.totalorder %s75, 0
    %p711 = por %p709, %p710
    %s713 = sadd.s32 %s712, 1
    %p716 = scmp.eq.s32.totalorder %s69, 1
    %p717 = scmp.ne.s32.totalorder %s712, %s714
    %p718 = scmp.eq.s32.totalorder %s69, 0
    %p719 = por %p717, %p718
    %p720 = scmp.ne.s32.totalorder %s712, %s714
    %p721 = scmp.eq.s32.totalorder %s74, 1
    %p722 = por %p720, %p721
    %p723 = scmp.ne.s32.totalorder %s714, %s715
    %p724 = scmp.eq.s32.totalorder %s74, 0
    %p725 = por %p723, %p724
    %p726 = scmp.ne.s32.totalorder %s714, %s715
    %p727 = scmp.eq.s32.totalorder %s75, 1
    %p728 = por %p726, %p727
    %p730 = scmp.ne.s32.totalorder %s715, %s729
    %p731 = scmp.eq.s32.totalorder %s75, 0
    %p732 = por %p730, %p731
    %s733 = ssub.s32 %s69, %s76
    %p734 = scmp.eq.s32.totalorder %s733, 0
    %s736 = sadd.s32 %s735, 1
    %s737 = scalar_select %p734, %s735, %s736
    %p740 = pneg %p734
    %p741 = scmp.eq.s32.totalorder %s69, 1
    %p742 = por %p740, %p741
    %p743 = scmp.ne.s32.totalorder %s735, %s738
    %p744 = scmp.eq.s32.totalorder %s69, 0
    %p745 = por %p743, %p744
    %p746 = scmp.ne.s32.totalorder %s735, %s738
    %p747 = scmp.eq.s32.totalorder %s74, 1
    %p748 = por %p746, %p747
    %p749 = scmp.ne.s32.totalorder %s738, %s739
    %p750 = scmp.eq.s32.totalorder %s74, 0
    %p751 = por %p749, %p750
    %p752 = scmp.ne.s32.totalorder %s738, %s739
    %p753 = scmp.eq.s32.totalorder %s75, 1
    %p754 = por %p752, %p753
    %p756 = scmp.ne.s32.totalorder %s739, %s755
    %p757 = scmp.eq.s32.totalorder %s75, 0
    %p758 = por %p756, %p757
    %p759 = scmp.le.s32.totalorder 1, %s69
    %p760 = scmp.lt.s32.totalorder %s69, 3
    %p761 = pnand %p759, %p760
    %p762 = pneg %p761
    // Predicated region
    $region9: #{polygon_net_forward.1} parent=5 // pred_check
      _
    $region10: #{polygon_net_forward.1} parent=5 // pred_check_branch
      %764 = sbr.rel (%p761) target = $region12
    $region11: #{polygon_net_forward.1} parent=5 // pred_region
      %s765 = ssub.s32 %s69, 1
      // Predicated region
      $region13: #{polygon_net_forward.1} parent=11 // pred_check
        %p766 = pneg %p116
      $region14: #{polygon_net_forward.1} parent=11 // pred_check_branch
        %768 = sbr.rel (%p766) target = $region16
      $region15: #{polygon_net_forward.1} parent=11 // pred_region
        _
      $region16: #{polygon_net_forward.1} parent=11 // pred_fallthru
        _
      // Predicated region
      $region17: #{polygon_net_forward.1} parent=11 // pred_check
        %p769 = pneg %p137
      $region18: #{polygon_net_forward.1} parent=11 // pred_check_branch
        %771 = sbr.rel (%p769) target = $region20
      $region19: #{polygon_net_forward.1} parent=11 // pred_region
        _
      $region20: #{polygon_net_forward.1} parent=11 // pred_fallthru
        _
      // Predicated region
      $region21: #{polygon_net_forward.1} parent=11 // pred_check
        %p772 = pneg %p158
      $region22: #{polygon_net_forward.1} parent=11 // pred_check_branch
        %774 = sbr.rel (%p772) target = $region24
      $region23: #{polygon_net_forward.1} parent=11 // pred_region
        _
      $region24: #{polygon_net_forward.1} parent=11 // pred_fallthru
        _
      // Predicated region
      $region25: #{polygon_net_forward.1} parent=11 // pred_check
        %p775 = pneg %p179
      $region26: #{polygon_net_forward.1} parent=11 // pred_check_branch
        %777 = sbr.rel (%p775) target = $region28
      $region27: #{polygon_net_forward.1} parent=11 // pred_region
        _
      $region28: #{polygon_net_forward.1} parent=11 // pred_fallthru
        _
      // Predicated region
      $region29: #{polygon_net_forward.1} parent=11 // pred_check
        %p778 = pneg %p200
      $region30: #{polygon_net_forward.1} parent=11 // pred_check_branch
        %780 = sbr.rel (%p778) target = $region32
      $region31: #{polygon_net_forward.1} parent=11 // pred_region
        _
      $region32: #{polygon_net_forward.1} parent=11 // pred_fallthru
        _
      // Predicated region
      $region33: #{polygon_net_forward.1} parent=11 // pred_check
        %p781 = pneg %p221
      $region34: #{polygon_net_forward.1} parent=11 // pred_check_branch
        %783 = sbr.rel (%p781) target = $region36
      $region35: #{polygon_net_forward.1} parent=11 // pred_region
        _
      $region36: #{polygon_net_forward.1} parent=11 // pred_fallthru
        _
      // Predicated region
      $region37: #{polygon_net_forward.1} parent=11 // pred_check
        %p784 = pneg %p242
      $region38: #{polygon_net_forward.1} parent=11 // pred_check_branch
        %786 = sbr.rel (%p784) target = $region40
      $region39: #{polygon_net_forward.1} parent=11 // pred_region
        _
      $region40: #{polygon_net_forward.1} parent=11 // pred_fallthru
        _
      // Predicated region
      $region41: #{polygon_net_forward.1} parent=11 // pred_check
        %p787 = pneg %p263
      $region42: #{polygon_net_forward.1} parent=11 // pred_check_branch
        %789 = sbr.rel (%p787) target = $region44
      $region43: #{polygon_net_forward.1} parent=11 // pred_region
        _
      $region44: #{polygon_net_forward.1} parent=11 // pred_fallthru
        _
      // Predicated region
      $region45: #{polygon_net_forward.1} parent=11 // pred_check
        %p790 = pneg %p284
      $region46: #{polygon_net_forward.1} parent=11 // pred_check_branch
        %792 = sbr.rel (%p790) target = $region48
      $region47: #{polygon_net_forward.1} parent=11 // pred_region
        _
      $region48: #{polygon_net_forward.1} parent=11 // pred_fallthru
        _
      // Predicated region
      $region49: #{polygon_net_forward.1} parent=11 // pred_check
        %p793 = pneg %p305
      $region50: #{polygon_net_forward.1} parent=11 // pred_check_branch
        %795 = sbr.rel (%p793) target = $region52
      $region51: #{polygon_net_forward.1} parent=11 // pred_region
        _
      $region52: #{polygon_net_forward.1} parent=11 // pred_fallthru
        _
      // Predicated region
      $region53: #{polygon_net_forward.1} parent=11 // pred_check
        %p796 = pneg %p326
      $region54: #{polygon_net_forward.1} parent=11 // pred_check_branch
        %798 = sbr.rel (%p796) target = $region56
      $region55: #{polygon_net_forward.1} parent=11 // pred_region
        _
      $region56: #{polygon_net_forward.1} parent=11 // pred_fallthru
        _
      // Predicated region
      $region57: #{polygon_net_forward.1} parent=11 // pred_check
        %p799 = pneg %p347
      $region58: #{polygon_net_forward.1} parent=11 // pred_check_branch
        %801 = sbr.rel (%p799) target = $region60
      $region59: #{polygon_net_forward.1} parent=11 // pred_region
        _
      $region60: #{polygon_net_forward.1} parent=11 // pred_fallthru
        _
      // Predicated region
      $region61: #{polygon_net_forward.1} parent=11 // pred_check
        %p802 = pneg %p368
      $region62: #{polygon_net_forward.1} parent=11 // pred_check_branch
        %804 = sbr.rel (%p802) target = $region64
      $region63: #{polygon_net_forward.1} parent=11 // pred_region
        _
      $region64: #{polygon_net_forward.1} parent=11 // pred_fallthru
        _
      // Predicated region
      $region65: #{polygon_net_forward.1} parent=11 // pred_check
        %p805 = pneg %p389
      $region66: #{polygon_net_forward.1} parent=11 // pred_check_branch
        %807 = sbr.rel (%p805) target = $region68
      $region67: #{polygon_net_forward.1} parent=11 // pred_region
        _
      $region68: #{polygon_net_forward.1} parent=11 // pred_fallthru
        _
      // Predicated region
      $region69: #{polygon_net_forward.1} parent=11 // pred_check
        %p808 = pneg %p410
      $region70: #{polygon_net_forward.1} parent=11 // pred_check_branch
        %810 = sbr.rel (%p808) target = $region72
      $region71: #{polygon_net_forward.1} parent=11 // pred_region
        _
      $region72: #{polygon_net_forward.1} parent=11 // pred_fallthru
        _
      // Predicated region
      $region73: #{polygon_net_forward.1} parent=11 // pred_check
        %p811 = pneg %p431
      $region74: #{polygon_net_forward.1} parent=11 // pred_check_branch
        %813 = sbr.rel (%p811) target = $region76
      $region75: #{polygon_net_forward.1} parent=11 // pred_region
        _
      $region76: #{polygon_net_forward.1} parent=11 // pred_fallthru
        _
      // Predicated region
      $region77: #{polygon_net_forward.1} parent=11 // pred_check
        %p814 = pneg %p452
      $region78: #{polygon_net_forward.1} parent=11 // pred_check_branch
        %816 = sbr.rel (%p814) target = $region80
      $region79: #{polygon_net_forward.1} parent=11 // pred_region
        _
      $region80: #{polygon_net_forward.1} parent=11 // pred_fallthru
        _
      // Predicated region
      $region81: #{polygon_net_forward.1} parent=11 // pred_check
        %p817 = pneg %p473
      $region82: #{polygon_net_forward.1} parent=11 // pred_check_branch
        %819 = sbr.rel (%p817) target = $region84
      $region83: #{polygon_net_forward.1} parent=11 // pred_region
        _
      $region84: #{polygon_net_forward.1} parent=11 // pred_fallthru
        _
      // Predicated region
      $region85: #{polygon_net_forward.1} parent=11 // pred_check
        %p820 = pneg %p494
      $region86: #{polygon_net_forward.1} parent=11 // pred_check_branch
        %822 = sbr.rel (%p820) target = $region88
      $region87: #{polygon_net_forward.1} parent=11 // pred_region
        _
      $region88: #{polygon_net_forward.1} parent=11 // pred_fallthru
        _
      // Predicated region
      $region89: #{polygon_net_forward.1} parent=11 // pred_check
        %p823 = pneg %p515
      $region90: #{polygon_net_forward.1} parent=11 // pred_check_branch
        %825 = sbr.rel (%p823) target = $region92
      $region91: #{polygon_net_forward.1} parent=11 // pred_region
        _
      $region92: #{polygon_net_forward.1} parent=11 // pred_fallthru
        _
      // Predicated region
      $region93: #{polygon_net_forward.1} parent=11 // pred_check
        %p826 = pneg %p536
      $region94: #{polygon_net_forward.1} parent=11 // pred_check_branch
        %828 = sbr.rel (%p826) target = $region96
      $region95: #{polygon_net_forward.1} parent=11 // pred_region
        _
      $region96: #{polygon_net_forward.1} parent=11 // pred_fallthru
        _
      // Predicated region
      $region97: #{polygon_net_forward.1} parent=11 // pred_check
        %p829 = pneg %p557
      $region98: #{polygon_net_forward.1} parent=11 // pred_check_branch
        %831 = sbr.rel (%p829) target = $region100
      $region99: #{polygon_net_forward.1} parent=11 // pred_region
        _
      $region100: #{polygon_net_forward.1} parent=11 // pred_fallthru
        _
      // Predicated region
      $region101: #{polygon_net_forward.1} parent=11 // pred_check
        %p832 = pneg %p578
      $region102: #{polygon_net_forward.1} parent=11 // pred_check_branch
        %834 = sbr.rel (%p832) target = $region104
      $region103: #{polygon_net_forward.1} parent=11 // pred_region
        _
      $region104: #{polygon_net_forward.1} parent=11 // pred_fallthru
        _
      // Predicated region
      $region105: #{polygon_net_forward.1} parent=11 // pred_check
        %p835 = pneg %p599
      $region106: #{polygon_net_forward.1} parent=11 // pred_check_branch
        %837 = sbr.rel (%p835) target = $region108
      $region107: #{polygon_net_forward.1} parent=11 // pred_region
        _
      $region108: #{polygon_net_forward.1} parent=11 // pred_fallthru
        _
      // Predicated region
      $region109: #{polygon_net_forward.1} parent=11 // pred_check
        %p838 = pneg %p620
      $region110: #{polygon_net_forward.1} parent=11 // pred_check_branch
        %840 = sbr.rel (%p838) target = $region112
      $region111: #{polygon_net_forward.1} parent=11 // pred_region
        _
      $region112: #{polygon_net_forward.1} parent=11 // pred_fallthru
        _
      // Predicated region
      $region113: #{polygon_net_forward.1} parent=11 // pred_check
        %p841 = pneg %p641
      $region114: #{polygon_net_forward.1} parent=11 // pred_check_branch
        %843 = sbr.rel (%p841) target = $region116
      $region115: #{polygon_net_forward.1} parent=11 // pred_region
        _
      $region116: #{polygon_net_forward.1} parent=11 // pred_fallthru
        _
      // Predicated region
      $region117: #{polygon_net_forward.1} parent=11 // pred_check
        %p844 = pneg %p662
      $region118: #{polygon_net_forward.1} parent=11 // pred_check_branch
        %846 = sbr.rel (%p844) target = $region120
      $region119: #{polygon_net_forward.1} parent=11 // pred_region
        _
      $region120: #{polygon_net_forward.1} parent=11 // pred_fallthru
        _
      // Predicated region
      $region121: #{polygon_net_forward.1} parent=11 // pred_check
        %p847 = pneg %p683
      $region122: #{polygon_net_forward.1} parent=11 // pred_check_branch
        %849 = sbr.rel (%p847) target = $region124
      $region123: #{polygon_net_forward.1} parent=11 // pred_region
        _
      $region124: #{polygon_net_forward.1} parent=11 // pred_fallthru
        _
      // Predicated region
      $region125: #{polygon_net_forward.1} parent=11 // pred_check
        %p850 = pneg %p704
      $region126: #{polygon_net_forward.1} parent=11 // pred_check_branch
        %852 = sbr.rel (%p850) target = $region128
      $region127: #{polygon_net_forward.1} parent=11 // pred_region
        _
      $region128: #{polygon_net_forward.1} parent=11 // pred_fallthru
        _
      // Predicated region
      $region129: #{polygon_net_forward.1} parent=11 // pred_check
        %p853 = pneg %p725
      $region130: #{polygon_net_forward.1} parent=11 // pred_check_branch
        %855 = sbr.rel (%p853) target = $region132
      $region131: #{polygon_net_forward.1} parent=11 // pred_region
        _
      $region132: #{polygon_net_forward.1} parent=11 // pred_fallthru
        _
    $region12: #{polygon_net_forward.1} parent=5 // pred_fallthru
      _
    %p856 = scmp.lt.s32.totalorder %s69, 2
    // Predicated region
    $region133: #{polygon_net_forward.1} parent=5 // pred_check
      %p857 = pneg %p856
    $region134: #{polygon_net_forward.1} parent=5 // pred_check_branch
      %859 = sbr.rel (%p857) target = $region136
    $region135: #{polygon_net_forward.1} parent=5 // pred_region
      // Predicated region
      $region137: #{polygon_net_forward.1} parent=135 // pred_check
        %p860 = pneg %p89
      $region138: #{polygon_net_forward.1} parent=135 // pred_check_branch
        %862 = sbr.rel (%p860) target = $region140
      $region139: #{polygon_net_forward.1} parent=135 // pred_region
        %s863 = smul.u32 2, %s69
        %p864 = scmp.lt.s32.totalorder %s863, 3
        %s865 = scalar_select %p864, %s863, 3
        %s866 = smul.addr %s865, 8
        %s867 = smul.addr %s866, 4
        %s868 = scalar_lea.vmem %s1, %s867
        %s869 = smul.u32 2, %s69
      $region140: #{polygon_net_forward.1} parent=135 // pred_fallthru
        _
    $region136: #{polygon_net_forward.1} parent=5 // pred_fallthru
      _
    %p870 = scmp.le.s32.totalorder 1, %s69
    %p871 = scmp.lt.s32.totalorder %s69, 3
    %p872 = pnand %p870, %p871
    %p873 = pneg %p872
    // Predicated region
    $region141: #{polygon_net_forward.1} parent=5 // pred_check
      _
    $region142: #{polygon_net_forward.1} parent=5 // pred_check_branch
      %875 = sbr.rel (%p872) target = $region144
    $region143: #{polygon_net_forward.1} parent=5 // pred_region
      %s876 = ssub.s32 %s69, 1
      %s877 = smul.u32 2, %s74
      %p878 = scmp.lt.s32.totalorder %s877, 3
      %s879 = scalar_select %p878, %s877, 3
      %s880 = smul.addr %s879, 8
      %s881 = smul.addr %s880, 4
      %s882 = scalar_lea.vmem %s1, %s881
      %p883 = pneg %p95
      %p884 = pneg %p92
      %p885 = pneg %p116
      %p886 = pneg %p113
      %p887 = pneg %p137
      %p888 = pneg %p134
      %p889 = pneg %p158
      %p890 = pneg %p155
      %p891 = pneg %p179
      %p892 = pneg %p176
      %p893 = pneg %p200
      %p894 = pneg %p197
      %p895 = pneg %p221
      %p896 = pneg %p218
      %p897 = pneg %p242
      %p898 = pneg %p239
      %p899 = pneg %p263
      %p900 = pneg %p260
      %p901 = pneg %p284
      %p902 = pneg %p281
      %p903 = pneg %p305
      %p904 = pneg %p302
      %p905 = pneg %p326
      %p906 = pneg %p323
      %p907 = pneg %p347
      %p908 = pneg %p344
      %p909 = pneg %p368
      %p910 = pneg %p365
      %p911 = pneg %p389
      %p912 = pneg %p386
      %p913 = pneg %p410
      %p914 = pneg %p407
      %p915 = pneg %p431
      %p916 = pneg %p428
      %p917 = pneg %p452
      %p918 = pneg %p449
      %p919 = pneg %p473
      %p920 = pneg %p470
      %p921 = pneg %p494
      %p922 = pneg %p491
      %p923 = pneg %p515
      %p924 = pneg %p512
      %p925 = pneg %p536
      %p926 = pneg %p533
      %p927 = pneg %p557
      %p928 = pneg %p554
      %p929 = pneg %p578
      %p930 = pneg %p575
      %p931 = pneg %p599
      %p932 = pneg %p596
      %p933 = pneg %p620
      %p934 = pneg %p617
      %p935 = pneg %p641
      %p936 = pneg %p638
      %p937 = pneg %p662
      %p938 = pneg %p659
      %p939 = pneg %p683
      %p940 = pneg %p680
      %p941 = pneg %p704
      %p942 = pneg %p701
      %p943 = pneg %p725
      %p944 = pneg %p722
      %p945 = pneg %p751
      %p946 = pneg %p748
      %p947 = scmp.lt.s32.totalorder %s74, 1
      %s948 = scalar_select %p947, %s74, 1
      %s949 = smul.addr %s948, 2
      %s950 = scalar_lea.vmem %s63, %s949
      %s951 = smul.u32 2, %s74
      %p952 = scmp.lt.s32.totalorder %s951, 3
      %s953 = scalar_select %p952, %s951, 3
      %s954 = smul.addr %s953, 8
      %s955 = smul.addr %s954, 4
      %s956 = scalar_lea.vmem %s1, %s955
      %s957 = smul.u32 2, %s74
      %p958 = scmp.lt.s32.totalorder %s74, 1
      %s959 = scalar_select %p958, %s74, 1
      %s960 = smul.addr %s959, 2
      %s961 = scalar_lea.vmem %s63, %s960
      %v963 = vld [vmem:[%s3] sm:$0xf]
      %v964 = vld [vmem:[%s3 + $0x4] sm:$0xf]
      %v965 = vld [vmem:[%s5] sm:$0xff]
      %v966 = vld [vmem:[%s5 + $0x8] sm:$0xff]
      %v967 = vld [vmem:[%s7] sm:$0xff]
      %v968 = vld [vmem:[%s7 + $0x8] sm:$0xff]
      %v969 = vld [vmem:[%s956] sm:$0xf]
      %v970 = vld [vmem:[%s956 + $0x4] sm:$0xf]
      %v971 = vld [vmem:[%s956 + $0x8] sm:$0xf]
      %v972 = vld [vmem:[%s956 + $0xc] sm:$0xf]
      %v973 = vld [vmem:[%s956 + $0x10] sm:$0xf]
      %v974 = vld [vmem:[%s956 + $0x14] sm:$0xf]
      %v975 = vld [vmem:[%s956 + $0x18] sm:$0xf]
      %v976 = vld [vmem:[%s956 + $0x1c] sm:$0xf]
      %v979 = vunpack.c.l.b16 %v963
      %v980 = vunpack.c.l.b16 %v964
      %v981 = vpack.c.b16 %v980, %v979
      %v990 = vunpack.c.l.b16 %v969
      %v991 = vunpack.c.l.b16 %v970
      %v992 = vunpack.c.l.b16 %v971
      %v993 = vunpack.c.l.b16 %v972
      %v994 = vunpack.c.l.b16 %v973
      %v995 = vunpack.c.l.b16 %v974
      %v996 = vunpack.c.l.b16 %v975
      %v997 = vunpack.c.l.b16 %v976
      %v998 = vpack.c.b16 %v991, %v990
      %v999 = vpack.c.b16 %v993, %v992
      %v1000 = vpack.c.b16 %v995, %v994
      %v1001 = vpack.c.b16 %v997, %v996
      %vm1006 = vcmask 523264
      %v1008 = vsel %vm1006, %v981, 0
      %1010 = vmatprep.subr.bf16.mxu0 0
      %1011 = vmatpush1.bf16.msra.mxu0 0
      %1012 = vmatprep.subr.bf16.mxu0 0
      %1013 = vmatpush1.bf16.msra.mxu0 0
      %1014 = vmatprep.subr.bf16.mxu0 0
      %1015 = vmatpush1.bf16.msra.mxu0 0
      %1016 = vmatprep.subr.bf16.mxu0 0
      %1017 = vmatpush1.bf16.msra.mxu0 0
      %1018 = vmatprep.subr.bf16.mxu0 0
      %1019 = vmatpush1.bf16.msra.mxu0 %v1001
      %1020 = vmatprep.subr.bf16.mxu0 0
      %1021 = vmatpush1.bf16.msra.mxu0 %v1000
      %1022 = vmatprep.subr.bf16.mxu0 0
      %1023 = vmatpush1.bf16.msra.mxu0 %v999
      %1024 = vmatprep.subr.bf16.mxu0 0
      %1025 = vmatpush1.bf16.msra.mxu0 %v998
      %1026 = vmatprep.subr.bf16.mxu0 0
      %1027 = vmatpush2.bf16.msra.mxu0 0
      %1028 = vmatprep.subr.bf16.mxu0 0
      %1029 = vmatpush2.bf16.msra.mxu0 0
      %1030 = vmatprep.subr.bf16.mxu0 0
      %1031 = vmatpush2.bf16.msra.mxu0 0
      %1032 = vmatprep.subr.bf16.mxu0 0
      %1033 = vmatpush2.bf16.msra.mxu0 0
      %1034 = vmatprep.subr.bf16.mxu0 0
      %1035 = vmatpush2.bf16.msra.mxu0 0
      %1036 = vmatprep.subr.bf16.mxu0 0
      %1037 = vmatpush2.bf16.msra.mxu0 0
      %1038 = vmatprep.subr.bf16.mxu0 0
      %1039 = vmatpush2.bf16.msra.mxu0 0
      %1040 = vmatprep.subr.bf16.mxu0 0
      %1041 = vmatpush2.bf16.msra.mxu0 0
      %1042 = vmatprep.mubr.bf16.mxu0 0
      %1043 = vmatmul.mubr.bf16.gmra.mxu0 %v1008
      %v1044 = vpop.f32.mrf.mxu0
      %v1045 = vadd.f32 0.0, %v1044
      %v1046 = vpop.f32.mrf.mxu0
      %v1047 = vpop.f32.mrf.mxu0
      %v1048 = vadd.f32 0.0, %v1047
      %v1049 = vpop.f32.mrf.mxu0
      %1050 = vdwg.mxu0
      %1052 = vset.pattern.permute.xlu0 0
      %1053 = vperm.xlu0 %1052, %v965
      %v1054 = vpop.permute.xlu0 %1053
      %1057 = vset.pattern.permute.xlu0 0
      %1058 = vperm.xlu0 %1057, %v966
      %v1059 = vpop.permute.xlu0 %1058
      %v1061 = vmul.f32 %v1045, %v1054
      %v1062 = vmul.f32 %v1048, %v1059
      %1064 = vset.pattern.permute.xlu0 0
      %1065 = vperm.xlu0 %1064, %v967
      %v1066 = vpop.permute.xlu0 %1065
      %1069 = vset.pattern.permute.xlu0 0
      %1070 = vperm.xlu0 %1069, %v968
      %v1071 = vpop.permute.xlu0 %1070
      %v1073 = vadd.f32 %v1061, %v1066
      %v1074 = vadd.f32 %v1062, %v1071
      %v1075 = vmax.f32 %v1073, 0.0
      %v1076 = vmax.f32 %v1074, 0.0
      %v1077 = vpack.c.bf16 %v1076, %v1075
      %s1078 = scalar_lea.vmem %s956, 32
      %v1079 = vld [vmem:[%s1078] sm:$0xf]
      %v1080 = vld [vmem:[%s1078 + $0x4] sm:$0xf]
      %v1081 = vld [vmem:[%s1078 + $0x8] sm:$0xf]
      %v1082 = vld [vmem:[%s1078 + $0xc] sm:$0xf]
      %v1083 = vld [vmem:[%s1078 + $0x10] sm:$0xf]
      %v1084 = vld [vmem:[%s1078 + $0x14] sm:$0xf]
      %v1085 = vld [vmem:[%s1078 + $0x18] sm:$0xf]
      %v1086 = vld [vmem:[%s1078 + $0x1c] sm:$0xf]
      %v1095 = vunpack.c.l.b16 %v1079
      %v1096 = vunpack.c.l.b16 %v1080
      %v1097 = vunpack.c.l.b16 %v1081
      %v1098 = vunpack.c.l.b16 %v1082
      %v1099 = vunpack.c.l.b16 %v1083
      %v1100 = vunpack.c.l.b16 %v1084
      %v1101 = vunpack.c.l.b16 %v1085
      %v1102 = vunpack.c.l.b16 %v1086
      %v1103 = vpack.c.b16 %v1096, %v1095
      %v1104 = vpack.c.b16 %v1098, %v1097
      %v1105 = vpack.c.b16 %v1100, %v1099
      %v1106 = vpack.c.b16 %v1102, %v1101
      %1111 = vmatprep.subr.bf16.mxu0 0
      %1112 = vmatpush1.bf16.msra.mxu0 0
      %1113 = vmatprep.subr.bf16.mxu0 0
      %1114 = vmatpush1.bf16.msra.mxu0 0
      %1115 = vmatprep.subr.bf16.mxu0 0
      %1116 = vmatpush1.bf16.msra.mxu0 0
      %1117 = vmatprep.subr.bf16.mxu0 0
      %1118 = vmatpush1.bf16.msra.mxu0 0
      %1119 = vmatprep.subr.bf16.mxu0 0
      %1120 = vmatpush1.bf16.msra.mxu0 %v1106
      %1121 = vmatprep.subr.bf16.mxu0 0
      %1122 = vmatpush1.bf16.msra.mxu0 %v1105
      %1123 = vmatprep.subr.bf16.mxu0 0
      %1124 = vmatpush1.bf16.msra.mxu0 %v1104
      %1125 = vmatprep.subr.bf16.mxu0 0
      %1126 = vmatpush1.bf16.msra.mxu0 %v1103
      %1127 = vmatprep.subr.bf16.mxu0 0
      %1128 = vmatpush2.bf16.msra.mxu0 0
      %1129 = vmatprep.subr.bf16.mxu0 0
      %1130 = vmatpush2.bf16.msra.mxu0 0
      %1131 = vmatprep.subr.bf16.mxu0 0
      %1132 = vmatpush2.bf16.msra.mxu0 0
      %1133 = vmatprep.subr.bf16.mxu0 0
      %1134 = vmatpush2.bf16.msra.mxu0 0
      %1135 = vmatprep.subr.bf16.mxu0 0
      %1136 = vmatpush2.bf16.msra.mxu0 0
      %1137 = vmatprep.subr.bf16.mxu0 0
      %1138 = vmatpush2.bf16.msra.mxu0 0
      %1139 = vmatprep.subr.bf16.mxu0 0
      %1140 = vmatpush2.bf16.msra.mxu0 0
      %1141 = vmatprep.subr.bf16.mxu0 0
      %1142 = vmatpush2.bf16.msra.mxu0 0
      %1143 = vmatprep.mubr.bf16.mxu0 0
      %1144 = vmatmul.mubr.bf16.gmra.mxu0 %v1008
      %v1145 = vpop.f32.mrf.mxu0
      %v1146 = vadd.f32 0.0, %v1145
      %v1147 = vpop.f32.mrf.mxu0
      %v1148 = vpop.f32.mrf.mxu0
      %v1149 = vadd.f32 0.0, %v1148
      %v1150 = vpop.f32.mrf.mxu0
      %1151 = vdwg.mxu0
      %v1152 = vmul.f32 %v1146, %v1054
      %v1153 = vmul.f32 %v1149, %v1059
      %v1154 = vadd.f32 %v1152, %v1066
      %v1155 = vadd.f32 %v1153, %v1071
      %v1156 = vmax.f32 %v1154, 0.0
      %v1157 = vmax.f32 %v1155, 0.0
      %v1158 = vpack.c.bf16 %v1157, %v1156
      %v1160 = vshll.u32 %v1158, 16
      %vm1163 = vcmask 1040384
      %vm1164 = vsmask.f32 256
      %vm1165 = vmand %vm1163, %vm1164
      %v1166 = vsel %vm1165, %v1077, %v1160
      %v1167 = vld [vmem:[%s9] sm:$0xf]
      %v1168 = vld [vmem:[%s9 + $0x4] sm:$0xf]
      %v1169 = vld [vmem:[%s9 + $0x8] sm:$0xf]
      %v1170 = vld [vmem:[%s9 + $0xc] sm:$0xf]
      %v1171 = vld [vmem:[%s9 + $0x10] sm:$0xf]
      %v1172 = vld [vmem:[%s9 + $0x14] sm:$0xf]
      %v1173 = vld [vmem:[%s9 + $0x18] sm:$0x1]
      %v1175 = vshrl.u32 %v1077, 16
      %v1178 = vsel %vm1165, %v1175, %v1158
      %s1179 = scalar_lea.vmem %s9, 28
      %v1180 = vld [vmem:[%s1179] sm:$0xf]
      %v1181 = vld [vmem:[%s1179 + $0x4] sm:$0xf]
      %v1182 = vld [vmem:[%s1179 + $0x8] sm:$0xf]
      %v1183 = vld [vmem:[%s1179 + $0xc] sm:$0xf]
      %v1184 = vld [vmem:[%s1179 + $0x10] sm:$0xf]
      %v1185 = vld [vmem:[%s1179 + $0x14] sm:$0xf]
      %v1186 = vld [vmem:[%s1179 + $0x18] sm:$0x1]
      %v1194 = vunpack.c.l.b16 %v1180
      %v1195 = vunpack.c.l.b16 %v1181
      %v1196 = vunpack.c.l.b16 %v1182
      %v1197 = vunpack.c.l.b16 %v1183
      %v1198 = vunpack.c.l.b16 %v1184
      %v1199 = vunpack.c.l.b16 %v1185
      %v1200 = vunpack.c.l.b16 %v1186
      %v1201 = vpack.c.b16 %v1195, %v1194
      %v1202 = vpack.c.b16 %v1197, %v1196
      %v1203 = vpack.c.b16 %v1199, %v1198
      %v1204 = vpack.c.b16 %v1200, %v1200
      %vm1208 = vcmask 400384
      %v1210 = vsel %vm1208, %v1178, 0
      %vm1212 = vcmask 1040384
      %v1213 = vsel 0, 4294967295, 65535
      %v1214 = vsel %vm1212, %v1213, 0
      %v1216 = vand.u32 %v1204, %v1214
      %1218 = vmatprep.subr.bf16.mxu0 0
      %1219 = vmatpush1.bf16.msra.mxu0 0
      %1220 = vmatprep.subr.bf16.mxu0 0
      %1221 = vmatpush1.bf16.msra.mxu0 0
      %1222 = vmatprep.subr.bf16.mxu0 0
      %1223 = vmatpush1.bf16.msra.mxu0 0
      %1224 = vmatprep.subr.bf16.mxu0 0
      %1225 = vmatpush1.bf16.msra.mxu0 0
      %1226 = vmatprep.subr.bf16.mxu0 0
      %1227 = vmatpush1.bf16.msra.mxu0 %v1216
      %1228 = vmatprep.subr.bf16.mxu0 0
      %1229 = vmatpush1.bf16.msra.mxu0 %v1203
      %1230 = vmatprep.subr.bf16.mxu0 0
      %1231 = vmatpush1.bf16.msra.mxu0 %v1202
      %1232 = vmatprep.subr.bf16.mxu0 0
      %1233 = vmatpush1.bf16.msra.mxu0 %v1201
      %1234 = vmatprep.subr.bf16.mxu0 0
      %1235 = vmatpush2.bf16.msra.mxu0 0
      %1236 = vmatprep.subr.bf16.mxu0 0
      %1237 = vmatpush2.bf16.msra.mxu0 0
      %1238 = vmatprep.subr.bf16.mxu0 0
      %1239 = vmatpush2.bf16.msra.mxu0 0
      %1240 = vmatprep.subr.bf16.mxu0 0
      %1241 = vmatpush2.bf16.msra.mxu0 0
      %1242 = vmatprep.subr.bf16.mxu0 0
      %1243 = vmatpush2.bf16.msra.mxu0 0
      %1244 = vmatprep.subr.bf16.mxu0 0
      %1245 = vmatpush2.bf16.msra.mxu0 0
      %1246 = vmatprep.subr.bf16.mxu0 0
      %1247 = vmatpush2.bf16.msra.mxu0 0
      %1248 = vmatprep.subr.bf16.mxu0 0
      %1249 = vmatpush2.bf16.msra.mxu0 0
      %1250 = vmatprep.mubr.bf16.mxu0 0
      %1251 = vmatmul.mubr.bf16.gmra.mxu0 %v1210
      %v1252 = vpop.f32.mrf.mxu0
      %v1253 = vadd.f32 0.0, %v1252
      %v1254 = vpop.f32.mrf.mxu0
      %v1255 = vpop.f32.mrf.mxu0
      %v1256 = vpop.f32.mrf.mxu0
      %1257 = vdwg.mxu0
      %v1265 = vunpack.c.l.b16 %v1167
      %v1266 = vunpack.c.l.b16 %v1168
      %v1267 = vunpack.c.l.b16 %v1169
      %v1268 = vunpack.c.l.b16 %v1170
      %v1269 = vunpack.c.l.b16 %v1171
      %v1270 = vunpack.c.l.b16 %v1172
      %v1271 = vunpack.c.l.b16 %v1173
      %v1272 = vpack.c.b16 %v1266, %v1265
      %v1273 = vpack.c.b16 %v1268, %v1267
      %v1274 = vpack.c.b16 %v1270, %v1269
      %v1275 = vpack.c.b16 %v1271, %v1271
      %v1280 = vsel %vm1208, %v1166, 0
      %v1283 = vand.u32 %v1275, %v1214
      %1285 = vmatprep.subr.bf16.mxu0 0
      %1286 = vmatpush1.bf16.msra.mxu0 0
      %1287 = vmatprep.subr.bf16.mxu0 0
      %1288 = vmatpush1.bf16.msra.mxu0 0
      %1289 = vmatprep.subr.bf16.mxu0 0
      %1290 = vmatpush1.bf16.msra.mxu0 0
      %1291 = vmatprep.subr.bf16.mxu0 0
      %1292 = vmatpush1.bf16.msra.mxu0 0
      %1293 = vmatprep.subr.bf16.mxu0 0
      %1294 = vmatpush1.bf16.msra.mxu0 %v1283
      %1295 = vmatprep.subr.bf16.mxu0 0
      %1296 = vmatpush1.bf16.msra.mxu0 %v1274
      %1297 = vmatprep.subr.bf16.mxu0 0
      %1298 = vmatpush1.bf16.msra.mxu0 %v1273
      %1299 = vmatprep.subr.bf16.mxu0 0
      %1300 = vmatpush1.bf16.msra.mxu0 %v1272
      %1301 = vmatprep.subr.bf16.mxu0 0
      %1302 = vmatpush2.bf16.msra.mxu0 0
      %1303 = vmatprep.subr.bf16.mxu0 0
      %1304 = vmatpush2.bf16.msra.mxu0 0
      %1305 = vmatprep.subr.bf16.mxu0 0
      %1306 = vmatpush2.bf16.msra.mxu0 0
      %1307 = vmatprep.subr.bf16.mxu0 0
      %1308 = vmatpush2.bf16.msra.mxu0 0
      %1309 = vmatprep.subr.bf16.mxu0 0
      %1310 = vmatpush2.bf16.msra.mxu0 0
      %1311 = vmatprep.subr.bf16.mxu0 0
      %1312 = vmatpush2.bf16.msra.mxu0 0
      %1313 = vmatprep.subr.bf16.mxu0 0
      %1314 = vmatpush2.bf16.msra.mxu0 0
      %1315 = vmatprep.subr.bf16.mxu0 0
      %1316 = vmatpush2.bf16.msra.mxu0 0
      %1317 = vmatprep.mubr.bf16.mxu0 0
      %1318 = vmatmul.mubr.bf16.gmra.mxu0 %v1280
      %v1319 = vpop.f32.mrf.mxu0
      %v1320 = vadd.f32 %v1253, %v1319
      %v1321 = vpop.f32.mrf.mxu0
      %v1322 = vpop.f32.mrf.mxu0
      %v1323 = vpop.f32.mrf.mxu0
      %1324 = vdwg.mxu0
      %v1326 = vrot.slane %v1077, 1
      %v1328 = vrot.slane %v1160, 1
      %v1330 = vsel %vm1165, %v1326, %v1328
      %s1331 = scalar_lea.vmem %s9, 56
      %v1332 = vld [vmem:[%s1331] sm:$0xf]
      %v1333 = vld [vmem:[%s1331 + $0x4] sm:$0xf]
      %v1334 = vld [vmem:[%s1331 + $0x8] sm:$0xf]
      %v1335 = vld [vmem:[%s1331 + $0xc] sm:$0xf]
      %v1336 = vld [vmem:[%s1331 + $0x10] sm:$0xf]
      %v1337 = vld [vmem:[%s1331 + $0x14] sm:$0xf]
      %v1338 = vld [vmem:[%s1331 + $0x18] sm:$0x1]
      %v1346 = vunpack.c.l.b16 %v1332
      %v1347 = vunpack.c.l.b16 %v1333
      %v1348 = vunpack.c.l.b16 %v1334
      %v1349 = vunpack.c.l.b16 %v1335
      %v1350 = vunpack.c.l.b16 %v1336
      %v1351 = vunpack.c.l.b16 %v1337
      %v1352 = vunpack.c.l.b16 %v1338
      %v1353 = vpack.c.b16 %v1347, %v1346
      %v1354 = vpack.c.b16 %v1349, %v1348
      %v1355 = vpack.c.b16 %v1351, %v1350
      %v1356 = vpack.c.b16 %v1352, %v1352
      %v1361 = vsel %vm1208, %v1330, 0
      %v1364 = vand.u32 %v1356, %v1214
      %1366 = vmatprep.subr.bf16.mxu0 0
      %1367 = vmatpush1.bf16.msra.mxu0 0
      %1368 = vmatprep.subr.bf16.mxu0 0
      %1369 = vmatpush1.bf16.msra.mxu0 0
      %1370 = vmatprep.subr.bf16.mxu0 0
      %1371 = vmatpush1.bf16.msra.mxu0 0
      %1372 = vmatprep.subr.bf16.mxu0 0
      %1373 = vmatpush1.bf16.msra.mxu0 0
      %1374 = vmatprep.subr.bf16.mxu0 0
      %1375 = vmatpush1.bf16.msra.mxu0 %v1364
      %1376 = vmatprep.subr.bf16.mxu0 0
      %1377 = vmatpush1.bf16.msra.mxu0 %v1355
      %1378 = vmatprep.subr.bf16.mxu0 0
      %1379 = vmatpush1.bf16.msra.mxu0 %v1354
      %1380 = vmatprep.subr.bf16.mxu0 0
      %1381 = vmatpush1.bf16.msra.mxu0 %v1353
      %1382 = vmatprep.subr.bf16.mxu0 0
      %1383 = vmatpush2.bf16.msra.mxu0 0
      %1384 = vmatprep.subr.bf16.mxu0 0
      %1385 = vmatpush2.bf16.msra.mxu0 0
      %1386 = vmatprep.subr.bf16.mxu0 0
      %1387 = vmatpush2.bf16.msra.mxu0 0
      %1388 = vmatprep.subr.bf16.mxu0 0
      %1389 = vmatpush2.bf16.msra.mxu0 0
      %1390 = vmatprep.subr.bf16.mxu0 0
      %1391 = vmatpush2.bf16.msra.mxu0 0
      %1392 = vmatprep.subr.bf16.mxu0 0
      %1393 = vmatpush2.bf16.msra.mxu0 0
      %1394 = vmatprep.subr.bf16.mxu0 0
      %1395 = vmatpush2.bf16.msra.mxu0 0
      %1396 = vmatprep.subr.bf16.mxu0 0
      %1397 = vmatpush2.bf16.msra.mxu0 0
      %1398 = vmatprep.mubr.bf16.mxu0 0
      %1399 = vmatmul.mubr.bf16.gmra.mxu0 %v1361
      %v1400 = vpop.f32.mrf.mxu0
      %v1401 = vadd.f32 0.0, %v1400
      %v1402 = vpop.f32.mrf.mxu0
      %v1403 = vpop.f32.mrf.mxu0
      %v1404 = vpop.f32.mrf.mxu0
      %1405 = vdwg.mxu0
      %v1406 = vadd.f32 %v1320, %v1401
      %v1407 = vrot.slane %v1175, 1
      %v1410 = vrot.slane %v1158, 1
      %v1412 = vsel %vm1165, %v1407, %v1410
      %s1413 = scalar_lea.vmem %s9, 84
      %v1414 = vld [vmem:[%s1413] sm:$0xf]
      %v1415 = vld [vmem:[%s1413 + $0x4] sm:$0xf]
      %v1416 = vld [vmem:[%s1413 + $0x8] sm:$0xf]
      %v1417 = vld [vmem:[%s1413 + $0xc] sm:$0xf]
      %v1418 = vld [vmem:[%s1413 + $0x10] sm:$0xf]
      %v1419 = vld [vmem:[%s1413 + $0x14] sm:$0xf]
      %v1420 = vld [vmem:[%s1413 + $0x18] sm:$0x1]
      %v1428 = vunpack.c.l.b16 %v1414
      %v1429 = vunpack.c.l.b16 %v1415
      %v1430 = vunpack.c.l.b16 %v1416
      %v1431 = vunpack.c.l.b16 %v1417
      %v1432 = vunpack.c.l.b16 %v1418
      %v1433 = vunpack.c.l.b16 %v1419
      %v1434 = vunpack.c.l.b16 %v1420
      %v1435 = vpack.c.b16 %v1429, %v1428
      %v1436 = vpack.c.b16 %v1431, %v1430
      %v1437 = vpack.c.b16 %v1433, %v1432
      %v1438 = vpack.c.b16 %v1434, %v1434
      %v1443 = vsel %vm1208, %v1412, 0
      %v1446 = vand.u32 %v1438, %v1214
      %1448 = vmatprep.subr.bf16.mxu0 0
      %1449 = vmatpush1.bf16.msra.mxu0 0
      %1450 = vmatprep.subr.bf16.mxu0 0
      %1451 = vmatpush1.bf16.msra.mxu0 0
      %1452 = vmatprep.subr.bf16.mxu0 0
      %1453 = vmatpush1.bf16.msra.mxu0 0
      %1454 = vmatprep.subr.bf16.mxu0 0
      %1455 = vmatpush1.bf16.msra.mxu0 0
      %1456 = vmatprep.subr.bf16.mxu0 0
      %1457 = vmatpush1.bf16.msra.mxu0 %v1446
      %1458 = vmatprep.subr.bf16.mxu0 0
      %1459 = vmatpush1.bf16.msra.mxu0 %v1437
      %1460 = vmatprep.subr.bf16.mxu0 0
      %1461 = vmatpush1.bf16.msra.mxu0 %v1436
      %1462 = vmatprep.subr.bf16.mxu0 0
      %1463 = vmatpush1.bf16.msra.mxu0 %v1435
      %1464 = vmatprep.subr.bf16.mxu0 0
      %1465 = vmatpush2.bf16.msra.mxu0 0
      %1466 = vmatprep.subr.bf16.mxu0 0
      %1467 = vmatpush2.bf16.msra.mxu0 0
      %1468 = vmatprep.subr.bf16.mxu0 0
      %1469 = vmatpush2.bf16.msra.mxu0 0
      %1470 = vmatprep.subr.bf16.mxu0 0
      %1471 = vmatpush2.bf16.msra.mxu0 0
      %1472 = vmatprep.subr.bf16.mxu0 0
      %1473 = vmatpush2.bf16.msra.mxu0 0
      %1474 = vmatprep.subr.bf16.mxu0 0
      %1475 = vmatpush2.bf16.msra.mxu0 0
      %1476 = vmatprep.subr.bf16.mxu0 0
      %1477 = vmatpush2.bf16.msra.mxu0 0
      %1478 = vmatprep.subr.bf16.mxu0 0
      %1479 = vmatpush2.bf16.msra.mxu0 0
      %1480 = vmatprep.mubr.bf16.mxu0 0
      %1481 = vmatmul.mubr.bf16.gmra.mxu0 %v1443
      %v1482 = vpop.f32.mrf.mxu0
      %v1483 = vadd.f32 0.0, %v1482
      %v1484 = vpop.f32.mrf.mxu0
      %v1485 = vpop.f32.mrf.mxu0
      %v1486 = vpop.f32.mrf.mxu0
      %1487 = vdwg.mxu0
      %v1488 = vadd.f32 %v1406, %v1483
      %v1489 = vrot.slane %v1077, 2
      %v1491 = vrot.slane %v1160, 2
      %v1493 = vsel %vm1165, %v1489, %v1491
      %s1494 = scalar_lea.vmem %s9, 112
      %v1495 = vld [vmem:[%s1494] sm:$0xf]
      %v1496 = vld [vmem:[%s1494 + $0x4] sm:$0xf]
      %v1497 = vld [vmem:[%s1494 + $0x8] sm:$0xf]
      %v1498 = vld [vmem:[%s1494 + $0xc] sm:$0xf]
      %v1499 = vld [vmem:[%s1494 + $0x10] sm:$0xf]
      %v1500 = vld [vmem:[%s1494 + $0x14] sm:$0xf]
      %v1501 = vld [vmem:[%s1494 + $0x18] sm:$0x1]
      %v1509 = vunpack.c.l.b16 %v1495
      %v1510 = vunpack.c.l.b16 %v1496
      %v1511 = vunpack.c.l.b16 %v1497
      %v1512 = vunpack.c.l.b16 %v1498
      %v1513 = vunpack.c.l.b16 %v1499
      %v1514 = vunpack.c.l.b16 %v1500
      %v1515 = vunpack.c.l.b16 %v1501
      %v1516 = vpack.c.b16 %v1510, %v1509
      %v1517 = vpack.c.b16 %v1512, %v1511
      %v1518 = vpack.c.b16 %v1514, %v1513
      %v1519 = vpack.c.b16 %v1515, %v1515
      %v1524 = vsel %vm1208, %v1493, 0
      %v1527 = vand.u32 %v1519, %v1214
      %1529 = vmatprep.subr.bf16.mxu0 0
      %1530 = vmatpush1.bf16.msra.mxu0 0
      %1531 = vmatprep.subr.bf16.mxu0 0
      %1532 = vmatpush1.bf16.msra.mxu0 0
      %1533 = vmatprep.subr.bf16.mxu0 0
      %1534 = vmatpush1.bf16.msra.mxu0 0
      %1535 = vmatprep.subr.bf16.mxu0 0
      %1536 = vmatpush1.bf16.msra.mxu0 0
      %1537 = vmatprep.subr.bf16.mxu0 0
      %1538 = vmatpush1.bf16.msra.mxu0 %v1527
      %1539 = vmatprep.subr.bf16.mxu0 0
      %1540 = vmatpush1.bf16.msra.mxu0 %v1518
      %1541 = vmatprep.subr.bf16.mxu0 0
      %1542 = vmatpush1.bf16.msra.mxu0 %v1517
      %1543 = vmatprep.subr.bf16.mxu0 0
      %1544 = vmatpush1.bf16.msra.mxu0 %v1516
      %1545 = vmatprep.subr.bf16.mxu0 0
      %1546 = vmatpush2.bf16.msra.mxu0 0
      %1547 = vmatprep.subr.bf16.mxu0 0
      %1548 = vmatpush2.bf16.msra.mxu0 0
      %1549 = vmatprep.subr.bf16.mxu0 0
      %1550 = vmatpush2.bf16.msra.mxu0 0
      %1551 = vmatprep.subr.bf16.mxu0 0
      %1552 = vmatpush2.bf16.msra.mxu0 0
      %1553 = vmatprep.subr.bf16.mxu0 0
      %1554 = vmatpush2.bf16.msra.mxu0 0
      %1555 = vmatprep.subr.bf16.mxu0 0
      %1556 = vmatpush2.bf16.msra.mxu0 0
      %1557 = vmatprep.subr.bf16.mxu0 0
      %1558 = vmatpush2.bf16.msra.mxu0 0
      %1559 = vmatprep.subr.bf16.mxu0 0
      %1560 = vmatpush2.bf16.msra.mxu0 0
      %1561 = vmatprep.mubr.bf16.mxu0 0
      %1562 = vmatmul.mubr.bf16.gmra.mxu0 %v1524
      %v1563 = vpop.f32.mrf.mxu0
      %v1564 = vadd.f32 0.0, %v1563
      %v1565 = vpop.f32.mrf.mxu0
      %v1566 = vpop.f32.mrf.mxu0
      %v1567 = vpop.f32.mrf.mxu0
      %1568 = vdwg.mxu0
      %v1569 = vadd.f32 %v1488, %v1564
      %v1570 = vrot.slane %v1175, 2
      %v1572 = vrot.slane %v1158, 2
      %v1574 = vsel %vm1165, %v1570, %v1572
      %s1575 = scalar_lea.vmem %s9, 140
      %v1576 = vld [vmem:[%s1575] sm:$0xf]
      %v1577 = vld [vmem:[%s1575 + $0x4] sm:$0xf]
      %v1578 = vld [vmem:[%s1575 + $0x8] sm:$0xf]
      %v1579 = vld [vmem:[%s1575 + $0xc] sm:$0xf]
      %v1580 = vld [vmem:[%s1575 + $0x10] sm:$0xf]
      %v1581 = vld [vmem:[%s1575 + $0x14] sm:$0xf]
      %v1582 = vld [vmem:[%s1575 + $0x18] sm:$0x1]
      %v1590 = vunpack.c.l.b16 %v1576
      %v1591 = vunpack.c.l.b16 %v1577
      %v1592 = vunpack.c.l.b16 %v1578
      %v1593 = vunpack.c.l.b16 %v1579
      %v1594 = vunpack.c.l.b16 %v1580
      %v1595 = vunpack.c.l.b16 %v1581
      %v1596 = vunpack.c.l.b16 %v1582
      %v1597 = vpack.c.b16 %v1591, %v1590
      %v1598 = vpack.c.b16 %v1593, %v1592
      %v1599 = vpack.c.b16 %v1595, %v1594
      %v1600 = vpack.c.b16 %v1596, %v1596
      %v1605 = vsel %vm1208, %v1574, 0
      %v1608 = vand.u32 %v1600, %v1214
      %1610 = vmatprep.subr.bf16.mxu0 0
      %1611 = vmatpush1.bf16.msra.mxu0 0
      %1612 = vmatprep.subr.bf16.mxu0 0
      %1613 = vmatpush1.bf16.msra.mxu0 0
      %1614 = vmatprep.subr.bf16.mxu0 0
      %1615 = vmatpush1.bf16.msra.mxu0 0
      %1616 = vmatprep.subr.bf16.mxu0 0
      %1617 = vmatpush1.bf16.msra.mxu0 0
      %1618 = vmatprep.subr.bf16.mxu0 0
      %1619 = vmatpush1.bf16.msra.mxu0 %v1608
      %1620 = vmatprep.subr.bf16.mxu0 0
      %1621 = vmatpush1.bf16.msra.mxu0 %v1599
      %1622 = vmatprep.subr.bf16.mxu0 0
      %1623 = vmatpush1.bf16.msra.mxu0 %v1598
      %1624 = vmatprep.subr.bf16.mxu0 0
      %1625 = vmatpush1.bf16.msra.mxu0 %v1597
      %1626 = vmatprep.subr.bf16.mxu0 0
      %1627 = vmatpush2.bf16.msra.mxu0 0
      %1628 = vmatprep.subr.bf16.mxu0 0
      %1629 = vmatpush2.bf16.msra.mxu0 0
      %1630 = vmatprep.subr.bf16.mxu0 0
      %1631 = vmatpush2.bf16.msra.mxu0 0
      %1632 = vmatprep.subr.bf16.mxu0 0
      %1633 = vmatpush2.bf16.msra.mxu0 0
      %1634 = vmatprep.subr.bf16.mxu0 0
      %1635 = vmatpush2.bf16.msra.mxu0 0
      %1636 = vmatprep.subr.bf16.mxu0 0
      %1637 = vmatpush2.bf16.msra.mxu0 0
      %1638 = vmatprep.subr.bf16.mxu0 0
      %1639 = vmatpush2.bf16.msra.mxu0 0
      %1640 = vmatprep.subr.bf16.mxu0 0
      %1641 = vmatpush2.bf16.msra.mxu0 0
      %1642 = vmatprep.mubr.bf16.mxu0 0
      %1643 = vmatmul.mubr.bf16.gmra.mxu0 %v1605
      %v1644 = vpop.f32.mrf.mxu0
      %v1645 = vadd.f32 0.0, %v1644
      %v1646 = vpop.f32.mrf.mxu0
      %v1647 = vpop.f32.mrf.mxu0
      %v1648 = vpop.f32.mrf.mxu0
      %1649 = vdwg.mxu0
      %v1650 = vadd.f32 %v1569, %v1645
      %v1651 = vrot.slane %v1077, 3
      %v1653 = vrot.slane %v1160, 3
      %v1655 = vsel %vm1165, %v1651, %v1653
      %s1656 = scalar_lea.vmem %s9, 168
      %v1657 = vld [vmem:[%s1656] sm:$0xf]
      %v1658 = vld [vmem:[%s1656 + $0x4] sm:$0xf]
      %v1659 = vld [vmem:[%s1656 + $0x8] sm:$0xf]
      %v1660 = vld [vmem:[%s1656 + $0xc] sm:$0xf]
      %v1661 = vld [vmem:[%s1656 + $0x10] sm:$0xf]
      %v1662 = vld [vmem:[%s1656 + $0x14] sm:$0xf]
      %v1663 = vld [vmem:[%s1656 + $0x18] sm:$0x1]
      %v1671 = vunpack.c.l.b16 %v1657
      %v1672 = vunpack.c.l.b16 %v1658
      %v1673 = vunpack.c.l.b16 %v1659
      %v1674 = vunpack.c.l.b16 %v1660
      %v1675 = vunpack.c.l.b16 %v1661
      %v1676 = vunpack.c.l.b16 %v1662
      %v1677 = vunpack.c.l.b16 %v1663
      %v1678 = vpack.c.b16 %v1672, %v1671
      %v1679 = vpack.c.b16 %v1674, %v1673
      %v1680 = vpack.c.b16 %v1676, %v1675
      %v1681 = vpack.c.b16 %v1677, %v1677
      %v1686 = vsel %vm1208, %v1655, 0
      %v1689 = vand.u32 %v1681, %v1214
      %1691 = vmatprep.subr.bf16.mxu0 0
      %1692 = vmatpush1.bf16.msra.mxu0 0
      %1693 = vmatprep.subr.bf16.mxu0 0
      %1694 = vmatpush1.bf16.msra.mxu0 0
      %1695 = vmatprep.subr.bf16.mxu0 0
      %1696 = vmatpush1.bf16.msra.mxu0 0
      %1697 = vmatprep.subr.bf16.mxu0 0
      %1698 = vmatpush1.bf16.msra.mxu0 0
      %1699 = vmatprep.subr.bf16.mxu0 0
      %1700 = vmatpush1.bf16.msra.mxu0 %v1689
      %1701 = vmatprep.subr.bf16.mxu0 0
      %1702 = vmatpush1.bf16.msra.mxu0 %v1680
      %1703 = vmatprep.subr.bf16.mxu0 0
      %1704 = vmatpush1.bf16.msra.mxu0 %v1679
      %1705 = vmatprep.subr.bf16.mxu0 0
      %1706 = vmatpush1.bf16.msra.mxu0 %v1678
      %1707 = vmatprep.subr.bf16.mxu0 0
      %1708 = vmatpush2.bf16.msra.mxu0 0
      %1709 = vmatprep.subr.bf16.mxu0 0
      %1710 = vmatpush2.bf16.msra.mxu0 0
      %1711 = vmatprep.subr.bf16.mxu0 0
      %1712 = vmatpush2.bf16.msra.mxu0 0
      %1713 = vmatprep.subr.bf16.mxu0 0
      %1714 = vmatpush2.bf16.msra.mxu0 0
      %1715 = vmatprep.subr.bf16.mxu0 0
      %1716 = vmatpush2.bf16.msra.mxu0 0
      %1717 = vmatprep.subr.bf16.mxu0 0
      %1718 = vmatpush2.bf16.msra.mxu0 0
      %1719 = vmatprep.subr.bf16.mxu0 0
      %1720 = vmatpush2.bf16.msra.mxu0 0
      %1721 = vmatprep.subr.bf16.mxu0 0
      %1722 = vmatpush2.bf16.msra.mxu0 0
      %1723 = vmatprep.mubr.bf16.mxu0 0
      %1724 = vmatmul.mubr.bf16.gmra.mxu0 %v1686
      %v1725 = vpop.f32.mrf.mxu0
      %v1726 = vadd.f32 0.0, %v1725
      %v1727 = vpop.f32.mrf.mxu0
      %v1728 = vpop.f32.mrf.mxu0
      %v1729 = vpop.f32.mrf.mxu0
      %1730 = vdwg.mxu0
      %v1731 = vadd.f32 %v1650, %v1726
      %v1732 = vrot.slane %v1175, 3
      %v1734 = vrot.slane %v1158, 3
      %v1736 = vsel %vm1165, %v1732, %v1734
      %s1737 = scalar_lea.vmem %s9, 196
      %v1738 = vld [vmem:[%s1737] sm:$0xf]
      %v1739 = vld [vmem:[%s1737 + $0x4] sm:$0xf]
      %v1740 = vld [vmem:[%s1737 + $0x8] sm:$0xf]
      %v1741 = vld [vmem:[%s1737 + $0xc] sm:$0xf]
      %v1742 = vld [vmem:[%s1737 + $0x10] sm:$0xf]
      %v1743 = vld [vmem:[%s1737 + $0x14] sm:$0xf]
      %v1744 = vld [vmem:[%s1737 + $0x18] sm:$0x1]
      %v1752 = vunpack.c.l.b16 %v1738
      %v1753 = vunpack.c.l.b16 %v1739
      %v1754 = vunpack.c.l.b16 %v1740
      %v1755 = vunpack.c.l.b16 %v1741
      %v1756 = vunpack.c.l.b16 %v1742
      %v1757 = vunpack.c.l.b16 %v1743
      %v1758 = vunpack.c.l.b16 %v1744
      %v1759 = vpack.c.b16 %v1753, %v1752
      %v1760 = vpack.c.b16 %v1755, %v1754
      %v1761 = vpack.c.b16 %v1757, %v1756
      %v1762 = vpack.c.b16 %v1758, %v1758
      %v1767 = vsel %vm1208, %v1736, 0
      %v1770 = vand.u32 %v1762, %v1214
      %1772 = vmatprep.subr.bf16.mxu0 0
      %1773 = vmatpush1.bf16.msra.mxu0 0
      %1774 = vmatprep.subr.bf16.mxu0 0
      %1775 = vmatpush1.bf16.msra.mxu0 0
      %1776 = vmatprep.subr.bf16.mxu0 0
      %1777 = vmatpush1.bf16.msra.mxu0 0
      %1778 = vmatprep.subr.bf16.mxu0 0
      %1779 = vmatpush1.bf16.msra.mxu0 0
      %1780 = vmatprep.subr.bf16.mxu0 0
      %1781 = vmatpush1.bf16.msra.mxu0 %v1770
      %1782 = vmatprep.subr.bf16.mxu0 0
      %1783 = vmatpush1.bf16.msra.mxu0 %v1761
      %1784 = vmatprep.subr.bf16.mxu0 0
      %1785 = vmatpush1.bf16.msra.mxu0 %v1760
      %1786 = vmatprep.subr.bf16.mxu0 0
      %1787 = vmatpush1.bf16.msra.mxu0 %v1759
      %1788 = vmatprep.subr.bf16.mxu0 0
      %1789 = vmatpush2.bf16.msra.mxu0 0
      %1790 = vmatprep.subr.bf16.mxu0 0
      %1791 = vmatpush2.bf16.msra.mxu0 0
      %1792 = vmatprep.subr.bf16.mxu0 0
      %1793 = vmatpush2.bf16.msra.mxu0 0
      %1794 = vmatprep.subr.bf16.mxu0 0
      %1795 = vmatpush2.bf16.msra.mxu0 0
      %1796 = vmatprep.subr.bf16.mxu0 0
      %1797 = vmatpush2.bf16.msra.mxu0 0
      %1798 = vmatprep.subr.bf16.mxu0 0
      %1799 = vmatpush2.bf16.msra.mxu0 0
      %1800 = vmatprep.subr.bf16.mxu0 0
      %1801 = vmatpush2.bf16.msra.mxu0 0
      %1802 = vmatprep.subr.bf16.mxu0 0
      %1803 = vmatpush2.bf16.msra.mxu0 0
      %1804 = vmatprep.mubr.bf16.mxu0 0
      %1805 = vmatmul.mubr.bf16.gmra.mxu0 %v1767
      %v1806 = vpop.f32.mrf.mxu0
      %v1807 = vadd.f32 0.0, %v1806
      %v1808 = vpop.f32.mrf.mxu0
      %v1809 = vpop.f32.mrf.mxu0
      %v1810 = vpop.f32.mrf.mxu0
      %1811 = vdwg.mxu0
      %v1812 = vadd.f32 %v1731, %v1807
      %v1813 = vrot.slane %v1077, 4
      %v1815 = vrot.slane %v1160, 4
      %v1817 = vsel %vm1165, %v1813, %v1815
      %s1818 = scalar_lea.vmem %s9, 224
      %v1819 = vld [vmem:[%s1818] sm:$0xf]
      %v1820 = vld [vmem:[%s1818 + $0x4] sm:$0xf]
      %v1821 = vld [vmem:[%s1818 + $0x8] sm:$0xf]
      %v1822 = vld [vmem:[%s1818 + $0xc] sm:$0xf]
      %v1823 = vld [vmem:[%s1818 + $0x10] sm:$0xf]
      %v1824 = vld [vmem:[%s1818 + $0x14] sm:$0xf]
      %v1825 = vld [vmem:[%s1818 + $0x18] sm:$0x1]
      %v1833 = vunpack.c.l.b16 %v1819
      %v1834 = vunpack.c.l.b16 %v1820
      %v1835 = vunpack.c.l.b16 %v1821
      %v1836 = vunpack.c.l.b16 %v1822
      %v1837 = vunpack.c.l.b16 %v1823
      %v1838 = vunpack.c.l.b16 %v1824
      %v1839 = vunpack.c.l.b16 %v1825
      %v1840 = vpack.c.b16 %v1834, %v1833
      %v1841 = vpack.c.b16 %v1836, %v1835
      %v1842 = vpack.c.b16 %v1838, %v1837
      %v1843 = vpack.c.b16 %v1839, %v1839
      %v1848 = vsel %vm1208, %v1817, 0
      %v1851 = vand.u32 %v1843, %v1214
      %1853 = vmatprep.subr.bf16.mxu0 0
      %1854 = vmatpush1.bf16.msra.mxu0 0
      %1855 = vmatprep.subr.bf16.mxu0 0
      %1856 = vmatpush1.bf16.msra.mxu0 0
      %1857 = vmatprep.subr.bf16.mxu0 0
      %1858 = vmatpush1.bf16.msra.mxu0 0
      %1859 = vmatprep.subr.bf16.mxu0 0
      %1860 = vmatpush1.bf16.msra.mxu0 0
      %1861 = vmatprep.subr.bf16.mxu0 0
      %1862 = vmatpush1.bf16.msra.mxu0 %v1851
      %1863 = vmatprep.subr.bf16.mxu0 0
      %1864 = vmatpush1.bf16.msra.mxu0 %v1842
      %1865 = vmatprep.subr.bf16.mxu0 0
      %1866 = vmatpush1.bf16.msra.mxu0 %v1841
      %1867 = vmatprep.subr.bf16.mxu0 0
      %1868 = vmatpush1.bf16.msra.mxu0 %v1840
      %1869 = vmatprep.subr.bf16.mxu0 0
      %1870 = vmatpush2.bf16.msra.mxu0 0
      %1871 = vmatprep.subr.bf16.mxu0 0
      %1872 = vmatpush2.bf16.msra.mxu0 0
      %1873 = vmatprep.subr.bf16.mxu0 0
      %1874 = vmatpush2.bf16.msra.mxu0 0
      %1875 = vmatprep.subr.bf16.mxu0 0
      %1876 = vmatpush2.bf16.msra.mxu0 0
      %1877 = vmatprep.subr.bf16.mxu0 0
      %1878 = vmatpush2.bf16.msra.mxu0 0
      %1879 = vmatprep.subr.bf16.mxu0 0
      %1880 = vmatpush2.bf16.msra.mxu0 0
      %1881 = vmatprep.subr.bf16.mxu0 0
      %1882 = vmatpush2.bf16.msra.mxu0 0
      %1883 = vmatprep.subr.bf16.mxu0 0
      %1884 = vmatpush2.bf16.msra.mxu0 0
      %1885 = vmatprep.mubr.bf16.mxu0 0
      %1886 = vmatmul.mubr.bf16.gmra.mxu0 %v1848
      %v1887 = vpop.f32.mrf.mxu0
      %v1888 = vadd.f32 0.0, %v1887
      %v1889 = vpop.f32.mrf.mxu0
      %v1890 = vpop.f32.mrf.mxu0
      %v1891 = vpop.f32.mrf.mxu0
      %1892 = vdwg.mxu0
      %v1893 = vadd.f32 %v1812, %v1888
      %v1894 = vrot.slane %v1175, 4
      %v1896 = vrot.slane %v1158, 4
      %v1898 = vsel %vm1165, %v1894, %v1896
      %s1899 = scalar_lea.vmem %s9, 252
      %v1900 = vld [vmem:[%s1899] sm:$0xf]
      %v1901 = vld [vmem:[%s1899 + $0x4] sm:$0xf]
      %v1902 = vld [vmem:[%s1899 + $0x8] sm:$0xf]
      %v1903 = vld [vmem:[%s1899 + $0xc] sm:$0xf]
      %v1904 = vld [vmem:[%s1899 + $0x10] sm:$0xf]
      %v1905 = vld [vmem:[%s1899 + $0x14] sm:$0xf]
      %v1906 = vld [vmem:[%s1899 + $0x18] sm:$0x1]
      %v1914 = vunpack.c.l.b16 %v1900
      %v1915 = vunpack.c.l.b16 %v1901
      %v1916 = vunpack.c.l.b16 %v1902
      %v1917 = vunpack.c.l.b16 %v1903
      %v1918 = vunpack.c.l.b16 %v1904
      %v1919 = vunpack.c.l.b16 %v1905
      %v1920 = vunpack.c.l.b16 %v1906
      %v1921 = vpack.c.b16 %v1915, %v1914
      %v1922 = vpack.c.b16 %v1917, %v1916
      %v1923 = vpack.c.b16 %v1919, %v1918
      %v1924 = vpack.c.b16 %v1920, %v1920
      %v1929 = vsel %vm1208, %v1898, 0
      %v1932 = vand.u32 %v1924, %v1214
      %1934 = vmatprep.subr.bf16.mxu0 0
      %1935 = vmatpush1.bf16.msra.mxu0 0
      %1936 = vmatprep.subr.bf16.mxu0 0
      %1937 = vmatpush1.bf16.msra.mxu0 0
      %1938 = vmatprep.subr.bf16.mxu0 0
      %1939 = vmatpush1.bf16.msra.mxu0 0
      %1940 = vmatprep.subr.bf16.mxu0 0
      %1941 = vmatpush1.bf16.msra.mxu0 0
      %1942 = vmatprep.subr.bf16.mxu0 0
      %1943 = vmatpush1.bf16.msra.mxu0 %v1932
      %1944 = vmatprep.subr.bf16.mxu0 0
      %1945 = vmatpush1.bf16.msra.mxu0 %v1923
      %1946 = vmatprep.subr.bf16.mxu0 0
      %1947 = vmatpush1.bf16.msra.mxu0 %v1922
      %1948 = vmatprep.subr.bf16.mxu0 0
      %1949 = vmatpush1.bf16.msra.mxu0 %v1921
      %1950 = vmatprep.subr.bf16.mxu0 0
      %1951 = vmatpush2.bf16.msra.mxu0 0
      %1952 = vmatprep.subr.bf16.mxu0 0
      %1953 = vmatpush2.bf16.msra.mxu0 0
      %1954 = vmatprep.subr.bf16.mxu0 0
      %1955 = vmatpush2.bf16.msra.mxu0 0
      %1956 = vmatprep.subr.bf16.mxu0 0
      %1957 = vmatpush2.bf16.msra.mxu0 0
      %1958 = vmatprep.subr.bf16.mxu0 0
      %1959 = vmatpush2.bf16.msra.mxu0 0
      %1960 = vmatprep.subr.bf16.mxu0 0
      %1961 = vmatpush2.bf16.msra.mxu0 0
      %1962 = vmatprep.subr.bf16.mxu0 0
      %1963 = vmatpush2.bf16.msra.mxu0 0
      %1964 = vmatprep.subr.bf16.mxu0 0
      %1965 = vmatpush2.bf16.msra.mxu0 0
      %1966 = vmatprep.mubr.bf16.mxu0 0
      %1967 = vmatmul.mubr.bf16.gmra.mxu0 %v1929
      %v1968 = vpop.f32.mrf.mxu0
      %v1969 = vadd.f32 0.0, %v1968
      %v1970 = vpop.f32.mrf.mxu0
      %v1971 = vpop.f32.mrf.mxu0
      %v1972 = vpop.f32.mrf.mxu0
      %1973 = vdwg.mxu0
      %v1974 = vadd.f32 %v1893, %v1969
      %v1975 = vrot.slane %v1077, 5
      %v1977 = vrot.slane %v1160, 5
      %v1979 = vsel %vm1165, %v1975, %v1977
      %s1980 = scalar_lea.vmem %s9, 280
      %v1981 = vld [vmem:[%s1980] sm:$0xf]
      %v1982 = vld [vmem:[%s1980 + $0x4] sm:$0xf]
      %v1983 = vld [vmem:[%s1980 + $0x8] sm:$0xf]
      %v1984 = vld [vmem:[%s1980 + $0xc] sm:$0xf]
      %v1985 = vld [vmem:[%s1980 + $0x10] sm:$0xf]
      %v1986 = vld [vmem:[%s1980 + $0x14] sm:$0xf]
      %v1987 = vld [vmem:[%s1980 + $0x18] sm:$0x1]
      %v1995 = vunpack.c.l.b16 %v1981
      %v1996 = vunpack.c.l.b16 %v1982
      %v1997 = vunpack.c.l.b16 %v1983
      %v1998 = vunpack.c.l.b16 %v1984
      %v1999 = vunpack.c.l.b16 %v1985
      %v2000 = vunpack.c.l.b16 %v1986
      %v2001 = vunpack.c.l.b16 %v1987
      %v2002 = vpack.c.b16 %v1996, %v1995
      %v2003 = vpack.c.b16 %v1998, %v1997
      %v2004 = vpack.c.b16 %v2000, %v1999
      %v2005 = vpack.c.b16 %v2001, %v2001
      %v2010 = vsel %vm1208, %v1979, 0
      %v2013 = vand.u32 %v2005, %v1214
      %2015 = vmatprep.subr.bf16.mxu0 0
      %2016 = vmatpush1.bf16.msra.mxu0 0
      %2017 = vmatprep.subr.bf16.mxu0 0
      %2018 = vmatpush1.bf16.msra.mxu0 0
      %2019 = vmatprep.subr.bf16.mxu0 0
      %2020 = vmatpush1.bf16.msra.mxu0 0
      %2021 = vmatprep.subr.bf16.mxu0 0
      %2022 = vmatpush1.bf16.msra.mxu0 0
      %2023 = vmatprep.subr.bf16.mxu0 0
      %2024 = vmatpush1.bf16.msra.mxu0 %v2013
      %2025 = vmatprep.subr.bf16.mxu0 0
      %2026 = vmatpush1.bf16.msra.mxu0 %v2004
      %2027 = vmatprep.subr.bf16.mxu0 0
      %2028 = vmatpush1.bf16.msra.mxu0 %v2003
      %2029 = vmatprep.subr.bf16.mxu0 0
      %2030 = vmatpush1.bf16.msra.mxu0 %v2002
      %2031 = vmatprep.subr.bf16.mxu0 0
      %2032 = vmatpush2.bf16.msra.mxu0 0
      %2033 = vmatprep.subr.bf16.mxu0 0
      %2034 = vmatpush2.bf16.msra.mxu0 0
      %2035 = vmatprep.subr.bf16.mxu0 0
      %2036 = vmatpush2.bf16.msra.mxu0 0
      %2037 = vmatprep.subr.bf16.mxu0 0
      %2038 = vmatpush2.bf16.msra.mxu0 0
      %2039 = vmatprep.subr.bf16.mxu0 0
      %2040 = vmatpush2.bf16.msra.mxu0 0
      %2041 = vmatprep.subr.bf16.mxu0 0
      %2042 = vmatpush2.bf16.msra.mxu0 0
      %2043 = vmatprep.subr.bf16.mxu0 0
      %2044 = vmatpush2.bf16.msra.mxu0 0
      %2045 = vmatprep.subr.bf16.mxu0 0
      %2046 = vmatpush2.bf16.msra.mxu0 0
      %2047 = vmatprep.mubr.bf16.mxu0 0
      %2048 = vmatmul.mubr.bf16.gmra.mxu0 %v2010
      %v2049 = vpop.f32.mrf.mxu0
      %v2050 = vadd.f32 0.0, %v2049
      %v2051 = vpop.f32.mrf.mxu0
      %v2052 = vpop.f32.mrf.mxu0
      %v2053 = vpop.f32.mrf.mxu0
      %2054 = vdwg.mxu0
      %v2055 = vadd.f32 %v1974, %v2050
      %v2056 = vrot.slane %v1175, 5
      %v2058 = vrot.slane %v1158, 5
      %v2060 = vsel %vm1165, %v2056, %v2058
      %s2061 = scalar_lea.vmem %s9, 308
      %v2062 = vld [vmem:[%s2061] sm:$0xf]
      %v2063 = vld [vmem:[%s2061 + $0x4] sm:$0xf]
      %v2064 = vld [vmem:[%s2061 + $0x8] sm:$0xf]
      %v2065 = vld [vmem:[%s2061 + $0xc] sm:$0xf]
      %v2066 = vld [vmem:[%s2061 + $0x10] sm:$0xf]
      %v2067 = vld [vmem:[%s2061 + $0x14] sm:$0xf]
      %v2068 = vld [vmem:[%s2061 + $0x18] sm:$0x1]
      %v2076 = vunpack.c.l.b16 %v2062
      %v2077 = vunpack.c.l.b16 %v2063
      %v2078 = vunpack.c.l.b16 %v2064
      %v2079 = vunpack.c.l.b16 %v2065
      %v2080 = vunpack.c.l.b16 %v2066
      %v2081 = vunpack.c.l.b16 %v2067
      %v2082 = vunpack.c.l.b16 %v2068
      %v2083 = vpack.c.b16 %v2077, %v2076
      %v2084 = vpack.c.b16 %v2079, %v2078
      %v2085 = vpack.c.b16 %v2081, %v2080
      %v2086 = vpack.c.b16 %v2082, %v2082
      %v2091 = vsel %vm1208, %v2060, 0
      %v2094 = vand.u32 %v2086, %v1214
      %2096 = vmatprep.subr.bf16.mxu0 0
      %2097 = vmatpush1.bf16.msra.mxu0 0
      %2098 = vmatprep.subr.bf16.mxu0 0
      %2099 = vmatpush1.bf16.msra.mxu0 0
      %2100 = vmatprep.subr.bf16.mxu0 0
      %2101 = vmatpush1.bf16.msra.mxu0 0
      %2102 = vmatprep.subr.bf16.mxu0 0
      %2103 = vmatpush1.bf16.msra.mxu0 0
      %2104 = vmatprep.subr.bf16.mxu0 0
      %2105 = vmatpush1.bf16.msra.mxu0 %v2094
      %2106 = vmatprep.subr.bf16.mxu0 0
      %2107 = vmatpush1.bf16.msra.mxu0 %v2085
      %2108 = vmatprep.subr.bf16.mxu0 0
      %2109 = vmatpush1.bf16.msra.mxu0 %v2084
      %2110 = vmatprep.subr.bf16.mxu0 0
      %2111 = vmatpush1.bf16.msra.mxu0 %v2083
      %2112 = vmatprep.subr.bf16.mxu0 0
      %2113 = vmatpush2.bf16.msra.mxu0 0
      %2114 = vmatprep.subr.bf16.mxu0 0
      %2115 = vmatpush2.bf16.msra.mxu0 0
      %2116 = vmatprep.subr.bf16.mxu0 0
      %2117 = vmatpush2.bf16.msra.mxu0 0
      %2118 = vmatprep.subr.bf16.mxu0 0
      %2119 = vmatpush2.bf16.msra.mxu0 0
      %2120 = vmatprep.subr.bf16.mxu0 0
      %2121 = vmatpush2.bf16.msra.mxu0 0
      %2122 = vmatprep.subr.bf16.mxu0 0
      %2123 = vmatpush2.bf16.msra.mxu0 0
      %2124 = vmatprep.subr.bf16.mxu0 0
      %2125 = vmatpush2.bf16.msra.mxu0 0
      %2126 = vmatprep.subr.bf16.mxu0 0
      %2127 = vmatpush2.bf16.msra.mxu0 0
      %2128 = vmatprep.mubr.bf16.mxu0 0
      %2129 = vmatmul.mubr.bf16.gmra.mxu0 %v2091
      %v2130 = vpop.f32.mrf.mxu0
      %v2131 = vadd.f32 0.0, %v2130
      %v2132 = vpop.f32.mrf.mxu0
      %v2133 = vpop.f32.mrf.mxu0
      %v2134 = vpop.f32.mrf.mxu0
      %2135 = vdwg.mxu0
      %v2136 = vadd.f32 %v2055, %v2131
      %v2137 = vrot.slane %v1077, 6
      %v2139 = vrot.slane %v1160, 6
      %v2141 = vsel %vm1165, %v2137, %v2139
      %s2142 = scalar_lea.vmem %s9, 336
      %v2143 = vld [vmem:[%s2142] sm:$0xf]
      %v2144 = vld [vmem:[%s2142 + $0x4] sm:$0xf]
      %v2145 = vld [vmem:[%s2142 + $0x8] sm:$0xf]
      %v2146 = vld [vmem:[%s2142 + $0xc] sm:$0xf]
      %v2147 = vld [vmem:[%s2142 + $0x10] sm:$0xf]
      %v2148 = vld [vmem:[%s2142 + $0x14] sm:$0xf]
      %v2149 = vld [vmem:[%s2142 + $0x18] sm:$0x1]
      %v2157 = vunpack.c.l.b16 %v2143
      %v2158 = vunpack.c.l.b16 %v2144
      %v2159 = vunpack.c.l.b16 %v2145
      %v2160 = vunpack.c.l.b16 %v2146
      %v2161 = vunpack.c.l.b16 %v2147
      %v2162 = vunpack.c.l.b16 %v2148
      %v2163 = vunpack.c.l.b16 %v2149
      %v2164 = vpack.c.b16 %v2158, %v2157
      %v2165 = vpack.c.b16 %v2160, %v2159
      %v2166 = vpack.c.b16 %v2162, %v2161
      %v2167 = vpack.c.b16 %v2163, %v2163
      %v2172 = vsel %vm1208, %v2141, 0
      %v2175 = vand.u32 %v2167, %v1214
      %2177 = vmatprep.subr.bf16.mxu0 0
      %2178 = vmatpush1.bf16.msra.mxu0 0
      %2179 = vmatprep.subr.bf16.mxu0 0
      %2180 = vmatpush1.bf16.msra.mxu0 0
      %2181 = vmatprep.subr.bf16.mxu0 0
      %2182 = vmatpush1.bf16.msra.mxu0 0
      %2183 = vmatprep.subr.bf16.mxu0 0
      %2184 = vmatpush1.bf16.msra.mxu0 0
      %2185 = vmatprep.subr.bf16.mxu0 0
      %2186 = vmatpush1.bf16.msra.mxu0 %v2175
      %2187 = vmatprep.subr.bf16.mxu0 0
      %2188 = vmatpush1.bf16.msra.mxu0 %v2166
      %2189 = vmatprep.subr.bf16.mxu0 0
      %2190 = vmatpush1.bf16.msra.mxu0 %v2165
      %2191 = vmatprep.subr.bf16.mxu0 0
      %2192 = vmatpush1.bf16.msra.mxu0 %v2164
      %2193 = vmatprep.subr.bf16.mxu0 0
      %2194 = vmatpush2.bf16.msra.mxu0 0
      %2195 = vmatprep.subr.bf16.mxu0 0
      %2196 = vmatpush2.bf16.msra.mxu0 0
      %2197 = vmatprep.subr.bf16.mxu0 0
      %2198 = vmatpush2.bf16.msra.mxu0 0
      %2199 = vmatprep.subr.bf16.mxu0 0
      %2200 = vmatpush2.bf16.msra.mxu0 0
      %2201 = vmatprep.subr.bf16.mxu0 0
      %2202 = vmatpush2.bf16.msra.mxu0 0
      %2203 = vmatprep.subr.bf16.mxu0 0
      %2204 = vmatpush2.bf16.msra.mxu0 0
      %2205 = vmatprep.subr.bf16.mxu0 0
      %2206 = vmatpush2.bf16.msra.mxu0 0
      %2207 = vmatprep.subr.bf16.mxu0 0
      %2208 = vmatpush2.bf16.msra.mxu0 0
      %2209 = vmatprep.mubr.bf16.mxu0 0
      %2210 = vmatmul.mubr.bf16.gmra.mxu0 %v2172
      %v2211 = vpop.f32.mrf.mxu0
      %v2212 = vadd.f32 0.0, %v2211
      %v2213 = vpop.f32.mrf.mxu0
      %v2214 = vpop.f32.mrf.mxu0
      %v2215 = vpop.f32.mrf.mxu0
      %2216 = vdwg.mxu0
      %v2217 = vadd.f32 %v2136, %v2212
      %v2218 = vrot.slane %v1175, 6
      %v2220 = vrot.slane %v1158, 6
      %v2222 = vsel %vm1165, %v2218, %v2220
      %s2223 = scalar_lea.vmem %s9, 364
      %v2224 = vld [vmem:[%s2223] sm:$0xf]
      %v2225 = vld [vmem:[%s2223 + $0x4] sm:$0xf]
      %v2226 = vld [vmem:[%s2223 + $0x8] sm:$0xf]
      %v2227 = vld [vmem:[%s2223 + $0xc] sm:$0xf]
      %v2228 = vld [vmem:[%s2223 + $0x10] sm:$0xf]
      %v2229 = vld [vmem:[%s2223 + $0x14] sm:$0xf]
      %v2230 = vld [vmem:[%s2223 + $0x18] sm:$0x1]
      %v2238 = vunpack.c.l.b16 %v2224
      %v2239 = vunpack.c.l.b16 %v2225
      %v2240 = vunpack.c.l.b16 %v2226
      %v2241 = vunpack.c.l.b16 %v2227
      %v2242 = vunpack.c.l.b16 %v2228
      %v2243 = vunpack.c.l.b16 %v2229
      %v2244 = vunpack.c.l.b16 %v2230
      %v2245 = vpack.c.b16 %v2239, %v2238
      %v2246 = vpack.c.b16 %v2241, %v2240
      %v2247 = vpack.c.b16 %v2243, %v2242
      %v2248 = vpack.c.b16 %v2244, %v2244
      %v2253 = vsel %vm1208, %v2222, 0
      %v2256 = vand.u32 %v2248, %v1214
      %2258 = vmatprep.subr.bf16.mxu0 0
      %2259 = vmatpush1.bf16.msra.mxu0 0
      %2260 = vmatprep.subr.bf16.mxu0 0
      %2261 = vmatpush1.bf16.msra.mxu0 0
      %2262 = vmatprep.subr.bf16.mxu0 0
      %2263 = vmatpush1.bf16.msra.mxu0 0
      %2264 = vmatprep.subr.bf16.mxu0 0
      %2265 = vmatpush1.bf16.msra.mxu0 0
      %2266 = vmatprep.subr.bf16.mxu0 0
      %2267 = vmatpush1.bf16.msra.mxu0 %v2256
      %2268 = vmatprep.subr.bf16.mxu0 0
      %2269 = vmatpush1.bf16.msra.mxu0 %v2247
      %2270 = vmatprep.subr.bf16.mxu0 0
      %2271 = vmatpush1.bf16.msra.mxu0 %v2246
      %2272 = vmatprep.subr.bf16.mxu0 0
      %2273 = vmatpush1.bf16.msra.mxu0 %v2245
      %2274 = vmatprep.subr.bf16.mxu0 0
      %2275 = vmatpush2.bf16.msra.mxu0 0
      %2276 = vmatprep.subr.bf16.mxu0 0
      %2277 = vmatpush2.bf16.msra.mxu0 0
      %2278 = vmatprep.subr.bf16.mxu0 0
      %2279 = vmatpush2.bf16.msra.mxu0 0
      %2280 = vmatprep.subr.bf16.mxu0 0
      %2281 = vmatpush2.bf16.msra.mxu0 0
      %2282 = vmatprep.subr.bf16.mxu0 0
      %2283 = vmatpush2.bf16.msra.mxu0 0
      %2284 = vmatprep.subr.bf16.mxu0 0
      %2285 = vmatpush2.bf16.msra.mxu0 0
      %2286 = vmatprep.subr.bf16.mxu0 0
      %2287 = vmatpush2.bf16.msra.mxu0 0
      %2288 = vmatprep.subr.bf16.mxu0 0
      %2289 = vmatpush2.bf16.msra.mxu0 0
      %2290 = vmatprep.mubr.bf16.mxu0 0
      %2291 = vmatmul.mubr.bf16.gmra.mxu0 %v2253
      %v2292 = vpop.f32.mrf.mxu0
      %v2293 = vadd.f32 0.0, %v2292
      %v2294 = vpop.f32.mrf.mxu0
      %v2295 = vpop.f32.mrf.mxu0
      %v2296 = vpop.f32.mrf.mxu0
      %2297 = vdwg.mxu0
      %v2298 = vadd.f32 %v2217, %v2293
      %v2299 = vrot.slane %v1077, 7
      %v2301 = vrot.slane %v1160, 7
      %v2303 = vsel %vm1165, %v2299, %v2301
      %s2304 = scalar_lea.vmem %s9, 392
      %v2305 = vld [vmem:[%s2304] sm:$0xf]
      %v2306 = vld [vmem:[%s2304 + $0x4] sm:$0xf]
      %v2307 = vld [vmem:[%s2304 + $0x8] sm:$0xf]
      %v2308 = vld [vmem:[%s2304 + $0xc] sm:$0xf]
      %v2309 = vld [vmem:[%s2304 + $0x10] sm:$0xf]
      %v2310 = vld [vmem:[%s2304 + $0x14] sm:$0xf]
      %v2311 = vld [vmem:[%s2304 + $0x18] sm:$0x1]
      %v2319 = vunpack.c.l.b16 %v2305
      %v2320 = vunpack.c.l.b16 %v2306
      %v2321 = vunpack.c.l.b16 %v2307
      %v2322 = vunpack.c.l.b16 %v2308
      %v2323 = vunpack.c.l.b16 %v2309
      %v2324 = vunpack.c.l.b16 %v2310
      %v2325 = vunpack.c.l.b16 %v2311
      %v2326 = vpack.c.b16 %v2320, %v2319
      %v2327 = vpack.c.b16 %v2322, %v2321
      %v2328 = vpack.c.b16 %v2324, %v2323
      %v2329 = vpack.c.b16 %v2325, %v2325
      %v2334 = vsel %vm1208, %v2303, 0
      %v2337 = vand.u32 %v2329, %v1214
      %2339 = vmatprep.subr.bf16.mxu0 0
      %2340 = vmatpush1.bf16.msra.mxu0 0
      %2341 = vmatprep.subr.bf16.mxu0 0
      %2342 = vmatpush1.bf16.msra.mxu0 0
      %2343 = vmatprep.subr.bf16.mxu0 0
      %2344 = vmatpush1.bf16.msra.mxu0 0
      %2345 = vmatprep.subr.bf16.mxu0 0
      %2346 = vmatpush1.bf16.msra.mxu0 0
      %2347 = vmatprep.subr.bf16.mxu0 0
      %2348 = vmatpush1.bf16.msra.mxu0 %v2337
      %2349 = vmatprep.subr.bf16.mxu0 0
      %2350 = vmatpush1.bf16.msra.mxu0 %v2328
      %2351 = vmatprep.subr.bf16.mxu0 0
      %2352 = vmatpush1.bf16.msra.mxu0 %v2327
      %2353 = vmatprep.subr.bf16.mxu0 0
      %2354 = vmatpush1.bf16.msra.mxu0 %v2326
      %2355 = vmatprep.subr.bf16.mxu0 0
      %2356 = vmatpush2.bf16.msra.mxu0 0
      %2357 = vmatprep.subr.bf16.mxu0 0
      %2358 = vmatpush2.bf16.msra.mxu0 0
      %2359 = vmatprep.subr.bf16.mxu0 0
      %2360 = vmatpush2.bf16.msra.mxu0 0
      %2361 = vmatprep.subr.bf16.mxu0 0
      %2362 = vmatpush2.bf16.msra.mxu0 0
      %2363 = vmatprep.subr.bf16.mxu0 0
      %2364 = vmatpush2.bf16.msra.mxu0 0
      %2365 = vmatprep.subr.bf16.mxu0 0
      %2366 = vmatpush2.bf16.msra.mxu0 0
      %2367 = vmatprep.subr.bf16.mxu0 0
      %2368 = vmatpush2.bf16.msra.mxu0 0
      %2369 = vmatprep.subr.bf16.mxu0 0
      %2370 = vmatpush2.bf16.msra.mxu0 0
      %2371 = vmatprep.mubr.bf16.mxu0 0
      %2372 = vmatmul.mubr.bf16.gmra.mxu0 %v2334
      %v2373 = vpop.f32.mrf.mxu0
      %v2374 = vadd.f32 0.0, %v2373
      %v2375 = vpop.f32.mrf.mxu0
      %v2376 = vpop.f32.mrf.mxu0
      %v2377 = vpop.f32.mrf.mxu0
      %2378 = vdwg.mxu0
      %v2379 = vadd.f32 %v2298, %v2374
      %v2380 = vrot.slane %v1175, 7
      %v2382 = vrot.slane %v1158, 7
      %v2384 = vsel %vm1165, %v2380, %v2382
      %s2385 = scalar_lea.vmem %s9, 420
      %v2386 = vld [vmem:[%s2385] sm:$0xf]
      %v2387 = vld [vmem:[%s2385 + $0x4] sm:$0xf]
      %v2388 = vld [vmem:[%s2385 + $0x8] sm:$0xf]
      %v2389 = vld [vmem:[%s2385 + $0xc] sm:$0xf]
      %v2390 = vld [vmem:[%s2385 + $0x10] sm:$0xf]
      %v2391 = vld [vmem:[%s2385 + $0x14] sm:$0xf]
      %v2392 = vld [vmem:[%s2385 + $0x18] sm:$0x1]
      %v2400 = vunpack.c.l.b16 %v2386
      %v2401 = vunpack.c.l.b16 %v2387
      %v2402 = vunpack.c.l.b16 %v2388
      %v2403 = vunpack.c.l.b16 %v2389
      %v2404 = vunpack.c.l.b16 %v2390
      %v2405 = vunpack.c.l.b16 %v2391
      %v2406 = vunpack.c.l.b16 %v2392
      %v2407 = vpack.c.b16 %v2401, %v2400
      %v2408 = vpack.c.b16 %v2403, %v2402
      %v2409 = vpack.c.b16 %v2405, %v2404
      %v2410 = vpack.c.b16 %v2406, %v2406
      %v2415 = vsel %vm1208, %v2384, 0
      %v2418 = vand.u32 %v2410, %v1214
      %2420 = vmatprep.subr.bf16.mxu0 0
      %2421 = vmatpush1.bf16.msra.mxu0 0
      %2422 = vmatprep.subr.bf16.mxu0 0
      %2423 = vmatpush1.bf16.msra.mxu0 0
      %2424 = vmatprep.subr.bf16.mxu0 0
      %2425 = vmatpush1.bf16.msra.mxu0 0
      %2426 = vmatprep.subr.bf16.mxu0 0
      %2427 = vmatpush1.bf16.msra.mxu0 0
      %2428 = vmatprep.subr.bf16.mxu0 0
      %2429 = vmatpush1.bf16.msra.mxu0 %v2418
      %2430 = vmatprep.subr.bf16.mxu0 0
      %2431 = vmatpush1.bf16.msra.mxu0 %v2409
      %2432 = vmatprep.subr.bf16.mxu0 0
      %2433 = vmatpush1.bf16.msra.mxu0 %v2408
      %2434 = vmatprep.subr.bf16.mxu0 0
      %2435 = vmatpush1.bf16.msra.mxu0 %v2407
      %2436 = vmatprep.subr.bf16.mxu0 0
      %2437 = vmatpush2.bf16.msra.mxu0 0
      %2438 = vmatprep.subr.bf16.mxu0 0
      %2439 = vmatpush2.bf16.msra.mxu0 0
      %2440 = vmatprep.subr.bf16.mxu0 0
      %2441 = vmatpush2.bf16.msra.mxu0 0
      %2442 = vmatprep.subr.bf16.mxu0 0
      %2443 = vmatpush2.bf16.msra.mxu0 0
      %2444 = vmatprep.subr.bf16.mxu0 0
      %2445 = vmatpush2.bf16.msra.mxu0 0
      %2446 = vmatprep.subr.bf16.mxu0 0
      %2447 = vmatpush2.bf16.msra.mxu0 0
      %2448 = vmatprep.subr.bf16.mxu0 0
      %2449 = vmatpush2.bf16.msra.mxu0 0
      %2450 = vmatprep.subr.bf16.mxu0 0
      %2451 = vmatpush2.bf16.msra.mxu0 0
      %2452 = vmatprep.mubr.bf16.mxu0 0
      %2453 = vmatmul.mubr.bf16.gmra.mxu0 %v2415
      %v2454 = vpop.f32.mrf.mxu0
      %v2455 = vadd.f32 0.0, %v2454
      %v2456 = vpop.f32.mrf.mxu0
      %v2457 = vpop.f32.mrf.mxu0
      %v2458 = vpop.f32.mrf.mxu0
      %2459 = vdwg.mxu0
      %v2460 = vadd.f32 %v2379, %v2455
      %v2461 = vld [vmem:[%s11] sm:$0x1]
      %v2463 = vlaneseq
      %v2464 = vshrl.u32 %v2463, 7
      %v2465 = vsub.s32 0, %v2464
      %v2466 = vrot.slane %v2461, %v2465
      %v2468 = vadd.f32 %v2460, %v2466
      %v2469 = vmax.f32 %v2468, 0.0
      %v2471 = vrot.slane %v2469, 6
      %2472 = vrot.lane.b32.xlu0 %v2471, 96
      %v2473 = vpop.permute.xlu0 %2472
      %v2475 = vrot.slane %v2469, 4
      %2476 = vrot.lane.b32.xlu0 %v2475, 64
      %v2477 = vpop.permute.xlu0 %2476
      %vm2479 = vcmask 1041408
      %v2480 = vsel %vm2479, %v2469, %v2473
      %vm2481 = vcmask 1043456
      %v2482 = vsel %vm2481, %v2480, %v2477
      %v2483 = vpack.c.bf16 %v2482, %v2482
      %v2484 = vld [vmem:[%s13] sm:$0xf]
      %v2485 = vld [vmem:[%s13 + $0x4] sm:$0xf]
      %v2486 = vld [vmem:[%s13 + $0x8] sm:$0xf]
      %v2487 = vld [vmem:[%s13 + $0xc] sm:$0xf]
      %v2488 = vld [vmem:[%s15] sm:$0x1]
      %v2490 = vlaneseq
      %v2491 = vshrl.u32 %v2490, 7
      %v2492 = vsub.s32 0, %v2491
      %v2493 = vrot.slane %v2488, %v2492
      %v2499 = vunpack.c.l.b16 %v2484
      %v2500 = vunpack.c.l.b16 %v2485
      %v2501 = vunpack.c.l.b16 %v2486
      %v2502 = vunpack.c.l.b16 %v2487
      %v2503 = vpack.c.b16 %v2500, %v2499
      %v2504 = vpack.c.b16 %v2502, %v2501
      %vm2507 = vcmask 261120
      %v2509 = vsel %vm2507, %v2483, 0
      %2511 = vmatprep.subr.bf16.mxu0 0
      %2512 = vmatpush1.bf16.msra.mxu0 0
      %2513 = vmatprep.subr.bf16.mxu0 0
      %2514 = vmatpush1.bf16.msra.mxu0 0
      %2515 = vmatprep.subr.bf16.mxu0 0
      %2516 = vmatpush1.bf16.msra.mxu0 0
      %2517 = vmatprep.subr.bf16.mxu0 0
      %2518 = vmatpush1.bf16.msra.mxu0 0
      %2519 = vmatprep.subr.bf16.mxu0 0
      %2520 = vmatpush1.bf16.msra.mxu0 0
      %2521 = vmatprep.subr.bf16.mxu0 0
      %2522 = vmatpush1.bf16.msra.mxu0 0
      %2523 = vmatprep.subr.bf16.mxu0 0
      %2524 = vmatpush1.bf16.msra.mxu0 %v2504
      %2525 = vmatprep.subr.bf16.mxu0 0
      %2526 = vmatpush1.bf16.msra.mxu0 %v2503
      %2527 = vmatprep.subr.bf16.mxu0 0
      %2528 = vmatpush2.bf16.msra.mxu0 0
      %2529 = vmatprep.subr.bf16.mxu0 0
      %2530 = vmatpush2.bf16.msra.mxu0 0
      %2531 = vmatprep.subr.bf16.mxu0 0
      %2532 = vmatpush2.bf16.msra.mxu0 0
      %2533 = vmatprep.subr.bf16.mxu0 0
      %2534 = vmatpush2.bf16.msra.mxu0 0
      %2535 = vmatprep.subr.bf16.mxu0 0
      %2536 = vmatpush2.bf16.msra.mxu0 0
      %2537 = vmatprep.subr.bf16.mxu0 0
      %2538 = vmatpush2.bf16.msra.mxu0 0
      %2539 = vmatprep.subr.bf16.mxu0 0
      %2540 = vmatpush2.bf16.msra.mxu0 0
      %2541 = vmatprep.subr.bf16.mxu0 0
      %2542 = vmatpush2.bf16.msra.mxu0 0
      %2543 = vmatprep.mubr.bf16.mxu0 0
      %2544 = vmatmul.mubr.bf16.gmra.mxu0 %v2509
      %v2545 = vpop.f32.mrf.mxu0
      %v2546 = vadd.f32 %v2493, %v2545
      %v2547 = vpop.f32.mrf.mxu0
      %v2548 = vpop.f32.mrf.mxu0
      %v2549 = vpop.f32.mrf.mxu0
      %2550 = vdwg.mxu0
      %v2551 = vxor.u32 %v2546, 2147483648
      %v2552 = vmul.f32 %v2551, 1.442695
      %v2553 = vpow.pop %v2552
      %v2554 = vadd.f32 %v2553, 1.0
      %v2555 = vrcp.pop %v2554
      %v2556 = vmul.f32 1.0, %v2555
      %v2557 = vld [vmem:[%s17] sm:$0x1]
      %2559 = vset.pattern.permute.xlu0 0
      %2560 = vperm.xlu0 %2559, %v2556
      %v2561 = vpop.permute.xlu0 %2560
      %v2563 = vlaneseq
      %v2564 = vshrl.u32 %v2563, 7
      %v2565 = vsub.s32 0, %v2564
      %v2566 = vrot.slane %v2557, %v2565
      %v2567 = vmul.f32 %v2561, %v2566
      %v2568 = vadd.f32 %v2567, 0.0
      %v2569 = vld [vmem:[%s17 + $0x1] sm:$0x1]
      %2570 = vset.pattern.permute.xlu0 1
      %2571 = vperm.xlu0 %2570, %v2556
      %v2572 = vpop.permute.xlu0 %2571
      %v2574 = vlaneseq
      %v2575 = vshrl.u32 %v2574, 7
      %v2576 = vsub.s32 0, %v2575
      %v2577 = vrot.slane %v2569, %v2576
      %v2578 = vmul.f32 %v2572, %v2577
      %v2579 = vadd.f32 %v2568, %v2578
      %v2580 = vld [vmem:[%s17 + $0x2] sm:$0x1]
      %v2581 = vlaneseq
      %v2582 = vshrl.u32 %v2581, 7
      %v2583 = vsub.s32 0, %v2582
      %v2584 = vrot.slane %v2580, %v2583
      %v2585 = vmul.f32 %v2561, %v2584
      %v2587 = vrot.slane %v2585, 2
      %v2589 = vadd.f32 %v2579, %v2587
      %v2590 = vld [vmem:[%s17 + $0x3] sm:$0x1]
      %v2591 = vlaneseq
      %v2592 = vshrl.u32 %v2591, 7
      %v2593 = vsub.s32 0, %v2592
      %v2594 = vrot.slane %v2590, %v2593
      %v2595 = vmul.f32 %v2572, %v2594
      %v2597 = vrot.slane %v2595, 2
      %v2599 = vadd.f32 %v2589, %v2597
      %v2600 = vld [vmem:[%s17 + $0x4] sm:$0x1]
      %v2601 = vlaneseq
      %v2602 = vshrl.u32 %v2601, 7
      %v2603 = vsub.s32 0, %v2602
      %v2604 = vrot.slane %v2600, %v2603
      %v2605 = vmul.f32 %v2561, %v2604
      %v2607 = vrot.slane %v2605, 4
      %v2609 = vadd.f32 %v2599, %v2607
      %v2610 = vld [vmem:[%s17 + $0x5] sm:$0x1]
      %v2611 = vlaneseq
      %v2612 = vshrl.u32 %v2611, 7
      %v2613 = vsub.s32 0, %v2612
      %v2614 = vrot.slane %v2610, %v2613
      %v2615 = vmul.f32 %v2572, %v2614
      %v2617 = vrot.slane %v2615, 4
      %v2619 = vadd.f32 %v2609, %v2617
      %v2620 = vld [vmem:[%s43] sm:$0x1]
      %v2622 = vlaneseq
      %v2623 = vshrl.u32 %v2622, 7
      %v2624 = vsub.s32 0, %v2623
      %v2625 = vrot.slane %v2620, %v2624
      %v2627 = vmul.f32 %v2482, %v2625
      %vm2628 = vcmask 259072
      %v2629 = vsel %vm2628, %v2627, 0.0
      %2630 = vadd.xlane.f32.xlu0 %v2629
      %v2631 = vpop.xlane.xlu0 %2630
      %v2632 = vld [vmem:[%s45] sm:$0x1]
      %v2634 = vlaneseq
      %v2635 = vshrl.u32 %v2634, 7
      %v2636 = vsub.s32 0, %v2635
      %v2637 = vrot.slane %v2632, %v2636
      %v2639 = vadd.f32 %v2631, %v2637
      %v2640 = vtanh.pop %v2639
      %2642 = vrot.lane.b32.xlu0 %v2640, 1
      %v2643 = vpop.permute.xlu0 %2642
      %v2645 = vmul.f32 %v2637, %v2643
      %v2646 = vld [vmem:[%s17 + $0x6] sm:$0x1]
      %2648 = vset.pattern.permute.xlu0 1
      %2649 = vperm.xlu0 %2648, %v2645
      %v2650 = vpop.permute.xlu0 %2649
      %v2652 = vlaneseq
      %v2653 = vshrl.u32 %v2652, 7
      %v2654 = vsub.s32 0, %v2653
      %v2655 = vrot.slane %v2646, %v2654
      %v2656 = vmul.f32 %v2650, %v2655
      %v2657 = vadd.f32 %v2619, %v2656
      %v2658 = vld [vmem:[%s17 + $0x7] sm:$0x1]
      %v2659 = vlaneseq
      %v2660 = vshrl.u32 %v2659, 7
      %v2661 = vsub.s32 0, %v2660
      %v2662 = vrot.slane %v2658, %v2661
      %v2663 = vmul.f32 %v2650, %v2662
      %v2665 = vrot.slane %v2663, 2
      %v2667 = vadd.f32 %v2657, %v2665
      %v2668 = vld [vmem:[%s17 + $0x8] sm:$0x1]
      %v2669 = vlaneseq
      %v2670 = vshrl.u32 %v2669, 7
      %v2671 = vsub.s32 0, %v2670
      %v2672 = vrot.slane %v2668, %v2671
      %v2673 = vmul.f32 %v2650, %v2672
      %v2675 = vrot.slane %v2673, 4
      %v2677 = vadd.f32 %v2667, %v2675
      %v2678 = vld [vmem:[%s21] sm:$0x1]
      %v2679 = vld [vmem:[%s23] sm:$0x1]
      %v2681 = vrot.slane %v2483, 2
      %v2682 = vrot.slane %v2483, 7
      %v2685 = vsel %vm1212, %v2681, %v2682
      %v2686 = vld [vmem:[%s19] sm:$0xf]
      %v2687 = vld [vmem:[%s19 + $0x4] sm:$0xf]
      %v2688 = vld [vmem:[%s19 + $0x8] sm:$0xf]
      %v2689 = vld [vmem:[%s19 + $0xc] sm:$0xf]
      %s2690 = scalar_lea.vmem %s19, 32
      %v2691 = vld [vmem:[%s2690] sm:$0xf]
      %v2692 = vld [vmem:[%s2690 + $0x4] sm:$0xf]
      %v2693 = vld [vmem:[%s2690 + $0x8] sm:$0xf]
      %v2694 = vld [vmem:[%s2690 + $0xc] sm:$0xf]
      %v2699 = vunpack.c.l.b16 %v2691
      %v2700 = vunpack.c.l.b16 %v2692
      %v2701 = vunpack.c.l.b16 %v2693
      %v2702 = vunpack.c.l.b16 %v2694
      %v2703 = vpack.c.b16 %v2700, %v2699
      %v2704 = vpack.c.b16 %v2702, %v2701
      %2707 = vmatprep.subr.bf16.mxu0 0
      %2708 = vmatpush1.bf16.msra.mxu0 0
      %2709 = vmatprep.subr.bf16.mxu0 0
      %2710 = vmatpush1.bf16.msra.mxu0 0
      %2711 = vmatprep.subr.bf16.mxu0 0
      %2712 = vmatpush1.bf16.msra.mxu0 0
      %2713 = vmatprep.subr.bf16.mxu0 0
      %2714 = vmatpush1.bf16.msra.mxu0 0
      %2715 = vmatprep.subr.bf16.mxu0 0
      %2716 = vmatpush1.bf16.msra.mxu0 0
      %2717 = vmatprep.subr.bf16.mxu0 0
      %2718 = vmatpush1.bf16.msra.mxu0 0
      %2719 = vmatprep.subr.bf16.mxu0 0
      %2720 = vmatpush1.bf16.msra.mxu0 %v2704
      %2721 = vmatprep.subr.bf16.mxu0 0
      %2722 = vmatpush1.bf16.msra.mxu0 %v2703
      %2723 = vmatprep.subr.bf16.mxu0 0
      %2724 = vmatpush2.bf16.msra.mxu0 0
      %2725 = vmatprep.subr.bf16.mxu0 0
      %2726 = vmatpush2.bf16.msra.mxu0 0
      %2727 = vmatprep.subr.bf16.mxu0 0
      %2728 = vmatpush2.bf16.msra.mxu0 0
      %2729 = vmatprep.subr.bf16.mxu0 0
      %2730 = vmatpush2.bf16.msra.mxu0 0
      %2731 = vmatprep.subr.bf16.mxu0 0
      %2732 = vmatpush2.bf16.msra.mxu0 0
      %2733 = vmatprep.subr.bf16.mxu0 0
      %2734 = vmatpush2.bf16.msra.mxu0 0
      %2735 = vmatprep.subr.bf16.mxu0 0
      %2736 = vmatpush2.bf16.msra.mxu0 0
      %2737 = vmatprep.subr.bf16.mxu0 0
      %2738 = vmatpush2.bf16.msra.mxu0 0
      %2739 = vmatprep.mubr.bf16.mxu0 0
      %2740 = vmatmul.mubr.bf16.gmra.mxu0 %v2509
      %v2741 = vpop.f32.mrf.mxu0
      %v2742 = vadd.f32 0.0, %v2741
      %v2743 = vpop.f32.mrf.mxu0
      %v2744 = vpop.f32.mrf.mxu0
      %v2745 = vpop.f32.mrf.mxu0
      %2746 = vdwg.mxu0
      %v2751 = vunpack.c.l.b16 %v2686
      %v2752 = vunpack.c.l.b16 %v2687
      %v2753 = vunpack.c.l.b16 %v2688
      %v2754 = vunpack.c.l.b16 %v2689
      %v2755 = vpack.c.b16 %v2752, %v2751
      %v2756 = vpack.c.b16 %v2754, %v2753
      %v2759 = vsel %vm2507, %v2685, 0
      %2761 = vmatprep.subr.bf16.mxu0 0
      %2762 = vmatpush1.bf16.msra.mxu0 0
      %2763 = vmatprep.subr.bf16.mxu0 0
      %2764 = vmatpush1.bf16.msra.mxu0 0
      %2765 = vmatprep.subr.bf16.mxu0 0
      %2766 = vmatpush1.bf16.msra.mxu0 0
      %2767 = vmatprep.subr.bf16.mxu0 0
      %2768 = vmatpush1.bf16.msra.mxu0 0
      %2769 = vmatprep.subr.bf16.mxu0 0
      %2770 = vmatpush1.bf16.msra.mxu0 0
      %2771 = vmatprep.subr.bf16.mxu0 0
      %2772 = vmatpush1.bf16.msra.mxu0 0
      %2773 = vmatprep.subr.bf16.mxu0 0
      %2774 = vmatpush1.bf16.msra.mxu0 %v2756
      %2775 = vmatprep.subr.bf16.mxu0 0
      %2776 = vmatpush1.bf16.msra.mxu0 %v2755
      %2777 = vmatprep.subr.bf16.mxu0 0
      %2778 = vmatpush2.bf16.msra.mxu0 0
      %2779 = vmatprep.subr.bf16.mxu0 0
      %2780 = vmatpush2.bf16.msra.mxu0 0
      %2781 = vmatprep.subr.bf16.mxu0 0
      %2782 = vmatpush2.bf16.msra.mxu0 0
      %2783 = vmatprep.subr.bf16.mxu0 0
      %2784 = vmatpush2.bf16.msra.mxu0 0
      %2785 = vmatprep.subr.bf16.mxu0 0
      %2786 = vmatpush2.bf16.msra.mxu0 0
      %2787 = vmatprep.subr.bf16.mxu0 0
      %2788 = vmatpush2.bf16.msra.mxu0 0
      %2789 = vmatprep.subr.bf16.mxu0 0
      %2790 = vmatpush2.bf16.msra.mxu0 0
      %2791 = vmatprep.subr.bf16.mxu0 0
      %2792 = vmatpush2.bf16.msra.mxu0 0
      %2793 = vmatprep.mubr.bf16.mxu0 0
      %2794 = vmatmul.mubr.bf16.gmra.mxu0 %v2759
      %v2795 = vpop.f32.mrf.mxu0
      %v2796 = vadd.f32 %v2742, %v2795
      %v2797 = vpop.f32.mrf.mxu0
      %v2798 = vpop.f32.mrf.mxu0
      %v2799 = vpop.f32.mrf.mxu0
      %2800 = vdwg.mxu0
      %v2802 = vlaneseq
      %v2803 = vshrl.u32 %v2802, 7
      %v2804 = vsub.s32 0, %v2803
      %v2805 = vrot.slane %v2678, %v2804
      %v2807 = vmul.f32 %v2796, %v2805
      %v2809 = vlaneseq
      %v2810 = vshrl.u32 %v2809, 7
      %v2811 = vsub.s32 0, %v2810
      %v2812 = vrot.slane %v2679, %v2811
      %v2814 = vadd.f32 %v2807, %v2812
      %v2815 = vmax.f32 %v2814, 0.0
      %s2816 = scalar_lea.vmem %s19, 16
      %v2817 = vld [vmem:[%s2816] sm:$0xf]
      %v2818 = vld [vmem:[%s2816 + $0x4] sm:$0xf]
      %v2819 = vld [vmem:[%s2816 + $0x8] sm:$0xf]
      %v2820 = vld [vmem:[%s2816 + $0xc] sm:$0xf]
      %v2825 = vunpack.c.l.b16 %v2817
      %v2826 = vunpack.c.l.b16 %v2818
      %v2827 = vunpack.c.l.b16 %v2819
      %v2828 = vunpack.c.l.b16 %v2820
      %v2829 = vpack.c.b16 %v2826, %v2825
      %v2830 = vpack.c.b16 %v2828, %v2827
      %2833 = vmatprep.subr.bf16.mxu0 0
      %2834 = vmatpush1.bf16.msra.mxu0 0
      %2835 = vmatprep.subr.bf16.mxu0 0
      %2836 = vmatpush1.bf16.msra.mxu0 0
      %2837 = vmatprep.subr.bf16.mxu0 0
      %2838 = vmatpush1.bf16.msra.mxu0 0
      %2839 = vmatprep.subr.bf16.mxu0 0
      %2840 = vmatpush1.bf16.msra.mxu0 0
      %2841 = vmatprep.subr.bf16.mxu0 0
      %2842 = vmatpush1.bf16.msra.mxu0 0
      %2843 = vmatprep.subr.bf16.mxu0 0
      %2844 = vmatpush1.bf16.msra.mxu0 0
      %2845 = vmatprep.subr.bf16.mxu0 0
      %2846 = vmatpush1.bf16.msra.mxu0 %v2830
      %2847 = vmatprep.subr.bf16.mxu0 0
      %2848 = vmatpush1.bf16.msra.mxu0 %v2829
      %2849 = vmatprep.subr.bf16.mxu0 0
      %2850 = vmatpush2.bf16.msra.mxu0 0
      %2851 = vmatprep.subr.bf16.mxu0 0
      %2852 = vmatpush2.bf16.msra.mxu0 0
      %2853 = vmatprep.subr.bf16.mxu0 0
      %2854 = vmatpush2.bf16.msra.mxu0 0
      %2855 = vmatprep.subr.bf16.mxu0 0
      %2856 = vmatpush2.bf16.msra.mxu0 0
      %2857 = vmatprep.subr.bf16.mxu0 0
      %2858 = vmatpush2.bf16.msra.mxu0 0
      %2859 = vmatprep.subr.bf16.mxu0 0
      %2860 = vmatpush2.bf16.msra.mxu0 0
      %2861 = vmatprep.subr.bf16.mxu0 0
      %2862 = vmatpush2.bf16.msra.mxu0 0
      %2863 = vmatprep.subr.bf16.mxu0 0
      %2864 = vmatpush2.bf16.msra.mxu0 0
      %2865 = vmatprep.mubr.bf16.mxu0 0
      %2866 = vmatmul.mubr.bf16.gmra.mxu0 %v2509
      %v2867 = vpop.f32.mrf.mxu0
      %v2868 = vadd.f32 0.0, %v2867
      %v2869 = vpop.f32.mrf.mxu0
      %v2870 = vpop.f32.mrf.mxu0
      %v2871 = vpop.f32.mrf.mxu0
      %2872 = vdwg.mxu0
      %v2873 = vmul.f32 %v2868, %v2805
      %v2874 = vadd.f32 %v2873, %v2812
      %v2875 = vmax.f32 %v2874, 0.0
      %v2877 = vrot.slane %v2875, 6
      %v2880 = vrot.slane %v2815, 6
      %v2882 = vrot.slane %v2875, 4
      %v2884 = vrot.slane %v2815, 4
      %v2886 = vrot.slane %v2875, 2
      %v2888 = vsel %vm2479, %v2815, %v2877
      %v2889 = vsel %vm2481, %v2888, %v2880
      %vm2890 = vcmask 1045504
      %v2891 = vsel %vm2890, %v2889, %v2882
      %v2892 = vsel %vm2479, %v2884, %v2886
      %v2893 = vld [vmem:[%s47] sm:$0x1]
      %v2895 = vlaneseq
      %v2896 = vshrl.u32 %v2895, 7
      %v2897 = vsub.s32 0, %v2896
      %v2898 = vrot.slane %v2893, %v2897
      %v2900 = vmul.f32 %v2891, %v2898
      %v2901 = vmul.f32 %v2892, %v2898
      %vm2902 = vcmask 130048
      %v2903 = vsel %vm2902, %v2900, 0.0
      %2904 = vadd.xlane.f32.xlu0 %v2903
      %v2905 = vpop.xlane.xlu0 %2904
      %vm2906 = vcmask 125952
      %v2907 = vsel %vm2906, %v2901, 0.0
      %2908 = vadd.xlane.f32.xlu0 %v2907
      %v2909 = vpop.xlane.xlu0 %2908
      %v2910 = vld [vmem:[%s49] sm:$0x1]
      %v2912 = vlaneseq
      %v2913 = vshrl.u32 %v2912, 7
      %v2914 = vsub.s32 0, %v2913
      %v2915 = vrot.slane %v2910, %v2914
      %v2917 = vadd.f32 %v2905, %v2915
      %v2918 = vadd.f32 %v2909, %v2915
      %v2919 = vtanh.pop %v2917
      %v2920 = vtanh.pop %v2918
      %2923 = vrot.lane.b32.xlu0 %v2919, 1
      %v2924 = vpop.permute.xlu0 %2923
      %2925 = vrot.lane.b32.xlu0 %v2920, 1
      %v2926 = vpop.permute.xlu0 %2925
      %v2929 = vmul.f32 %v2915, %v2924
      %v2930 = vmul.f32 %v2915, %v2926
      %v2931 = vld [vmem:[%s17 + $0x9] sm:$0x1]
      %2933 = vset.pattern.permute.xlu0 1
      %2934 = vperm.xlu0 %2933, %v2929
      %v2935 = vpop.permute.xlu0 %2934
      %v2937 = vlaneseq
      %v2938 = vshrl.u32 %v2937, 7
      %v2939 = vsub.s32 0, %v2938
      %v2940 = vrot.slane %v2931, %v2939
      %v2941 = vmul.f32 %v2935, %v2940
      %v2942 = vadd.f32 %v2677, %v2941
      %v2943 = vld [vmem:[%s17 + $0xa] sm:$0x1]
      %v2944 = vlaneseq
      %v2945 = vshrl.u32 %v2944, 7
      %v2946 = vsub.s32 0, %v2945
      %v2947 = vrot.slane %v2943, %v2946
      %v2948 = vmul.f32 %v2935, %v2947
      %v2950 = vrot.slane %v2948, 2
      %v2952 = vadd.f32 %v2942, %v2950
      %v2953 = vld [vmem:[%s17 + $0xb] sm:$0x1]
      %v2954 = vlaneseq
      %v2955 = vshrl.u32 %v2954, 7
      %v2956 = vsub.s32 0, %v2955
      %v2957 = vrot.slane %v2953, %v2956
      %v2958 = vmul.f32 %v2935, %v2957
      %v2960 = vrot.slane %v2958, 4
      %v2962 = vadd.f32 %v2952, %v2960
      %v2963 = vld [vmem:[%s17 + $0xc] sm:$0x1]
      %v2964 = vlaneseq
      %v2965 = vshrl.u32 %v2964, 7
      %v2966 = vsub.s32 0, %v2965
      %v2967 = vrot.slane %v2963, %v2966
      %v2968 = vmul.f32 %v2935, %v2967
      %v2970 = vrot.slane %v2968, 6
      %v2972 = vadd.f32 %v2962, %v2970
      %v2973 = vld [vmem:[%s17 + $0xd] sm:$0x1]
      %2975 = vset.pattern.permute.xlu0 1
      %2976 = vperm.xlu0 %2975, %v2930
      %v2977 = vpop.permute.xlu0 %2976
      %v2979 = vlaneseq
      %v2980 = vshrl.u32 %v2979, 7
      %v2981 = vsub.s32 0, %v2980
      %v2982 = vrot.slane %v2973, %v2981
      %v2983 = vmul.f32 %v2977, %v2982
      %v2984 = vadd.f32 %v2972, %v2983
      %v2985 = vld [vmem:[%s17 + $0xe] sm:$0x1]
      %v2986 = vlaneseq
      %v2987 = vshrl.u32 %v2986, 7
      %v2988 = vsub.s32 0, %v2987
      %v2989 = vrot.slane %v2985, %v2988
      %v2990 = vmul.f32 %v2977, %v2989
      %v2992 = vrot.slane %v2990, 2
      %v2994 = vadd.f32 %v2984, %v2992
      %v2995 = vld [vmem:[%s27] sm:$0x1]
      %v2996 = vld [vmem:[%s29] sm:$0x1]
      %v2997 = vpack.c.bf16 %v2892, %v2891
      %v2999 = vrot.slane %v2997, 5
      %v3000 = vrot.slane %v2997, 7
      %v3003 = vsel %vm1212, %v2999, %v3000
      %v3004 = vld [vmem:[%s25] sm:$0xf]
      %v3005 = vld [vmem:[%s25 + $0x4] sm:$0xf]
      %s3006 = scalar_lea.vmem %s25, 16
      %v3007 = vld [vmem:[%s3006] sm:$0xf]
      %v3008 = vld [vmem:[%s3006 + $0x4] sm:$0xf]
      %v3011 = vunpack.c.l.b16 %v3007
      %v3012 = vunpack.c.l.b16 %v3008
      %v3013 = vpack.c.b16 %v3012, %v3011
      %v3016 = vsel %vm2902, %v2997, 0
      %3018 = vmatprep.subr.bf16.mxu0 0
      %3019 = vmatpush1.bf16.msra.mxu0 0
      %3020 = vmatprep.subr.bf16.mxu0 0
      %3021 = vmatpush1.bf16.msra.mxu0 0
      %3022 = vmatprep.subr.bf16.mxu0 0
      %3023 = vmatpush1.bf16.msra.mxu0 0
      %3024 = vmatprep.subr.bf16.mxu0 0
      %3025 = vmatpush1.bf16.msra.mxu0 0
      %3026 = vmatprep.subr.bf16.mxu0 0
      %3027 = vmatpush1.bf16.msra.mxu0 0
      %3028 = vmatprep.subr.bf16.mxu0 0
      %3029 = vmatpush1.bf16.msra.mxu0 0
      %3030 = vmatprep.subr.bf16.mxu0 0
      %3031 = vmatpush1.bf16.msra.mxu0 0
      %3032 = vmatprep.subr.bf16.mxu0 0
      %3033 = vmatpush1.bf16.msra.mxu0 %v3013
      %3034 = vmatprep.subr.bf16.mxu0 0
      %3035 = vmatpush2.bf16.msra.mxu0 0
      %3036 = vmatprep.subr.bf16.mxu0 0
      %3037 = vmatpush2.bf16.msra.mxu0 0
      %3038 = vmatprep.subr.bf16.mxu0 0
      %3039 = vmatpush2.bf16.msra.mxu0 0
      %3040 = vmatprep.subr.bf16.mxu0 0
      %3041 = vmatpush2.bf16.msra.mxu0 0
      %3042 = vmatprep.subr.bf16.mxu0 0
      %3043 = vmatpush2.bf16.msra.mxu0 0
      %3044 = vmatprep.subr.bf16.mxu0 0
      %3045 = vmatpush2.bf16.msra.mxu0 0
      %3046 = vmatprep.subr.bf16.mxu0 0
      %3047 = vmatpush2.bf16.msra.mxu0 0
      %3048 = vmatprep.subr.bf16.mxu0 0
      %3049 = vmatpush2.bf16.msra.mxu0 0
      %3050 = vmatprep.mubr.bf16.mxu0 0
      %3051 = vmatmul.mubr.bf16.gmra.mxu0 %v3016
      %v3052 = vpop.f32.mrf.mxu0
      %v3053 = vadd.f32 0.0, %v3052
      %v3054 = vpop.f32.mrf.mxu0
      %v3055 = vpop.f32.mrf.mxu0
      %v3056 = vadd.f32 0.0, %v3055
      %v3057 = vpop.f32.mrf.mxu0
      %3058 = vdwg.mxu0
      %v3061 = vunpack.c.l.b16 %v3004
      %v3062 = vunpack.c.l.b16 %v3005
      %v3063 = vpack.c.b16 %v3062, %v3061
      %v3065 = vsel %vm2902, %v3003, 0
      %3067 = vmatprep.subr.bf16.mxu0 0
      %3068 = vmatpush1.bf16.msra.mxu0 0
      %3069 = vmatprep.subr.bf16.mxu0 0
      %3070 = vmatpush1.bf16.msra.mxu0 0
      %3071 = vmatprep.subr.bf16.mxu0 0
      %3072 = vmatpush1.bf16.msra.mxu0 0
      %3073 = vmatprep.subr.bf16.mxu0 0
      %3074 = vmatpush1.bf16.msra.mxu0 0
      %3075 = vmatprep.subr.bf16.mxu0 0
      %3076 = vmatpush1.bf16.msra.mxu0 0
      %3077 = vmatprep.subr.bf16.mxu0 0
      %3078 = vmatpush1.bf16.msra.mxu0 0
      %3079 = vmatprep.subr.bf16.mxu0 0
      %3080 = vmatpush1.bf16.msra.mxu0 0
      %3081 = vmatprep.subr.bf16.mxu0 0
      %3082 = vmatpush1.bf16.msra.mxu0 %v3063
      %3083 = vmatprep.subr.bf16.mxu0 0
      %3084 = vmatpush2.bf16.msra.mxu0 0
      %3085 = vmatprep.subr.bf16.mxu0 0
      %3086 = vmatpush2.bf16.msra.mxu0 0
      %3087 = vmatprep.subr.bf16.mxu0 0
      %3088 = vmatpush2.bf16.msra.mxu0 0
      %3089 = vmatprep.subr.bf16.mxu0 0
      %3090 = vmatpush2.bf16.msra.mxu0 0
      %3091 = vmatprep.subr.bf16.mxu0 0
      %3092 = vmatpush2.bf16.msra.mxu0 0
      %3093 = vmatprep.subr.bf16.mxu0 0
      %3094 = vmatpush2.bf16.msra.mxu0 0
      %3095 = vmatprep.subr.bf16.mxu0 0
      %3096 = vmatpush2.bf16.msra.mxu0 0
      %3097 = vmatprep.subr.bf16.mxu0 0
      %3098 = vmatpush2.bf16.msra.mxu0 0
      %3099 = vmatprep.mubr.bf16.mxu0 0
      %3100 = vmatmul.mubr.bf16.gmra.mxu0 %v3065
      %v3101 = vpop.f32.mrf.mxu0
      %v3102 = vadd.f32 %v3053, %v3101
      %v3103 = vpop.f32.mrf.mxu0
      %v3104 = vpop.f32.mrf.mxu0
      %v3105 = vadd.f32 %v3056, %v3104
      %v3106 = vpop.f32.mrf.mxu0
      %3107 = vdwg.mxu0
      %v3109 = vlaneseq
      %v3110 = vshrl.u32 %v3109, 7
      %v3111 = vsub.s32 0, %v3110
      %v3112 = vrot.slane %v2995, %v3111
      %v3114 = vmul.f32 %v3102, %v3112
      %v3115 = vmul.f32 %v3105, %v3112
      %v3117 = vlaneseq
      %v3118 = vshrl.u32 %v3117, 7
      %v3119 = vsub.s32 0, %v3118
      %v3120 = vrot.slane %v2996, %v3119
      %v3122 = vadd.f32 %v3114, %v3120
      %v3123 = vadd.f32 %v3115, %v3120
      %v3124 = vmax.f32 %v3122, 0.0
      %v3125 = vmax.f32 %v3123, 0.0
      %s3126 = scalar_lea.vmem %s25, 8
      %v3127 = vld [vmem:[%s3126] sm:$0xf]
      %v3128 = vld [vmem:[%s3126 + $0x4] sm:$0xf]
      %v3131 = vunpack.c.l.b16 %v3127
      %v3132 = vunpack.c.l.b16 %v3128
      %v3133 = vpack.c.b16 %v3132, %v3131
      %3135 = vmatprep.subr.bf16.mxu0 0
      %3136 = vmatpush1.bf16.msra.mxu0 0
      %3137 = vmatprep.subr.bf16.mxu0 0
      %3138 = vmatpush1.bf16.msra.mxu0 0
      %3139 = vmatprep.subr.bf16.mxu0 0
      %3140 = vmatpush1.bf16.msra.mxu0 0
      %3141 = vmatprep.subr.bf16.mxu0 0
      %3142 = vmatpush1.bf16.msra.mxu0 0
      %3143 = vmatprep.subr.bf16.mxu0 0
      %3144 = vmatpush1.bf16.msra.mxu0 0
      %3145 = vmatprep.subr.bf16.mxu0 0
      %3146 = vmatpush1.bf16.msra.mxu0 0
      %3147 = vmatprep.subr.bf16.mxu0 0
      %3148 = vmatpush1.bf16.msra.mxu0 0
      %3149 = vmatprep.subr.bf16.mxu0 0
      %3150 = vmatpush1.bf16.msra.mxu0 %v3133
      %3151 = vmatprep.subr.bf16.mxu0 0
      %3152 = vmatpush2.bf16.msra.mxu0 0
      %3153 = vmatprep.subr.bf16.mxu0 0
      %3154 = vmatpush2.bf16.msra.mxu0 0
      %3155 = vmatprep.subr.bf16.mxu0 0
      %3156 = vmatpush2.bf16.msra.mxu0 0
      %3157 = vmatprep.subr.bf16.mxu0 0
      %3158 = vmatpush2.bf16.msra.mxu0 0
      %3159 = vmatprep.subr.bf16.mxu0 0
      %3160 = vmatpush2.bf16.msra.mxu0 0
      %3161 = vmatprep.subr.bf16.mxu0 0
      %3162 = vmatpush2.bf16.msra.mxu0 0
      %3163 = vmatprep.subr.bf16.mxu0 0
      %3164 = vmatpush2.bf16.msra.mxu0 0
      %3165 = vmatprep.subr.bf16.mxu0 0
      %3166 = vmatpush2.bf16.msra.mxu0 0
      %3167 = vmatprep.mubr.bf16.mxu0 0
      %3168 = vmatmul.mubr.bf16.gmra.mxu0 %v3016
      %v3169 = vpop.f32.mrf.mxu0
      %v3170 = vadd.f32 0.0, %v3169
      %v3171 = vpop.f32.mrf.mxu0
      %v3172 = vpop.f32.mrf.mxu0
      %v3173 = vadd.f32 0.0, %v3172
      %v3174 = vpop.f32.mrf.mxu0
      %3175 = vdwg.mxu0
      %v3176 = vmul.f32 %v3170, %v3112
      %v3177 = vmul.f32 %v3173, %v3112
      %v3178 = vadd.f32 %v3176, %v3120
      %v3179 = vadd.f32 %v3177, %v3120
      %v3180 = vmax.f32 %v3178, 0.0
      %v3181 = vmax.f32 %v3179, 0.0
      %v3183 = vrot.slane %v3180, 6
      %v3186 = vrot.slane %v3124, 6
      %v3188 = vrot.slane %v3180, 4
      %v3190 = vrot.slane %v3124, 4
      %v3192 = vrot.slane %v3180, 2
      %v3194 = vrot.slane %v3124, 2
      %v3197 = vrot.slane %v3181, 6
      %v3200 = vrot.slane %v3125, 6
      %v3202 = vrot.slane %v3181, 4
      %v3204 = vsel %vm2479, %v3124, %v3183
      %v3205 = vsel %vm2481, %v3204, %v3186
      %v3206 = vsel %vm2890, %v3205, %v3188
      %v3207 = vsel %vm2479, %v3190, %v3192
      %v3208 = vsel %vm2481, %v3207, %v3194
      %v3209 = vsel %vm2890, %v3208, %v3180
      %v3210 = vsel %vm2479, %v3125, %v3197
      %v3211 = vsel %vm2481, %v3210, %v3200
      %v3212 = vsel %vm2890, %v3211, %v3202
      %v3213 = vld [vmem:[%s51] sm:$0x1]
      %v3215 = vlaneseq
      %v3216 = vshrl.u32 %v3215, 7
      %v3217 = vsub.s32 0, %v3216
      %v3218 = vrot.slane %v3213, %v3217
      %v3220 = vmul.f32 %v3206, %v3218
      %v3221 = vmul.f32 %v3209, %v3218
      %v3222 = vmul.f32 %v3212, %v3218
      %vm3223 = vcmask 64512
      %v3224 = vsel %vm3223, %v3220, 0.0
      %3225 = vadd.xlane.f32.xlu0 %v3224
      %v3226 = vpop.xlane.xlu0 %3225
      %v3227 = vsel %vm3223, %v3221, 0.0
      %3228 = vadd.xlane.f32.xlu0 %v3227
      %v3229 = vpop.xlane.xlu0 %3228
      %v3230 = vsel %vm3223, %v3222, 0.0
      %3231 = vadd.xlane.f32.xlu0 %v3230
      %v3232 = vpop.xlane.xlu0 %3231
      %v3233 = vld [vmem:[%s53] sm:$0x1]
      %v3235 = vlaneseq
      %v3236 = vshrl.u32 %v3235, 7
      %v3237 = vsub.s32 0, %v3236
      %v3238 = vrot.slane %v3233, %v3237
      %v3240 = vadd.f32 %v3226, %v3238
      %v3241 = vadd.f32 %v3229, %v3238
      %v3242 = vadd.f32 %v3232, %v3238
      %v3243 = vtanh.pop %v3240
      %v3244 = vtanh.pop %v3241
      %v3245 = vtanh.pop %v3242
      %3249 = vrot.lane.b32.xlu0 %v3243, 1
      %v3250 = vpop.permute.xlu0 %3249
      %3251 = vrot.lane.b32.xlu0 %v3244, 1
      %v3252 = vpop.permute.xlu0 %3251
      %3253 = vrot.lane.b32.xlu0 %v3245, 1
      %v3254 = vpop.permute.xlu0 %3253
      %v3258 = vmul.f32 %v3238, %v3250
      %v3259 = vmul.f32 %v3238, %v3252
      %v3260 = vmul.f32 %v3238, %v3254
      %v3261 = vld [vmem:[%s17 + $0xf] sm:$0x1]
      %3263 = vset.pattern.permute.xlu0 1
      %3264 = vperm.xlu0 %3263, %v3258
      %v3265 = vpop.permute.xlu0 %3264
      %v3267 = vlaneseq
      %v3268 = vshrl.u32 %v3267, 7
      %v3269 = vsub.s32 0, %v3268
      %v3270 = vrot.slane %v3261, %v3269
      %v3271 = vmul.f32 %v3265, %v3270
      %v3272 = vadd.f32 %v2994, %v3271
      %v3273 = vld [vmem:[%s17 + $0x10] sm:$0x1]
      %v3274 = vlaneseq
      %v3275 = vshrl.u32 %v3274, 7
      %v3276 = vsub.s32 0, %v3275
      %v3277 = vrot.slane %v3273, %v3276
      %v3278 = vmul.f32 %v3265, %v3277
      %v3280 = vrot.slane %v3278, 2
      %v3282 = vadd.f32 %v3272, %v3280
      %v3283 = vld [vmem:[%s17 + $0x11] sm:$0x1]
      %v3284 = vlaneseq
      %v3285 = vshrl.u32 %v3284, 7
      %v3286 = vsub.s32 0, %v3285
      %v3287 = vrot.slane %v3283, %v3286
      %v3288 = vmul.f32 %v3265, %v3287
      %v3290 = vrot.slane %v3288, 4
      %v3292 = vadd.f32 %v3282, %v3290
      %v3293 = vld [vmem:[%s17 + $0x12] sm:$0x1]
      %v3294 = vlaneseq
      %v3295 = vshrl.u32 %v3294, 7
      %v3296 = vsub.s32 0, %v3295
      %v3297 = vrot.slane %v3293, %v3296
      %v3298 = vmul.f32 %v3265, %v3297
      %v3300 = vrot.slane %v3298, 6
      %v3302 = vadd.f32 %v3292, %v3300
      %v3303 = vld [vmem:[%s17 + $0x13] sm:$0x1]
      %3305 = vset.pattern.permute.xlu0 1
      %3306 = vperm.xlu0 %3305, %v3259
      %v3307 = vpop.permute.xlu0 %3306
      %v3309 = vlaneseq
      %v3310 = vshrl.u32 %v3309, 7
      %v3311 = vsub.s32 0, %v3310
      %v3312 = vrot.slane %v3303, %v3311
      %v3313 = vmul.f32 %v3307, %v3312
      %v3314 = vadd.f32 %v3302, %v3313
      %v3315 = vld [vmem:[%s17 + $0x14] sm:$0x1]
      %v3316 = vlaneseq
      %v3317 = vshrl.u32 %v3316, 7
      %v3318 = vsub.s32 0, %v3317
      %v3319 = vrot.slane %v3315, %v3318
      %v3320 = vmul.f32 %v3307, %v3319
      %v3322 = vrot.slane %v3320, 2
      %v3324 = vadd.f32 %v3314, %v3322
      %v3325 = vld [vmem:[%s17 + $0x15] sm:$0x1]
      %v3326 = vlaneseq
      %v3327 = vshrl.u32 %v3326, 7
      %v3328 = vsub.s32 0, %v3327
      %v3329 = vrot.slane %v3325, %v3328
      %v3330 = vmul.f32 %v3307, %v3329
      %v3332 = vrot.slane %v3330, 4
      %v3334 = vadd.f32 %v3324, %v3332
      %v3335 = vld [vmem:[%s17 + $0x16] sm:$0x1]
      %v3336 = vlaneseq
      %v3337 = vshrl.u32 %v3336, 7
      %v3338 = vsub.s32 0, %v3337
      %v3339 = vrot.slane %v3335, %v3338
      %v3340 = vmul.f32 %v3307, %v3339
      %v3342 = vrot.slane %v3340, 6
      %v3344 = vadd.f32 %v3334, %v3342
      %v3345 = vld [vmem:[%s17 + $0x17] sm:$0x1]
      %3347 = vset.pattern.permute.xlu0 1
      %3348 = vperm.xlu0 %3347, %v3260
      %v3349 = vpop.permute.xlu0 %3348
      %v3351 = vlaneseq
      %v3352 = vshrl.u32 %v3351, 7
      %v3353 = vsub.s32 0, %v3352
      %v3354 = vrot.slane %v3345, %v3353
      %v3355 = vmul.f32 %v3349, %v3354
      %v3356 = vadd.f32 %v3344, %v3355
      %v3357 = vld [vmem:[%s17 + $0x18] sm:$0x1]
      %v3358 = vlaneseq
      %v3359 = vshrl.u32 %v3358, 7
      %v3360 = vsub.s32 0, %v3359
      %v3361 = vrot.slane %v3357, %v3360
      %v3362 = vmul.f32 %v3349, %v3361
      %v3364 = vrot.slane %v3362, 2
      %v3366 = vadd.f32 %v3356, %v3364
      %v3367 = vld [vmem:[%s17 + $0x19] sm:$0x1]
      %v3368 = vlaneseq
      %v3369 = vshrl.u32 %v3368, 7
      %v3370 = vsub.s32 0, %v3369
      %v3371 = vrot.slane %v3367, %v3370
      %v3372 = vmul.f32 %v3349, %v3371
      %v3374 = vrot.slane %v3372, 4
      %v3376 = vadd.f32 %v3366, %v3374
      %v3377 = vld [vmem:[%s17 + $0x1a] sm:$0x1]
      %v3378 = vlaneseq
      %v3379 = vshrl.u32 %v3378, 7
      %v3380 = vsub.s32 0, %v3379
      %v3381 = vrot.slane %v3377, %v3380
      %v3382 = vmul.f32 %v3349, %v3381
      %v3384 = vrot.slane %v3382, 6
      %v3386 = vadd.f32 %v3376, %v3384
      %v3387 = vld [vmem:[%s33] sm:$0x1]
      %v3388 = vld [vmem:[%s35] sm:$0x1]
      %v3389 = vpack.c.bf16 %v3209, %v3206
      %v3390 = vpack.c.bf16 %v3212, %v3212
      %v3392 = vrot.slane %v3390, 3
      %v3394 = vrot.slane %v3389, 7
      %v3395 = vrot.slane %v3390, 7
      %v3396 = vsel %vm1163, %v3394, %v3395
      %v3399 = vsel %vm1212, %v3392, %v3394
      %v3400 = vld [vmem:[%s31] sm:$0xf]
      %s3401 = scalar_lea.vmem %s31, 8
      %v3402 = vld [vmem:[%s3401] sm:$0xf]
      %v3404 = vsel %vm3223, %v3389, 0
      %v3407 = vsel %vm3223, %v3390, 0
      %v3410 = vsel %vm2481, %v3402, 0
      %3412 = vmatprep.subr.bf16.mxu0 0
      %3413 = vmatpush1.bf16.msra.mxu0 0
      %3414 = vmatprep.subr.bf16.mxu0 0
      %3415 = vmatpush1.bf16.msra.mxu0 0
      %3416 = vmatprep.subr.bf16.mxu0 0
      %3417 = vmatpush1.bf16.msra.mxu0 0
      %3418 = vmatprep.subr.bf16.mxu0 0
      %3419 = vmatpush1.bf16.msra.mxu0 0
      %3420 = vmatprep.subr.bf16.mxu0 0
      %3421 = vmatpush1.bf16.msra.mxu0 0
      %3422 = vmatprep.subr.bf16.mxu0 0
      %3423 = vmatpush1.bf16.msra.mxu0 0
      %3424 = vmatprep.subr.bf16.mxu0 0
      %3425 = vmatpush1.bf16.msra.mxu0 0
      %3426 = vmatprep.subr.bf16.mxu0 0
      %3427 = vmatpush1.bf16.msra.mxu0 %v3410
      %3428 = vmatprep.subr.bf16.mxu0 0
      %3429 = vmatpush2.bf16.msra.mxu0 0
      %3430 = vmatprep.subr.bf16.mxu0 0
      %3431 = vmatpush2.bf16.msra.mxu0 0
      %3432 = vmatprep.subr.bf16.mxu0 0
      %3433 = vmatpush2.bf16.msra.mxu0 0
      %3434 = vmatprep.subr.bf16.mxu0 0
      %3435 = vmatpush2.bf16.msra.mxu0 0
      %3436 = vmatprep.subr.bf16.mxu0 0
      %3437 = vmatpush2.bf16.msra.mxu0 0
      %3438 = vmatprep.subr.bf16.mxu0 0
      %3439 = vmatpush2.bf16.msra.mxu0 0
      %3440 = vmatprep.subr.bf16.mxu0 0
      %3441 = vmatpush2.bf16.msra.mxu0 0
      %3442 = vmatprep.subr.bf16.mxu0 0
      %3443 = vmatpush2.bf16.msra.mxu0 0
      %3444 = vmatprep.mubr.bf16.mxu0 0
      %3445 = vmatmul.mubr.bf16.gmra.mxu0 %v3404
      %v3446 = vpop.f32.mrf.mxu0
      %v3447 = vadd.f32 0.0, %v3446
      %v3448 = vpop.f32.mrf.mxu0
      %v3449 = vpop.f32.mrf.mxu0
      %v3450 = vadd.f32 0.0, %v3449
      %v3451 = vpop.f32.mrf.mxu0
      %3452 = vmatprep.mubr.bf16.mxu0 0
      %3453 = vmatmul.mubr.bf16.gmra.mxu0 %v3407
      %v3454 = vpop.f32.mrf.mxu0
      %v3455 = vadd.f32 0.0, %v3454
      %v3456 = vpop.f32.mrf.mxu0
      %v3457 = vpop.f32.mrf.mxu0
      %v3458 = vpop.f32.mrf.mxu0
      %3459 = vdwg.mxu0
      %v3460 = vsel %vm3223, %v3399, 0
      %v3463 = vsel %vm3223, %v3396, 0
      %v3466 = vsel %vm2481, %v3400, 0
      %3468 = vmatprep.subr.bf16.mxu0 0
      %3469 = vmatpush1.bf16.msra.mxu0 0
      %3470 = vmatprep.subr.bf16.mxu0 0
      %3471 = vmatpush1.bf16.msra.mxu0 0
      %3472 = vmatprep.subr.bf16.mxu0 0
      %3473 = vmatpush1.bf16.msra.mxu0 0
      %3474 = vmatprep.subr.bf16.mxu0 0
      %3475 = vmatpush1.bf16.msra.mxu0 0
      %3476 = vmatprep.subr.bf16.mxu0 0
      %3477 = vmatpush1.bf16.msra.mxu0 0
      %3478 = vmatprep.subr.bf16.mxu0 0
      %3479 = vmatpush1.bf16.msra.mxu0 0
      %3480 = vmatprep.subr.bf16.mxu0 0
      %3481 = vmatpush1.bf16.msra.mxu0 0
      %3482 = vmatprep.subr.bf16.mxu0 0
      %3483 = vmatpush1.bf16.msra.mxu0 %v3466
      %3484 = vmatprep.subr.bf16.mxu0 0
      %3485 = vmatpush2.bf16.msra.mxu0 0
      %3486 = vmatprep.subr.bf16.mxu0 0
      %3487 = vmatpush2.bf16.msra.mxu0 0
      %3488 = vmatprep.subr.bf16.mxu0 0
      %3489 = vmatpush2.bf16.msra.mxu0 0
      %3490 = vmatprep.subr.bf16.mxu0 0
      %3491 = vmatpush2.bf16.msra.mxu0 0
      %3492 = vmatprep.subr.bf16.mxu0 0
      %3493 = vmatpush2.bf16.msra.mxu0 0
      %3494 = vmatprep.subr.bf16.mxu0 0
      %3495 = vmatpush2.bf16.msra.mxu0 0
      %3496 = vmatprep.subr.bf16.mxu0 0
      %3497 = vmatpush2.bf16.msra.mxu0 0
      %3498 = vmatprep.subr.bf16.mxu0 0
      %3499 = vmatpush2.bf16.msra.mxu0 0
      %3500 = vmatprep.mubr.bf16.mxu0 0
      %3501 = vmatmul.mubr.bf16.gmra.mxu0 %v3460
      %v3502 = vpop.f32.mrf.mxu0
      %v3503 = vadd.f32 %v3447, %v3502
      %v3504 = vpop.f32.mrf.mxu0
      %v3505 = vpop.f32.mrf.mxu0
      %v3506 = vadd.f32 %v3450, %v3505
      %v3507 = vpop.f32.mrf.mxu0
      %3508 = vmatprep.mubr.bf16.mxu0 0
      %3509 = vmatmul.mubr.bf16.gmra.mxu0 %v3463
      %v3510 = vpop.f32.mrf.mxu0
      %v3511 = vadd.f32 %v3455, %v3510
      %v3512 = vpop.f32.mrf.mxu0
      %v3513 = vpop.f32.mrf.mxu0
      %v3514 = vpop.f32.mrf.mxu0
      %3515 = vdwg.mxu0
      %v3517 = vlaneseq
      %v3518 = vshrl.u32 %v3517, 7
      %v3519 = vsub.s32 0, %v3518
      %v3520 = vrot.slane %v3387, %v3519
      %v3522 = vmul.f32 %v3503, %v3520
      %v3523 = vmul.f32 %v3506, %v3520
      %v3524 = vmul.f32 %v3511, %v3520
      %v3526 = vlaneseq
      %v3527 = vshrl.u32 %v3526, 7
      %v3528 = vsub.s32 0, %v3527
      %v3529 = vrot.slane %v3388, %v3528
      %v3531 = vadd.f32 %v3522, %v3529
      %v3532 = vadd.f32 %v3523, %v3529
      %v3533 = vadd.f32 %v3524, %v3529
      %v3534 = vmax.f32 %v3531, 0.0
      %v3535 = vmax.f32 %v3532, 0.0
      %v3536 = vmax.f32 %v3533, 0.0
      %s3537 = scalar_lea.vmem %s31, 4
      %v3538 = vld [vmem:[%s3537] sm:$0xf]
      %v3540 = vsel %vm2481, %v3538, 0
      %3542 = vmatprep.subr.bf16.mxu0 0
      %3543 = vmatpush1.bf16.msra.mxu0 0
      %3544 = vmatprep.subr.bf16.mxu0 0
      %3545 = vmatpush1.bf16.msra.mxu0 0
      %3546 = vmatprep.subr.bf16.mxu0 0
      %3547 = vmatpush1.bf16.msra.mxu0 0
      %3548 = vmatprep.subr.bf16.mxu0 0
      %3549 = vmatpush1.bf16.msra.mxu0 0
      %3550 = vmatprep.subr.bf16.mxu0 0
      %3551 = vmatpush1.bf16.msra.mxu0 0
      %3552 = vmatprep.subr.bf16.mxu0 0
      %3553 = vmatpush1.bf16.msra.mxu0 0
      %3554 = vmatprep.subr.bf16.mxu0 0
      %3555 = vmatpush1.bf16.msra.mxu0 0
      %3556 = vmatprep.subr.bf16.mxu0 0
      %3557 = vmatpush1.bf16.msra.mxu0 %v3540
      %3558 = vmatprep.subr.bf16.mxu0 0
      %3559 = vmatpush2.bf16.msra.mxu0 0
      %3560 = vmatprep.subr.bf16.mxu0 0
      %3561 = vmatpush2.bf16.msra.mxu0 0
      %3562 = vmatprep.subr.bf16.mxu0 0
      %3563 = vmatpush2.bf16.msra.mxu0 0
      %3564 = vmatprep.subr.bf16.mxu0 0
      %3565 = vmatpush2.bf16.msra.mxu0 0
      %3566 = vmatprep.subr.bf16.mxu0 0
      %3567 = vmatpush2.bf16.msra.mxu0 0
      %3568 = vmatprep.subr.bf16.mxu0 0
      %3569 = vmatpush2.bf16.msra.mxu0 0
      %3570 = vmatprep.subr.bf16.mxu0 0
      %3571 = vmatpush2.bf16.msra.mxu0 0
      %3572 = vmatprep.subr.bf16.mxu0 0
      %3573 = vmatpush2.bf16.msra.mxu0 0
      %3574 = vmatprep.mubr.bf16.mxu0 0
      %3575 = vmatmul.mubr.bf16.gmra.mxu0 %v3404
      %v3576 = vpop.f32.mrf.mxu0
      %v3577 = vadd.f32 0.0, %v3576
      %v3578 = vpop.f32.mrf.mxu0
      %v3579 = vpop.f32.mrf.mxu0
      %v3580 = vadd.f32 0.0, %v3579
      %v3581 = vpop.f32.mrf.mxu0
      %3582 = vmatprep.mubr.bf16.mxu0 0
      %3583 = vmatmul.mubr.bf16.gmra.mxu0 %v3407
      %v3584 = vpop.f32.mrf.mxu0
      %v3585 = vadd.f32 0.0, %v3584
      %v3586 = vpop.f32.mrf.mxu0
      %v3587 = vpop.f32.mrf.mxu0
      %v3588 = vpop.f32.mrf.mxu0
      %3589 = vdwg.mxu0
      %v3590 = vmul.f32 %v3577, %v3520
      %v3591 = vmul.f32 %v3580, %v3520
      %v3592 = vmul.f32 %v3585, %v3520
      %v3593 = vadd.f32 %v3590, %v3529
      %v3594 = vadd.f32 %v3591, %v3529
      %v3595 = vadd.f32 %v3592, %v3529
      %v3596 = vmax.f32 %v3593, 0.0
      %v3597 = vmax.f32 %v3594, 0.0
      %v3598 = vmax.f32 %v3595, 0.0
      %v3600 = vrot.slane %v3596, 6
      %v3603 = vrot.slane %v3534, 6
      %v3605 = vrot.slane %v3596, 4
      %v3607 = vrot.slane %v3534, 4
      %v3609 = vrot.slane %v3596, 2
      %v3611 = vrot.slane %v3534, 2
      %v3614 = vrot.slane %v3597, 6
      %v3617 = vrot.slane %v3535, 6
      %v3619 = vrot.slane %v3597, 4
      %v3621 = vrot.slane %v3535, 4
      %v3623 = vrot.slane %v3597, 2
      %v3625 = vrot.slane %v3535, 2
      %v3627 = vsel %vm2479, %v3534, %v3600
      %v3628 = vsel %vm2481, %v3627, %v3603
      %v3629 = vsel %vm2890, %v3628, %v3605
      %v3630 = vsel %vm2479, %v3607, %v3609
      %v3631 = vsel %vm2481, %v3630, %v3611
      %v3632 = vsel %vm2890, %v3631, %v3596
      %v3633 = vsel %vm2479, %v3535, %v3614
      %v3634 = vsel %vm2481, %v3633, %v3617
      %v3635 = vsel %vm2890, %v3634, %v3619
      %v3636 = vsel %vm2479, %v3621, %v3623
      %v3637 = vsel %vm2481, %v3636, %v3625
      %v3638 = vsel %vm2890, %v3637, %v3597
      %v3640 = vrot.slane %v3598, 6
      %v3643 = vrot.slane %v3536, 6
      %v3645 = vrot.slane %v3598, 4
      %v3647 = vrot.slane %v3536, 4
      %v3649 = vrot.slane %v3598, 2
      %v3651 = vrot.slane %v3536, 2
      %v3653 = vsel %vm2479, %v3536, %v3640
      %v3654 = vsel %vm2481, %v3653, %v3643
      %v3655 = vsel %vm2890, %v3654, %v3645
      %v3656 = vsel %vm2479, %v3647, %v3649
      %v3657 = vsel %vm2481, %v3656, %v3651
      %v3658 = vsel %vm2890, %v3657, %v3598
      %v3659 = vld [vmem:[%s55] sm:$0x1]
      %v3661 = vlaneseq
      %v3662 = vshrl.u32 %v3661, 7
      %v3663 = vsub.s32 0, %v3662
      %v3664 = vrot.slane %v3659, %v3663
      %v3666 = vmul.f32 %v3629, %v3664
      %v3667 = vmul.f32 %v3632, %v3664
      %v3668 = vmul.f32 %v3635, %v3664
      %v3669 = vmul.f32 %v3638, %v3664
      %v3670 = vmul.f32 %v3655, %v3664
      %v3671 = vmul.f32 %v3658, %v3664
      %vm3672 = vcmask 31744
      %v3673 = vsel %vm3672, %v3666, 0.0
      %3674 = vadd.xlane.f32.xlu0 %v3673
      %v3675 = vpop.xlane.xlu0 %3674
      %v3676 = vsel %vm3672, %v3667, 0.0
      %3677 = vadd.xlane.f32.xlu0 %v3676
      %v3678 = vpop.xlane.xlu0 %3677
      %v3679 = vsel %vm3672, %v3668, 0.0
      %3680 = vadd.xlane.f32.xlu0 %v3679
      %v3681 = vpop.xlane.xlu0 %3680
      %v3682 = vsel %vm3672, %v3669, 0.0
      %3683 = vadd.xlane.f32.xlu0 %v3682
      %v3684 = vpop.xlane.xlu0 %3683
      %v3685 = vsel %vm3672, %v3670, 0.0
      %3686 = vadd.xlane.f32.xlu0 %v3685
      %v3687 = vpop.xlane.xlu0 %3686
      %v3688 = vsel %vm3672, %v3671, 0.0
      %3689 = vadd.xlane.f32.xlu0 %v3688
      %v3690 = vpop.xlane.xlu0 %3689
      %v3691 = vld [vmem:[%s57] sm:$0x1]
      %v3693 = vlaneseq
      %v3694 = vshrl.u32 %v3693, 7
      %v3695 = vsub.s32 0, %v3694
      %v3696 = vrot.slane %v3691, %v3695
      %v3698 = vadd.f32 %v3675, %v3696
      %v3699 = vadd.f32 %v3678, %v3696
      %v3700 = vadd.f32 %v3681, %v3696
      %v3701 = vadd.f32 %v3684, %v3696
      %v3702 = vadd.f32 %v3687, %v3696
      %v3703 = vadd.f32 %v3690, %v3696
      %v3704 = vtanh.pop %v3698
      %v3705 = vtanh.pop %v3699
      %v3706 = vtanh.pop %v3700
      %v3707 = vtanh.pop %v3701
      %v3708 = vtanh.pop %v3702
      %v3709 = vtanh.pop %v3703
      %3716 = vrot.lane.b32.xlu0 %v3704, 1
      %v3717 = vpop.permute.xlu0 %3716
      %3718 = vrot.lane.b32.xlu0 %v3705, 1
      %v3719 = vpop.permute.xlu0 %3718
      %3720 = vrot.lane.b32.xlu0 %v3706, 1
      %v3721 = vpop.permute.xlu0 %3720
      %3722 = vrot.lane.b32.xlu0 %v3707, 1
      %v3723 = vpop.permute.xlu0 %3722
      %3724 = vrot.lane.b32.xlu0 %v3708, 1
      %v3725 = vpop.permute.xlu0 %3724
      %3726 = vrot.lane.b32.xlu0 %v3709, 1
      %v3727 = vpop.permute.xlu0 %3726
      %v3734 = vmul.f32 %v3696, %v3717
      %v3735 = vmul.f32 %v3696, %v3719
      %v3736 = vmul.f32 %v3696, %v3721
      %v3737 = vmul.f32 %v3696, %v3723
      %v3738 = vmul.f32 %v3696, %v3725
      %v3739 = vmul.f32 %v3696, %v3727
      %v3740 = vld [vmem:[%s17 + $0x1b] sm:$0x1]
      %3742 = vset.pattern.permute.xlu0 1
      %3743 = vperm.xlu0 %3742, %v3734
      %v3744 = vpop.permute.xlu0 %3743
      %v3746 = vlaneseq
      %v3747 = vshrl.u32 %v3746, 7
      %v3748 = vsub.s32 0, %v3747
      %v3749 = vrot.slane %v3740, %v3748
      %v3750 = vmul.f32 %v3744, %v3749
      %v3751 = vadd.f32 %v3386, %v3750
      %v3752 = vld [vmem:[%s17 + $0x1c] sm:$0x1]
      %v3753 = vlaneseq
      %v3754 = vshrl.u32 %v3753, 7
      %v3755 = vsub.s32 0, %v3754
      %v3756 = vrot.slane %v3752, %v3755
      %v3757 = vmul.f32 %v3744, %v3756
      %v3759 = vrot.slane %v3757, 2
      %v3761 = vadd.f32 %v3751, %v3759
      %v3762 = vld [vmem:[%s17 + $0x1d] sm:$0x1]
      %v3763 = vlaneseq
      %v3764 = vshrl.u32 %v3763, 7
      %v3765 = vsub.s32 0, %v3764
      %v3766 = vrot.slane %v3762, %v3765
      %v3767 = vmul.f32 %v3744, %v3766
      %v3769 = vrot.slane %v3767, 4
      %v3771 = vadd.f32 %v3761, %v3769
      %v3772 = vld [vmem:[%s17 + $0x1e] sm:$0x1]
      %v3773 = vlaneseq
      %v3774 = vshrl.u32 %v3773, 7
      %v3775 = vsub.s32 0, %v3774
      %v3776 = vrot.slane %v3772, %v3775
      %v3777 = vmul.f32 %v3744, %v3776
      %v3779 = vrot.slane %v3777, 6
      %v3781 = vadd.f32 %v3771, %v3779
      %v3782 = vld [vmem:[%s17 + $0x1f] sm:$0x1]
      %3784 = vset.pattern.permute.xlu0 1
      %3785 = vperm.xlu0 %3784, %v3735
      %v3786 = vpop.permute.xlu0 %3785
      %v3788 = vlaneseq
      %v3789 = vshrl.u32 %v3788, 7
      %v3790 = vsub.s32 0, %v3789
      %v3791 = vrot.slane %v3782, %v3790
      %v3792 = vmul.f32 %v3786, %v3791
      %v3793 = vadd.f32 %v3781, %v3792
      %v3794 = vld [vmem:[%s17 + $0x20] sm:$0x1]
      %v3795 = vlaneseq
      %v3796 = vshrl.u32 %v3795, 7
      %v3797 = vsub.s32 0, %v3796
      %v3798 = vrot.slane %v3794, %v3797
      %v3799 = vmul.f32 %v3786, %v3798
      %v3801 = vrot.slane %v3799, 2
      %v3803 = vadd.f32 %v3793, %v3801
      %v3804 = vld [vmem:[%s17 + $0x21] sm:$0x1]
      %v3805 = vlaneseq
      %v3806 = vshrl.u32 %v3805, 7
      %v3807 = vsub.s32 0, %v3806
      %v3808 = vrot.slane %v3804, %v3807
      %v3809 = vmul.f32 %v3786, %v3808
      %v3811 = vrot.slane %v3809, 4
      %v3813 = vadd.f32 %v3803, %v3811
      %v3814 = vld [vmem:[%s17 + $0x22] sm:$0x1]
      %v3815 = vlaneseq
      %v3816 = vshrl.u32 %v3815, 7
      %v3817 = vsub.s32 0, %v3816
      %v3818 = vrot.slane %v3814, %v3817
      %v3819 = vmul.f32 %v3786, %v3818
      %v3821 = vrot.slane %v3819, 6
      %v3823 = vadd.f32 %v3813, %v3821
      %v3824 = vld [vmem:[%s17 + $0x23] sm:$0x1]
      %3826 = vset.pattern.permute.xlu0 1
      %3827 = vperm.xlu0 %3826, %v3736
      %v3828 = vpop.permute.xlu0 %3827
      %v3830 = vlaneseq
      %v3831 = vshrl.u32 %v3830, 7
      %v3832 = vsub.s32 0, %v3831
      %v3833 = vrot.slane %v3824, %v3832
      %v3834 = vmul.f32 %v3828, %v3833
      %v3835 = vadd.f32 %v3823, %v3834
      %v3836 = vld [vmem:[%s17 + $0x24] sm:$0x1]
      %v3837 = vlaneseq
      %v3838 = vshrl.u32 %v3837, 7
      %v3839 = vsub.s32 0, %v3838
      %v3840 = vrot.slane %v3836, %v3839
      %v3841 = vmul.f32 %v3828, %v3840
      %v3843 = vrot.slane %v3841, 2
      %v3845 = vadd.f32 %v3835, %v3843
      %v3846 = vld [vmem:[%s17 + $0x25] sm:$0x1]
      %v3847 = vlaneseq
      %v3848 = vshrl.u32 %v3847, 7
      %v3849 = vsub.s32 0, %v3848
      %v3850 = vrot.slane %v3846, %v3849
      %v3851 = vmul.f32 %v3828, %v3850
      %v3853 = vrot.slane %v3851, 4
      %v3855 = vadd.f32 %v3845, %v3853
      %v3856 = vld [vmem:[%s17 + $0x26] sm:$0x1]
      %v3857 = vlaneseq
      %v3858 = vshrl.u32 %v3857, 7
      %v3859 = vsub.s32 0, %v3858
      %v3860 = vrot.slane %v3856, %v3859
      %v3861 = vmul.f32 %v3828, %v3860
      %v3863 = vrot.slane %v3861, 6
      %v3865 = vadd.f32 %v3855, %v3863
      %v3866 = vld [vmem:[%s17 + $0x27] sm:$0x1]
      %3868 = vset.pattern.permute.xlu0 1
      %3869 = vperm.xlu0 %3868, %v3737
      %v3870 = vpop.permute.xlu0 %3869
      %v3872 = vlaneseq
      %v3873 = vshrl.u32 %v3872, 7
      %v3874 = vsub.s32 0, %v3873
      %v3875 = vrot.slane %v3866, %v3874
      %v3876 = vmul.f32 %v3870, %v3875
      %v3877 = vadd.f32 %v3865, %v3876
      %v3878 = vld [vmem:[%s17 + $0x28] sm:$0x1]
      %v3879 = vlaneseq
      %v3880 = vshrl.u32 %v3879, 7
      %v3881 = vsub.s32 0, %v3880
      %v3882 = vrot.slane %v3878, %v3881
      %v3883 = vmul.f32 %v3870, %v3882
      %v3885 = vrot.slane %v3883, 2
      %v3887 = vadd.f32 %v3877, %v3885
      %v3888 = vld [vmem:[%s17 + $0x29] sm:$0x1]
      %v3889 = vlaneseq
      %v3890 = vshrl.u32 %v3889, 7
      %v3891 = vsub.s32 0, %v3890
      %v3892 = vrot.slane %v3888, %v3891
      %v3893 = vmul.f32 %v3870, %v3892
      %v3895 = vrot.slane %v3893, 4
      %v3897 = vadd.f32 %v3887, %v3895
      %v3898 = vld [vmem:[%s17 + $0x2a] sm:$0x1]
      %v3899 = vlaneseq
      %v3900 = vshrl.u32 %v3899, 7
      %v3901 = vsub.s32 0, %v3900
      %v3902 = vrot.slane %v3898, %v3901
      %v3903 = vmul.f32 %v3870, %v3902
      %v3905 = vrot.slane %v3903, 6
      %v3907 = vadd.f32 %v3897, %v3905
      %v3908 = vld [vmem:[%s17 + $0x2b] sm:$0x1]
      %3910 = vset.pattern.permute.xlu0 1
      %3911 = vperm.xlu0 %3910, %v3738
      %v3912 = vpop.permute.xlu0 %3911
      %v3914 = vlaneseq
      %v3915 = vshrl.u32 %v3914, 7
      %v3916 = vsub.s32 0, %v3915
      %v3917 = vrot.slane %v3908, %v3916
      %v3918 = vmul.f32 %v3912, %v3917
      %v3919 = vadd.f32 %v3907, %v3918
      %v3920 = vld [vmem:[%s17 + $0x2c] sm:$0x1]
      %v3921 = vlaneseq
      %v3922 = vshrl.u32 %v3921, 7
      %v3923 = vsub.s32 0, %v3922
      %v3924 = vrot.slane %v3920, %v3923
      %v3925 = vmul.f32 %v3912, %v3924
      %v3927 = vrot.slane %v3925, 2
      %v3929 = vadd.f32 %v3919, %v3927
      %v3930 = vld [vmem:[%s17 + $0x2d] sm:$0x1]
      %v3931 = vlaneseq
      %v3932 = vshrl.u32 %v3931, 7
      %v3933 = vsub.s32 0, %v3932
      %v3934 = vrot.slane %v3930, %v3933
      %v3935 = vmul.f32 %v3912, %v3934
      %v3937 = vrot.slane %v3935, 4
      %v3939 = vadd.f32 %v3929, %v3937
      %v3940 = vld [vmem:[%s17 + $0x2e] sm:$0x1]
      %v3941 = vlaneseq
      %v3942 = vshrl.u32 %v3941, 7
      %v3943 = vsub.s32 0, %v3942
      %v3944 = vrot.slane %v3940, %v3943
      %v3945 = vmul.f32 %v3912, %v3944
      %v3947 = vrot.slane %v3945, 6
      %v3949 = vadd.f32 %v3939, %v3947
      %v3950 = vld [vmem:[%s17 + $0x2f] sm:$0x1]
      %3952 = vset.pattern.permute.xlu0 1
      %3953 = vperm.xlu0 %3952, %v3739
      %v3954 = vpop.permute.xlu0 %3953
      %v3956 = vlaneseq
      %v3957 = vshrl.u32 %v3956, 7
      %v3958 = vsub.s32 0, %v3957
      %v3959 = vrot.slane %v3950, %v3958
      %v3960 = vmul.f32 %v3954, %v3959
      %v3961 = vadd.f32 %v3949, %v3960
      %v3962 = vld [vmem:[%s17 + $0x30] sm:$0x1]
      %v3963 = vlaneseq
      %v3964 = vshrl.u32 %v3963, 7
      %v3965 = vsub.s32 0, %v3964
      %v3966 = vrot.slane %v3962, %v3965
      %v3967 = vmul.f32 %v3954, %v3966
      %v3969 = vrot.slane %v3967, 2
      %v3971 = vadd.f32 %v3961, %v3969
      %v3972 = vld [vmem:[%s17 + $0x31] sm:$0x1]
      %v3973 = vlaneseq
      %v3974 = vshrl.u32 %v3973, 7
      %v3975 = vsub.s32 0, %v3974
      %v3976 = vrot.slane %v3972, %v3975
      %v3977 = vmul.f32 %v3954, %v3976
      %v3979 = vrot.slane %v3977, 4
      %v3981 = vadd.f32 %v3971, %v3979
      %v3982 = vld [vmem:[%s17 + $0x32] sm:$0x1]
      %v3983 = vlaneseq
      %v3984 = vshrl.u32 %v3983, 7
      %v3985 = vsub.s32 0, %v3984
      %v3986 = vrot.slane %v3982, %v3985
      %v3987 = vmul.f32 %v3954, %v3986
      %v3989 = vrot.slane %v3987, 6
      %v3991 = vadd.f32 %v3981, %v3989
      %v3992 = vld [vmem:[%s39] sm:$0x1]
      %v3993 = vld [vmem:[%s41] sm:$0x1]
      %v3994 = vpack.c.bf16 %v3632, %v3629
      %v3995 = vpack.c.bf16 %v3638, %v3635
      %v3996 = vpack.c.bf16 %v3658, %v3655
      %v3998 = vrot.slane %v3996, 7
      %v4001 = vrot.slane %v3994, 7
      %v4002 = vrot.slane %v3995, 7
      %v4003 = vsel %vm1163, %v4001, %v4002
      %v4004 = vsel %vm1163, %v4002, %v3998
      %v4007 = vsel %vm1212, %v3998, %v4001
      %v4008 = vld [vmem:[%s37] sm:$0x3]
      %s4009 = scalar_lea.vmem %s37, 4
      %v4010 = vld [vmem:[%s4009] sm:$0x3]
      %v4012 = vsel %vm3672, %v3994, 0
      %v4015 = vsel %vm3672, %v3995, 0
      %v4018 = vsel %vm3672, %v3996, 0
      %v4021 = vsel %vm2479, %v4010, 0
      %4023 = vmatprep.subr.bf16.mxu0 0
      %4024 = vmatpush1.bf16.msra.mxu0 0
      %4025 = vmatprep.subr.bf16.mxu0 0
      %4026 = vmatpush1.bf16.msra.mxu0 0
      %4027 = vmatprep.subr.bf16.mxu0 0
      %4028 = vmatpush1.bf16.msra.mxu0 0
      %4029 = vmatprep.subr.bf16.mxu0 0
      %4030 = vmatpush1.bf16.msra.mxu0 0
      %4031 = vmatprep.subr.bf16.mxu0 0
      %4032 = vmatpush1.bf16.msra.mxu0 0
      %4033 = vmatprep.subr.bf16.mxu0 0
      %4034 = vmatpush1.bf16.msra.mxu0 0
      %4035 = vmatprep.subr.bf16.mxu0 0
      %4036 = vmatpush1.bf16.msra.mxu0 0
      %4037 = vmatprep.subr.bf16.mxu0 0
      %4038 = vmatpush1.bf16.msra.mxu0 %v4021
      %4039 = vmatprep.subr.bf16.mxu0 0
      %4040 = vmatpush2.bf16.msra.mxu0 0
      %4041 = vmatprep.subr.bf16.mxu0 0
      %4042 = vmatpush2.bf16.msra.mxu0 0
      %4043 = vmatprep.subr.bf16.mxu0 0
      %4044 = vmatpush2.bf16.msra.mxu0 0
      %4045 = vmatprep.subr.bf16.mxu0 0
      %4046 = vmatpush2.bf16.msra.mxu0 0
      %4047 = vmatprep.subr.bf16.mxu0 0
      %4048 = vmatpush2.bf16.msra.mxu0 0
      %4049 = vmatprep.subr.bf16.mxu0 0
      %4050 = vmatpush2.bf16.msra.mxu0 0
      %4051 = vmatprep.subr.bf16.mxu0 0
      %4052 = vmatpush2.bf16.msra.mxu0 0
      %4053 = vmatprep.subr.bf16.mxu0 0
      %4054 = vmatpush2.bf16.msra.mxu0 0
      %4055 = vmatprep.mubr.bf16.mxu0 0
      %4056 = vmatmul.mubr.bf16.gmra.mxu0 %v4012
      %v4057 = vpop.f32.mrf.mxu0
      %v4058 = vadd.f32 0.0, %v4057
      %v4059 = vpop.f32.mrf.mxu0
      %v4060 = vpop.f32.mrf.mxu0
      %v4061 = vadd.f32 0.0, %v4060
      %v4062 = vpop.f32.mrf.mxu0
      %4063 = vmatprep.mubr.bf16.mxu0 0
      %4064 = vmatmul.mubr.bf16.gmra.mxu0 %v4015
      %v4065 = vpop.f32.mrf.mxu0
      %v4066 = vadd.f32 0.0, %v4065
      %v4067 = vpop.f32.mrf.mxu0
      %v4068 = vpop.f32.mrf.mxu0
      %v4069 = vadd.f32 0.0, %v4068
      %v4070 = vpop.f32.mrf.mxu0
      %4071 = vmatprep.mubr.bf16.mxu0 0
      %4072 = vmatmul.mubr.bf16.gmra.mxu0 %v4018
      %v4073 = vpop.f32.mrf.mxu0
      %v4074 = vadd.f32 0.0, %v4073
      %v4075 = vpop.f32.mrf.mxu0
      %v4076 = vpop.f32.mrf.mxu0
      %v4077 = vadd.f32 0.0, %v4076
      %v4078 = vpop.f32.mrf.mxu0
      %4079 = vdwg.mxu0
      %v4080 = vsel %vm3672, %v4007, 0
      %v4083 = vsel %vm3672, %v4003, 0
      %v4086 = vsel %vm3672, %v4004, 0
      %v4089 = vsel %vm2479, %v4008, 0
      %4091 = vmatprep.subr.bf16.mxu0 0
      %4092 = vmatpush1.bf16.msra.mxu0 0
      %4093 = vmatprep.subr.bf16.mxu0 0
      %4094 = vmatpush1.bf16.msra.mxu0 0
      %4095 = vmatprep.subr.bf16.mxu0 0
      %4096 = vmatpush1.bf16.msra.mxu0 0
      %4097 = vmatprep.subr.bf16.mxu0 0
      %4098 = vmatpush1.bf16.msra.mxu0 0
      %4099 = vmatprep.subr.bf16.mxu0 0
      %4100 = vmatpush1.bf16.msra.mxu0 0
      %4101 = vmatprep.subr.bf16.mxu0 0
      %4102 = vmatpush1.bf16.msra.mxu0 0
      %4103 = vmatprep.subr.bf16.mxu0 0
      %4104 = vmatpush1.bf16.msra.mxu0 0
      %4105 = vmatprep.subr.bf16.mxu0 0
      %4106 = vmatpush1.bf16.msra.mxu0 %v4089
      %4107 = vmatprep.subr.bf16.mxu0 0
      %4108 = vmatpush2.bf16.msra.mxu0 0
      %4109 = vmatprep.subr.bf16.mxu0 0
      %4110 = vmatpush2.bf16.msra.mxu0 0
      %4111 = vmatprep.subr.bf16.mxu0 0
      %4112 = vmatpush2.bf16.msra.mxu0 0
      %4113 = vmatprep.subr.bf16.mxu0 0
      %4114 = vmatpush2.bf16.msra.mxu0 0
      %4115 = vmatprep.subr.bf16.mxu0 0
      %4116 = vmatpush2.bf16.msra.mxu0 0
      %4117 = vmatprep.subr.bf16.mxu0 0
      %4118 = vmatpush2.bf16.msra.mxu0 0
      %4119 = vmatprep.subr.bf16.mxu0 0
      %4120 = vmatpush2.bf16.msra.mxu0 0
      %4121 = vmatprep.subr.bf16.mxu0 0
      %4122 = vmatpush2.bf16.msra.mxu0 0
      %4123 = vmatprep.mubr.bf16.mxu0 0
      %4124 = vmatmul.mubr.bf16.gmra.mxu0 %v4080
      %v4125 = vpop.f32.mrf.mxu0
      %v4126 = vadd.f32 %v4058, %v4125
      %v4127 = vpop.f32.mrf.mxu0
      %v4128 = vpop.f32.mrf.mxu0
      %v4129 = vadd.f32 %v4061, %v4128
      %v4130 = vpop.f32.mrf.mxu0
      %4131 = vmatprep.mubr.bf16.mxu0 0
      %4132 = vmatmul.mubr.bf16.gmra.mxu0 %v4083
      %v4133 = vpop.f32.mrf.mxu0
      %v4134 = vadd.f32 %v4066, %v4133
      %v4135 = vpop.f32.mrf.mxu0
      %v4136 = vpop.f32.mrf.mxu0
      %v4137 = vadd.f32 %v4069, %v4136
      %v4138 = vpop.f32.mrf.mxu0
      %4139 = vmatprep.mubr.bf16.mxu0 0
      %4140 = vmatmul.mubr.bf16.gmra.mxu0 %v4086
      %v4141 = vpop.f32.mrf.mxu0
      %v4142 = vadd.f32 %v4074, %v4141
      %v4143 = vpop.f32.mrf.mxu0
      %v4144 = vpop.f32.mrf.mxu0
      %v4145 = vadd.f32 %v4077, %v4144
      %v4146 = vpop.f32.mrf.mxu0
      %4147 = vdwg.mxu0
      %v4149 = vlaneseq
      %v4150 = vshrl.u32 %v4149, 7
      %v4151 = vsub.s32 0, %v4150
      %v4152 = vrot.slane %v3992, %v4151
      %v4154 = vmul.f32 %v4126, %v4152
      %v4155 = vmul.f32 %v4129, %v4152
      %v4156 = vmul.f32 %v4134, %v4152
      %v4157 = vmul.f32 %v4137, %v4152
      %v4158 = vmul.f32 %v4142, %v4152
      %v4159 = vmul.f32 %v4145, %v4152
      %v4161 = vlaneseq
      %v4162 = vshrl.u32 %v4161, 7
      %v4163 = vsub.s32 0, %v4162
      %v4164 = vrot.slane %v3993, %v4163
      %v4166 = vadd.f32 %v4154, %v4164
      %v4167 = vadd.f32 %v4155, %v4164
      %v4168 = vadd.f32 %v4156, %v4164
      %v4169 = vadd.f32 %v4157, %v4164
      %v4170 = vadd.f32 %v4158, %v4164
      %v4171 = vadd.f32 %v4159, %v4164
      %v4172 = vmax.f32 %v4166, 0.0
      %v4173 = vmax.f32 %v4167, 0.0
      %v4174 = vmax.f32 %v4168, 0.0
      %v4175 = vmax.f32 %v4169, 0.0
      %v4176 = vmax.f32 %v4170, 0.0
      %v4177 = vmax.f32 %v4171, 0.0
      %s4178 = scalar_lea.vmem %s37, 2
      %v4179 = vld [vmem:[%s4178] sm:$0x3]
      %v4181 = vsel %vm2479, %v4179, 0
      %4183 = vmatprep.subr.bf16.mxu0 0
      %4184 = vmatpush1.bf16.msra.mxu0 0
      %4185 = vmatprep.subr.bf16.mxu0 0
      %4186 = vmatpush1.bf16.msra.mxu0 0
      %4187 = vmatprep.subr.bf16.mxu0 0
      %4188 = vmatpush1.bf16.msra.mxu0 0
      %4189 = vmatprep.subr.bf16.mxu0 0
      %4190 = vmatpush1.bf16.msra.mxu0 0
      %4191 = vmatprep.subr.bf16.mxu0 0
      %4192 = vmatpush1.bf16.msra.mxu0 0
      %4193 = vmatprep.subr.bf16.mxu0 0
      %4194 = vmatpush1.bf16.msra.mxu0 0
      %4195 = vmatprep.subr.bf16.mxu0 0
      %4196 = vmatpush1.bf16.msra.mxu0 0
      %4197 = vmatprep.subr.bf16.mxu0 0
      %4198 = vmatpush1.bf16.msra.mxu0 %v4181
      %4199 = vmatprep.subr.bf16.mxu0 0
      %4200 = vmatpush2.bf16.msra.mxu0 0
      %4201 = vmatprep.subr.bf16.mxu0 0
      %4202 = vmatpush2.bf16.msra.mxu0 0
      %4203 = vmatprep.subr.bf16.mxu0 0
      %4204 = vmatpush2.bf16.msra.mxu0 0
      %4205 = vmatprep.subr.bf16.mxu0 0
      %4206 = vmatpush2.bf16.msra.mxu0 0
      %4207 = vmatprep.subr.bf16.mxu0 0
      %4208 = vmatpush2.bf16.msra.mxu0 0
      %4209 = vmatprep.subr.bf16.mxu0 0
      %4210 = vmatpush2.bf16.msra.mxu0 0
      %4211 = vmatprep.subr.bf16.mxu0 0
      %4212 = vmatpush2.bf16.msra.mxu0 0
      %4213 = vmatprep.subr.bf16.mxu0 0
      %4214 = vmatpush2.bf16.msra.mxu0 0
      %4215 = vmatprep.mubr.bf16.mxu0 0
      %4216 = vmatmul.mubr.bf16.gmra.mxu0 %v4012
      %v4217 = vpop.f32.mrf.mxu0
      %v4218 = vadd.f32 0.0, %v4217
      %v4219 = vpop.f32.mrf.mxu0
      %v4220 = vpop.f32.mrf.mxu0
      %v4221 = vadd.f32 0.0, %v4220
      %v4222 = vpop.f32.mrf.mxu0
      %4223 = vmatprep.mubr.bf16.mxu0 0
      %4224 = vmatmul.mubr.bf16.gmra.mxu0 %v4015
      %v4225 = vpop.f32.mrf.mxu0
      %v4226 = vadd.f32 0.0, %v4225
      %v4227 = vpop.f32.mrf.mxu0
      %v4228 = vpop.f32.mrf.mxu0
      %v4229 = vadd.f32 0.0, %v4228
      %v4230 = vpop.f32.mrf.mxu0
      %4231 = vmatprep.mubr.bf16.mxu0 0
      %4232 = vmatmul.mubr.bf16.gmra.mxu0 %v4018
      %v4233 = vpop.f32.mrf.mxu0
      %v4234 = vadd.f32 0.0, %v4233
      %v4235 = vpop.f32.mrf.mxu0
      %v4236 = vpop.f32.mrf.mxu0
      %v4237 = vadd.f32 0.0, %v4236
      %v4238 = vpop.f32.mrf.mxu0
      %4239 = vdwg.mxu0
      %v4240 = vmul.f32 %v4218, %v4152
      %v4241 = vmul.f32 %v4221, %v4152
      %v4242 = vmul.f32 %v4226, %v4152
      %v4243 = vmul.f32 %v4229, %v4152
      %v4244 = vmul.f32 %v4234, %v4152
      %v4245 = vmul.f32 %v4237, %v4152
      %v4246 = vadd.f32 %v4240, %v4164
      %v4247 = vadd.f32 %v4241, %v4164
      %v4248 = vadd.f32 %v4242, %v4164
      %v4249 = vadd.f32 %v4243, %v4164
      %v4250 = vadd.f32 %v4244, %v4164
      %v4251 = vadd.f32 %v4245, %v4164
      %v4252 = vmax.f32 %v4246, 0.0
      %v4253 = vmax.f32 %v4247, 0.0
      %v4254 = vmax.f32 %v4248, 0.0
      %v4255 = vmax.f32 %v4249, 0.0
      %v4256 = vmax.f32 %v4250, 0.0
      %v4257 = vmax.f32 %v4251, 0.0
      %v4259 = vrot.slane %v4252, 6
      %v4262 = vrot.slane %v4172, 6
      %v4264 = vrot.slane %v4252, 4
      %v4266 = vrot.slane %v4172, 4
      %v4268 = vrot.slane %v4252, 2
      %v4270 = vrot.slane %v4172, 2
      %v4273 = vrot.slane %v4253, 6
      %v4276 = vrot.slane %v4173, 6
      %v4278 = vrot.slane %v4253, 4
      %v4280 = vrot.slane %v4173, 4
      %v4282 = vrot.slane %v4253, 2
      %v4284 = vrot.slane %v4173, 2
      %v4286 = vsel %vm2479, %v4172, %v4259
      %v4287 = vsel %vm2481, %v4286, %v4262
      %v4288 = vsel %vm2890, %v4287, %v4264
      %v4289 = vsel %vm2479, %v4266, %v4268
      %v4290 = vsel %vm2481, %v4289, %v4270
      %v4291 = vsel %vm2890, %v4290, %v4252
      %v4292 = vsel %vm2479, %v4173, %v4273
      %v4293 = vsel %vm2481, %v4292, %v4276
      %v4294 = vsel %vm2890, %v4293, %v4278
      %v4295 = vsel %vm2479, %v4280, %v4282
      %v4296 = vsel %vm2481, %v4295, %v4284
      %v4297 = vsel %vm2890, %v4296, %v4253
      %v4299 = vrot.slane %v4254, 6
      %v4302 = vrot.slane %v4174, 6
      %v4304 = vrot.slane %v4254, 4
      %v4306 = vrot.slane %v4174, 4
      %v4308 = vrot.slane %v4254, 2
      %v4310 = vrot.slane %v4174, 2
      %v4313 = vrot.slane %v4255, 6
      %v4316 = vrot.slane %v4175, 6
      %v4318 = vrot.slane %v4255, 4
      %v4320 = vrot.slane %v4175, 4
      %v4322 = vrot.slane %v4255, 2
      %v4324 = vrot.slane %v4175, 2
      %v4326 = vsel %vm2479, %v4174, %v4299
      %v4327 = vsel %vm2481, %v4326, %v4302
      %v4328 = vsel %vm2890, %v4327, %v4304
      %v4329 = vsel %vm2479, %v4306, %v4308
      %v4330 = vsel %vm2481, %v4329, %v4310
      %v4331 = vsel %vm2890, %v4330, %v4254
      %v4332 = vsel %vm2479, %v4175, %v4313
      %v4333 = vsel %vm2481, %v4332, %v4316
      %v4334 = vsel %vm2890, %v4333, %v4318
      %v4335 = vsel %vm2479, %v4320, %v4322
      %v4336 = vsel %vm2481, %v4335, %v4324
      %v4337 = vsel %vm2890, %v4336, %v4255
      %v4339 = vrot.slane %v4256, 6
      %v4342 = vrot.slane %v4176, 6
      %v4344 = vrot.slane %v4256, 4
      %v4346 = vrot.slane %v4176, 4
      %v4348 = vrot.slane %v4256, 2
      %v4350 = vrot.slane %v4176, 2
      %v4353 = vrot.slane %v4257, 6
      %v4356 = vrot.slane %v4177, 6
      %v4358 = vrot.slane %v4257, 4
      %v4360 = vrot.slane %v4177, 4
      %v4362 = vrot.slane %v4257, 2
      %v4364 = vrot.slane %v4177, 2
      %v4366 = vsel %vm2479, %v4176, %v4339
      %v4367 = vsel %vm2481, %v4366, %v4342
      %v4368 = vsel %vm2890, %v4367, %v4344
      %v4369 = vsel %vm2479, %v4346, %v4348
      %v4370 = vsel %vm2481, %v4369, %v4350
      %v4371 = vsel %vm2890, %v4370, %v4256
      %v4372 = vsel %vm2479, %v4177, %v4353
      %v4373 = vsel %vm2481, %v4372, %v4356
      %v4374 = vsel %vm2890, %v4373, %v4358
      %v4375 = vsel %vm2479, %v4360, %v4362
      %v4376 = vsel %vm2481, %v4375, %v4364
      %v4377 = vsel %vm2890, %v4376, %v4257
      %v4378 = vld [vmem:[%s59] sm:$0x1]
      %v4380 = vlaneseq
      %v4381 = vshrl.u32 %v4380, 7
      %v4382 = vsub.s32 0, %v4381
      %v4383 = vrot.slane %v4378, %v4382
      %v4385 = vmul.f32 %v4288, %v4383
      %v4386 = vmul.f32 %v4291, %v4383
      %v4387 = vmul.f32 %v4294, %v4383
      %v4388 = vmul.f32 %v4297, %v4383
      %v4389 = vmul.f32 %v4328, %v4383
      %v4390 = vmul.f32 %v4331, %v4383
      %v4391 = vmul.f32 %v4334, %v4383
      %v4392 = vmul.f32 %v4337, %v4383
      %v4393 = vmul.f32 %v4368, %v4383
      %v4394 = vmul.f32 %v4371, %v4383
      %v4395 = vmul.f32 %v4374, %v4383
      %v4396 = vmul.f32 %v4377, %v4383
      %vm4397 = vcmask 15360
      %v4398 = vsel %vm4397, %v4385, 0.0
      %4399 = vadd.xlane.f32.xlu0 %v4398
      %v4400 = vpop.xlane.xlu0 %4399
      %v4401 = vsel %vm4397, %v4386, 0.0
      %4402 = vadd.xlane.f32.xlu0 %v4401
      %v4403 = vpop.xlane.xlu0 %4402
      %v4404 = vsel %vm4397, %v4387, 0.0
      %4405 = vadd.xlane.f32.xlu0 %v4404
      %v4406 = vpop.xlane.xlu0 %4405
      %v4407 = vsel %vm4397, %v4388, 0.0
      %4408 = vadd.xlane.f32.xlu0 %v4407
      %v4409 = vpop.xlane.xlu0 %4408
      %v4410 = vsel %vm4397, %v4389, 0.0
      %4411 = vadd.xlane.f32.xlu0 %v4410
      %v4412 = vpop.xlane.xlu0 %4411
      %v4413 = vsel %vm4397, %v4390, 0.0
      %4414 = vadd.xlane.f32.xlu0 %v4413
      %v4415 = vpop.xlane.xlu0 %4414
      %v4416 = vsel %vm4397, %v4391, 0.0
      %4417 = vadd.xlane.f32.xlu0 %v4416
      %v4418 = vpop.xlane.xlu0 %4417
      %v4419 = vsel %vm4397, %v4392, 0.0
      %4420 = vadd.xlane.f32.xlu0 %v4419
      %v4421 = vpop.xlane.xlu0 %4420
      %v4422 = vsel %vm4397, %v4393, 0.0
      %4423 = vadd.xlane.f32.xlu0 %v4422
      %v4424 = vpop.xlane.xlu0 %4423
      %v4425 = vsel %vm4397, %v4394, 0.0
      %4426 = vadd.xlane.f32.xlu0 %v4425
      %v4427 = vpop.xlane.xlu0 %4426
      %v4428 = vsel %vm4397, %v4395, 0.0
      %4429 = vadd.xlane.f32.xlu0 %v4428
      %v4430 = vpop.xlane.xlu0 %4429
      %v4431 = vsel %vm4397, %v4396, 0.0
      %4432 = vadd.xlane.f32.xlu0 %v4431
      %v4433 = vpop.xlane.xlu0 %4432
      %v4434 = vld [vmem:[%s61] sm:$0x1]
      %v4436 = vlaneseq
      %v4437 = vshrl.u32 %v4436, 7
      %v4438 = vsub.s32 0, %v4437
      %v4439 = vrot.slane %v4434, %v4438
      %v4441 = vadd.f32 %v4400, %v4439
      %v4442 = vadd.f32 %v4403, %v4439
      %v4443 = vadd.f32 %v4406, %v4439
      %v4444 = vadd.f32 %v4409, %v4439
      %v4445 = vadd.f32 %v4412, %v4439
      %v4446 = vadd.f32 %v4415, %v4439
      %v4447 = vadd.f32 %v4418, %v4439
      %v4448 = vadd.f32 %v4421, %v4439
      %v4449 = vadd.f32 %v4424, %v4439
      %v4450 = vadd.f32 %v4427, %v4439
      %v4451 = vadd.f32 %v4430, %v4439
      %v4452 = vadd.f32 %v4433, %v4439
      %v4453 = vtanh.pop %v4441
      %v4454 = vtanh.pop %v4442
      %v4455 = vtanh.pop %v4443
      %v4456 = vtanh.pop %v4444
      %v4457 = vtanh.pop %v4445
      %v4458 = vtanh.pop %v4446
      %v4459 = vtanh.pop %v4447
      %v4460 = vtanh.pop %v4448
      %v4461 = vtanh.pop %v4449
      %v4462 = vtanh.pop %v4450
      %v4463 = vtanh.pop %v4451
      %v4464 = vtanh.pop %v4452
      %4477 = vrot.lane.b32.xlu0 %v4453, 1
      %v4478 = vpop.permute.xlu0 %4477
      %4479 = vrot.lane.b32.xlu0 %v4454, 1
      %v4480 = vpop.permute.xlu0 %4479
      %4481 = vrot.lane.b32.xlu0 %v4455, 1
      %v4482 = vpop.permute.xlu0 %4481
      %4483 = vrot.lane.b32.xlu0 %v4456, 1
      %v4484 = vpop.permute.xlu0 %4483
      %4485 = vrot.lane.b32.xlu0 %v4457, 1
      %v4486 = vpop.permute.xlu0 %4485
      %4487 = vrot.lane.b32.xlu0 %v4458, 1
      %v4488 = vpop.permute.xlu0 %4487
      %4489 = vrot.lane.b32.xlu0 %v4459, 1
      %v4490 = vpop.permute.xlu0 %4489
      %4491 = vrot.lane.b32.xlu0 %v4460, 1
      %v4492 = vpop.permute.xlu0 %4491
      %4493 = vrot.lane.b32.xlu0 %v4461, 1
      %v4494 = vpop.permute.xlu0 %4493
      %4495 = vrot.lane.b32.xlu0 %v4462, 1
      %v4496 = vpop.permute.xlu0 %4495
      %4497 = vrot.lane.b32.xlu0 %v4463, 1
      %v4498 = vpop.permute.xlu0 %4497
      %4499 = vrot.lane.b32.xlu0 %v4464, 1
      %v4500 = vpop.permute.xlu0 %4499
      %v4513 = vmul.f32 %v4439, %v4478
      %v4514 = vmul.f32 %v4439, %v4480
      %v4515 = vmul.f32 %v4439, %v4482
      %v4516 = vmul.f32 %v4439, %v4484
      %v4517 = vmul.f32 %v4439, %v4486
      %v4518 = vmul.f32 %v4439, %v4488
      %v4519 = vmul.f32 %v4439, %v4490
      %v4520 = vmul.f32 %v4439, %v4492
      %v4521 = vmul.f32 %v4439, %v4494
      %v4522 = vmul.f32 %v4439, %v4496
      %v4523 = vmul.f32 %v4439, %v4498
      %v4524 = vmul.f32 %v4439, %v4500
      %v4525 = vld [vmem:[%s17 + $0x33] sm:$0x1]
      %4527 = vset.pattern.permute.xlu0 1
      %4528 = vperm.xlu0 %4527, %v4513
      %v4529 = vpop.permute.xlu0 %4528
      %v4531 = vlaneseq
      %v4532 = vshrl.u32 %v4531, 7
      %v4533 = vsub.s32 0, %v4532
      %v4534 = vrot.slane %v4525, %v4533
      %v4535 = vmul.f32 %v4529, %v4534
      %v4536 = vadd.f32 %v3991, %v4535
      %v4537 = vld [vmem:[%s17 + $0x34] sm:$0x1]
      %v4538 = vlaneseq
      %v4539 = vshrl.u32 %v4538, 7
      %v4540 = vsub.s32 0, %v4539
      %v4541 = vrot.slane %v4537, %v4540
      %v4542 = vmul.f32 %v4529, %v4541
      %v4544 = vrot.slane %v4542, 2
      %v4546 = vadd.f32 %v4536, %v4544
      %v4547 = vld [vmem:[%s17 + $0x35] sm:$0x1]
      %v4548 = vlaneseq
      %v4549 = vshrl.u32 %v4548, 7
      %v4550 = vsub.s32 0, %v4549
      %v4551 = vrot.slane %v4547, %v4550
      %v4552 = vmul.f32 %v4529, %v4551
      %v4554 = vrot.slane %v4552, 4
      %v4556 = vadd.f32 %v4546, %v4554
      %v4557 = vld [vmem:[%s17 + $0x36] sm:$0x1]
      %v4558 = vlaneseq
      %v4559 = vshrl.u32 %v4558, 7
      %v4560 = vsub.s32 0, %v4559
      %v4561 = vrot.slane %v4557, %v4560
      %v4562 = vmul.f32 %v4529, %v4561
      %v4564 = vrot.slane %v4562, 6
      %v4566 = vadd.f32 %v4556, %v4564
      %v4567 = vld [vmem:[%s17 + $0x37] sm:$0x1]
      %4569 = vset.pattern.permute.xlu0 1
      %4570 = vperm.xlu0 %4569, %v4514
      %v4571 = vpop.permute.xlu0 %4570
      %v4573 = vlaneseq
      %v4574 = vshrl.u32 %v4573, 7
      %v4575 = vsub.s32 0, %v4574
      %v4576 = vrot.slane %v4567, %v4575
      %v4577 = vmul.f32 %v4571, %v4576
      %v4578 = vadd.f32 %v4566, %v4577
      %v4579 = vld [vmem:[%s17 + $0x38] sm:$0x1]
      %v4580 = vlaneseq
      %v4581 = vshrl.u32 %v4580, 7
      %v4582 = vsub.s32 0, %v4581
      %v4583 = vrot.slane %v4579, %v4582
      %v4584 = vmul.f32 %v4571, %v4583
      %v4586 = vrot.slane %v4584, 2
      %v4588 = vadd.f32 %v4578, %v4586
      %v4589 = vld [vmem:[%s17 + $0x39] sm:$0x1]
      %v4590 = vlaneseq
      %v4591 = vshrl.u32 %v4590, 7
      %v4592 = vsub.s32 0, %v4591
      %v4593 = vrot.slane %v4589, %v4592
      %v4594 = vmul.f32 %v4571, %v4593
      %v4596 = vrot.slane %v4594, 4
      %v4598 = vadd.f32 %v4588, %v4596
      %v4599 = vld [vmem:[%s17 + $0x3a] sm:$0x1]
      %v4600 = vlaneseq
      %v4601 = vshrl.u32 %v4600, 7
      %v4602 = vsub.s32 0, %v4601
      %v4603 = vrot.slane %v4599, %v4602
      %v4604 = vmul.f32 %v4571, %v4603
      %v4606 = vrot.slane %v4604, 6
      %v4608 = vadd.f32 %v4598, %v4606
      %v4609 = vld [vmem:[%s17 + $0x3b] sm:$0x1]
      %4611 = vset.pattern.permute.xlu0 1
      %4612 = vperm.xlu0 %4611, %v4515
      %v4613 = vpop.permute.xlu0 %4612
      %v4615 = vlaneseq
      %v4616 = vshrl.u32 %v4615, 7
      %v4617 = vsub.s32 0, %v4616
      %v4618 = vrot.slane %v4609, %v4617
      %v4619 = vmul.f32 %v4613, %v4618
      %v4620 = vadd.f32 %v4608, %v4619
      %v4621 = vld [vmem:[%s17 + $0x3c] sm:$0x1]
      %v4622 = vlaneseq
      %v4623 = vshrl.u32 %v4622, 7
      %v4624 = vsub.s32 0, %v4623
      %v4625 = vrot.slane %v4621, %v4624
      %v4626 = vmul.f32 %v4613, %v4625
      %v4628 = vrot.slane %v4626, 2
      %v4630 = vadd.f32 %v4620, %v4628
      %v4631 = vld [vmem:[%s17 + $0x3d] sm:$0x1]
      %v4632 = vlaneseq
      %v4633 = vshrl.u32 %v4632, 7
      %v4634 = vsub.s32 0, %v4633
      %v4635 = vrot.slane %v4631, %v4634
      %v4636 = vmul.f32 %v4613, %v4635
      %v4638 = vrot.slane %v4636, 4
      %v4640 = vadd.f32 %v4630, %v4638
      %v4641 = vld [vmem:[%s17 + $0x3e] sm:$0x1]
      %v4642 = vlaneseq
      %v4643 = vshrl.u32 %v4642, 7
      %v4644 = vsub.s32 0, %v4643
      %v4645 = vrot.slane %v4641, %v4644
      %v4646 = vmul.f32 %v4613, %v4645
      %v4648 = vrot.slane %v4646, 6
      %v4650 = vadd.f32 %v4640, %v4648
      %v4651 = vld [vmem:[%s17 + $0x3f] sm:$0x1]
      %4653 = vset.pattern.permute.xlu0 1
      %4654 = vperm.xlu0 %4653, %v4516
      %v4655 = vpop.permute.xlu0 %4654
      %v4657 = vlaneseq
      %v4658 = vshrl.u32 %v4657, 7
      %v4659 = vsub.s32 0, %v4658
      %v4660 = vrot.slane %v4651, %v4659
      %v4661 = vmul.f32 %v4655, %v4660
      %v4662 = vadd.f32 %v4650, %v4661
      %v4663 = vld [vmem:[%s17 + $0x40] sm:$0x1]
      %v4664 = vlaneseq
      %v4665 = vshrl.u32 %v4664, 7
      %v4666 = vsub.s32 0, %v4665
      %v4667 = vrot.slane %v4663, %v4666
      %v4668 = vmul.f32 %v4655, %v4667
      %v4670 = vrot.slane %v4668, 2
      %v4672 = vadd.f32 %v4662, %v4670
      %v4673 = vld [vmem:[%s17 + $0x41] sm:$0x1]
      %v4674 = vlaneseq
      %v4675 = vshrl.u32 %v4674, 7
      %v4676 = vsub.s32 0, %v4675
      %v4677 = vrot.slane %v4673, %v4676
      %v4678 = vmul.f32 %v4655, %v4677
      %v4680 = vrot.slane %v4678, 4
      %v4682 = vadd.f32 %v4672, %v4680
      %v4683 = vld [vmem:[%s17 + $0x42] sm:$0x1]
      %v4684 = vlaneseq
      %v4685 = vshrl.u32 %v4684, 7
      %v4686 = vsub.s32 0, %v4685
      %v4687 = vrot.slane %v4683, %v4686
      %v4688 = vmul.f32 %v4655, %v4687
      %v4690 = vrot.slane %v4688, 6
      %v4692 = vadd.f32 %v4682, %v4690
      %v4693 = vld [vmem:[%s17 + $0x43] sm:$0x1]
      %4695 = vset.pattern.permute.xlu0 1
      %4696 = vperm.xlu0 %4695, %v4517
      %v4697 = vpop.permute.xlu0 %4696
      %v4699 = vlaneseq
      %v4700 = vshrl.u32 %v4699, 7
      %v4701 = vsub.s32 0, %v4700
      %v4702 = vrot.slane %v4693, %v4701
      %v4703 = vmul.f32 %v4697, %v4702
      %v4704 = vadd.f32 %v4692, %v4703
      %v4705 = vld [vmem:[%s17 + $0x44] sm:$0x1]
      %v4706 = vlaneseq
      %v4707 = vshrl.u32 %v4706, 7
      %v4708 = vsub.s32 0, %v4707
      %v4709 = vrot.slane %v4705, %v4708
      %v4710 = vmul.f32 %v4697, %v4709
      %v4712 = vrot.slane %v4710, 2
      %v4714 = vadd.f32 %v4704, %v4712
      %v4715 = vld [vmem:[%s17 + $0x45] sm:$0x1]
      %v4716 = vlaneseq
      %v4717 = vshrl.u32 %v4716, 7
      %v4718 = vsub.s32 0, %v4717
      %v4719 = vrot.slane %v4715, %v4718
      %v4720 = vmul.f32 %v4697, %v4719
      %v4722 = vrot.slane %v4720, 4
      %v4724 = vadd.f32 %v4714, %v4722
      %v4725 = vld [vmem:[%s17 + $0x46] sm:$0x1]
      %v4726 = vlaneseq
      %v4727 = vshrl.u32 %v4726, 7
      %v4728 = vsub.s32 0, %v4727
      %v4729 = vrot.slane %v4725, %v4728
      %v4730 = vmul.f32 %v4697, %v4729
      %v4732 = vrot.slane %v4730, 6
      %v4734 = vadd.f32 %v4724, %v4732
      %v4735 = vld [vmem:[%s17 + $0x47] sm:$0x1]
      %4737 = vset.pattern.permute.xlu0 1
      %4738 = vperm.xlu0 %4737, %v4518
      %v4739 = vpop.permute.xlu0 %4738
      %v4741 = vlaneseq
      %v4742 = vshrl.u32 %v4741, 7
      %v4743 = vsub.s32 0, %v4742
      %v4744 = vrot.slane %v4735, %v4743
      %v4745 = vmul.f32 %v4739, %v4744
      %v4746 = vadd.f32 %v4734, %v4745
      %v4747 = vld [vmem:[%s17 + $0x48] sm:$0x1]
      %v4748 = vlaneseq
      %v4749 = vshrl.u32 %v4748, 7
      %v4750 = vsub.s32 0, %v4749
      %v4751 = vrot.slane %v4747, %v4750
      %v4752 = vmul.f32 %v4739, %v4751
      %v4754 = vrot.slane %v4752, 2
      %v4756 = vadd.f32 %v4746, %v4754
      %v4757 = vld [vmem:[%s17 + $0x49] sm:$0x1]
      %v4758 = vlaneseq
      %v4759 = vshrl.u32 %v4758, 7
      %v4760 = vsub.s32 0, %v4759
      %v4761 = vrot.slane %v4757, %v4760
      %v4762 = vmul.f32 %v4739, %v4761
      %v4764 = vrot.slane %v4762, 4
      %v4766 = vadd.f32 %v4756, %v4764
      %v4767 = vld [vmem:[%s17 + $0x4a] sm:$0x1]
      %v4768 = vlaneseq
      %v4769 = vshrl.u32 %v4768, 7
      %v4770 = vsub.s32 0, %v4769
      %v4771 = vrot.slane %v4767, %v4770
      %v4772 = vmul.f32 %v4739, %v4771
      %v4774 = vrot.slane %v4772, 6
      %v4776 = vadd.f32 %v4766, %v4774
      %v4777 = vld [vmem:[%s17 + $0x4b] sm:$0x1]
      %4779 = vset.pattern.permute.xlu0 1
      %4780 = vperm.xlu0 %4779, %v4519
      %v4781 = vpop.permute.xlu0 %4780
      %v4783 = vlaneseq
      %v4784 = vshrl.u32 %v4783, 7
      %v4785 = vsub.s32 0, %v4784
      %v4786 = vrot.slane %v4777, %v4785
      %v4787 = vmul.f32 %v4781, %v4786
      %v4788 = vadd.f32 %v4776, %v4787
      %v4789 = vld [vmem:[%s17 + $0x4c] sm:$0x1]
      %v4790 = vlaneseq
      %v4791 = vshrl.u32 %v4790, 7
      %v4792 = vsub.s32 0, %v4791
      %v4793 = vrot.slane %v4789, %v4792
      %v4794 = vmul.f32 %v4781, %v4793
      %v4796 = vrot.slane %v4794, 2
      %v4798 = vadd.f32 %v4788, %v4796
      %v4799 = vld [vmem:[%s17 + $0x4d] sm:$0x1]
      %v4800 = vlaneseq
      %v4801 = vshrl.u32 %v4800, 7
      %v4802 = vsub.s32 0, %v4801
      %v4803 = vrot.slane %v4799, %v4802
      %v4804 = vmul.f32 %v4781, %v4803
      %v4806 = vrot.slane %v4804, 4
      %v4808 = vadd.f32 %v4798, %v4806
      %v4809 = vld [vmem:[%s17 + $0x4e] sm:$0x1]
      %v4810 = vlaneseq
      %v4811 = vshrl.u32 %v4810, 7
      %v4812 = vsub.s32 0, %v4811
      %v4813 = vrot.slane %v4809, %v4812
      %v4814 = vmul.f32 %v4781, %v4813
      %v4816 = vrot.slane %v4814, 6
      %v4818 = vadd.f32 %v4808, %v4816
      %v4819 = vld [vmem:[%s17 + $0x4f] sm:$0x1]
      %4821 = vset.pattern.permute.xlu0 1
      %4822 = vperm.xlu0 %4821, %v4520
      %v4823 = vpop.permute.xlu0 %4822
      %v4825 = vlaneseq
      %v4826 = vshrl.u32 %v4825, 7
      %v4827 = vsub.s32 0, %v4826
      %v4828 = vrot.slane %v4819, %v4827
      %v4829 = vmul.f32 %v4823, %v4828
      %v4830 = vadd.f32 %v4818, %v4829
      %v4831 = vld [vmem:[%s17 + $0x50] sm:$0x1]
      %v4832 = vlaneseq
      %v4833 = vshrl.u32 %v4832, 7
      %v4834 = vsub.s32 0, %v4833
      %v4835 = vrot.slane %v4831, %v4834
      %v4836 = vmul.f32 %v4823, %v4835
      %v4838 = vrot.slane %v4836, 2
      %v4840 = vadd.f32 %v4830, %v4838
      %v4841 = vld [vmem:[%s17 + $0x51] sm:$0x1]
      %v4842 = vlaneseq
      %v4843 = vshrl.u32 %v4842, 7
      %v4844 = vsub.s32 0, %v4843
      %v4845 = vrot.slane %v4841, %v4844
      %v4846 = vmul.f32 %v4823, %v4845
      %v4848 = vrot.slane %v4846, 4
      %v4850 = vadd.f32 %v4840, %v4848
      %v4851 = vld [vmem:[%s17 + $0x52] sm:$0x1]
      %v4852 = vlaneseq
      %v4853 = vshrl.u32 %v4852, 7
      %v4854 = vsub.s32 0, %v4853
      %v4855 = vrot.slane %v4851, %v4854
      %v4856 = vmul.f32 %v4823, %v4855
      %v4858 = vrot.slane %v4856, 6
      %v4860 = vadd.f32 %v4850, %v4858
      %v4861 = vld [vmem:[%s17 + $0x53] sm:$0x1]
      %4863 = vset.pattern.permute.xlu0 1
      %4864 = vperm.xlu0 %4863, %v4521
      %v4865 = vpop.permute.xlu0 %4864
      %v4867 = vlaneseq
      %v4868 = vshrl.u32 %v4867, 7
      %v4869 = vsub.s32 0, %v4868
      %v4870 = vrot.slane %v4861, %v4869
      %v4871 = vmul.f32 %v4865, %v4870
      %v4872 = vadd.f32 %v4860, %v4871
      %v4873 = vld [vmem:[%s17 + $0x54] sm:$0x1]
      %v4874 = vlaneseq
      %v4875 = vshrl.u32 %v4874, 7
      %v4876 = vsub.s32 0, %v4875
      %v4877 = vrot.slane %v4873, %v4876
      %v4878 = vmul.f32 %v4865, %v4877
      %v4880 = vrot.slane %v4878, 2
      %v4882 = vadd.f32 %v4872, %v4880
      %v4883 = vld [vmem:[%s17 + $0x55] sm:$0x1]
      %v4884 = vlaneseq
      %v4885 = vshrl.u32 %v4884, 7
      %v4886 = vsub.s32 0, %v4885
      %v4887 = vrot.slane %v4883, %v4886
      %v4888 = vmul.f32 %v4865, %v4887
      %v4890 = vrot.slane %v4888, 4
      %v4892 = vadd.f32 %v4882, %v4890
      %v4893 = vld [vmem:[%s17 + $0x56] sm:$0x1]
      %v4894 = vlaneseq
      %v4895 = vshrl.u32 %v4894, 7
      %v4896 = vsub.s32 0, %v4895
      %v4897 = vrot.slane %v4893, %v4896
      %v4898 = vmul.f32 %v4865, %v4897
      %v4900 = vrot.slane %v4898, 6
      %v4902 = vadd.f32 %v4892, %v4900
      %v4903 = vld [vmem:[%s17 + $0x57] sm:$0x1]
      %4905 = vset.pattern.permute.xlu0 1
      %4906 = vperm.xlu0 %4905, %v4522
      %v4907 = vpop.permute.xlu0 %4906
      %v4909 = vlaneseq
      %v4910 = vshrl.u32 %v4909, 7
      %v4911 = vsub.s32 0, %v4910
      %v4912 = vrot.slane %v4903, %v4911
      %v4913 = vmul.f32 %v4907, %v4912
      %v4914 = vadd.f32 %v4902, %v4913
      %v4915 = vld [vmem:[%s17 + $0x58] sm:$0x1]
      %v4916 = vlaneseq
      %v4917 = vshrl.u32 %v4916, 7
      %v4918 = vsub.s32 0, %v4917
      %v4919 = vrot.slane %v4915, %v4918
      %v4920 = vmul.f32 %v4907, %v4919
      %v4922 = vrot.slane %v4920, 2
      %v4924 = vadd.f32 %v4914, %v4922
      %v4925 = vld [vmem:[%s17 + $0x59] sm:$0x1]
      %v4926 = vlaneseq
      %v4927 = vshrl.u32 %v4926, 7
      %v4928 = vsub.s32 0, %v4927
      %v4929 = vrot.slane %v4925, %v4928
      %v4930 = vmul.f32 %v4907, %v4929
      %v4932 = vrot.slane %v4930, 4
      %v4934 = vadd.f32 %v4924, %v4932
      %v4935 = vld [vmem:[%s17 + $0x5a] sm:$0x1]
      %v4936 = vlaneseq
      %v4937 = vshrl.u32 %v4936, 7
      %v4938 = vsub.s32 0, %v4937
      %v4939 = vrot.slane %v4935, %v4938
      %v4940 = vmul.f32 %v4907, %v4939
      %v4942 = vrot.slane %v4940, 6
      %v4944 = vadd.f32 %v4934, %v4942
      %v4945 = vld [vmem:[%s17 + $0x5b] sm:$0x1]
      %4947 = vset.pattern.permute.xlu0 1
      %4948 = vperm.xlu0 %4947, %v4523
      %v4949 = vpop.permute.xlu0 %4948
      %v4951 = vlaneseq
      %v4952 = vshrl.u32 %v4951, 7
      %v4953 = vsub.s32 0, %v4952
      %v4954 = vrot.slane %v4945, %v4953
      %v4955 = vmul.f32 %v4949, %v4954
      %v4956 = vadd.f32 %v4944, %v4955
      %v4957 = vld [vmem:[%s17 + $0x5c] sm:$0x1]
      %v4958 = vlaneseq
      %v4959 = vshrl.u32 %v4958, 7
      %v4960 = vsub.s32 0, %v4959
      %v4961 = vrot.slane %v4957, %v4960
      %v4962 = vmul.f32 %v4949, %v4961
      %v4964 = vrot.slane %v4962, 2
      %v4966 = vadd.f32 %v4956, %v4964
      %v4967 = vld [vmem:[%s17 + $0x5d] sm:$0x1]
      %v4968 = vlaneseq
      %v4969 = vshrl.u32 %v4968, 7
      %v4970 = vsub.s32 0, %v4969
      %v4971 = vrot.slane %v4967, %v4970
      %v4972 = vmul.f32 %v4949, %v4971
      %v4974 = vrot.slane %v4972, 4
      %v4976 = vadd.f32 %v4966, %v4974
      %v4977 = vld [vmem:[%s17 + $0x5e] sm:$0x1]
      %v4978 = vlaneseq
      %v4979 = vshrl.u32 %v4978, 7
      %v4980 = vsub.s32 0, %v4979
      %v4981 = vrot.slane %v4977, %v4980
      %v4982 = vmul.f32 %v4949, %v4981
      %v4984 = vrot.slane %v4982, 6
      %v4986 = vadd.f32 %v4976, %v4984
      %v4987 = vld [vmem:[%s17 + $0x5f] sm:$0x1]
      %4989 = vset.pattern.permute.xlu0 1
      %4990 = vperm.xlu0 %4989, %v4524
      %v4991 = vpop.permute.xlu0 %4990
      %v4993 = vlaneseq
      %v4994 = vshrl.u32 %v4993, 7
      %v4995 = vsub.s32 0, %v4994
      %v4996 = vrot.slane %v4987, %v4995
      %v4997 = vmul.f32 %v4991, %v4996
      %v4998 = vadd.f32 %v4986, %v4997
      %v4999 = vld [vmem:[%s17 + $0x60] sm:$0x1]
      %v5000 = vlaneseq
      %v5001 = vshrl.u32 %v5000, 7
      %v5002 = vsub.s32 0, %v5001
      %v5003 = vrot.slane %v4999, %v5002
      %v5004 = vmul.f32 %v4991, %v5003
      %v5006 = vrot.slane %v5004, 2
      %v5008 = vadd.f32 %v4998, %v5006
      %v5009 = vld [vmem:[%s17 + $0x61] sm:$0x1]
      %v5010 = vlaneseq
      %v5011 = vshrl.u32 %v5010, 7
      %v5012 = vsub.s32 0, %v5011
      %v5013 = vrot.slane %v5009, %v5012
      %v5014 = vmul.f32 %v4991, %v5013
      %v5016 = vrot.slane %v5014, 4
      %v5018 = vadd.f32 %v5008, %v5016
      %v5019 = vld [vmem:[%s17 + $0x62] sm:$0x1]
      %v5020 = vlaneseq
      %v5021 = vshrl.u32 %v5020, 7
      %v5022 = vsub.s32 0, %v5021
      %v5023 = vrot.slane %v5019, %v5022
      %v5024 = vmul.f32 %v4991, %v5023
      %v5026 = vrot.slane %v5024, 6
      %v5028 = vadd.f32 %v5018, %v5026
      %5029 = vst [vmem:[%s961] sm:$0x3] %v5028
      %p5030 = scmp.lt.s32.totalorder %s74, 1
      %s5031 = scalar_select %p5030, %s74, 1
      %s5032 = smul.addr %s5031, 2
      %s5033 = scalar_lea.vmem %s63, %s5032
      // Predicated region
      $region145: #{polygon_net_forward.1} parent=143 // pred_check
        %p5034 = pneg %p748
      $region146: #{polygon_net_forward.1} parent=143 // pred_check_branch
        %5036 = sbr.rel (%p5034) target = $region148
      $region147: #{polygon_net_forward.1} parent=143 // pred_region
        _
      $region148: #{polygon_net_forward.1} parent=143 // pred_fallthru
        _
    $region144: #{polygon_net_forward.1} parent=5 // pred_fallthru
      _
    %p5037 = scmp.le.s32.totalorder 2, %s69
    // Predicated region
    $region149: #{polygon_net_forward.1} parent=5 // pred_check
      %p5038 = pneg %p5037
    $region150: #{polygon_net_forward.1} parent=5 // pred_check_branch
      %5040 = sbr.rel (%p5038) target = $region152
    $region151: #{polygon_net_forward.1} parent=5 // pred_region
      %s5041 = ssub.s32 %s69, 2
      // Predicated region
      $region153: #{polygon_net_forward.1} parent=151 // pred_check
        %p5042 = pneg %p754
      $region154: #{polygon_net_forward.1} parent=151 // pred_check_branch
        %5044 = sbr.rel (%p5042) target = $region156
      $region155: #{polygon_net_forward.1} parent=151 // pred_region
        %p5045 = scmp.lt.s32.totalorder %s75, 1
        %s5046 = scalar_select %p5045, %s75, 1
        %s5047 = smul.addr %s5046, 2
        %s5048 = scalar_lea.vmem %s63, %s5047
      $region156: #{polygon_net_forward.1} parent=151 // pred_fallthru
        _
    $region152: #{polygon_net_forward.1} parent=5 // pred_fallthru
      _
  $region6: #{polygon_net_forward.1} parent=0 // loop_footer
    %s73 = sadd.s32 1, %s69
  $region7: #{polygon_net_forward.1} parent=0 // loop_footer_branch
    %68 = sbr.rel target = $region3
  $region8: #{polygon_net_forward.1} parent=0 // loop_exit
    _

</llo_original>
